<compile_context>
chip_gen: v6e
topology: v6e:2x2x1
jax: 0.10.0
libtpu: 0.0.40
codegen_flags: <defaults>
</compile_context>

<pallas_src>
import functools
import math

import jax
import jax.numpy as jnp
from jax import lax
from jax.experimental import pallas as pl
from jax.experimental.pallas import tpu as pltpu

N_EMBD = 128
N_HEAD = 2
N_LAYERS = 2
LN_EPS = 1e-5
GELU_C = math.sqrt(2.0 / math.pi)


def _gelu_tanh(x):
    return 0.5 * x * (1.0 + jnp.tanh(GELU_C * (x + 0.044715 * x * x * x)))


def _layer_norm(x, w, b):
    mu = jnp.mean(x, axis=-1, keepdims=True)
    c = x - mu
    var = jnp.mean(c * c, axis=-1, keepdims=True)
    return c * lax.rsqrt(var + LN_EPS) * w + b


# ---------------------------------------------------------------------------
# Fused kernel: all blocks + final LayerNorm, one grid step = block_batch rows
# ---------------------------------------------------------------------------
def _fused_kernel(x_ref,
                  ln1w_ref, ln1b_ref, win_ref, bin_ref, wo_ref, bo_ref,
                  ln2w_ref, ln2b_ref, w1_ref, b1_ref, w2_ref, b2_ref,
                  lnfw_ref, lnfb_ref, o_ref, *, n_layers, n_head):
    blk_b, T, E = x_ref.shape
    M = blk_b * T
    D = E // n_head
    bf16 = jnp.bfloat16

    # Flatten to (M, E) so every dense matmul has a tall, lane-dense M.
    x = x_ref[...].reshape(M, E)                               # f32 activations

    for l in range(n_layers):                                  # static unroll
        # ---- LN1 + fused QKV projection (1/sqrt(D) folded into Q weights) ----
        ln1 = _layer_norm(x, ln1w_ref[l], ln1b_ref[l])
        qkv = jnp.dot(ln1.astype(bf16), win_ref[l],
                      preferred_element_type=jnp.float32) + bin_ref[l]

        # ---- multi-head attention, batched over the blk_b batch elements ----
        wo_l = wo_ref[l]                                       # (E, E) bf16
        attn = None
        for h in range(n_head):
            qh = qkv[:, h * D:(h + 1) * D].reshape(blk_b, T, D)
            kh = qkv[:, E + h * D:E + (h + 1) * D].reshape(blk_b, T, D)
            vh = qkv[:, 2 * E + h * D:2 * E + (h + 1) * D].reshape(blk_b, T, D)
            s = jnp.einsum("bqd,bkd->bqk", qh.astype(bf16), kh.astype(bf16),
                           preferred_element_type=jnp.float32)  # (blk_b, T, T)
            s = s - jnp.max(s, axis=-1, keepdims=True)
            p = jnp.exp(s)
            p = p * pl.reciprocal(jnp.sum(p, axis=-1, keepdims=True),
                                  approx=True)
            ctx = jnp.einsum("bqk,bkd->bqd", p.astype(bf16), vh.astype(bf16),
                             preferred_element_type=jnp.float32)
            # per-head out-projection accumulation (no lane-wise concat)
            part = jnp.dot(ctx.reshape(M, D).astype(bf16),
                           wo_l[h * D:(h + 1) * D, :],
                           preferred_element_type=jnp.float32)
            attn = part if attn is None else attn + part
        x = x + attn + bo_ref[l]                               # residual 1

        # ---- LN2 + MLP ----
        ln2 = _layer_norm(x, ln2w_ref[l], ln2b_ref[l])
        h1 = jnp.dot(ln2.astype(bf16), w1_ref[l],
                     preferred_element_type=jnp.float32) + b1_ref[l]
        h1 = _gelu_tanh(h1)
        mlp = jnp.dot(h1.astype(bf16), w2_ref[l],
                      preferred_element_type=jnp.float32) + b2_ref[l]
        x = x + mlp                                            # residual 2

    # ---- final LayerNorm (fused ln_f), single output store ----
    y = _layer_norm(x, lnfw_ref[...], lnfb_ref[...])
    o_ref[...] = y.reshape(blk_b, T, E)


# ---------------------------------------------------------------------------
# Wrapper: weight prep (layer stacking, scale fold, bf16 cast) + pallas_call
# ---------------------------------------------------------------------------
def _prep_weights(params, n_head):
    blocks = params["blocks"]
    E = blocks[0]["w_in"].shape[0]
    scale = 1.0 / math.sqrt(E // n_head)          # 0.125 — exact power of two

    def stack(name):
        return jnp.stack([blk[name] for blk in blocks], axis=0)

    w_in = stack("w_in")                          # (L, E, 3E)
    b_in = stack("b_in")                          # (L, 1, 3E)
    # Fold the attention scale into the Q part of the in-projection.
    w_in = w_in.at[:, :, :E].multiply(scale)
    b_in = b_in.at[:, :, :E].multiply(scale)

    f32, bf16 = jnp.float32, jnp.bfloat16
    return (
        stack("ln1_w").astype(f32), stack("ln1_b").astype(f32),
        w_in.astype(bf16), b_in.astype(f32),
        stack("w_out").astype(bf16), stack("b_out").astype(f32),
        stack("ln2_w").astype(f32), stack("ln2_b").astype(f32),
        stack("w1").astype(bf16), stack("b1").astype(f32),
        stack("w2").astype(bf16), stack("b2").astype(f32),
        params["ln_f_w"].astype(f32), params["ln_f_b"].astype(f32),
    )


def latent_transformer(x, params, *, n_head=N_HEAD, block_batch=None):
    """x: (B, T, n_embd) f32 patch representations -> (B, T, n_embd) f32."""
    B, T, E = x.shape
    n_layers = len(params["blocks"])
    weights = _prep_weights(params, n_head)

    if block_batch is None:
        # Keep >= 2 grid steps (v7x has 2 TensorCores) while making the
        # flattened matmul height block_batch*T land around 128-256 rows.
        block_batch = max(1, min(B // 2, max(1, 256 // T)))
        while B % block_batch:
            block_batch -= 1
    assert B % block_batch == 0

    def const_spec(a):
        return pl.BlockSpec(a.shape, lambda b, _n=a.ndim: (0,) * _n)

    in_specs = [pl.BlockSpec((block_batch, T, E), lambda b: (b, 0, 0))]
    in_specs += [const_spec(w) for w in weights]

    kernel = functools.partial(_fused_kernel, n_layers=n_layers, n_head=n_head)
    return pl.pallas_call(
        kernel,
        out_shape=jax.ShapeDtypeStruct((B, T, E), jnp.float32),
        grid=(B // block_batch,),
        in_specs=in_specs,
        out_specs=pl.BlockSpec((block_batch, T, E), lambda b: (b, 0, 0)),
        compiler_params=pltpu.CompilerParams(
            dimension_semantics=("parallel",),
            vmem_limit_bytes=32 << 20),
    )(x, *weights)


# ---------------------------------------------------------------------------
# Pure-JAX reference mirroring the PyTorch forward (eval mode) with the same
# numerics (bf16 matmul operands, f32 accumulation / LN / softmax / residuals)
# ---------------------------------------------------------------------------
def _mm(a, b):
    return jnp.dot(a.astype(jnp.bfloat16), b.astype(jnp.bfloat16),
                   preferred_element_type=jnp.float32)


def _block_ref(x, p, n_head):
    B, T, E = x.shape
    D = E // n_head
    scale = 1.0 / math.sqrt(D)
    ln1 = _layer_norm(x, p["ln1_w"], p["ln1_b"])
    qkv = _mm(ln1, p["w_in"]) + p["b_in"]
    q, k, v = qkv[..., :E], qkv[..., E:2 * E], qkv[..., 2 * E:]
    qh = q.reshape(B, T, n_head, D).transpose(0, 2, 1, 3) * scale
    kh = k.reshape(B, T, n_head, D).transpose(0, 2, 1, 3)
    vh = v.reshape(B, T, n_head, D).transpose(0, 2, 1, 3)
    s = jnp.einsum("bhqd,bhkd->bhqk", qh.astype(jnp.bfloat16),
                   kh.astype(jnp.bfloat16), preferred_element_type=jnp.float32)
    s = s - jnp.max(s, axis=-1, keepdims=True)
    a = jnp.exp(s)
    a = a / jnp.sum(a, axis=-1, keepdims=True)
    ctx = jnp.einsum("bhqk,bhkd->bhqd", a.astype(jnp.bfloat16),
                     vh.astype(jnp.bfloat16), preferred_element_type=jnp.float32)
    ctx = ctx.transpose(0, 2, 1, 3).reshape(B, T, E)
    x = x + _mm(ctx, p["w_out"]) + p["b_out"]
    ln2 = _layer_norm(x, p["ln2_w"], p["ln2_b"])
    m = _gelu_tanh(_mm(ln2, p["w1"]) + p["b1"])
    return x + _mm(m, p["w2"]) + p["b2"]


def _reference(x, params, n_head=N_HEAD):
    for p in params["blocks"]:
        x = _block_ref(x, p, n_head)
    return _layer_norm(x, params["ln_f_w"], params["ln_f_b"])


# ---------------------------------------------------------------------------
def init_params(key, n_layers, E, scale=0.05):
    H = 4 * E
    blocks = []
    for _ in range(n_layers):
        key, *ks = jax.random.split(key, 11)
        blocks.append(dict(
            ln1_w=1.0 + 0.1 * jax.random.normal(ks[0], (1, E), jnp.float32),
            ln1_b=0.1 * jax.random.normal(ks[1], (1, E), jnp.float32),
            w_in=scale * jax.random.normal(ks[2], (E, 3 * E), jnp.float32),
            b_in=scale * jax.random.normal(ks[3], (1, 3 * E), jnp.float32),
            w_out=scale * jax.random.normal(ks[4], (E, E), jnp.float32),
            b_out=scale * jax.random.normal(ks[5], (1, E), jnp.float32),
            ln2_w=1.0 + 0.1 * jax.random.normal(ks[6], (1, E), jnp.float32),
            ln2_b=0.1 * jax.random.normal(ks[7], (1, E), jnp.float32),
            w1=scale * jax.random.normal(ks[8], (E, H), jnp.float32),
            b1=scale * jax.random.normal(ks[9], (1, H), jnp.float32),
            w2=scale * jax.random.normal(key, (H, E), jnp.float32),
            b2=jnp.zeros((1, E), jnp.float32),
        ))
    key, k1, k2 = jax.random.split(key, 3)
    return dict(
        blocks=blocks,
        ln_f_w=1.0 + 0.1 * jax.random.normal(k1, (1, E), jnp.float32),
        ln_f_b=0.1 * jax.random.normal(k2, (1, E), jnp.float32),
    )


if __name__ == "__main__":
    B, T = 4, 64                      # 2 grid steps of a 128-row matmul tile
    key = jax.random.PRNGKey(0)
    kx, kp = jax.random.split(key)
    x = jax.random.normal(kx, (B, T, N_EMBD), jnp.float32)
    params = init_params(kp, N_LAYERS, N_EMBD)

    out = jax.block_until_ready(latent_transformer(x, params))
    ref = jax.block_until_ready(_reference(x, params))

    assert out.shape == (B, T, N_EMBD) and out.dtype == jnp.float32
    max_err = float(jnp.max(jnp.abs(out - ref)))
    # 5e-3 leaves headroom for the approximate softmax reciprocal and MXU vs
    # XLA accumulation-order differences; matmul rounding itself is matched
    # (the reference uses the same bf16 operands / f32 accumulation).
    assert jnp.allclose(out, ref, atol=5e-3, rtol=5e-3), f"max_err={max_err}"
    print("KERNEL_OK")
</pallas_src>

<mosaic_0001>
module attributes {stable_mosaic.version = 11 : i64} {
  func.func @_fused_kernel(%arg0: i32, %arg1: memref<2x64x128xf32, #tpu.memory_space<vmem>>, %arg2: memref<2x1x128xf32, #tpu.memory_space<vmem>>, %arg3: memref<2x1x128xf32, #tpu.memory_space<vmem>>, %arg4: memref<2x128x384xbf16, #tpu.memory_space<vmem>>, %arg5: memref<2x1x384xf32, #tpu.memory_space<vmem>>, %arg6: memref<2x128x128xbf16, #tpu.memory_space<vmem>>, %arg7: memref<2x1x128xf32, #tpu.memory_space<vmem>>, %arg8: memref<2x1x128xf32, #tpu.memory_space<vmem>>, %arg9: memref<2x1x128xf32, #tpu.memory_space<vmem>>, %arg10: memref<2x128x512xbf16, #tpu.memory_space<vmem>>, %arg11: memref<2x1x512xf32, #tpu.memory_space<vmem>>, %arg12: memref<2x512x128xbf16, #tpu.memory_space<vmem>>, %arg13: memref<2x1x128xf32, #tpu.memory_space<vmem>>, %arg14: memref<1x128xf32, #tpu.memory_space<vmem>>, %arg15: memref<1x128xf32, #tpu.memory_space<vmem>>, %arg16: memref<2x64x128xf32, #tpu.memory_space<vmem>>) attributes {dimension_semantics = [#tpu.dimension_semantics<parallel>], iteration_bounds = array<i64: 2>, scalar_prefetch = 0 : i64, scratch_operands = 0 : i64, tpu.core_type = #tpu.core_type<tc>, window_params = [{transform_indices = @transform_0, window_bounds = array<i64: 2, 64, 128>}, {pipeline_mode = #tpu.pipeline_mode<synchronous>, transform_indices = @transform_1, window_bounds = array<i64: 2, 1, 128>}, {pipeline_mode = #tpu.pipeline_mode<synchronous>, transform_indices = @transform_2, window_bounds = array<i64: 2, 1, 128>}, {pipeline_mode = #tpu.pipeline_mode<synchronous>, transform_indices = @transform_3, window_bounds = array<i64: 2, 128, 384>}, {pipeline_mode = #tpu.pipeline_mode<synchronous>, transform_indices = @transform_4, window_bounds = array<i64: 2, 1, 384>}, {pipeline_mode = #tpu.pipeline_mode<synchronous>, transform_indices = @transform_5, window_bounds = array<i64: 2, 128, 128>}, {pipeline_mode = #tpu.pipeline_mode<synchronous>, transform_indices = @transform_6, window_bounds = array<i64: 2, 1, 128>}, {pipeline_mode = #tpu.pipeline_mode<synchronous>, transform_indices = @transform_7, window_bounds = array<i64: 2, 1, 128>}, {pipeline_mode = #tpu.pipeline_mode<synchronous>, transform_indices = @transform_8, window_bounds = array<i64: 2, 1, 128>}, {pipeline_mode = #tpu.pipeline_mode<synchronous>, transform_indices = @transform_9, window_bounds = array<i64: 2, 128, 512>}, {pipeline_mode = #tpu.pipeline_mode<synchronous>, transform_indices = @transform_10, window_bounds = array<i64: 2, 1, 512>}, {pipeline_mode = #tpu.pipeline_mode<synchronous>, transform_indices = @transform_11, window_bounds = array<i64: 2, 512, 128>}, {pipeline_mode = #tpu.pipeline_mode<synchronous>, transform_indices = @transform_12, window_bounds = array<i64: 2, 1, 128>}, {pipeline_mode = #tpu.pipeline_mode<synchronous>, transform_indices = @transform_13, window_bounds = array<i64: 1, 128>}, {pipeline_mode = #tpu.pipeline_mode<synchronous>, transform_indices = @transform_14, window_bounds = array<i64: 1, 128>}, {transform_indices = @transform_15, window_bounds = array<i64: 2, 64, 128>}]} {
    %c0 = arith.constant 0 : index
    %c0_0 = arith.constant 0 : index
    %c0_1 = arith.constant 0 : index
    %0 = vector.load %arg1[%c0, %c0_0, %c0_1] : memref<2x64x128xf32, #tpu.memory_space<vmem>>, vector<2x64x128xf32>
    %1 = vector.shape_cast %0 : vector<2x64x128xf32> to vector<128x128xf32>
    %c0_2 = arith.constant 0 : index
    %c0_3 = arith.constant 0 : index
    %c0_4 = arith.constant 0 : index
    %2 = vector.load %arg2[%c0_2, %c0_3, %c0_4] : memref<2x1x128xf32, #tpu.memory_space<vmem>>, vector<1x1x128xf32>
    %3 = vector.shape_cast %2 : vector<1x1x128xf32> to vector<1x128xf32>
    %c0_5 = arith.constant 0 : index
    %c0_6 = arith.constant 0 : index
    %c0_7 = arith.constant 0 : index
    %4 = vector.load %arg3[%c0_5, %c0_6, %c0_7] : memref<2x1x128xf32, #tpu.memory_space<vmem>>, vector<1x1x128xf32>
    %5 = vector.shape_cast %4 : vector<1x1x128xf32> to vector<1x128xf32>
    %cst = arith.constant dense<0.000000e+00> : vector<128xf32>
    %6 = vector.multi_reduction <add>, %1, %cst [1] : vector<128x128xf32> to vector<128xf32>
    %7 = vector.shape_cast %6 : vector<128xf32> to vector<128x1xf32>
    %cst_8 = arith.constant 1.280000e+02 : f32
    %8 = vector.broadcast %cst_8 : f32 to vector<128x1xf32>
    %9 = arith.divf %7, %8 : vector<128x1xf32>
    %10 = vector.broadcast %9 : vector<128x1xf32> to vector<128x128xf32>
    %11 = arith.subf %1, %10 : vector<128x128xf32>
    %12 = arith.mulf %11, %11 : vector<128x128xf32>
    %cst_9 = arith.constant dense<0.000000e+00> : vector<128xf32>
    %13 = vector.multi_reduction <add>, %12, %cst_9 [1] : vector<128x128xf32> to vector<128xf32>
    %14 = vector.shape_cast %13 : vector<128xf32> to vector<128x1xf32>
    %cst_10 = arith.constant 1.280000e+02 : f32
    %15 = vector.broadcast %cst_10 : f32 to vector<128x1xf32>
    %16 = arith.divf %14, %15 : vector<128x1xf32>
    %cst_11 = arith.constant 9.99999974E-6 : f32
    %17 = vector.broadcast %cst_11 : f32 to vector<128x1xf32>
    %18 = arith.addf %16, %17 : vector<128x1xf32>
    %19 = math.rsqrt %18 : vector<128x1xf32>
    %20 = vector.broadcast %19 : vector<128x1xf32> to vector<128x128xf32>
    %21 = arith.mulf %11, %20 : vector<128x128xf32>
    %22 = vector.broadcast %3 : vector<1x128xf32> to vector<128x128xf32>
    %23 = arith.mulf %21, %22 : vector<128x128xf32>
    %24 = vector.broadcast %5 : vector<1x128xf32> to vector<128x128xf32>
    %25 = arith.addf %23, %24 : vector<128x128xf32>
    %26 = arith.truncf %25 : vector<128x128xf32> to vector<128x128xbf16>
    %c0_12 = arith.constant 0 : index
    %c0_13 = arith.constant 0 : index
    %c0_14 = arith.constant 0 : index
    %27 = vector.load %arg4[%c0_12, %c0_13, %c0_14] : memref<2x128x384xbf16, #tpu.memory_space<vmem>>, vector<1x128x384xbf16>
    %28 = vector.shape_cast %27 : vector<1x128x384xbf16> to vector<128x384xbf16>
    %cst_15 = arith.constant dense<0.000000e+00> : vector<128x384xf32>
    %29 = tpu.matmul %26, %28, %cst_15 {dimension_numbers = #tpu.dot_dimension_numbers<[1], [0], [0], [1], [0, 0, 1, 1], [], []>} : vector<128x128xbf16>, vector<128x384xbf16>, vector<128x384xf32> -> vector<128x384xf32>
    %c0_16 = arith.constant 0 : index
    %c0_17 = arith.constant 0 : index
    %c0_18 = arith.constant 0 : index
    %30 = vector.load %arg5[%c0_16, %c0_17, %c0_18] : memref<2x1x384xf32, #tpu.memory_space<vmem>>, vector<1x1x384xf32>
    %31 = vector.shape_cast %30 : vector<1x1x384xf32> to vector<1x384xf32>
    %32 = vector.broadcast %31 : vector<1x384xf32> to vector<128x384xf32>
    %33 = arith.addf %29, %32 : vector<128x384xf32>
    %c0_19 = arith.constant 0 : index
    %c0_20 = arith.constant 0 : index
    %c0_21 = arith.constant 0 : index
    %34 = vector.load %arg6[%c0_19, %c0_20, %c0_21] : memref<2x128x128xbf16, #tpu.memory_space<vmem>>, vector<1x128x128xbf16>
    %35 = vector.shape_cast %34 : vector<1x128x128xbf16> to vector<128x128xbf16>
    %36 = vector.extract_strided_slice %33 {offsets = [0, 0], sizes = [128, 64], strides = [1, 1]} : vector<128x384xf32> to vector<128x64xf32>
    %37 = vector.shape_cast %36 : vector<128x64xf32> to vector<2x64x64xf32>
    %38 = vector.extract_strided_slice %33 {offsets = [0, 128], sizes = [128, 64], strides = [1, 1]} : vector<128x384xf32> to vector<128x64xf32>
    %39 = vector.shape_cast %38 : vector<128x64xf32> to vector<2x64x64xf32>
    %40 = vector.extract_strided_slice %33 {offsets = [0, 256], sizes = [128, 64], strides = [1, 1]} : vector<128x384xf32> to vector<128x64xf32>
    %41 = vector.shape_cast %40 : vector<128x64xf32> to vector<2x64x64xf32>
    %42 = arith.truncf %37 : vector<2x64x64xf32> to vector<2x64x64xbf16>
    %43 = arith.truncf %39 : vector<2x64x64xf32> to vector<2x64x64xbf16>
    "tpu.trace_start"() <{level = 10 : i32, message = "bqd,bkd->bqk"}> : () -> ()
    %cst_22 = arith.constant dense<0.000000e+00> : vector<2x64x64xf32>
    %44 = tpu.matmul %42, %43, %cst_22 {dimension_numbers = #tpu.dot_dimension_numbers<[2], [2], [1], [1], [0, 0, 0, 1, 1, 1], [0], [0]>} : vector<2x64x64xbf16>, vector<2x64x64xbf16>, vector<2x64x64xf32> -> vector<2x64x64xf32>
    "tpu.trace_stop"() : () -> ()
    %cst_23 = arith.constant dense<0xFF800000> : vector<2x64xf32>
    %45 = vector.multi_reduction <maximumf>, %44, %cst_23 [2] : vector<2x64x64xf32> to vector<2x64xf32>
    %46 = vector.shape_cast %45 : vector<2x64xf32> to vector<2x64x1xf32>
    %47 = vector.broadcast %46 : vector<2x64x1xf32> to vector<2x64x64xf32>
    %48 = arith.subf %44, %47 : vector<2x64x64xf32>
    %49 = math.exp %48 : vector<2x64x64xf32>
    %cst_24 = arith.constant dense<0.000000e+00> : vector<2x64xf32>
    %50 = vector.multi_reduction <add>, %49, %cst_24 [2] : vector<2x64x64xf32> to vector<2x64xf32>
    %51 = vector.shape_cast %50 : vector<2x64xf32> to vector<2x64x1xf32>
    %52 = tpu.reciprocal %51 {approx = true} : vector<2x64x1xf32> -> vector<2x64x1xf32>
    %53 = vector.broadcast %52 : vector<2x64x1xf32> to vector<2x64x64xf32>
    %54 = arith.mulf %49, %53 : vector<2x64x64xf32>
    %55 = arith.truncf %54 : vector<2x64x64xf32> to vector<2x64x64xbf16>
    %56 = arith.truncf %41 : vector<2x64x64xf32> to vector<2x64x64xbf16>
    "tpu.trace_start"() <{level = 10 : i32, message = "bqk,bkd->bqd"}> : () -> ()
    %cst_25 = arith.constant dense<0.000000e+00> : vector<2x64x64xf32>
    %57 = tpu.matmul %55, %56, %cst_25 {dimension_numbers = #tpu.dot_dimension_numbers<[2], [1], [1], [2], [0, 0, 0, 1, 1, 2], [0], [0]>} : vector<2x64x64xbf16>, vector<2x64x64xbf16>, vector<2x64x64xf32> -> vector<2x64x64xf32>
    "tpu.trace_stop"() : () -> ()
    %58 = vector.shape_cast %57 : vector<2x64x64xf32> to vector<128x64xf32>
    %59 = arith.truncf %58 : vector<128x64xf32> to vector<128x64xbf16>
    %60 = vector.extract_strided_slice %35 {offsets = [0, 0], sizes = [64, 128], strides = [1, 1]} : vector<128x128xbf16> to vector<64x128xbf16>
    %cst_26 = arith.constant dense<0.000000e+00> : vector<128x128xf32>
    %61 = tpu.matmul %59, %60, %cst_26 {dimension_numbers = #tpu.dot_dimension_numbers<[1], [0], [0], [1], [0, 0, 1, 1], [], []>} : vector<128x64xbf16>, vector<64x128xbf16>, vector<128x128xf32> -> vector<128x128xf32>
    %62 = vector.extract_strided_slice %33 {offsets = [0, 64], sizes = [128, 64], strides = [1, 1]} : vector<128x384xf32> to vector<128x64xf32>
    %63 = vector.shape_cast %62 : vector<128x64xf32> to vector<2x64x64xf32>
    %64 = vector.extract_strided_slice %33 {offsets = [0, 192], sizes = [128, 64], strides = [1, 1]} : vector<128x384xf32> to vector<128x64xf32>
    %65 = vector.shape_cast %64 : vector<128x64xf32> to vector<2x64x64xf32>
    %66 = vector.extract_strided_slice %33 {offsets = [0, 320], sizes = [128, 64], strides = [1, 1]} : vector<128x384xf32> to vector<128x64xf32>
    %67 = vector.shape_cast %66 : vector<128x64xf32> to vector<2x64x64xf32>
    %68 = arith.truncf %63 : vector<2x64x64xf32> to vector<2x64x64xbf16>
    %69 = arith.truncf %65 : vector<2x64x64xf32> to vector<2x64x64xbf16>
    "tpu.trace_start"() <{level = 10 : i32, message = "bqd,bkd->bqk"}> : () -> ()
    %cst_27 = arith.constant dense<0.000000e+00> : vector<2x64x64xf32>
    %70 = tpu.matmul %68, %69, %cst_27 {dimension_numbers = #tpu.dot_dimension_numbers<[2], [2], [1], [1], [0, 0, 0, 1, 1, 1], [0], [0]>} : vector<2x64x64xbf16>, vector<2x64x64xbf16>, vector<2x64x64xf32> -> vector<2x64x64xf32>
    "tpu.trace_stop"() : () -> ()
    %cst_28 = arith.constant dense<0xFF800000> : vector<2x64xf32>
    %71 = vector.multi_reduction <maximumf>, %70, %cst_28 [2] : vector<2x64x64xf32> to vector<2x64xf32>
    %72 = vector.shape_cast %71 : vector<2x64xf32> to vector<2x64x1xf32>
    %73 = vector.broadcast %72 : vector<2x64x1xf32> to vector<2x64x64xf32>
    %74 = arith.subf %70, %73 : vector<2x64x64xf32>
    %75 = math.exp %74 : vector<2x64x64xf32>
    %cst_29 = arith.constant dense<0.000000e+00> : vector<2x64xf32>
    %76 = vector.multi_reduction <add>, %75, %cst_29 [2] : vector<2x64x64xf32> to vector<2x64xf32>
    %77 = vector.shape_cast %76 : vector<2x64xf32> to vector<2x64x1xf32>
    %78 = tpu.reciprocal %77 {approx = true} : vector<2x64x1xf32> -> vector<2x64x1xf32>
    %79 = vector.broadcast %78 : vector<2x64x1xf32> to vector<2x64x64xf32>
    %80 = arith.mulf %75, %79 : vector<2x64x64xf32>
    %81 = arith.truncf %80 : vector<2x64x64xf32> to vector<2x64x64xbf16>
    %82 = arith.truncf %67 : vector<2x64x64xf32> to vector<2x64x64xbf16>
    "tpu.trace_start"() <{level = 10 : i32, message = "bqk,bkd->bqd"}> : () -> ()
    %cst_30 = arith.constant dense<0.000000e+00> : vector<2x64x64xf32>
    %83 = tpu.matmul %81, %82, %cst_30 {dimension_numbers = #tpu.dot_dimension_numbers<[2], [1], [1], [2], [0, 0, 0, 1, 1, 2], [0], [0]>} : vector<2x64x64xbf16>, vector<2x64x64xbf16>, vector<2x64x64xf32> -> vector<2x64x64xf32>
    "tpu.trace_stop"() : () -> ()
    %84 = vector.shape_cast %83 : vector<2x64x64xf32> to vector<128x64xf32>
    %85 = arith.truncf %84 : vector<128x64xf32> to vector<128x64xbf16>
    %86 = vector.extract_strided_slice %35 {offsets = [64, 0], sizes = [64, 128], strides = [1, 1]} : vector<128x128xbf16> to vector<64x128xbf16>
    %cst_31 = arith.constant dense<0.000000e+00> : vector<128x128xf32>
    %87 = tpu.matmul %85, %86, %cst_31 {dimension_numbers = #tpu.dot_dimension_numbers<[1], [0], [0], [1], [0, 0, 1, 1], [], []>} : vector<128x64xbf16>, vector<64x128xbf16>, vector<128x128xf32> -> vector<128x128xf32>
    %88 = arith.addf %61, %87 : vector<128x128xf32>
    %89 = arith.addf %1, %88 : vector<128x128xf32>
    %c0_32 = arith.constant 0 : index
    %c0_33 = arith.constant 0 : index
    %c0_34 = arith.constant 0 : index
    %90 = vector.load %arg7[%c0_32, %c0_33, %c0_34] : memref<2x1x128xf32, #tpu.memory_space<vmem>>, vector<1x1x128xf32>
    %91 = vector.shape_cast %90 : vector<1x1x128xf32> to vector<1x128xf32>
    %92 = vector.broadcast %91 : vector<1x128xf32> to vector<128x128xf32>
    %93 = arith.addf %89, %92 : vector<128x128xf32>
    %c0_35 = arith.constant 0 : index
    %c0_36 = arith.constant 0 : index
    %c0_37 = arith.constant 0 : index
    %94 = vector.load %arg8[%c0_35, %c0_36, %c0_37] : memref<2x1x128xf32, #tpu.memory_space<vmem>>, vector<1x1x128xf32>
    %95 = vector.shape_cast %94 : vector<1x1x128xf32> to vector<1x128xf32>
    %c0_38 = arith.constant 0 : index
    %c0_39 = arith.constant 0 : index
    %c0_40 = arith.constant 0 : index
    %96 = vector.load %arg9[%c0_38, %c0_39, %c0_40] : memref<2x1x128xf32, #tpu.memory_space<vmem>>, vector<1x1x128xf32>
    %97 = vector.shape_cast %96 : vector<1x1x128xf32> to vector<1x128xf32>
    %cst_41 = arith.constant dense<0.000000e+00> : vector<128xf32>
    %98 = vector.multi_reduction <add>, %93, %cst_41 [1] : vector<128x128xf32> to vector<128xf32>
    %99 = vector.shape_cast %98 : vector<128xf32> to vector<128x1xf32>
    %cst_42 = arith.constant 1.280000e+02 : f32
    %100 = vector.broadcast %cst_42 : f32 to vector<128x1xf32>
    %101 = arith.divf %99, %100 : vector<128x1xf32>
    %102 = vector.broadcast %101 : vector<128x1xf32> to vector<128x128xf32>
    %103 = arith.subf %93, %102 : vector<128x128xf32>
    %104 = arith.mulf %103, %103 : vector<128x128xf32>
    %cst_43 = arith.constant dense<0.000000e+00> : vector<128xf32>
    %105 = vector.multi_reduction <add>, %104, %cst_43 [1] : vector<128x128xf32> to vector<128xf32>
    %106 = vector.shape_cast %105 : vector<128xf32> to vector<128x1xf32>
    %cst_44 = arith.constant 1.280000e+02 : f32
    %107 = vector.broadcast %cst_44 : f32 to vector<128x1xf32>
    %108 = arith.divf %106, %107 : vector<128x1xf32>
    %cst_45 = arith.constant 9.99999974E-6 : f32
    %109 = vector.broadcast %cst_45 : f32 to vector<128x1xf32>
    %110 = arith.addf %108, %109 : vector<128x1xf32>
    %111 = math.rsqrt %110 : vector<128x1xf32>
    %112 = vector.broadcast %111 : vector<128x1xf32> to vector<128x128xf32>
    %113 = arith.mulf %103, %112 : vector<128x128xf32>
    %114 = vector.broadcast %95 : vector<1x128xf32> to vector<128x128xf32>
    %115 = arith.mulf %113, %114 : vector<128x128xf32>
    %116 = vector.broadcast %97 : vector<1x128xf32> to vector<128x128xf32>
    %117 = arith.addf %115, %116 : vector<128x128xf32>
    %118 = arith.truncf %117 : vector<128x128xf32> to vector<128x128xbf16>
    %c0_46 = arith.constant 0 : index
    %c0_47 = arith.constant 0 : index
    %c0_48 = arith.constant 0 : index
    %119 = vector.load %arg10[%c0_46, %c0_47, %c0_48] : memref<2x128x512xbf16, #tpu.memory_space<vmem>>, vector<1x128x512xbf16>
    %120 = vector.shape_cast %119 : vector<1x128x512xbf16> to vector<128x512xbf16>
    %cst_49 = arith.constant dense<0.000000e+00> : vector<128x512xf32>
    %121 = tpu.matmul %118, %120, %cst_49 {dimension_numbers = #tpu.dot_dimension_numbers<[1], [0], [0], [1], [0, 0, 1, 1], [], []>} : vector<128x128xbf16>, vector<128x512xbf16>, vector<128x512xf32> -> vector<128x512xf32>
    %c0_50 = arith.constant 0 : index
    %c0_51 = arith.constant 0 : index
    %c0_52 = arith.constant 0 : index
    %122 = vector.load %arg11[%c0_50, %c0_51, %c0_52] : memref<2x1x512xf32, #tpu.memory_space<vmem>>, vector<1x1x512xf32>
    %123 = vector.shape_cast %122 : vector<1x1x512xf32> to vector<1x512xf32>
    %124 = vector.broadcast %123 : vector<1x512xf32> to vector<128x512xf32>
    %125 = arith.addf %121, %124 : vector<128x512xf32>
    %cst_53 = arith.constant 5.000000e-01 : f32
    %126 = vector.broadcast %cst_53 : f32 to vector<128x512xf32>
    %127 = arith.mulf %126, %125 : vector<128x512xf32>
    %cst_54 = arith.constant 4.471500e-02 : f32
    %128 = vector.broadcast %cst_54 : f32 to vector<128x512xf32>
    %129 = arith.mulf %128, %125 : vector<128x512xf32>
    %130 = arith.mulf %129, %125 : vector<128x512xf32>
    %131 = arith.mulf %130, %125 : vector<128x512xf32>
    %132 = arith.addf %125, %131 : vector<128x512xf32>
    %cst_55 = arith.constant 0.797884583 : f32
    %133 = vector.broadcast %cst_55 : f32 to vector<128x512xf32>
    %134 = arith.mulf %133, %132 : vector<128x512xf32>
    %135 = math.tanh %134 : vector<128x512xf32>
    %cst_56 = arith.constant 1.000000e+00 : f32
    %136 = vector.broadcast %cst_56 : f32 to vector<128x512xf32>
    %137 = arith.addf %136, %135 : vector<128x512xf32>
    %138 = arith.mulf %127, %137 : vector<128x512xf32>
    %139 = arith.truncf %138 : vector<128x512xf32> to vector<128x512xbf16>
    %c0_57 = arith.constant 0 : index
    %c0_58 = arith.constant 0 : index
    %c0_59 = arith.constant 0 : index
    %140 = vector.load %arg12[%c0_57, %c0_58, %c0_59] : memref<2x512x128xbf16, #tpu.memory_space<vmem>>, vector<1x512x128xbf16>
    %141 = vector.shape_cast %140 : vector<1x512x128xbf16> to vector<512x128xbf16>
    %cst_60 = arith.constant dense<0.000000e+00> : vector<128x128xf32>
    %142 = tpu.matmul %139, %141, %cst_60 {dimension_numbers = #tpu.dot_dimension_numbers<[1], [0], [0], [1], [0, 0, 1, 1], [], []>} : vector<128x512xbf16>, vector<512x128xbf16>, vector<128x128xf32> -> vector<128x128xf32>
    %c0_61 = arith.constant 0 : index
    %c0_62 = arith.constant 0 : index
    %c0_63 = arith.constant 0 : index
    %143 = vector.load %arg13[%c0_61, %c0_62, %c0_63] : memref<2x1x128xf32, #tpu.memory_space<vmem>>, vector<1x1x128xf32>
    %144 = vector.shape_cast %143 : vector<1x1x128xf32> to vector<1x128xf32>
    %145 = vector.broadcast %144 : vector<1x128xf32> to vector<128x128xf32>
    %146 = arith.addf %142, %145 : vector<128x128xf32>
    %147 = arith.addf %93, %146 : vector<128x128xf32>
    %c1 = arith.constant 1 : index
    %c0_64 = arith.constant 0 : index
    %c0_65 = arith.constant 0 : index
    %148 = vector.load %arg2[%c1, %c0_64, %c0_65] : memref<2x1x128xf32, #tpu.memory_space<vmem>>, vector<1x1x128xf32>
    %149 = vector.shape_cast %148 : vector<1x1x128xf32> to vector<1x128xf32>
    %c1_66 = arith.constant 1 : index
    %c0_67 = arith.constant 0 : index
    %c0_68 = arith.constant 0 : index
    %150 = vector.load %arg3[%c1_66, %c0_67, %c0_68] : memref<2x1x128xf32, #tpu.memory_space<vmem>>, vector<1x1x128xf32>
    %151 = vector.shape_cast %150 : vector<1x1x128xf32> to vector<1x128xf32>
    %cst_69 = arith.constant dense<0.000000e+00> : vector<128xf32>
    %152 = vector.multi_reduction <add>, %147, %cst_69 [1] : vector<128x128xf32> to vector<128xf32>
    %153 = vector.shape_cast %152 : vector<128xf32> to vector<128x1xf32>
    %cst_70 = arith.constant 1.280000e+02 : f32
    %154 = vector.broadcast %cst_70 : f32 to vector<128x1xf32>
    %155 = arith.divf %153, %154 : vector<128x1xf32>
    %156 = vector.broadcast %155 : vector<128x1xf32> to vector<128x128xf32>
    %157 = arith.subf %147, %156 : vector<128x128xf32>
    %158 = arith.mulf %157, %157 : vector<128x128xf32>
    %cst_71 = arith.constant dense<0.000000e+00> : vector<128xf32>
    %159 = vector.multi_reduction <add>, %158, %cst_71 [1] : vector<128x128xf32> to vector<128xf32>
    %160 = vector.shape_cast %159 : vector<128xf32> to vector<128x1xf32>
    %cst_72 = arith.constant 1.280000e+02 : f32
    %161 = vector.broadcast %cst_72 : f32 to vector<128x1xf32>
    %162 = arith.divf %160, %161 : vector<128x1xf32>
    %cst_73 = arith.constant 9.99999974E-6 : f32
    %163 = vector.broadcast %cst_73 : f32 to vector<128x1xf32>
    %164 = arith.addf %162, %163 : vector<128x1xf32>
    %165 = math.rsqrt %164 : vector<128x1xf32>
    %166 = vector.broadcast %165 : vector<128x1xf32> to vector<128x128xf32>
    %167 = arith.mulf %157, %166 : vector<128x128xf32>
    %168 = vector.broadcast %149 : vector<1x128xf32> to vector<128x128xf32>
    %169 = arith.mulf %167, %168 : vector<128x128xf32>
    %170 = vector.broadcast %151 : vector<1x128xf32> to vector<128x128xf32>
    %171 = arith.addf %169, %170 : vector<128x128xf32>
    %172 = arith.truncf %171 : vector<128x128xf32> to vector<128x128xbf16>
    %c1_74 = arith.constant 1 : index
    %c0_75 = arith.constant 0 : index
    %c0_76 = arith.constant 0 : index
    %173 = vector.load %arg4[%c1_74, %c0_75, %c0_76] : memref<2x128x384xbf16, #tpu.memory_space<vmem>>, vector<1x128x384xbf16>
    %174 = vector.shape_cast %173 : vector<1x128x384xbf16> to vector<128x384xbf16>
    %cst_77 = arith.constant dense<0.000000e+00> : vector<128x384xf32>
    %175 = tpu.matmul %172, %174, %cst_77 {dimension_numbers = #tpu.dot_dimension_numbers<[1], [0], [0], [1], [0, 0, 1, 1], [], []>} : vector<128x128xbf16>, vector<128x384xbf16>, vector<128x384xf32> -> vector<128x384xf32>
    %c1_78 = arith.constant 1 : index
    %c0_79 = arith.constant 0 : index
    %c0_80 = arith.constant 0 : index
    %176 = vector.load %arg5[%c1_78, %c0_79, %c0_80] : memref<2x1x384xf32, #tpu.memory_space<vmem>>, vector<1x1x384xf32>
    %177 = vector.shape_cast %176 : vector<1x1x384xf32> to vector<1x384xf32>
    %178 = vector.broadcast %177 : vector<1x384xf32> to vector<128x384xf32>
    %179 = arith.addf %175, %178 : vector<128x384xf32>
    %c1_81 = arith.constant 1 : index
    %c0_82 = arith.constant 0 : index
    %c0_83 = arith.constant 0 : index
    %180 = vector.load %arg6[%c1_81, %c0_82, %c0_83] : memref<2x128x128xbf16, #tpu.memory_space<vmem>>, vector<1x128x128xbf16>
    %181 = vector.shape_cast %180 : vector<1x128x128xbf16> to vector<128x128xbf16>
    %182 = vector.extract_strided_slice %179 {offsets = [0, 0], sizes = [128, 64], strides = [1, 1]} : vector<128x384xf32> to vector<128x64xf32>
    %183 = vector.shape_cast %182 : vector<128x64xf32> to vector<2x64x64xf32>
    %184 = vector.extract_strided_slice %179 {offsets = [0, 128], sizes = [128, 64], strides = [1, 1]} : vector<128x384xf32> to vector<128x64xf32>
    %185 = vector.shape_cast %184 : vector<128x64xf32> to vector<2x64x64xf32>
    %186 = vector.extract_strided_slice %179 {offsets = [0, 256], sizes = [128, 64], strides = [1, 1]} : vector<128x384xf32> to vector<128x64xf32>
    %187 = vector.shape_cast %186 : vector<128x64xf32> to vector<2x64x64xf32>
    %188 = arith.truncf %183 : vector<2x64x64xf32> to vector<2x64x64xbf16>
    %189 = arith.truncf %185 : vector<2x64x64xf32> to vector<2x64x64xbf16>
    "tpu.trace_start"() <{level = 10 : i32, message = "bqd,bkd->bqk"}> : () -> ()
    %cst_84 = arith.constant dense<0.000000e+00> : vector<2x64x64xf32>
    %190 = tpu.matmul %188, %189, %cst_84 {dimension_numbers = #tpu.dot_dimension_numbers<[2], [2], [1], [1], [0, 0, 0, 1, 1, 1], [0], [0]>} : vector<2x64x64xbf16>, vector<2x64x64xbf16>, vector<2x64x64xf32> -> vector<2x64x64xf32>
    "tpu.trace_stop"() : () -> ()
    %cst_85 = arith.constant dense<0xFF800000> : vector<2x64xf32>
    %191 = vector.multi_reduction <maximumf>, %190, %cst_85 [2] : vector<2x64x64xf32> to vector<2x64xf32>
    %192 = vector.shape_cast %191 : vector<2x64xf32> to vector<2x64x1xf32>
    %193 = vector.broadcast %192 : vector<2x64x1xf32> to vector<2x64x64xf32>
    %194 = arith.subf %190, %193 : vector<2x64x64xf32>
    %195 = math.exp %194 : vector<2x64x64xf32>
    %cst_86 = arith.constant dense<0.000000e+00> : vector<2x64xf32>
    %196 = vector.multi_reduction <add>, %195, %cst_86 [2] : vector<2x64x64xf32> to vector<2x64xf32>
    %197 = vector.shape_cast %196 : vector<2x64xf32> to vector<2x64x1xf32>
    %198 = tpu.reciprocal %197 {approx = true} : vector<2x64x1xf32> -> vector<2x64x1xf32>
    %199 = vector.broadcast %198 : vector<2x64x1xf32> to vector<2x64x64xf32>
    %200 = arith.mulf %195, %199 : vector<2x64x64xf32>
    %201 = arith.truncf %200 : vector<2x64x64xf32> to vector<2x64x64xbf16>
    %202 = arith.truncf %187 : vector<2x64x64xf32> to vector<2x64x64xbf16>
    "tpu.trace_start"() <{level = 10 : i32, message = "bqk,bkd->bqd"}> : () -> ()
    %cst_87 = arith.constant dense<0.000000e+00> : vector<2x64x64xf32>
    %203 = tpu.matmul %201, %202, %cst_87 {dimension_numbers = #tpu.dot_dimension_numbers<[2], [1], [1], [2], [0, 0, 0, 1, 1, 2], [0], [0]>} : vector<2x64x64xbf16>, vector<2x64x64xbf16>, vector<2x64x64xf32> -> vector<2x64x64xf32>
    "tpu.trace_stop"() : () -> ()
    %204 = vector.shape_cast %203 : vector<2x64x64xf32> to vector<128x64xf32>
    %205 = arith.truncf %204 : vector<128x64xf32> to vector<128x64xbf16>
    %206 = vector.extract_strided_slice %181 {offsets = [0, 0], sizes = [64, 128], strides = [1, 1]} : vector<128x128xbf16> to vector<64x128xbf16>
    %cst_88 = arith.constant dense<0.000000e+00> : vector<128x128xf32>
    %207 = tpu.matmul %205, %206, %cst_88 {dimension_numbers = #tpu.dot_dimension_numbers<[1], [0], [0], [1], [0, 0, 1, 1], [], []>} : vector<128x64xbf16>, vector<64x128xbf16>, vector<128x128xf32> -> vector<128x128xf32>
    %208 = vector.extract_strided_slice %179 {offsets = [0, 64], sizes = [128, 64], strides = [1, 1]} : vector<128x384xf32> to vector<128x64xf32>
    %209 = vector.shape_cast %208 : vector<128x64xf32> to vector<2x64x64xf32>
    %210 = vector.extract_strided_slice %179 {offsets = [0, 192], sizes = [128, 64], strides = [1, 1]} : vector<128x384xf32> to vector<128x64xf32>
    %211 = vector.shape_cast %210 : vector<128x64xf32> to vector<2x64x64xf32>
    %212 = vector.extract_strided_slice %179 {offsets = [0, 320], sizes = [128, 64], strides = [1, 1]} : vector<128x384xf32> to vector<128x64xf32>
    %213 = vector.shape_cast %212 : vector<128x64xf32> to vector<2x64x64xf32>
    %214 = arith.truncf %209 : vector<2x64x64xf32> to vector<2x64x64xbf16>
    %215 = arith.truncf %211 : vector<2x64x64xf32> to vector<2x64x64xbf16>
    "tpu.trace_start"() <{level = 10 : i32, message = "bqd,bkd->bqk"}> : () -> ()
    %cst_89 = arith.constant dense<0.000000e+00> : vector<2x64x64xf32>
    %216 = tpu.matmul %214, %215, %cst_89 {dimension_numbers = #tpu.dot_dimension_numbers<[2], [2], [1], [1], [0, 0, 0, 1, 1, 1], [0], [0]>} : vector<2x64x64xbf16>, vector<2x64x64xbf16>, vector<2x64x64xf32> -> vector<2x64x64xf32>
    "tpu.trace_stop"() : () -> ()
    %cst_90 = arith.constant dense<0xFF800000> : vector<2x64xf32>
    %217 = vector.multi_reduction <maximumf>, %216, %cst_90 [2] : vector<2x64x64xf32> to vector<2x64xf32>
    %218 = vector.shape_cast %217 : vector<2x64xf32> to vector<2x64x1xf32>
    %219 = vector.broadcast %218 : vector<2x64x1xf32> to vector<2x64x64xf32>
    %220 = arith.subf %216, %219 : vector<2x64x64xf32>
    %221 = math.exp %220 : vector<2x64x64xf32>
    %cst_91 = arith.constant dense<0.000000e+00> : vector<2x64xf32>
    %222 = vector.multi_reduction <add>, %221, %cst_91 [2] : vector<2x64x64xf32> to vector<2x64xf32>
    %223 = vector.shape_cast %222 : vector<2x64xf32> to vector<2x64x1xf32>
    %224 = tpu.reciprocal %223 {approx = true} : vector<2x64x1xf32> -> vector<2x64x1xf32>
    %225 = vector.broadcast %224 : vector<2x64x1xf32> to vector<2x64x64xf32>
    %226 = arith.mulf %221, %225 : vector<2x64x64xf32>
    %227 = arith.truncf %226 : vector<2x64x64xf32> to vector<2x64x64xbf16>
    %228 = arith.truncf %213 : vector<2x64x64xf32> to vector<2x64x64xbf16>
    "tpu.trace_start"() <{level = 10 : i32, message = "bqk,bkd->bqd"}> : () -> ()
    %cst_92 = arith.constant dense<0.000000e+00> : vector<2x64x64xf32>
    %229 = tpu.matmul %227, %228, %cst_92 {dimension_numbers = #tpu.dot_dimension_numbers<[2], [1], [1], [2], [0, 0, 0, 1, 1, 2], [0], [0]>} : vector<2x64x64xbf16>, vector<2x64x64xbf16>, vector<2x64x64xf32> -> vector<2x64x64xf32>
    "tpu.trace_stop"() : () -> ()
    %230 = vector.shape_cast %229 : vector<2x64x64xf32> to vector<128x64xf32>
    %231 = arith.truncf %230 : vector<128x64xf32> to vector<128x64xbf16>
    %232 = vector.extract_strided_slice %181 {offsets = [64, 0], sizes = [64, 128], strides = [1, 1]} : vector<128x128xbf16> to vector<64x128xbf16>
    %cst_93 = arith.constant dense<0.000000e+00> : vector<128x128xf32>
    %233 = tpu.matmul %231, %232, %cst_93 {dimension_numbers = #tpu.dot_dimension_numbers<[1], [0], [0], [1], [0, 0, 1, 1], [], []>} : vector<128x64xbf16>, vector<64x128xbf16>, vector<128x128xf32> -> vector<128x128xf32>
    %234 = arith.addf %207, %233 : vector<128x128xf32>
    %235 = arith.addf %147, %234 : vector<128x128xf32>
    %c1_94 = arith.constant 1 : index
    %c0_95 = arith.constant 0 : index
    %c0_96 = arith.constant 0 : index
    %236 = vector.load %arg7[%c1_94, %c0_95, %c0_96] : memref<2x1x128xf32, #tpu.memory_space<vmem>>, vector<1x1x128xf32>
    %237 = vector.shape_cast %236 : vector<1x1x128xf32> to vector<1x128xf32>
    %238 = vector.broadcast %237 : vector<1x128xf32> to vector<128x128xf32>
    %239 = arith.addf %235, %238 : vector<128x128xf32>
    %c1_97 = arith.constant 1 : index
    %c0_98 = arith.constant 0 : index
    %c0_99 = arith.constant 0 : index
    %240 = vector.load %arg8[%c1_97, %c0_98, %c0_99] : memref<2x1x128xf32, #tpu.memory_space<vmem>>, vector<1x1x128xf32>
    %241 = vector.shape_cast %240 : vector<1x1x128xf32> to vector<1x128xf32>
    %c1_100 = arith.constant 1 : index
    %c0_101 = arith.constant 0 : index
    %c0_102 = arith.constant 0 : index
    %242 = vector.load %arg9[%c1_100, %c0_101, %c0_102] : memref<2x1x128xf32, #tpu.memory_space<vmem>>, vector<1x1x128xf32>
    %243 = vector.shape_cast %242 : vector<1x1x128xf32> to vector<1x128xf32>
    %cst_103 = arith.constant dense<0.000000e+00> : vector<128xf32>
    %244 = vector.multi_reduction <add>, %239, %cst_103 [1] : vector<128x128xf32> to vector<128xf32>
    %245 = vector.shape_cast %244 : vector<128xf32> to vector<128x1xf32>
    %cst_104 = arith.constant 1.280000e+02 : f32
    %246 = vector.broadcast %cst_104 : f32 to vector<128x1xf32>
    %247 = arith.divf %245, %246 : vector<128x1xf32>
    %248 = vector.broadcast %247 : vector<128x1xf32> to vector<128x128xf32>
    %249 = arith.subf %239, %248 : vector<128x128xf32>
    %250 = arith.mulf %249, %249 : vector<128x128xf32>
    %cst_105 = arith.constant dense<0.000000e+00> : vector<128xf32>
    %251 = vector.multi_reduction <add>, %250, %cst_105 [1] : vector<128x128xf32> to vector<128xf32>
    %252 = vector.shape_cast %251 : vector<128xf32> to vector<128x1xf32>
    %cst_106 = arith.constant 1.280000e+02 : f32
    %253 = vector.broadcast %cst_106 : f32 to vector<128x1xf32>
    %254 = arith.divf %252, %253 : vector<128x1xf32>
    %cst_107 = arith.constant 9.99999974E-6 : f32
    %255 = vector.broadcast %cst_107 : f32 to vector<128x1xf32>
    %256 = arith.addf %254, %255 : vector<128x1xf32>
    %257 = math.rsqrt %256 : vector<128x1xf32>
    %258 = vector.broadcast %257 : vector<128x1xf32> to vector<128x128xf32>
    %259 = arith.mulf %249, %258 : vector<128x128xf32>
    %260 = vector.broadcast %241 : vector<1x128xf32> to vector<128x128xf32>
    %261 = arith.mulf %259, %260 : vector<128x128xf32>
    %262 = vector.broadcast %243 : vector<1x128xf32> to vector<128x128xf32>
    %263 = arith.addf %261, %262 : vector<128x128xf32>
    %264 = arith.truncf %263 : vector<128x128xf32> to vector<128x128xbf16>
    %c1_108 = arith.constant 1 : index
    %c0_109 = arith.constant 0 : index
    %c0_110 = arith.constant 0 : index
    %265 = vector.load %arg10[%c1_108, %c0_109, %c0_110] : memref<2x128x512xbf16, #tpu.memory_space<vmem>>, vector<1x128x512xbf16>
    %266 = vector.shape_cast %265 : vector<1x128x512xbf16> to vector<128x512xbf16>
    %cst_111 = arith.constant dense<0.000000e+00> : vector<128x512xf32>
    %267 = tpu.matmul %264, %266, %cst_111 {dimension_numbers = #tpu.dot_dimension_numbers<[1], [0], [0], [1], [0, 0, 1, 1], [], []>} : vector<128x128xbf16>, vector<128x512xbf16>, vector<128x512xf32> -> vector<128x512xf32>
    %c1_112 = arith.constant 1 : index
    %c0_113 = arith.constant 0 : index
    %c0_114 = arith.constant 0 : index
    %268 = vector.load %arg11[%c1_112, %c0_113, %c0_114] : memref<2x1x512xf32, #tpu.memory_space<vmem>>, vector<1x1x512xf32>
    %269 = vector.shape_cast %268 : vector<1x1x512xf32> to vector<1x512xf32>
    %270 = vector.broadcast %269 : vector<1x512xf32> to vector<128x512xf32>
    %271 = arith.addf %267, %270 : vector<128x512xf32>
    %cst_115 = arith.constant 5.000000e-01 : f32
    %272 = vector.broadcast %cst_115 : f32 to vector<128x512xf32>
    %273 = arith.mulf %272, %271 : vector<128x512xf32>
    %cst_116 = arith.constant 4.471500e-02 : f32
    %274 = vector.broadcast %cst_116 : f32 to vector<128x512xf32>
    %275 = arith.mulf %274, %271 : vector<128x512xf32>
    %276 = arith.mulf %275, %271 : vector<128x512xf32>
    %277 = arith.mulf %276, %271 : vector<128x512xf32>
    %278 = arith.addf %271, %277 : vector<128x512xf32>
    %cst_117 = arith.constant 0.797884583 : f32
    %279 = vector.broadcast %cst_117 : f32 to vector<128x512xf32>
    %280 = arith.mulf %279, %278 : vector<128x512xf32>
    %281 = math.tanh %280 : vector<128x512xf32>
    %cst_118 = arith.constant 1.000000e+00 : f32
    %282 = vector.broadcast %cst_118 : f32 to vector<128x512xf32>
    %283 = arith.addf %282, %281 : vector<128x512xf32>
    %284 = arith.mulf %273, %283 : vector<128x512xf32>
    %285 = arith.truncf %284 : vector<128x512xf32> to vector<128x512xbf16>
    %c1_119 = arith.constant 1 : index
    %c0_120 = arith.constant 0 : index
    %c0_121 = arith.constant 0 : index
    %286 = vector.load %arg12[%c1_119, %c0_120, %c0_121] : memref<2x512x128xbf16, #tpu.memory_space<vmem>>, vector<1x512x128xbf16>
    %287 = vector.shape_cast %286 : vector<1x512x128xbf16> to vector<512x128xbf16>
    %cst_122 = arith.constant dense<0.000000e+00> : vector<128x128xf32>
    %288 = tpu.matmul %285, %287, %cst_122 {dimension_numbers = #tpu.dot_dimension_numbers<[1], [0], [0], [1], [0, 0, 1, 1], [], []>} : vector<128x512xbf16>, vector<512x128xbf16>, vector<128x128xf32> -> vector<128x128xf32>
    %c1_123 = arith.constant 1 : index
    %c0_124 = arith.constant 0 : index
    %c0_125 = arith.constant 0 : index
    %289 = vector.load %arg13[%c1_123, %c0_124, %c0_125] : memref<2x1x128xf32, #tpu.memory_space<vmem>>, vector<1x1x128xf32>
    %290 = vector.shape_cast %289 : vector<1x1x128xf32> to vector<1x128xf32>
    %291 = vector.broadcast %290 : vector<1x128xf32> to vector<128x128xf32>
    %292 = arith.addf %288, %291 : vector<128x128xf32>
    %293 = arith.addf %239, %292 : vector<128x128xf32>
    %c0_126 = arith.constant 0 : index
    %c0_127 = arith.constant 0 : index
    %294 = vector.load %arg14[%c0_126, %c0_127] : memref<1x128xf32, #tpu.memory_space<vmem>>, vector<1x128xf32>
    %c0_128 = arith.constant 0 : index
    %c0_129 = arith.constant 0 : index
    %295 = vector.load %arg15[%c0_128, %c0_129] : memref<1x128xf32, #tpu.memory_space<vmem>>, vector<1x128xf32>
    %cst_130 = arith.constant dense<0.000000e+00> : vector<128xf32>
    %296 = vector.multi_reduction <add>, %293, %cst_130 [1] : vector<128x128xf32> to vector<128xf32>
    %297 = vector.shape_cast %296 : vector<128xf32> to vector<128x1xf32>
    %cst_131 = arith.constant 1.280000e+02 : f32
    %298 = vector.broadcast %cst_131 : f32 to vector<128x1xf32>
    %299 = arith.divf %297, %298 : vector<128x1xf32>
    %300 = vector.broadcast %299 : vector<128x1xf32> to vector<128x128xf32>
    %301 = arith.subf %293, %300 : vector<128x128xf32>
    %302 = arith.mulf %301, %301 : vector<128x128xf32>
    %cst_132 = arith.constant dense<0.000000e+00> : vector<128xf32>
    %303 = vector.multi_reduction <add>, %302, %cst_132 [1] : vector<128x128xf32> to vector<128xf32>
    %304 = vector.shape_cast %303 : vector<128xf32> to vector<128x1xf32>
    %cst_133 = arith.constant 1.280000e+02 : f32
    %305 = vector.broadcast %cst_133 : f32 to vector<128x1xf32>
    %306 = arith.divf %304, %305 : vector<128x1xf32>
    %cst_134 = arith.constant 9.99999974E-6 : f32
    %307 = vector.broadcast %cst_134 : f32 to vector<128x1xf32>
    %308 = arith.addf %306, %307 : vector<128x1xf32>
    %309 = math.rsqrt %308 : vector<128x1xf32>
    %310 = vector.broadcast %309 : vector<128x1xf32> to vector<128x128xf32>
    %311 = arith.mulf %301, %310 : vector<128x128xf32>
    %312 = vector.broadcast %294 : vector<1x128xf32> to vector<128x128xf32>
    %313 = arith.mulf %311, %312 : vector<128x128xf32>
    %314 = vector.broadcast %295 : vector<1x128xf32> to vector<128x128xf32>
    %315 = arith.addf %313, %314 : vector<128x128xf32>
    %316 = vector.shape_cast %315 : vector<128x128xf32> to vector<2x64x128xf32>
    %c0_135 = arith.constant 0 : index
    %c0_136 = arith.constant 0 : index
    %c0_137 = arith.constant 0 : index
    %317 = vector.load %arg16[%c0_135, %c0_136, %c0_137] : memref<2x64x128xf32, #tpu.memory_space<vmem>>, vector<2x64x128xf32>
    tpu.vector_store %arg16[%c0_135, %c0_136, %c0_137], %316 {strides = array<i32>} : memref<2x64x128xf32, #tpu.memory_space<vmem>>, vector<2x64x128xf32>,
    return
  }
  func.func @transform_0(%arg0: i32) -> (i32, i32, i32) {
    %c0_i32 = arith.constant 0 : i32
    %c0_i32_0 = arith.constant 0 : i32
    %c0_i32_1 = arith.constant 0 : i32
    return %arg0, %c0_i32, %c0_i32_0 : i32, i32, i32
  }
  func.func @transform_1(%arg0: i32) -> (i32, i32, i32) {
    %c0_i32 = arith.constant 0 : i32
    %c0_i32_0 = arith.constant 0 : i32
    %c0_i32_1 = arith.constant 0 : i32
    %c0_i32_2 = arith.constant 0 : i32
    return %c0_i32, %c0_i32_0, %c0_i32_1 : i32, i32, i32
  }
  func.func @transform_2(%arg0: i32) -> (i32, i32, i32) {
    %c0_i32 = arith.constant 0 : i32
    %c0_i32_0 = arith.constant 0 : i32
    %c0_i32_1 = arith.constant 0 : i32
    %c0_i32_2 = arith.constant 0 : i32
    return %c0_i32, %c0_i32_0, %c0_i32_1 : i32, i32, i32
  }
  func.func @transform_3(%arg0: i32) -> (i32, i32, i32) {
    %c0_i32 = arith.constant 0 : i32
    %c0_i32_0 = arith.constant 0 : i32
    %c0_i32_1 = arith.constant 0 : i32
    %c0_i32_2 = arith.constant 0 : i32
    return %c0_i32, %c0_i32_0, %c0_i32_1 : i32, i32, i32
  }
  func.func @transform_4(%arg0: i32) -> (i32, i32, i32) {
    %c0_i32 = arith.constant 0 : i32
    %c0_i32_0 = arith.constant 0 : i32
    %c0_i32_1 = arith.constant 0 : i32
    %c0_i32_2 = arith.constant 0 : i32
    return %c0_i32, %c0_i32_0, %c0_i32_1 : i32, i32, i32
  }
  func.func @transform_5(%arg0: i32) -> (i32, i32, i32) {
    %c0_i32 = arith.constant 0 : i32
    %c0_i32_0 = arith.constant 0 : i32
    %c0_i32_1 = arith.constant 0 : i32
    %c0_i32_2 = arith.constant 0 : i32
    return %c0_i32, %c0_i32_0, %c0_i32_1 : i32, i32, i32
  }
  func.func @transform_6(%arg0: i32) -> (i32, i32, i32) {
    %c0_i32 = arith.constant 0 : i32
    %c0_i32_0 = arith.constant 0 : i32
    %c0_i32_1 = arith.constant 0 : i32
    %c0_i32_2 = arith.constant 0 : i32
    return %c0_i32, %c0_i32_0, %c0_i32_1 : i32, i32, i32
  }
  func.func @transform_7(%arg0: i32) -> (i32, i32, i32) {
    %c0_i32 = arith.constant 0 : i32
    %c0_i32_0 = arith.constant 0 : i32
    %c0_i32_1 = arith.constant 0 : i32
    %c0_i32_2 = arith.constant 0 : i32
    return %c0_i32, %c0_i32_0, %c0_i32_1 : i32, i32, i32
  }
  func.func @transform_8(%arg0: i32) -> (i32, i32, i32) {
    %c0_i32 = arith.constant 0 : i32
    %c0_i32_0 = arith.constant 0 : i32
    %c0_i32_1 = arith.constant 0 : i32
    %c0_i32_2 = arith.constant 0 : i32
    return %c0_i32, %c0_i32_0, %c0_i32_1 : i32, i32, i32
  }
  func.func @transform_9(%arg0: i32) -> (i32, i32, i32) {
    %c0_i32 = arith.constant 0 : i32
    %c0_i32_0 = arith.constant 0 : i32
    %c0_i32_1 = arith.constant 0 : i32
    %c0_i32_2 = arith.constant 0 : i32
    return %c0_i32, %c0_i32_0, %c0_i32_1 : i32, i32, i32
  }
  func.func @transform_10(%arg0: i32) -> (i32, i32, i32) {
    %c0_i32 = arith.constant 0 : i32
    %c0_i32_0 = arith.constant 0 : i32
    %c0_i32_1 = arith.constant 0 : i32
    %c0_i32_2 = arith.constant 0 : i32
    return %c0_i32, %c0_i32_0, %c0_i32_1 : i32, i32, i32
  }
  func.func @transform_11(%arg0: i32) -> (i32, i32, i32) {
    %c0_i32 = arith.constant 0 : i32
    %c0_i32_0 = arith.constant 0 : i32
    %c0_i32_1 = arith.constant 0 : i32
    %c0_i32_2 = arith.constant 0 : i32
    return %c0_i32, %c0_i32_0, %c0_i32_1 : i32, i32, i32
  }
  func.func @transform_12(%arg0: i32) -> (i32, i32, i32) {
    %c0_i32 = arith.constant 0 : i32
    %c0_i32_0 = arith.constant 0 : i32
    %c0_i32_1 = arith.constant 0 : i32
    %c0_i32_2 = arith.constant 0 : i32
    return %c0_i32, %c0_i32_0, %c0_i32_1 : i32, i32, i32
  }
  func.func @transform_13(%arg0: i32) -> (i32, i32) {
    %c0_i32 = arith.constant 0 : i32
    %c0_i32_0 = arith.constant 0 : i32
    %c0_i32_1 = arith.constant 0 : i32
    return %c0_i32, %c0_i32_0 : i32, i32
  }
  func.func @transform_14(%arg0: i32) -> (i32, i32) {
    %c0_i32 = arith.constant 0 : i32
    %c0_i32_0 = arith.constant 0 : i32
    %c0_i32_1 = arith.constant 0 : i32
    return %c0_i32, %c0_i32_0 : i32, i32
  }
  func.func @transform_15(%arg0: i32) -> (i32, i32, i32) {
    %c0_i32 = arith.constant 0 : i32
    %c0_i32_0 = arith.constant 0 : i32
    %c0_i32_1 = arith.constant 0 : i32
    return %arg0, %c0_i32, %c0_i32_0 : i32, i32, i32
  }
}

</mosaic_0001>

<llo_original>
// kernel: tpu_custom_call.1
$region0: #{tpu_custom_call.1}
  #allocation0 [shape = 'u32[]', space=smem, size = 0x4, offset = 0x4, fixed_abs, tag = 'smem constant byte address 0x4 - core index']
  #allocation1 [shape = 'u32[144,128]{1,0:T(1,128)}', space=vmem, size = 0x12000, scoped, tag = 'internal scratch']
  %s0 = inlined_call_operand.hbm [shape: f32[4,64,128], index: 0, kind: input, shape index: {}]
  %s1 = inlined_call_operand.hbm [shape: f32[2,1,128], index: 1, kind: input, shape index: {}]
  %s2 = inlined_call_operand.hbm [shape: f32[2,1,128], index: 2, kind: input, shape index: {}]
  %s3 = inlined_call_operand.hbm [shape: bf16[2,128,384], index: 3, kind: input, shape index: {}]
  %s4 = inlined_call_operand.vmem [shape: f32[2,1,384], index: 4, kind: input, shape index: {}]
  %s5 = inlined_call_operand.hbm [shape: bf16[2,128,128], index: 5, kind: input, shape index: {}]
  %s6 = inlined_call_operand.vmem [shape: f32[2,1,128], index: 6, kind: input, shape index: {}]
  %s7 = inlined_call_operand.hbm [shape: f32[2,1,128], index: 7, kind: input, shape index: {}]
  %s8 = inlined_call_operand.hbm [shape: f32[2,1,128], index: 8, kind: input, shape index: {}]
  %s9 = inlined_call_operand.hbm [shape: bf16[2,128,512], index: 9, kind: input, shape index: {}]
  %s10 = inlined_call_operand.vmem [shape: f32[2,1,512], index: 10, kind: input, shape index: {}]
  %s11 = inlined_call_operand.hbm [shape: bf16[2,512,128], index: 11, kind: input, shape index: {}]
  %s12 = inlined_call_operand.vmem [shape: f32[2,1,128], index: 12, kind: input, shape index: {}]
  %s13 = inlined_call_operand.vmem [shape: f32[1,128], index: 13, kind: input, shape index: {}]
  %s14 = inlined_call_operand.vmem [shape: f32[1,128], index: 14, kind: input, shape index: {}]
  %s15 = inlined_call_operand.hbm [shape: f32[4,64,128], index: 15, kind: output, shape index: {}]
  %s16 = sld [smem:[#allocation0]]
  $region129: #{tpu_custom_call.1} parent=0
    _
  %s18 = ssub.s32 1, %s16
  %s19 = scalar_select 0, %s18, %s16
  $region1: #{tpu_custom_call.1} parent=0
    #allocation2 [shape = 'u8[131072]{0}', space=vmem, size = 0x20000, scoped, tag = 'input window, operand 0']
    #allocation3 [shape = 's32[2]{0}', space=sflag, size = 0x8, scoped, tag = 'scoped memory for tpu_custom_call.1']
    #allocation4 [shape = 's32[2]{0}', space=sflag, size = 0x8, scoped, tag = 'scoped memory for tpu_custom_call.1']
    #allocation5 [shape = 'u8[1024]{0}', space=vmem, size = 0x400, scoped, tag = 'input window, operand 1, single buffered']
    #allocation6 [shape = 's32[1]{0}', space=sflag, size = 0x4, scoped, tag = 'scoped memory for tpu_custom_call.1']
    #allocation7 [shape = 'u8[1024]{0}', space=vmem, size = 0x400, scoped, tag = 'input window, operand 2, single buffered']
    #allocation8 [shape = 'u8[196608]{0}', space=vmem, size = 0x30000, scoped, tag = 'input window, operand 3, single buffered']
    #allocation9 [shape = 's32[1]{0}', space=sflag, size = 0x4, scoped, tag = 'scoped memory for tpu_custom_call.1']
    #allocation10 [shape = 'u8[65536]{0}', space=vmem, size = 0x10000, scoped, tag = 'input window, operand 5, single buffered']
    #allocation11 [shape = 'u8[1024]{0}', space=vmem, size = 0x400, scoped, tag = 'input window, operand 7, single buffered']
    #allocation12 [shape = 's32[1]{0}', space=sflag, size = 0x4, scoped, tag = 'scoped memory for tpu_custom_call.1']
    #allocation13 [shape = 'u8[1024]{0}', space=vmem, size = 0x400, scoped, tag = 'input window, operand 8, single buffered']
    #allocation14 [shape = 'u8[262144]{0}', space=vmem, size = 0x40000, scoped, tag = 'input window, operand 9, single buffered']
    #allocation15 [shape = 's32[1]{0}', space=sflag, size = 0x4, scoped, tag = 'scoped memory for tpu_custom_call.1']
    #allocation16 [shape = 'u8[262144]{0}', space=vmem, size = 0x40000, scoped, tag = 'input window, operand 11, single buffered']
    #allocation17 [shape = 'u8[131072]{0}', space=vmem, size = 0x20000, scoped, tag = 'output window, operand 0']
    %20 = vsyncpa [#allocation3], 0
    %s21 = scalar_lea.sflag [#allocation3], 1
    %22 = vsyncpa %s21, 0
    %23 = vsyncpa [#allocation6], 0
    %24 = vsyncpa [#allocation9], 0
    %25 = vsyncpa [#allocation12], 0
    %26 = vsyncpa [#allocation15], 0
    %27 = vsyncpa [#allocation4], 0
    %s28 = scalar_lea.sflag [#allocation4], 1
    %29 = vsyncpa %s28, 0
    loop: start=0, step=1, limit=4
    $region2: #{tpu_custom_call.1} parent=1 // loop_pre_header
      _
    $region3: #{tpu_custom_call.1} parent=1 // loop_header
      %s31 = sphi 0, %s35
      %p32 = scmp.ge.s32.totalorder %s31, 4
      %s41 = sphi 0, %s43
      %s44 = sphi 0, %s41
      %s45 = sphi 0, %s44
      %s61 = sphi 0, %s45
      %s65 = sphi 0, %s65
      %s67 = sphi 0, %s65
      %s68 = sphi 0, %s67
      %s82 = sphi 0, %s68
      %s86 = sphi 0, %s86
      %s88 = sphi 0, %s86
      %s89 = sphi 0, %s88
      %s103 = sphi 0, %s89
      %s107 = sphi 0, %s107
      %s109 = sphi 0, %s107
      %s110 = sphi 0, %s109
      %s124 = sphi 0, %s110
      %s128 = sphi 0, %s128
      %s130 = sphi 0, %s128
      %s131 = sphi 0, %s130
      %s145 = sphi 0, %s131
      %s149 = sphi 0, %s149
      %s151 = sphi 0, %s149
      %s152 = sphi 0, %s151
      %s166 = sphi 0, %s152
      %s170 = sphi 0, %s170
      %s172 = sphi 0, %s170
      %s173 = sphi 0, %s172
      %s187 = sphi 0, %s173
      %s191 = sphi 0, %s191
      %s193 = sphi 0, %s191
      %s194 = sphi 0, %s193
      %s208 = sphi 0, %s194
      %s212 = sphi 0, %s212
      %s214 = sphi 0, %s212
      %s215 = sphi 0, %s214
      %s229 = sphi 0, %s215
      %s233 = sphi 0, %s233
      %s235 = sphi 0, %s233
      %s236 = sphi 0, %s235
      %s250 = sphi 0, %s236
      %s254 = sphi 0, %s254
      %s256 = sphi 0, %s254
      %s257 = sphi 0, %s256
      %s271 = sphi 0, %s257
      %s275 = sphi 0, %s275
      %s277 = sphi 0, %s275
      %s278 = sphi 0, %s277
      %s292 = sphi 0, %s278
      %s296 = sphi 0, %s296
      %s298 = sphi 0, %s296
      %s299 = sphi 0, %s298
      %s313 = sphi 0, %s299
      %s317 = sphi 0, %s317
      %s319 = sphi 0, %s317
      %s320 = sphi 0, %s319
      %s334 = sphi 0, %s320
      %s338 = sphi 0, %s338
      %s340 = sphi 0, %s338
      %s341 = sphi 0, %s340
      %s355 = sphi 0, %s341
      %s361 = sphi 0, %s363
      %s364 = sphi 0, %s361
      %s365 = sphi 0, %s364
      %s381 = sphi 0, %s365
    $region4: #{tpu_custom_call.1} parent=1 // loop_header_branch
      %34 = sbr.rel (%p32) target = $region8
    $region5: #{tpu_custom_call.1} parent=1 // loop_body
      %s36 = ssub.s32 %s31, 1
      %s37 = ssub.s32 %s31, 2
      %s38 = sadd.s32 %s31, 1
      %s39 = ssub.s32 %s31, %s38
      %p40 = scmp.eq.s32.totalorder %s39, 0
      %s42 = sadd.s32 %s41, 1
      %s43 = scalar_select %p40, %s41, %s42
      %p46 = pneg %p40
      %p47 = scmp.eq.s32.totalorder %s31, 1
      %p48 = por %p46, %p47
      %p49 = scmp.ne.s32.totalorder %s41, %s44
      %p50 = scmp.eq.s32.totalorder %s31, 0
      %p51 = por %p49, %p50
      %p52 = scmp.ne.s32.totalorder %s41, %s44
      %p53 = scmp.eq.s32.totalorder %s36, 1
      %p54 = por %p52, %p53
      %p55 = scmp.ne.s32.totalorder %s44, %s45
      %p56 = scmp.eq.s32.totalorder %s36, 0
      %p57 = por %p55, %p56
      %p58 = scmp.ne.s32.totalorder %s44, %s45
      %p59 = scmp.eq.s32.totalorder %s37, 1
      %p60 = por %p58, %p59
      %p62 = scmp.ne.s32.totalorder %s45, %s61
      %p63 = scmp.eq.s32.totalorder %s37, 0
      %p64 = por %p62, %p63
      %s66 = sadd.s32 %s65, 1
      %p69 = scmp.eq.s32.totalorder %s31, 1
      %p70 = scmp.ne.s32.totalorder %s65, %s67
      %p71 = scmp.eq.s32.totalorder %s31, 0
      %p72 = por %p70, %p71
      %p73 = scmp.ne.s32.totalorder %s65, %s67
      %p74 = scmp.eq.s32.totalorder %s36, 1
      %p75 = por %p73, %p74
      %p76 = scmp.ne.s32.totalorder %s67, %s68
      %p77 = scmp.eq.s32.totalorder %s36, 0
      %p78 = por %p76, %p77
      %p79 = scmp.ne.s32.totalorder %s67, %s68
      %p80 = scmp.eq.s32.totalorder %s37, 1
      %p81 = por %p79, %p80
      %p83 = scmp.ne.s32.totalorder %s68, %s82
      %p84 = scmp.eq.s32.totalorder %s37, 0
      %p85 = por %p83, %p84
      %s87 = sadd.s32 %s86, 1
      %p90 = scmp.eq.s32.totalorder %s31, 1
      %p91 = scmp.ne.s32.totalorder %s86, %s88
      %p92 = scmp.eq.s32.totalorder %s31, 0
      %p93 = por %p91, %p92
      %p94 = scmp.ne.s32.totalorder %s86, %s88
      %p95 = scmp.eq.s32.totalorder %s36, 1
      %p96 = por %p94, %p95
      %p97 = scmp.ne.s32.totalorder %s88, %s89
      %p98 = scmp.eq.s32.totalorder %s36, 0
      %p99 = por %p97, %p98
      %p100 = scmp.ne.s32.totalorder %s88, %s89
      %p101 = scmp.eq.s32.totalorder %s37, 1
      %p102 = por %p100, %p101
      %p104 = scmp.ne.s32.totalorder %s89, %s103
      %p105 = scmp.eq.s32.totalorder %s37, 0
      %p106 = por %p104, %p105
      %s108 = sadd.s32 %s107, 1
      %p111 = scmp.eq.s32.totalorder %s31, 1
      %p112 = scmp.ne.s32.totalorder %s107, %s109
      %p113 = scmp.eq.s32.totalorder %s31, 0
      %p114 = por %p112, %p113
      %p115 = scmp.ne.s32.totalorder %s107, %s109
      %p116 = scmp.eq.s32.totalorder %s36, 1
      %p117 = por %p115, %p116
      %p118 = scmp.ne.s32.totalorder %s109, %s110
      %p119 = scmp.eq.s32.totalorder %s36, 0
      %p120 = por %p118, %p119
      %p121 = scmp.ne.s32.totalorder %s109, %s110
      %p122 = scmp.eq.s32.totalorder %s37, 1
      %p123 = por %p121, %p122
      %p125 = scmp.ne.s32.totalorder %s110, %s124
      %p126 = scmp.eq.s32.totalorder %s37, 0
      %p127 = por %p125, %p126
      %s129 = sadd.s32 %s128, 1
      %p132 = scmp.eq.s32.totalorder %s31, 1
      %p133 = scmp.ne.s32.totalorder %s128, %s130
      %p134 = scmp.eq.s32.totalorder %s31, 0
      %p135 = por %p133, %p134
      %p136 = scmp.ne.s32.totalorder %s128, %s130
      %p137 = scmp.eq.s32.totalorder %s36, 1
      %p138 = por %p136, %p137
      %p139 = scmp.ne.s32.totalorder %s130, %s131
      %p140 = scmp.eq.s32.totalorder %s36, 0
      %p141 = por %p139, %p140
      %p142 = scmp.ne.s32.totalorder %s130, %s131
      %p143 = scmp.eq.s32.totalorder %s37, 1
      %p144 = por %p142, %p143
      %p146 = scmp.ne.s32.totalorder %s131, %s145
      %p147 = scmp.eq.s32.totalorder %s37, 0
      %p148 = por %p146, %p147
      %s150 = sadd.s32 %s149, 1
      %p153 = scmp.eq.s32.totalorder %s31, 1
      %p154 = scmp.ne.s32.totalorder %s149, %s151
      %p155 = scmp.eq.s32.totalorder %s31, 0
      %p156 = por %p154, %p155
      %p157 = scmp.ne.s32.totalorder %s149, %s151
      %p158 = scmp.eq.s32.totalorder %s36, 1
      %p159 = por %p157, %p158
      %p160 = scmp.ne.s32.totalorder %s151, %s152
      %p161 = scmp.eq.s32.totalorder %s36, 0
      %p162 = por %p160, %p161
      %p163 = scmp.ne.s32.totalorder %s151, %s152
      %p164 = scmp.eq.s32.totalorder %s37, 1
      %p165 = por %p163, %p164
      %p167 = scmp.ne.s32.totalorder %s152, %s166
      %p168 = scmp.eq.s32.totalorder %s37, 0
      %p169 = por %p167, %p168
      %s171 = sadd.s32 %s170, 1
      %p174 = scmp.eq.s32.totalorder %s31, 1
      %p175 = scmp.ne.s32.totalorder %s170, %s172
      %p176 = scmp.eq.s32.totalorder %s31, 0
      %p177 = por %p175, %p176
      %p178 = scmp.ne.s32.totalorder %s170, %s172
      %p179 = scmp.eq.s32.totalorder %s36, 1
      %p180 = por %p178, %p179
      %p181 = scmp.ne.s32.totalorder %s172, %s173
      %p182 = scmp.eq.s32.totalorder %s36, 0
      %p183 = por %p181, %p182
      %p184 = scmp.ne.s32.totalorder %s172, %s173
      %p185 = scmp.eq.s32.totalorder %s37, 1
      %p186 = por %p184, %p185
      %p188 = scmp.ne.s32.totalorder %s173, %s187
      %p189 = scmp.eq.s32.totalorder %s37, 0
      %p190 = por %p188, %p189
      %s192 = sadd.s32 %s191, 1
      %p195 = scmp.eq.s32.totalorder %s31, 1
      %p196 = scmp.ne.s32.totalorder %s191, %s193
      %p197 = scmp.eq.s32.totalorder %s31, 0
      %p198 = por %p196, %p197
      %p199 = scmp.ne.s32.totalorder %s191, %s193
      %p200 = scmp.eq.s32.totalorder %s36, 1
      %p201 = por %p199, %p200
      %p202 = scmp.ne.s32.totalorder %s193, %s194
      %p203 = scmp.eq.s32.totalorder %s36, 0
      %p204 = por %p202, %p203
      %p205 = scmp.ne.s32.totalorder %s193, %s194
      %p206 = scmp.eq.s32.totalorder %s37, 1
      %p207 = por %p205, %p206
      %p209 = scmp.ne.s32.totalorder %s194, %s208
      %p210 = scmp.eq.s32.totalorder %s37, 0
      %p211 = por %p209, %p210
      %s213 = sadd.s32 %s212, 1
      %p216 = scmp.eq.s32.totalorder %s31, 1
      %p217 = scmp.ne.s32.totalorder %s212, %s214
      %p218 = scmp.eq.s32.totalorder %s31, 0
      %p219 = por %p217, %p218
      %p220 = scmp.ne.s32.totalorder %s212, %s214
      %p221 = scmp.eq.s32.totalorder %s36, 1
      %p222 = por %p220, %p221
      %p223 = scmp.ne.s32.totalorder %s214, %s215
      %p224 = scmp.eq.s32.totalorder %s36, 0
      %p225 = por %p223, %p224
      %p226 = scmp.ne.s32.totalorder %s214, %s215
      %p227 = scmp.eq.s32.totalorder %s37, 1
      %p228 = por %p226, %p227
      %p230 = scmp.ne.s32.totalorder %s215, %s229
      %p231 = scmp.eq.s32.totalorder %s37, 0
      %p232 = por %p230, %p231
      %s234 = sadd.s32 %s233, 1
      %p237 = scmp.eq.s32.totalorder %s31, 1
      %p238 = scmp.ne.s32.totalorder %s233, %s235
      %p239 = scmp.eq.s32.totalorder %s31, 0
      %p240 = por %p238, %p239
      %p241 = scmp.ne.s32.totalorder %s233, %s235
      %p242 = scmp.eq.s32.totalorder %s36, 1
      %p243 = por %p241, %p242
      %p244 = scmp.ne.s32.totalorder %s235, %s236
      %p245 = scmp.eq.s32.totalorder %s36, 0
      %p246 = por %p244, %p245
      %p247 = scmp.ne.s32.totalorder %s235, %s236
      %p248 = scmp.eq.s32.totalorder %s37, 1
      %p249 = por %p247, %p248
      %p251 = scmp.ne.s32.totalorder %s236, %s250
      %p252 = scmp.eq.s32.totalorder %s37, 0
      %p253 = por %p251, %p252
      %s255 = sadd.s32 %s254, 1
      %p258 = scmp.eq.s32.totalorder %s31, 1
      %p259 = scmp.ne.s32.totalorder %s254, %s256
      %p260 = scmp.eq.s32.totalorder %s31, 0
      %p261 = por %p259, %p260
      %p262 = scmp.ne.s32.totalorder %s254, %s256
      %p263 = scmp.eq.s32.totalorder %s36, 1
      %p264 = por %p262, %p263
      %p265 = scmp.ne.s32.totalorder %s256, %s257
      %p266 = scmp.eq.s32.totalorder %s36, 0
      %p267 = por %p265, %p266
      %p268 = scmp.ne.s32.totalorder %s256, %s257
      %p269 = scmp.eq.s32.totalorder %s37, 1
      %p270 = por %p268, %p269
      %p272 = scmp.ne.s32.totalorder %s257, %s271
      %p273 = scmp.eq.s32.totalorder %s37, 0
      %p274 = por %p272, %p273
      %s276 = sadd.s32 %s275, 1
      %p279 = scmp.eq.s32.totalorder %s31, 1
      %p280 = scmp.ne.s32.totalorder %s275, %s277
      %p281 = scmp.eq.s32.totalorder %s31, 0
      %p282 = por %p280, %p281
      %p283 = scmp.ne.s32.totalorder %s275, %s277
      %p284 = scmp.eq.s32.totalorder %s36, 1
      %p285 = por %p283, %p284
      %p286 = scmp.ne.s32.totalorder %s277, %s278
      %p287 = scmp.eq.s32.totalorder %s36, 0
      %p288 = por %p286, %p287
      %p289 = scmp.ne.s32.totalorder %s277, %s278
      %p290 = scmp.eq.s32.totalorder %s37, 1
      %p291 = por %p289, %p290
      %p293 = scmp.ne.s32.totalorder %s278, %s292
      %p294 = scmp.eq.s32.totalorder %s37, 0
      %p295 = por %p293, %p294
      %s297 = sadd.s32 %s296, 1
      %p300 = scmp.eq.s32.totalorder %s31, 1
      %p301 = scmp.ne.s32.totalorder %s296, %s298
      %p302 = scmp.eq.s32.totalorder %s31, 0
      %p303 = por %p301, %p302
      %p304 = scmp.ne.s32.totalorder %s296, %s298
      %p305 = scmp.eq.s32.totalorder %s36, 1
      %p306 = por %p304, %p305
      %p307 = scmp.ne.s32.totalorder %s298, %s299
      %p308 = scmp.eq.s32.totalorder %s36, 0
      %p309 = por %p307, %p308
      %p310 = scmp.ne.s32.totalorder %s298, %s299
      %p311 = scmp.eq.s32.totalorder %s37, 1
      %p312 = por %p310, %p311
      %p314 = scmp.ne.s32.totalorder %s299, %s313
      %p315 = scmp.eq.s32.totalorder %s37, 0
      %p316 = por %p314, %p315
      %s318 = sadd.s32 %s317, 1
      %p321 = scmp.eq.s32.totalorder %s31, 1
      %p322 = scmp.ne.s32.totalorder %s317, %s319
      %p323 = scmp.eq.s32.totalorder %s31, 0
      %p324 = por %p322, %p323
      %p325 = scmp.ne.s32.totalorder %s317, %s319
      %p326 = scmp.eq.s32.totalorder %s36, 1
      %p327 = por %p325, %p326
      %p328 = scmp.ne.s32.totalorder %s319, %s320
      %p329 = scmp.eq.s32.totalorder %s36, 0
      %p330 = por %p328, %p329
      %p331 = scmp.ne.s32.totalorder %s319, %s320
      %p332 = scmp.eq.s32.totalorder %s37, 1
      %p333 = por %p331, %p332
      %p335 = scmp.ne.s32.totalorder %s320, %s334
      %p336 = scmp.eq.s32.totalorder %s37, 0
      %p337 = por %p335, %p336
      %s339 = sadd.s32 %s338, 1
      %p342 = scmp.eq.s32.totalorder %s31, 1
      %p343 = scmp.ne.s32.totalorder %s338, %s340
      %p344 = scmp.eq.s32.totalorder %s31, 0
      %p345 = por %p343, %p344
      %p346 = scmp.ne.s32.totalorder %s338, %s340
      %p347 = scmp.eq.s32.totalorder %s36, 1
      %p348 = por %p346, %p347
      %p349 = scmp.ne.s32.totalorder %s340, %s341
      %p350 = scmp.eq.s32.totalorder %s36, 0
      %p351 = por %p349, %p350
      %p352 = scmp.ne.s32.totalorder %s340, %s341
      %p353 = scmp.eq.s32.totalorder %s37, 1
      %p354 = por %p352, %p353
      %p356 = scmp.ne.s32.totalorder %s341, %s355
      %p357 = scmp.eq.s32.totalorder %s37, 0
      %p358 = por %p356, %p357
      %s359 = ssub.s32 %s31, %s38
      %p360 = scmp.eq.s32.totalorder %s359, 0
      %s362 = sadd.s32 %s361, 1
      %s363 = scalar_select %p360, %s361, %s362
      %p366 = pneg %p360
      %p367 = scmp.eq.s32.totalorder %s31, 1
      %p368 = por %p366, %p367
      %p369 = scmp.ne.s32.totalorder %s361, %s364
      %p370 = scmp.eq.s32.totalorder %s31, 0
      %p371 = por %p369, %p370
      %p372 = scmp.ne.s32.totalorder %s361, %s364
      %p373 = scmp.eq.s32.totalorder %s36, 1
      %p374 = por %p372, %p373
      %p375 = scmp.ne.s32.totalorder %s364, %s365
      %p376 = scmp.eq.s32.totalorder %s36, 0
      %p377 = por %p375, %p376
      %p378 = scmp.ne.s32.totalorder %s364, %s365
      %p379 = scmp.eq.s32.totalorder %s37, 1
      %p380 = por %p378, %p379
      %p382 = scmp.ne.s32.totalorder %s365, %s381
      %p383 = scmp.eq.s32.totalorder %s37, 0
      %p384 = por %p382, %p383
      %p385 = scmp.le.s32.totalorder 1, %s31
      %p386 = scmp.lt.s32.totalorder %s31, 3
      %p387 = pnand %p385, %p386
      %p388 = pneg %p387
      // Predicated region
      $region9: #{tpu_custom_call.1} parent=5 // pred_check
        _
      $region10: #{tpu_custom_call.1} parent=5 // pred_check_branch
        %390 = sbr.rel (%p387) target = $region12
      $region11: #{tpu_custom_call.1} parent=5 // pred_region
        %s391 = ssub.s32 %s31, 1
        // Predicated region
        $region13: #{tpu_custom_call.1} parent=11 // pred_check
          %p392 = pneg %p78
        $region14: #{tpu_custom_call.1} parent=11 // pred_check_branch
          %394 = sbr.rel (%p392) target = $region16
        $region15: #{tpu_custom_call.1} parent=11 // pred_region
          %s396 = ssub.s32 32, 32
          %397 = vsyncadd [#allocation6], %s396
          %s398 = sshll.u32 [#allocation5], 4
          %s399 = int_to_ptr.vmem [resolvable:$true] %s398
          %404 = dma.hbm_to_vmem [thread:$0]  %s1, 32, %s399, [#allocation6], 16, 16, 1
        $region16: #{tpu_custom_call.1} parent=11 // pred_fallthru
          _
        // Predicated region
        $region17: #{tpu_custom_call.1} parent=11 // pred_check
          %p405 = pneg %p99
        $region18: #{tpu_custom_call.1} parent=11 // pred_check_branch
          %407 = sbr.rel (%p405) target = $region20
        $region19: #{tpu_custom_call.1} parent=11 // pred_region
          %s409 = ssub.s32 32, 32
          %410 = vsyncadd [#allocation6], %s409
          %s411 = sshll.u32 [#allocation7], 4
          %s412 = int_to_ptr.vmem [resolvable:$true] %s411
          %417 = dma.hbm_to_vmem [thread:$0]  %s2, 32, %s412, [#allocation6], 16, 16, 1
        $region20: #{tpu_custom_call.1} parent=11 // pred_fallthru
          _
        // Predicated region
        $region21: #{tpu_custom_call.1} parent=11 // pred_check
          %p418 = pneg %p120
        $region22: #{tpu_custom_call.1} parent=11 // pred_check_branch
          %420 = sbr.rel (%p418) target = $region24
        $region23: #{tpu_custom_call.1} parent=11 // pred_region
          %s422 = ssub.s32 6144, 6144
          %423 = vsyncadd [#allocation9], %s422
          %s424 = sshll.u32 [#allocation8], 4
          %s425 = int_to_ptr.vmem [resolvable:$true] %s424
          %430 = dma.hbm_to_vmem [thread:$0]  %s3, 6144, %s425, [#allocation9], 192, 192, 12
        $region24: #{tpu_custom_call.1} parent=11 // pred_fallthru
          _
        // Predicated region
        $region25: #{tpu_custom_call.1} parent=11 // pred_check
          %p431 = pneg %p141
        $region26: #{tpu_custom_call.1} parent=11 // pred_check_branch
          %433 = sbr.rel (%p431) target = $region28
        $region27: #{tpu_custom_call.1} parent=11 // pred_region
          _
        $region28: #{tpu_custom_call.1} parent=11 // pred_fallthru
          _
        // Predicated region
        $region29: #{tpu_custom_call.1} parent=11 // pred_check
          %p434 = pneg %p162
        $region30: #{tpu_custom_call.1} parent=11 // pred_check_branch
          %436 = sbr.rel (%p434) target = $region32
        $region31: #{tpu_custom_call.1} parent=11 // pred_region
          %s438 = ssub.s32 2048, 2048
          %439 = vsyncadd [#allocation9], %s438
          %s440 = sshll.u32 [#allocation10], 4
          %s441 = int_to_ptr.vmem [resolvable:$true] %s440
          %446 = dma.hbm_to_vmem [thread:$0]  %s5, 2048, %s441, [#allocation9], 64, 64, 4
        $region32: #{tpu_custom_call.1} parent=11 // pred_fallthru
          _
        // Predicated region
        $region33: #{tpu_custom_call.1} parent=11 // pred_check
          %p447 = pneg %p183
        $region34: #{tpu_custom_call.1} parent=11 // pred_check_branch
          %449 = sbr.rel (%p447) target = $region36
        $region35: #{tpu_custom_call.1} parent=11 // pred_region
          _
        $region36: #{tpu_custom_call.1} parent=11 // pred_fallthru
          _
        // Predicated region
        $region37: #{tpu_custom_call.1} parent=11 // pred_check
          %p450 = pneg %p204
        $region38: #{tpu_custom_call.1} parent=11 // pred_check_branch
          %452 = sbr.rel (%p450) target = $region40
        $region39: #{tpu_custom_call.1} parent=11 // pred_region
          %s454 = ssub.s32 32, 32
          %455 = vsyncadd [#allocation12], %s454
          %s456 = sshll.u32 [#allocation11], 4
          %s457 = int_to_ptr.vmem [resolvable:$true] %s456
          %462 = dma.hbm_to_vmem [thread:$0]  %s7, 32, %s457, [#allocation12], 16, 16, 1
        $region40: #{tpu_custom_call.1} parent=11 // pred_fallthru
          _
        // Predicated region
        $region41: #{tpu_custom_call.1} parent=11 // pred_check
          %p463 = pneg %p225
        $region42: #{tpu_custom_call.1} parent=11 // pred_check_branch
          %465 = sbr.rel (%p463) target = $region44
        $region43: #{tpu_custom_call.1} parent=11 // pred_region
          %s467 = ssub.s32 32, 32
          %468 = vsyncadd [#allocation12], %s467
          %s469 = sshll.u32 [#allocation13], 4
          %s470 = int_to_ptr.vmem [resolvable:$true] %s469
          %475 = dma.hbm_to_vmem [thread:$0]  %s8, 32, %s470, [#allocation12], 16, 16, 1
        $region44: #{tpu_custom_call.1} parent=11 // pred_fallthru
          _
        // Predicated region
        $region45: #{tpu_custom_call.1} parent=11 // pred_check
          %p476 = pneg %p246
        $region46: #{tpu_custom_call.1} parent=11 // pred_check_branch
          %478 = sbr.rel (%p476) target = $region48
        $region47: #{tpu_custom_call.1} parent=11 // pred_region
          %s480 = ssub.s32 8192, 8192
          %481 = vsyncadd [#allocation15], %s480
          %s482 = sshll.u32 [#allocation14], 4
          %s483 = int_to_ptr.vmem [resolvable:$true] %s482
          %488 = dma.hbm_to_vmem [thread:$0]  %s9, 8192, %s483, [#allocation15], 256, 256, 16
        $region48: #{tpu_custom_call.1} parent=11 // pred_fallthru
          _
        // Predicated region
        $region49: #{tpu_custom_call.1} parent=11 // pred_check
          %p489 = pneg %p267
        $region50: #{tpu_custom_call.1} parent=11 // pred_check_branch
          %491 = sbr.rel (%p489) target = $region52
        $region51: #{tpu_custom_call.1} parent=11 // pred_region
          _
        $region52: #{tpu_custom_call.1} parent=11 // pred_fallthru
          _
        // Predicated region
        $region53: #{tpu_custom_call.1} parent=11 // pred_check
          %p492 = pneg %p288
        $region54: #{tpu_custom_call.1} parent=11 // pred_check_branch
          %494 = sbr.rel (%p492) target = $region56
        $region55: #{tpu_custom_call.1} parent=11 // pred_region
          %s496 = ssub.s32 8192, 8192
          %497 = vsyncadd [#allocation15], %s496
          %s498 = sshll.u32 [#allocation16], 4
          %s499 = int_to_ptr.vmem [resolvable:$true] %s498
          %504 = dma.hbm_to_vmem [thread:$0]  %s11, 8192, %s499, [#allocation15], 64, 64, 4
        $region56: #{tpu_custom_call.1} parent=11 // pred_fallthru
          _
        // Predicated region
        $region57: #{tpu_custom_call.1} parent=11 // pred_check
          %p505 = pneg %p309
        $region58: #{tpu_custom_call.1} parent=11 // pred_check_branch
          %507 = sbr.rel (%p505) target = $region60
        $region59: #{tpu_custom_call.1} parent=11 // pred_region
          _
        $region60: #{tpu_custom_call.1} parent=11 // pred_fallthru
          _
        // Predicated region
        $region61: #{tpu_custom_call.1} parent=11 // pred_check
          %p508 = pneg %p330
        $region62: #{tpu_custom_call.1} parent=11 // pred_check_branch
          %510 = sbr.rel (%p508) target = $region64
        $region63: #{tpu_custom_call.1} parent=11 // pred_region
          _
        $region64: #{tpu_custom_call.1} parent=11 // pred_fallthru
          _
        // Predicated region
        $region65: #{tpu_custom_call.1} parent=11 // pred_check
          %p511 = pneg %p351
        $region66: #{tpu_custom_call.1} parent=11 // pred_check_branch
          %513 = sbr.rel (%p511) target = $region68
        $region67: #{tpu_custom_call.1} parent=11 // pred_region
          _
        $region68: #{tpu_custom_call.1} parent=11 // pred_fallthru
          _
      $region12: #{tpu_custom_call.1} parent=5 // pred_fallthru
        _
      %p514 = scmp.lt.s32.totalorder %s31, 2
      // Predicated region
      $region69: #{tpu_custom_call.1} parent=5 // pred_check
        %p515 = pneg %p514
      $region70: #{tpu_custom_call.1} parent=5 // pred_check_branch
        %517 = sbr.rel (%p515) target = $region72
      $region71: #{tpu_custom_call.1} parent=5 // pred_region
        // Predicated region
        $region73: #{tpu_custom_call.1} parent=71 // pred_check
          %p518 = pneg %p51
        $region74: #{tpu_custom_call.1} parent=71 // pred_check_branch
          %520 = sbr.rel (%p518) target = $region76
        $region75: #{tpu_custom_call.1} parent=71 // pred_region
          %s521 = sand.u32 %s41, 1
          %s522 = scalar_lea.sflag [#allocation3], %s521
          %s523 = sand.u32 %s41, 1
          %s524 = smul.addr %s523, 128
          %s525 = scalar_lea.vmem [#allocation2], %s524
          %s526 = smul.u32 2, %s31
          %s528 = ssub.s32 2048, 2048
          %529 = vsyncadd %s522, %s528
          %s530 = smul.addr %s526, 8
          %s531 = smul.addr %s530, 128
          %s532 = scalar_lea.hbm %s0, %s531
          %s533 = sshll.u32 %s525, 4
          %s534 = int_to_ptr.vmem [resolvable:$true] %s533
          %539 = dma.hbm_to_vmem [thread:$0]  %s532, 2048, %s534, %s522, 128, 128, 8
        $region76: #{tpu_custom_call.1} parent=71 // pred_fallthru
          _
      $region72: #{tpu_custom_call.1} parent=5 // pred_fallthru
        _
      %p540 = scmp.le.s32.totalorder 1, %s31
      %p541 = scmp.lt.s32.totalorder %s31, 3
      %p542 = pnand %p540, %p541
      %p543 = pneg %p542
      // Predicated region
      $region77: #{tpu_custom_call.1} parent=5 // pred_check
        _
      $region78: #{tpu_custom_call.1} parent=5 // pred_check_branch
        %545 = sbr.rel (%p542) target = $region80
      $region79: #{tpu_custom_call.1} parent=5 // pred_region
        %s546 = ssub.s32 %s31, 1
        %s547 = sand.u32 %s44, 1
        %s548 = scalar_lea.sflag [#allocation3], %s547
        %s549 = sand.u32 %s44, 1
        %s550 = smul.addr %s549, 128
        %s551 = scalar_lea.vmem [#allocation2], %s550
        // Predicated region
        $region81: #{tpu_custom_call.1} parent=79 // pred_check
          %p552 = pneg %p57
        $region82: #{tpu_custom_call.1} parent=79 // pred_check_branch
          %554 = sbr.rel (%p552) target = $region84
        $region83: #{tpu_custom_call.1} parent=79 // pred_region
          %555 = dma.done %s548, 2048
        $region84: #{tpu_custom_call.1} parent=79 // pred_fallthru
          _
        // Predicated region
        $region85: #{tpu_custom_call.1} parent=79 // pred_check
          %p556 = pneg %p78
        $region86: #{tpu_custom_call.1} parent=79 // pred_check_branch
          %558 = sbr.rel (%p556) target = $region88
        $region87: #{tpu_custom_call.1} parent=79 // pred_region
          %559 = dma.done [#allocation6], 32
        $region88: #{tpu_custom_call.1} parent=79 // pred_fallthru
          _
        // Predicated region
        $region89: #{tpu_custom_call.1} parent=79 // pred_check
          %p560 = pneg %p99
        $region90: #{tpu_custom_call.1} parent=79 // pred_check_branch
          %562 = sbr.rel (%p560) target = $region92
        $region91: #{tpu_custom_call.1} parent=79 // pred_region
          %563 = dma.done [#allocation6], 32
        $region92: #{tpu_custom_call.1} parent=79 // pred_fallthru
          _
        // Predicated region
        $region93: #{tpu_custom_call.1} parent=79 // pred_check
          %p564 = pneg %p120
        $region94: #{tpu_custom_call.1} parent=79 // pred_check_branch
          %566 = sbr.rel (%p564) target = $region96
        $region95: #{tpu_custom_call.1} parent=79 // pred_region
          %567 = dma.done [#allocation9], 6144
        $region96: #{tpu_custom_call.1} parent=79 // pred_fallthru
          _
        // Predicated region
        $region97: #{tpu_custom_call.1} parent=79 // pred_check
          %p568 = pneg %p162
        $region98: #{tpu_custom_call.1} parent=79 // pred_check_branch
          %570 = sbr.rel (%p568) target = $region100
        $region99: #{tpu_custom_call.1} parent=79 // pred_region
          %571 = dma.done [#allocation9], 2048
        $region100: #{tpu_custom_call.1} parent=79 // pred_fallthru
          _
        // Predicated region
        $region101: #{tpu_custom_call.1} parent=79 // pred_check
          %p572 = pneg %p204
        $region102: #{tpu_custom_call.1} parent=79 // pred_check_branch
          %574 = sbr.rel (%p572) target = $region104
        $region103: #{tpu_custom_call.1} parent=79 // pred_region
          %575 = dma.done [#allocation12], 32
        $region104: #{tpu_custom_call.1} parent=79 // pred_fallthru
          _
        // Predicated region
        $region105: #{tpu_custom_call.1} parent=79 // pred_check
          %p576 = pneg %p225
        $region106: #{tpu_custom_call.1} parent=79 // pred_check_branch
          %578 = sbr.rel (%p576) target = $region108
        $region107: #{tpu_custom_call.1} parent=79 // pred_region
          %579 = dma.done [#allocation12], 32
        $region108: #{tpu_custom_call.1} parent=79 // pred_fallthru
          _
        // Predicated region
        $region109: #{tpu_custom_call.1} parent=79 // pred_check
          %p580 = pneg %p246
        $region110: #{tpu_custom_call.1} parent=79 // pred_check_branch
          %582 = sbr.rel (%p580) target = $region112
        $region111: #{tpu_custom_call.1} parent=79 // pred_region
          %583 = dma.done [#allocation15], 8192
        $region112: #{tpu_custom_call.1} parent=79 // pred_fallthru
          _
        // Predicated region
        $region113: #{tpu_custom_call.1} parent=79 // pred_check
          %p584 = pneg %p288
        $region114: #{tpu_custom_call.1} parent=79 // pred_check_branch
          %586 = sbr.rel (%p584) target = $region116
        $region115: #{tpu_custom_call.1} parent=79 // pred_region
          %587 = dma.done [#allocation15], 8192
        $region116: #{tpu_custom_call.1} parent=79 // pred_fallthru
          _
        %s588 = sand.u32 %s44, 1
        %s589 = scalar_lea.sflag [#allocation3], %s588
        %s590 = sand.u32 %s44, 1
        %s591 = smul.addr %s590, 128
        %s592 = scalar_lea.vmem [#allocation2], %s591
        %p593 = pneg %p57
        %p594 = pneg %p54
        %p595 = pneg %p78
        %p596 = pneg %p75
        %p597 = pneg %p99
        %p598 = pneg %p96
        %p599 = pneg %p120
        %p600 = pneg %p117
        %p601 = pneg %p141
        %p602 = pneg %p138
        %p603 = pneg %p162
        %p604 = pneg %p159
        %p605 = pneg %p183
        %p606 = pneg %p180
        %p607 = pneg %p204
        %p608 = pneg %p201
        %p609 = pneg %p225
        %p610 = pneg %p222
        %p611 = pneg %p246
        %p612 = pneg %p243
        %p613 = pneg %p267
        %p614 = pneg %p264
        %p615 = pneg %p288
        %p616 = pneg %p285
        %p617 = pneg %p309
        %p618 = pneg %p306
        %p619 = pneg %p330
        %p620 = pneg %p327
        %p621 = pneg %p351
        %p622 = pneg %p348
        %p623 = pneg %p377
        %p624 = pneg %p374
        %s625 = sand.u32 %s364, 1
        %s626 = scalar_lea.sflag [#allocation4], %s625
        %s627 = sand.u32 %s364, 1
        %s628 = smul.addr %s627, 128
        %s629 = scalar_lea.vmem [#allocation17], %s628
        %s630 = smul.u32 2, %s36
        %s631 = smul.u32 2, %s36
        %v633 = vld [vmem:[%s551] sm:$0xff]
        %v634 = vld [vmem:[%s551 + $0x8] sm:$0xff]
        %v635 = vld [vmem:[%s551 + $0x10] sm:$0xff]
        %v636 = vld [vmem:[%s551 + $0x18] sm:$0xff]
        %v637 = vld [vmem:[%s551 + $0x20] sm:$0xff]
        %v638 = vld [vmem:[%s551 + $0x28] sm:$0xff]
        %v639 = vld [vmem:[%s551 + $0x30] sm:$0xff]
        %v640 = vld [vmem:[%s551 + $0x38] sm:$0xff]
        %v641 = vld [vmem:[%s551 + $0x40] sm:$0xff]
        %v642 = vld [vmem:[%s551 + $0x48] sm:$0xff]
        %v643 = vld [vmem:[%s551 + $0x50] sm:$0xff]
        %v644 = vld [vmem:[%s551 + $0x58] sm:$0xff]
        %v645 = vld [vmem:[%s551 + $0x60] sm:$0xff]
        %v646 = vld [vmem:[%s551 + $0x68] sm:$0xff]
        %v647 = vld [vmem:[%s551 + $0x70] sm:$0xff]
        %v648 = vld [vmem:[%s551 + $0x78] sm:$0xff]
        %v649 = vld [vmem:[#allocation5] sm:$0x1]
        %v650 = vld [vmem:[#allocation7] sm:$0x1]
        %651 = vadd.xlane.f32.xlu0 %v633
        %v652 = vpop.xlane.xlu0 %651
        %653 = vadd.xlane.f32.xlu0 %v634
        %v654 = vpop.xlane.xlu0 %653
        %655 = vadd.xlane.f32.xlu0 %v635
        %v656 = vpop.xlane.xlu0 %655
        %657 = vadd.xlane.f32.xlu0 %v636
        %v658 = vpop.xlane.xlu0 %657
        %659 = vadd.xlane.f32.xlu0 %v637
        %v660 = vpop.xlane.xlu0 %659
        %661 = vadd.xlane.f32.xlu0 %v638
        %v662 = vpop.xlane.xlu0 %661
        %663 = vadd.xlane.f32.xlu0 %v639
        %v664 = vpop.xlane.xlu0 %663
        %665 = vadd.xlane.f32.xlu0 %v640
        %v666 = vpop.xlane.xlu0 %665
        %667 = vadd.xlane.f32.xlu0 %v641
        %v668 = vpop.xlane.xlu0 %667
        %669 = vadd.xlane.f32.xlu0 %v642
        %v670 = vpop.xlane.xlu0 %669
        %671 = vadd.xlane.f32.xlu0 %v643
        %v672 = vpop.xlane.xlu0 %671
        %673 = vadd.xlane.f32.xlu0 %v644
        %v674 = vpop.xlane.xlu0 %673
        %675 = vadd.xlane.f32.xlu0 %v645
        %v676 = vpop.xlane.xlu0 %675
        %677 = vadd.xlane.f32.xlu0 %v646
        %v678 = vpop.xlane.xlu0 %677
        %679 = vadd.xlane.f32.xlu0 %v647
        %v680 = vpop.xlane.xlu0 %679
        %681 = vadd.xlane.f32.xlu0 %v648
        %v682 = vpop.xlane.xlu0 %681
        %v683 = vrcp.pop 128.0
        %v684 = vmul.f32 %v652, %v683
        %v685 = vmul.f32 %v654, %v683
        %v686 = vmul.f32 %v656, %v683
        %v687 = vmul.f32 %v658, %v683
        %v688 = vmul.f32 %v660, %v683
        %v689 = vmul.f32 %v662, %v683
        %v690 = vmul.f32 %v664, %v683
        %v691 = vmul.f32 %v666, %v683
        %v692 = vmul.f32 %v668, %v683
        %v693 = vmul.f32 %v670, %v683
        %v694 = vmul.f32 %v672, %v683
        %v695 = vmul.f32 %v674, %v683
        %v696 = vmul.f32 %v676, %v683
        %v697 = vmul.f32 %v678, %v683
        %v698 = vmul.f32 %v680, %v683
        %v699 = vmul.f32 %v682, %v683
        %v700 = vsub.f32 %v633, %v684
        %v701 = vsub.f32 %v634, %v685
        %v702 = vsub.f32 %v635, %v686
        %v703 = vsub.f32 %v636, %v687
        %v704 = vsub.f32 %v637, %v688
        %v705 = vsub.f32 %v638, %v689
        %v706 = vsub.f32 %v639, %v690
        %v707 = vsub.f32 %v640, %v691
        %v708 = vsub.f32 %v641, %v692
        %v709 = vsub.f32 %v642, %v693
        %v710 = vsub.f32 %v643, %v694
        %v711 = vsub.f32 %v644, %v695
        %v712 = vsub.f32 %v645, %v696
        %v713 = vsub.f32 %v646, %v697
        %v714 = vsub.f32 %v647, %v698
        %v715 = vsub.f32 %v648, %v699
        %v716 = vmul.f32 %v700, %v700
        %v717 = vmul.f32 %v701, %v701
        %v718 = vmul.f32 %v702, %v702
        %v719 = vmul.f32 %v703, %v703
        %v720 = vmul.f32 %v704, %v704
        %v721 = vmul.f32 %v705, %v705
        %v722 = vmul.f32 %v706, %v706
        %v723 = vmul.f32 %v707, %v707
        %v724 = vmul.f32 %v708, %v708
        %v725 = vmul.f32 %v709, %v709
        %v726 = vmul.f32 %v710, %v710
        %v727 = vmul.f32 %v711, %v711
        %v728 = vmul.f32 %v712, %v712
        %v729 = vmul.f32 %v713, %v713
        %v730 = vmul.f32 %v714, %v714
        %v731 = vmul.f32 %v715, %v715
        %732 = vadd.xlane.f32.xlu0 %v716
        %v733 = vpop.xlane.xlu0 %732
        %734 = vadd.xlane.f32.xlu0 %v717
        %v735 = vpop.xlane.xlu0 %734
        %736 = vadd.xlane.f32.xlu0 %v718
        %v737 = vpop.xlane.xlu0 %736
        %738 = vadd.xlane.f32.xlu0 %v719
        %v739 = vpop.xlane.xlu0 %738
        %740 = vadd.xlane.f32.xlu0 %v720
        %v741 = vpop.xlane.xlu0 %740
        %742 = vadd.xlane.f32.xlu0 %v721
        %v743 = vpop.xlane.xlu0 %742
        %744 = vadd.xlane.f32.xlu0 %v722
        %v745 = vpop.xlane.xlu0 %744
        %746 = vadd.xlane.f32.xlu0 %v723
        %v747 = vpop.xlane.xlu0 %746
        %748 = vadd.xlane.f32.xlu0 %v724
        %v749 = vpop.xlane.xlu0 %748
        %750 = vadd.xlane.f32.xlu0 %v725
        %v751 = vpop.xlane.xlu0 %750
        %752 = vadd.xlane.f32.xlu0 %v726
        %v753 = vpop.xlane.xlu0 %752
        %754 = vadd.xlane.f32.xlu0 %v727
        %v755 = vpop.xlane.xlu0 %754
        %756 = vadd.xlane.f32.xlu0 %v728
        %v757 = vpop.xlane.xlu0 %756
        %758 = vadd.xlane.f32.xlu0 %v729
        %v759 = vpop.xlane.xlu0 %758
        %760 = vadd.xlane.f32.xlu0 %v730
        %v761 = vpop.xlane.xlu0 %760
        %762 = vadd.xlane.f32.xlu0 %v731
        %v763 = vpop.xlane.xlu0 %762
        %v764 = vmul.f32 %v733, %v683
        %v765 = vmul.f32 %v735, %v683
        %v766 = vmul.f32 %v737, %v683
        %v767 = vmul.f32 %v739, %v683
        %v768 = vmul.f32 %v741, %v683
        %v769 = vmul.f32 %v743, %v683
        %v770 = vmul.f32 %v745, %v683
        %v771 = vmul.f32 %v747, %v683
        %v772 = vmul.f32 %v749, %v683
        %v773 = vmul.f32 %v751, %v683
        %v774 = vmul.f32 %v753, %v683
        %v775 = vmul.f32 %v755, %v683
        %v776 = vmul.f32 %v757, %v683
        %v777 = vmul.f32 %v759, %v683
        %v778 = vmul.f32 %v761, %v683
        %v779 = vmul.f32 %v763, %v683
        %v780 = vadd.f32 %v764, 1e-05
        %v781 = vadd.f32 %v765, 1e-05
        %v782 = vadd.f32 %v766, 1e-05
        %v783 = vadd.f32 %v767, 1e-05
        %v784 = vadd.f32 %v768, 1e-05
        %v785 = vadd.f32 %v769, 1e-05
        %v786 = vadd.f32 %v770, 1e-05
        %v787 = vadd.f32 %v771, 1e-05
        %v788 = vadd.f32 %v772, 1e-05
        %v789 = vadd.f32 %v773, 1e-05
        %v790 = vadd.f32 %v774, 1e-05
        %v791 = vadd.f32 %v775, 1e-05
        %v792 = vadd.f32 %v776, 1e-05
        %v793 = vadd.f32 %v777, 1e-05
        %v794 = vadd.f32 %v778, 1e-05
        %v795 = vadd.f32 %v779, 1e-05
        %v796 = vrsqrt.pop %v780
        %v797 = vrsqrt.pop %v781
        %v798 = vrsqrt.pop %v782
        %v799 = vrsqrt.pop %v783
        %v800 = vrsqrt.pop %v784
        %v801 = vrsqrt.pop %v785
        %v802 = vrsqrt.pop %v786
        %v803 = vrsqrt.pop %v787
        %v804 = vrsqrt.pop %v788
        %v805 = vrsqrt.pop %v789
        %v806 = vrsqrt.pop %v790
        %v807 = vrsqrt.pop %v791
        %v808 = vrsqrt.pop %v792
        %v809 = vrsqrt.pop %v793
        %v810 = vrsqrt.pop %v794
        %v811 = vrsqrt.pop %v795
        %v812 = vmul.f32 %v700, %v796
        %v813 = vmul.f32 %v701, %v797
        %v814 = vmul.f32 %v702, %v798
        %v815 = vmul.f32 %v703, %v799
        %v816 = vmul.f32 %v704, %v800
        %v817 = vmul.f32 %v705, %v801
        %v818 = vmul.f32 %v706, %v802
        %v819 = vmul.f32 %v707, %v803
        %v820 = vmul.f32 %v708, %v804
        %v821 = vmul.f32 %v709, %v805
        %v822 = vmul.f32 %v710, %v806
        %v823 = vmul.f32 %v711, %v807
        %v824 = vmul.f32 %v712, %v808
        %v825 = vmul.f32 %v713, %v809
        %v826 = vmul.f32 %v714, %v810
        %v827 = vmul.f32 %v715, %v811
        %v829 = vlaneseq
        %v830 = vshrl.u32 %v829, 7
        %v831 = vsub.s32 0, %v830
        %v832 = vrot.slane %v649, %v831
        %v834 = vmul.f32 %v812, %v832
        %v835 = vmul.f32 %v813, %v832
        %v836 = vmul.f32 %v814, %v832
        %v837 = vmul.f32 %v815, %v832
        %v838 = vmul.f32 %v816, %v832
        %v839 = vmul.f32 %v817, %v832
        %v840 = vmul.f32 %v818, %v832
        %v841 = vmul.f32 %v819, %v832
        %v842 = vmul.f32 %v820, %v832
        %v843 = vmul.f32 %v821, %v832
        %v844 = vmul.f32 %v822, %v832
        %v845 = vmul.f32 %v823, %v832
        %v846 = vmul.f32 %v824, %v832
        %v847 = vmul.f32 %v825, %v832
        %v848 = vmul.f32 %v826, %v832
        %v849 = vmul.f32 %v827, %v832
        %v851 = vlaneseq
        %v852 = vshrl.u32 %v851, 7
        %v853 = vsub.s32 0, %v852
        %v854 = vrot.slane %v650, %v853
        %v856 = vadd.f32 %v834, %v854
        %v857 = vadd.f32 %v835, %v854
        %v858 = vadd.f32 %v836, %v854
        %v859 = vadd.f32 %v837, %v854
        %v860 = vadd.f32 %v838, %v854
        %v861 = vadd.f32 %v839, %v854
        %v862 = vadd.f32 %v840, %v854
        %v863 = vadd.f32 %v841, %v854
        %v864 = vadd.f32 %v842, %v854
        %v865 = vadd.f32 %v843, %v854
        %v866 = vadd.f32 %v844, %v854
        %v867 = vadd.f32 %v845, %v854
        %v868 = vadd.f32 %v846, %v854
        %v869 = vadd.f32 %v847, %v854
        %v870 = vadd.f32 %v848, %v854
        %v871 = vadd.f32 %v849, %v854
        %v872 = vpack.c.bf16 %v857, %v856
        %v873 = vpack.c.bf16 %v859, %v858
        %v874 = vpack.c.bf16 %v861, %v860
        %v875 = vpack.c.bf16 %v863, %v862
        %v876 = vpack.c.bf16 %v865, %v864
        %v877 = vpack.c.bf16 %v867, %v866
        %v878 = vpack.c.bf16 %v869, %v868
        %v879 = vpack.c.bf16 %v871, %v870
        %v880 = vld [vmem:[#allocation8] sm:$0xff]
        %v881 = vld [vmem:[#allocation8 + $0x8] sm:$0xf]
        %v882 = vld [vmem:[#allocation8 + $0xc] sm:$0xff]
        %v883 = vld [vmem:[#allocation8 + $0x14] sm:$0xf]
        %v884 = vld [vmem:[#allocation8 + $0x18] sm:$0xff]
        %v885 = vld [vmem:[#allocation8 + $0x20] sm:$0xf]
        %v886 = vld [vmem:[#allocation8 + $0x24] sm:$0xff]
        %v887 = vld [vmem:[#allocation8 + $0x2c] sm:$0xf]
        %v888 = vld [vmem:[#allocation8 + $0x30] sm:$0xff]
        %v889 = vld [vmem:[#allocation8 + $0x38] sm:$0xf]
        %v890 = vld [vmem:[#allocation8 + $0x3c] sm:$0xff]
        %v891 = vld [vmem:[#allocation8 + $0x44] sm:$0xf]
        %v892 = vld [vmem:[#allocation8 + $0x48] sm:$0xff]
        %v893 = vld [vmem:[#allocation8 + $0x50] sm:$0xf]
        %v894 = vld [vmem:[#allocation8 + $0x54] sm:$0xff]
        %v895 = vld [vmem:[#allocation8 + $0x5c] sm:$0xf]
        %v896 = vld [vmem:[#allocation8 + $0x60] sm:$0xff]
        %v897 = vld [vmem:[#allocation8 + $0x68] sm:$0xf]
        %v898 = vld [vmem:[#allocation8 + $0x6c] sm:$0xff]
        %v899 = vld [vmem:[#allocation8 + $0x74] sm:$0xf]
        %v900 = vld [vmem:[#allocation8 + $0x78] sm:$0xff]
        %v901 = vld [vmem:[#allocation8 + $0x80] sm:$0xf]
        %v902 = vld [vmem:[#allocation8 + $0x84] sm:$0xff]
        %v903 = vld [vmem:[#allocation8 + $0x8c] sm:$0xf]
        %v904 = vld [vmem:[#allocation8 + $0x90] sm:$0xff]
        %v905 = vld [vmem:[#allocation8 + $0x98] sm:$0xf]
        %v906 = vld [vmem:[#allocation8 + $0x9c] sm:$0xff]
        %v907 = vld [vmem:[#allocation8 + $0xa4] sm:$0xf]
        %v908 = vld [vmem:[#allocation8 + $0xa8] sm:$0xff]
        %v909 = vld [vmem:[#allocation8 + $0xb0] sm:$0xf]
        %v910 = vld [vmem:[#allocation8 + $0xb4] sm:$0xff]
        %v911 = vld [vmem:[#allocation8 + $0xbc] sm:$0xf]
        %v912 = vld [vmem:[%s4] sm:$0x7]
        %v914 = vlaneseq
        %v915 = vshrl.u32 %v914, 7
        %v916 = vsub.s32 0, %v915
        %v917 = vrot.slane %v912, %v916
        %v918 = vlaneseq
        %v919 = vshrl.u32 %v918, 7
        %v920 = vsub.s32 1, %v919
        %v921 = vrot.slane %v912, %v920
        %v922 = vlaneseq
        %v923 = vshrl.u32 %v922, 7
        %v924 = vsub.s32 2, %v923
        %v925 = vrot.slane %v912, %v924
        %v961 = vunpack.c.l.b16 %v880
        %v962 = vunpack.c.h.b16 %v880
        %v963 = vunpack.c.l.b16 %v881
        %v964 = vunpack.c.l.b16 %v882
        %v965 = vunpack.c.h.b16 %v882
        %v966 = vunpack.c.l.b16 %v883
        %v967 = vunpack.c.l.b16 %v884
        %v968 = vunpack.c.h.b16 %v884
        %v969 = vunpack.c.l.b16 %v885
        %v970 = vunpack.c.l.b16 %v886
        %v971 = vunpack.c.h.b16 %v886
        %v972 = vunpack.c.l.b16 %v887
        %v973 = vunpack.c.l.b16 %v888
        %v974 = vunpack.c.h.b16 %v888
        %v975 = vunpack.c.l.b16 %v889
        %v976 = vunpack.c.l.b16 %v890
        %v977 = vunpack.c.h.b16 %v890
        %v978 = vunpack.c.l.b16 %v891
        %v979 = vunpack.c.l.b16 %v892
        %v980 = vunpack.c.h.b16 %v892
        %v981 = vunpack.c.l.b16 %v893
        %v982 = vunpack.c.l.b16 %v894
        %v983 = vunpack.c.h.b16 %v894
        %v984 = vunpack.c.l.b16 %v895
        %v985 = vunpack.c.l.b16 %v896
        %v986 = vunpack.c.h.b16 %v896
        %v987 = vunpack.c.l.b16 %v897
        %v988 = vunpack.c.l.b16 %v898
        %v989 = vunpack.c.h.b16 %v898
        %v990 = vunpack.c.l.b16 %v899
        %v991 = vunpack.c.l.b16 %v900
        %v992 = vunpack.c.h.b16 %v900
        %v993 = vunpack.c.l.b16 %v901
        %v994 = vunpack.c.l.b16 %v902
        %v995 = vunpack.c.h.b16 %v902
        %v996 = vunpack.c.l.b16 %v903
        %v997 = vunpack.c.l.b16 %v904
        %v998 = vunpack.c.h.b16 %v904
        %v999 = vunpack.c.l.b16 %v905
        %v1000 = vunpack.c.l.b16 %v906
        %v1001 = vunpack.c.h.b16 %v906
        %v1002 = vunpack.c.l.b16 %v907
        %v1003 = vunpack.c.l.b16 %v908
        %v1004 = vunpack.c.h.b16 %v908
        %v1005 = vunpack.c.l.b16 %v909
        %v1006 = vunpack.c.l.b16 %v910
        %v1007 = vunpack.c.h.b16 %v910
        %v1008 = vunpack.c.l.b16 %v911
        %v1009 = vpack.c.b16 %v964, %v961
        %v1010 = vpack.c.b16 %v965, %v962
        %v1011 = vpack.c.b16 %v966, %v963
        %v1012 = vpack.c.b16 %v970, %v967
        %v1013 = vpack.c.b16 %v971, %v968
        %v1014 = vpack.c.b16 %v972, %v969
        %v1015 = vpack.c.b16 %v976, %v973
        %v1016 = vpack.c.b16 %v977, %v974
        %v1017 = vpack.c.b16 %v978, %v975
        %v1018 = vpack.c.b16 %v982, %v979
        %v1019 = vpack.c.b16 %v983, %v980
        %v1020 = vpack.c.b16 %v984, %v981
        %v1021 = vpack.c.b16 %v988, %v985
        %v1022 = vpack.c.b16 %v989, %v986
        %v1023 = vpack.c.b16 %v990, %v987
        %v1024 = vpack.c.b16 %v994, %v991
        %v1025 = vpack.c.b16 %v995, %v992
        %v1026 = vpack.c.b16 %v996, %v993
        %v1027 = vpack.c.b16 %v1000, %v997
        %v1028 = vpack.c.b16 %v1001, %v998
        %v1029 = vpack.c.b16 %v1002, %v999
        %v1030 = vpack.c.b16 %v1006, %v1003
        %v1031 = vpack.c.b16 %v1007, %v1004
        %v1032 = vpack.c.b16 %v1008, %v1005
        %1057 = vmatprep.subr.bf16.mxu0 %v1031
        %1058 = vmatpush1.bf16.msra.mxu0 %v1030
        %1059 = vmatprep.subr.bf16.mxu0 %v1028
        %1060 = vmatpush1.bf16.msra.mxu0 %v1027
        %1061 = vmatprep.subr.bf16.mxu0 %v1025
        %1062 = vmatpush1.bf16.msra.mxu0 %v1024
        %1063 = vmatprep.subr.bf16.mxu0 %v1022
        %1064 = vmatpush1.bf16.msra.mxu0 %v1021
        %1065 = vmatprep.subr.bf16.mxu0 %v1019
        %1066 = vmatpush1.bf16.msra.mxu0 %v1018
        %1067 = vmatprep.subr.bf16.mxu0 %v1016
        %1068 = vmatpush1.bf16.msra.mxu0 %v1015
        %1069 = vmatprep.subr.bf16.mxu0 %v1013
        %1070 = vmatpush1.bf16.msra.mxu0 %v1012
        %1071 = vmatprep.subr.bf16.mxu0 %v1010
        %1072 = vmatpush1.bf16.msra.mxu0 %v1009
        %1073 = vmatprep.subr.bf16.mxu0 0
        %1074 = vmatpush2.bf16.msra.mxu0 0
        %1075 = vmatprep.subr.bf16.mxu0 0
        %1076 = vmatpush2.bf16.msra.mxu0 0
        %1077 = vmatprep.subr.bf16.mxu0 0
        %1078 = vmatpush2.bf16.msra.mxu0 0
        %1079 = vmatprep.subr.bf16.mxu0 0
        %1080 = vmatpush2.bf16.msra.mxu0 0
        %1081 = vmatprep.subr.bf16.mxu0 0
        %1082 = vmatpush2.bf16.msra.mxu0 0
        %1083 = vmatprep.subr.bf16.mxu0 0
        %1084 = vmatpush2.bf16.msra.mxu0 0
        %1085 = vmatprep.subr.bf16.mxu0 0
        %1086 = vmatpush2.bf16.msra.mxu0 0
        %1087 = vmatprep.subr.bf16.mxu0 0
        %1088 = vmatpush2.bf16.msra.mxu0 0
        %1089 = vmatprep.mubr.bf16.mxu0 0
        %1090 = vmatmul.mubr.bf16.gmra.mxu0 %v872
        %v1091 = vpop.f32.mrf.mxu0
        %v1092 = vadd.f32 %v917, %v1091
        %v1093 = vpop.f32.mrf.mxu0
        %v1094 = vadd.f32 %v921, %v1093
        %v1095 = vpop.f32.mrf.mxu0
        %v1096 = vadd.f32 %v917, %v1095
        %v1097 = vpop.f32.mrf.mxu0
        %v1098 = vadd.f32 %v921, %v1097
        %1099 = vmatprep.mubr.bf16.mxu0 0
        %1100 = vmatmul.mubr.bf16.gmra.mxu0 %v873
        %v1101 = vpop.f32.mrf.mxu0
        %v1102 = vadd.f32 %v917, %v1101
        %v1103 = vpop.f32.mrf.mxu0
        %v1104 = vadd.f32 %v921, %v1103
        %v1105 = vpop.f32.mrf.mxu0
        %v1106 = vadd.f32 %v917, %v1105
        %v1107 = vpop.f32.mrf.mxu0
        %v1108 = vadd.f32 %v921, %v1107
        %1109 = vmatprep.mubr.bf16.mxu0 0
        %1110 = vmatmul.mubr.bf16.gmra.mxu0 %v874
        %v1111 = vpop.f32.mrf.mxu0
        %v1112 = vadd.f32 %v917, %v1111
        %v1113 = vpop.f32.mrf.mxu0
        %v1114 = vadd.f32 %v921, %v1113
        %v1115 = vpop.f32.mrf.mxu0
        %v1116 = vadd.f32 %v917, %v1115
        %v1117 = vpop.f32.mrf.mxu0
        %v1118 = vadd.f32 %v921, %v1117
        %1119 = vmatprep.mubr.bf16.mxu0 0
        %1120 = vmatmul.mubr.bf16.gmra.mxu0 %v875
        %v1121 = vpop.f32.mrf.mxu0
        %v1122 = vadd.f32 %v917, %v1121
        %v1123 = vpop.f32.mrf.mxu0
        %v1124 = vadd.f32 %v921, %v1123
        %v1125 = vpop.f32.mrf.mxu0
        %v1126 = vadd.f32 %v917, %v1125
        %v1127 = vpop.f32.mrf.mxu0
        %v1128 = vadd.f32 %v921, %v1127
        %1129 = vmatprep.mubr.bf16.mxu0 0
        %1130 = vmatmul.mubr.bf16.gmra.mxu0 %v876
        %v1131 = vpop.f32.mrf.mxu0
        %v1132 = vadd.f32 %v917, %v1131
        %v1133 = vpop.f32.mrf.mxu0
        %v1134 = vadd.f32 %v921, %v1133
        %v1135 = vpop.f32.mrf.mxu0
        %v1136 = vadd.f32 %v917, %v1135
        %v1137 = vpop.f32.mrf.mxu0
        %v1138 = vadd.f32 %v921, %v1137
        %1139 = vmatprep.mubr.bf16.mxu0 0
        %1140 = vmatmul.mubr.bf16.gmra.mxu0 %v877
        %v1141 = vpop.f32.mrf.mxu0
        %v1142 = vadd.f32 %v917, %v1141
        %v1143 = vpop.f32.mrf.mxu0
        %v1144 = vadd.f32 %v921, %v1143
        %v1145 = vpop.f32.mrf.mxu0
        %v1146 = vadd.f32 %v917, %v1145
        %v1147 = vpop.f32.mrf.mxu0
        %v1148 = vadd.f32 %v921, %v1147
        %1149 = vmatprep.mubr.bf16.mxu0 0
        %1150 = vmatmul.mubr.bf16.gmra.mxu0 %v878
        %v1151 = vpop.f32.mrf.mxu0
        %v1152 = vadd.f32 %v917, %v1151
        %v1153 = vpop.f32.mrf.mxu0
        %v1154 = vadd.f32 %v921, %v1153
        %v1155 = vpop.f32.mrf.mxu0
        %v1156 = vadd.f32 %v917, %v1155
        %v1157 = vpop.f32.mrf.mxu0
        %v1158 = vadd.f32 %v921, %v1157
        %1159 = vmatprep.mubr.bf16.mxu0 0
        %1160 = vmatmul.mubr.bf16.gmra.mxu0 %v879
        %v1161 = vpop.f32.mrf.mxu0
        %v1162 = vadd.f32 %v917, %v1161
        %v1163 = vpop.f32.mrf.mxu0
        %v1164 = vadd.f32 %v921, %v1163
        %v1165 = vpop.f32.mrf.mxu0
        %v1166 = vadd.f32 %v917, %v1165
        %v1167 = vpop.f32.mrf.mxu0
        %v1168 = vadd.f32 %v921, %v1167
        %1169 = vdwg.mxu0
        %1170 = vmatprep.subr.bf16.mxu0 0
        %1171 = vmatpush1.bf16.msra.mxu0 %v1032
        %1172 = vmatprep.subr.bf16.mxu0 0
        %1173 = vmatpush1.bf16.msra.mxu0 %v1029
        %1174 = vmatprep.subr.bf16.mxu0 0
        %1175 = vmatpush1.bf16.msra.mxu0 %v1026
        %1176 = vmatprep.subr.bf16.mxu0 0
        %1177 = vmatpush1.bf16.msra.mxu0 %v1023
        %1178 = vmatprep.subr.bf16.mxu0 0
        %1179 = vmatpush1.bf16.msra.mxu0 %v1020
        %1180 = vmatprep.subr.bf16.mxu0 0
        %1181 = vmatpush1.bf16.msra.mxu0 %v1017
        %1182 = vmatprep.subr.bf16.mxu0 0
        %1183 = vmatpush1.bf16.msra.mxu0 %v1014
        %1184 = vmatprep.subr.bf16.mxu0 0
        %1185 = vmatpush1.bf16.msra.mxu0 %v1011
        %1186 = vmatprep.subr.bf16.mxu0 0
        %1187 = vmatpush2.bf16.msra.mxu0 0
        %1188 = vmatprep.subr.bf16.mxu0 0
        %1189 = vmatpush2.bf16.msra.mxu0 0
        %1190 = vmatprep.subr.bf16.mxu0 0
        %1191 = vmatpush2.bf16.msra.mxu0 0
        %1192 = vmatprep.subr.bf16.mxu0 0
        %1193 = vmatpush2.bf16.msra.mxu0 0
        %1194 = vmatprep.subr.bf16.mxu0 0
        %1195 = vmatpush2.bf16.msra.mxu0 0
        %1196 = vmatprep.subr.bf16.mxu0 0
        %1197 = vmatpush2.bf16.msra.mxu0 0
        %1198 = vmatprep.subr.bf16.mxu0 0
        %1199 = vmatpush2.bf16.msra.mxu0 0
        %1200 = vmatprep.subr.bf16.mxu0 0
        %1201 = vmatpush2.bf16.msra.mxu0 0
        %1202 = vmatprep.mubr.bf16.mxu0 0
        %1203 = vmatmul.mubr.bf16.gmra.mxu0 %v872
        %v1204 = vpop.f32.mrf.mxu0
        %v1205 = vadd.f32 %v925, %v1204
        %v1206 = vpop.f32.mrf.mxu0
        %v1207 = vpop.f32.mrf.mxu0
        %v1208 = vadd.f32 %v925, %v1207
        %v1209 = vpop.f32.mrf.mxu0
        %1210 = vmatprep.mubr.bf16.mxu0 0
        %1211 = vmatmul.mubr.bf16.gmra.mxu0 %v873
        %v1212 = vpop.f32.mrf.mxu0
        %v1213 = vadd.f32 %v925, %v1212
        %v1214 = vpop.f32.mrf.mxu0
        %v1215 = vpop.f32.mrf.mxu0
        %v1216 = vadd.f32 %v925, %v1215
        %v1217 = vpop.f32.mrf.mxu0
        %1218 = vmatprep.mubr.bf16.mxu0 0
        %1219 = vmatmul.mubr.bf16.gmra.mxu0 %v874
        %v1220 = vpop.f32.mrf.mxu0
        %v1221 = vadd.f32 %v925, %v1220
        %v1222 = vpop.f32.mrf.mxu0
        %v1223 = vpop.f32.mrf.mxu0
        %v1224 = vadd.f32 %v925, %v1223
        %v1225 = vpop.f32.mrf.mxu0
        %1226 = vmatprep.mubr.bf16.mxu0 0
        %1227 = vmatmul.mubr.bf16.gmra.mxu0 %v875
        %v1228 = vpop.f32.mrf.mxu0
        %v1229 = vadd.f32 %v925, %v1228
        %v1230 = vpop.f32.mrf.mxu0
        %v1231 = vpop.f32.mrf.mxu0
        %v1232 = vadd.f32 %v925, %v1231
        %v1233 = vpop.f32.mrf.mxu0
        %1234 = vmatprep.mubr.bf16.mxu0 0
        %1235 = vmatmul.mubr.bf16.gmra.mxu0 %v876
        %v1236 = vpop.f32.mrf.mxu0
        %v1237 = vadd.f32 %v925, %v1236
        %v1238 = vpop.f32.mrf.mxu0
        %v1239 = vpop.f32.mrf.mxu0
        %v1240 = vadd.f32 %v925, %v1239
        %v1241 = vpop.f32.mrf.mxu0
        %1242 = vmatprep.mubr.bf16.mxu0 0
        %1243 = vmatmul.mubr.bf16.gmra.mxu0 %v877
        %v1244 = vpop.f32.mrf.mxu0
        %v1245 = vadd.f32 %v925, %v1244
        %v1246 = vpop.f32.mrf.mxu0
        %v1247 = vpop.f32.mrf.mxu0
        %v1248 = vadd.f32 %v925, %v1247
        %v1249 = vpop.f32.mrf.mxu0
        %1250 = vmatprep.mubr.bf16.mxu0 0
        %1251 = vmatmul.mubr.bf16.gmra.mxu0 %v878
        %v1252 = vpop.f32.mrf.mxu0
        %v1253 = vadd.f32 %v925, %v1252
        %v1254 = vpop.f32.mrf.mxu0
        %v1255 = vpop.f32.mrf.mxu0
        %v1256 = vadd.f32 %v925, %v1255
        %v1257 = vpop.f32.mrf.mxu0
        %1258 = vmatprep.mubr.bf16.mxu0 0
        %1259 = vmatmul.mubr.bf16.gmra.mxu0 %v879
        %v1260 = vpop.f32.mrf.mxu0
        %v1261 = vadd.f32 %v925, %v1260
        %v1262 = vpop.f32.mrf.mxu0
        %v1263 = vpop.f32.mrf.mxu0
        %v1264 = vadd.f32 %v925, %v1263
        %v1265 = vpop.f32.mrf.mxu0
        %1266 = vdwg.mxu0
        %v1267 = vld [vmem:[#allocation10] sm:$0xf]
        %v1268 = vld [vmem:[#allocation10 + $0x4] sm:$0xf]
        %v1269 = vld [vmem:[#allocation10 + $0x8] sm:$0xf]
        %v1270 = vld [vmem:[#allocation10 + $0xc] sm:$0xf]
        %v1271 = vld [vmem:[#allocation10 + $0x10] sm:$0xf]
        %v1272 = vld [vmem:[#allocation10 + $0x14] sm:$0xf]
        %v1273 = vld [vmem:[#allocation10 + $0x18] sm:$0xf]
        %v1274 = vld [vmem:[#allocation10 + $0x1c] sm:$0xf]
        %v1275 = vld [vmem:[#allocation10 + $0x20] sm:$0xf]
        %v1276 = vld [vmem:[#allocation10 + $0x24] sm:$0xf]
        %v1277 = vld [vmem:[#allocation10 + $0x28] sm:$0xf]
        %v1278 = vld [vmem:[#allocation10 + $0x2c] sm:$0xf]
        %v1279 = vld [vmem:[#allocation10 + $0x30] sm:$0xf]
        %v1280 = vld [vmem:[#allocation10 + $0x34] sm:$0xf]
        %v1281 = vld [vmem:[#allocation10 + $0x38] sm:$0xf]
        %v1282 = vld [vmem:[#allocation10 + $0x3c] sm:$0xf]
        %v1283 = vpack.c.bf16 %v1096, %v1092
        %v1284 = vpack.c.bf16 %v1106, %v1102
        %v1285 = vpack.c.bf16 %v1116, %v1112
        %v1286 = vpack.c.bf16 %v1126, %v1122
        %v1287 = vpack.c.bf16 %v1136, %v1132
        %v1288 = vpack.c.bf16 %v1146, %v1142
        %v1289 = vpack.c.bf16 %v1156, %v1152
        %v1290 = vpack.c.bf16 %v1166, %v1162
        %v1291 = vpack.c.bf16 %v1098, %v1094
        %v1292 = vpack.c.bf16 %v1108, %v1104
        %v1293 = vpack.c.bf16 %v1118, %v1114
        %v1294 = vpack.c.bf16 %v1128, %v1124
        %v1295 = vpack.c.bf16 %v1138, %v1134
        %v1296 = vpack.c.bf16 %v1148, %v1144
        %v1297 = vpack.c.bf16 %v1158, %v1154
        %v1298 = vpack.c.bf16 %v1168, %v1164
        %vm1299 = vcmask 523264
        %v1301 = vsel %vm1299, %v1283, 0
        %v1304 = vsel %vm1299, %v1284, 0
        %v1307 = vsel %vm1299, %v1285, 0
        %v1310 = vsel %vm1299, %v1286, 0
        %v1313 = vsel %vm1299, %v1291, 0
        %v1316 = vsel %vm1299, %v1292, 0
        %v1319 = vsel %vm1299, %v1293, 0
        %v1322 = vsel %vm1299, %v1294, 0
        %1324 = vmatprep.subr.bf16.mxu0 0
        %1325 = vmatpush1.bf16.xpose.msra.mxu0 0
        %1326 = vmatprep.subr.bf16.mxu0 0
        %1327 = vmatpush1.bf16.xpose.msra.mxu0 0
        %1328 = vmatprep.subr.bf16.mxu0 0
        %1329 = vmatpush1.bf16.xpose.msra.mxu0 0
        %1330 = vmatprep.subr.bf16.mxu0 0
        %1331 = vmatpush1.bf16.xpose.msra.mxu0 0
        %1332 = vmatprep.subr.bf16.mxu0 0
        %1333 = vmatpush1.bf16.xpose.msra.mxu0 %v1322
        %1334 = vmatprep.subr.bf16.mxu0 0
        %1335 = vmatpush1.bf16.xpose.msra.mxu0 %v1319
        %1336 = vmatprep.subr.bf16.mxu0 0
        %1337 = vmatpush1.bf16.xpose.msra.mxu0 %v1316
        %1338 = vmatprep.subr.bf16.mxu0 0
        %1339 = vmatpush1.bf16.xpose.msra.mxu0 %v1313
        %1340 = vmatprep.subr.bf16.mxu0 0
        %1341 = vmatpush2.bf16.xpose.msra.mxu0 0
        %1342 = vmatprep.subr.bf16.mxu0 0
        %1343 = vmatpush2.bf16.xpose.msra.mxu0 0
        %1344 = vmatprep.subr.bf16.mxu0 0
        %1345 = vmatpush2.bf16.xpose.msra.mxu0 0
        %1346 = vmatprep.subr.bf16.mxu0 0
        %1347 = vmatpush2.bf16.xpose.msra.mxu0 0
        %1348 = vmatprep.subr.bf16.mxu0 0
        %1349 = vmatpush2.bf16.xpose.msra.mxu0 0
        %1350 = vmatprep.subr.bf16.mxu0 0
        %1351 = vmatpush2.bf16.xpose.msra.mxu0 0
        %1352 = vmatprep.subr.bf16.mxu0 0
        %1353 = vmatpush2.bf16.xpose.msra.mxu0 0
        %1354 = vmatprep.subr.bf16.mxu0 0
        %1355 = vmatpush2.bf16.xpose.msra.mxu0 0
        %1356 = vmatprep.mubr.bf16.mxu0 0
        %1357 = vmatmul.mubr.bf16.gmra.mxu0 %v1301
        %v1358 = vpop.f32.mrf.mxu0
        %v1359 = vadd.f32 0.0, %v1358
        %v1360 = vpop.f32.mrf.mxu0
        %v1361 = vpop.f32.mrf.mxu0
        %v1362 = vadd.f32 0.0, %v1361
        %v1363 = vpop.f32.mrf.mxu0
        %1364 = vmatprep.mubr.bf16.mxu0 0
        %1365 = vmatmul.mubr.bf16.gmra.mxu0 %v1304
        %v1366 = vpop.f32.mrf.mxu0
        %v1367 = vadd.f32 0.0, %v1366
        %v1368 = vpop.f32.mrf.mxu0
        %v1369 = vpop.f32.mrf.mxu0
        %v1370 = vadd.f32 0.0, %v1369
        %v1371 = vpop.f32.mrf.mxu0
        %1372 = vmatprep.mubr.bf16.mxu0 0
        %1373 = vmatmul.mubr.bf16.gmra.mxu0 %v1307
        %v1374 = vpop.f32.mrf.mxu0
        %v1375 = vadd.f32 0.0, %v1374
        %v1376 = vpop.f32.mrf.mxu0
        %v1377 = vpop.f32.mrf.mxu0
        %v1378 = vadd.f32 0.0, %v1377
        %v1379 = vpop.f32.mrf.mxu0
        %1380 = vmatprep.mubr.bf16.mxu0 0
        %1381 = vmatmul.mubr.bf16.gmra.mxu0 %v1310
        %v1382 = vpop.f32.mrf.mxu0
        %v1383 = vadd.f32 0.0, %v1382
        %v1384 = vpop.f32.mrf.mxu0
        %v1385 = vpop.f32.mrf.mxu0
        %v1386 = vadd.f32 0.0, %v1385
        %v1387 = vpop.f32.mrf.mxu0
        %1388 = vdwg.mxu0
        %v1390 = vsel %vm1299, %v1287, 0
        %v1393 = vsel %vm1299, %v1288, 0
        %v1396 = vsel %vm1299, %v1289, 0
        %v1399 = vsel %vm1299, %v1290, 0
        %v1402 = vsel %vm1299, %v1295, 0
        %v1405 = vsel %vm1299, %v1296, 0
        %v1408 = vsel %vm1299, %v1297, 0
        %v1411 = vsel %vm1299, %v1298, 0
        %1413 = vmatprep.subr.bf16.mxu0 0
        %1414 = vmatpush1.bf16.xpose.msra.mxu0 0
        %1415 = vmatprep.subr.bf16.mxu0 0
        %1416 = vmatpush1.bf16.xpose.msra.mxu0 0
        %1417 = vmatprep.subr.bf16.mxu0 0
        %1418 = vmatpush1.bf16.xpose.msra.mxu0 0
        %1419 = vmatprep.subr.bf16.mxu0 0
        %1420 = vmatpush1.bf16.xpose.msra.mxu0 0
        %1421 = vmatprep.subr.bf16.mxu0 0
        %1422 = vmatpush1.bf16.xpose.msra.mxu0 %v1411
        %1423 = vmatprep.subr.bf16.mxu0 0
        %1424 = vmatpush1.bf16.xpose.msra.mxu0 %v1408
        %1425 = vmatprep.subr.bf16.mxu0 0
        %1426 = vmatpush1.bf16.xpose.msra.mxu0 %v1405
        %1427 = vmatprep.subr.bf16.mxu0 0
        %1428 = vmatpush1.bf16.xpose.msra.mxu0 %v1402
        %1429 = vmatprep.subr.bf16.mxu0 0
        %1430 = vmatpush2.bf16.xpose.msra.mxu0 0
        %1431 = vmatprep.subr.bf16.mxu0 0
        %1432 = vmatpush2.bf16.xpose.msra.mxu0 0
        %1433 = vmatprep.subr.bf16.mxu0 0
        %1434 = vmatpush2.bf16.xpose.msra.mxu0 0
        %1435 = vmatprep.subr.bf16.mxu0 0
        %1436 = vmatpush2.bf16.xpose.msra.mxu0 0
        %1437 = vmatprep.subr.bf16.mxu0 0
        %1438 = vmatpush2.bf16.xpose.msra.mxu0 0
        %1439 = vmatprep.subr.bf16.mxu0 0
        %1440 = vmatpush2.bf16.xpose.msra.mxu0 0
        %1441 = vmatprep.subr.bf16.mxu0 0
        %1442 = vmatpush2.bf16.xpose.msra.mxu0 0
        %1443 = vmatprep.subr.bf16.mxu0 0
        %1444 = vmatpush2.bf16.xpose.msra.mxu0 0
        %1445 = vmatprep.mubr.bf16.mxu0 0
        %1446 = vmatmul.mubr.bf16.gmra.mxu0 %v1390
        %v1447 = vpop.f32.mrf.mxu0
        %v1448 = vadd.f32 0.0, %v1447
        %v1449 = vpop.f32.mrf.mxu0
        %v1450 = vpop.f32.mrf.mxu0
        %v1451 = vadd.f32 0.0, %v1450
        %v1452 = vpop.f32.mrf.mxu0
        %1453 = vmatprep.mubr.bf16.mxu0 0
        %1454 = vmatmul.mubr.bf16.gmra.mxu0 %v1393
        %v1455 = vpop.f32.mrf.mxu0
        %v1456 = vadd.f32 0.0, %v1455
        %v1457 = vpop.f32.mrf.mxu0
        %v1458 = vpop.f32.mrf.mxu0
        %v1459 = vadd.f32 0.0, %v1458
        %v1460 = vpop.f32.mrf.mxu0
        %1461 = vmatprep.mubr.bf16.mxu0 0
        %1462 = vmatmul.mubr.bf16.gmra.mxu0 %v1396
        %v1463 = vpop.f32.mrf.mxu0
        %v1464 = vadd.f32 0.0, %v1463
        %v1465 = vpop.f32.mrf.mxu0
        %v1466 = vpop.f32.mrf.mxu0
        %v1467 = vadd.f32 0.0, %v1466
        %v1468 = vpop.f32.mrf.mxu0
        %1469 = vmatprep.mubr.bf16.mxu0 0
        %1470 = vmatmul.mubr.bf16.gmra.mxu0 %v1399
        %v1471 = vpop.f32.mrf.mxu0
        %v1472 = vadd.f32 0.0, %v1471
        %v1473 = vpop.f32.mrf.mxu0
        %v1474 = vpop.f32.mrf.mxu0
        %v1475 = vadd.f32 0.0, %v1474
        %v1476 = vpop.f32.mrf.mxu0
        %1477 = vdwg.mxu0
        %v1478 = vsel %vm1299, %v1359, -inf
        %1479 = vmax.xlane.f32.xlu0 %v1478
        %v1480 = vpop.xlane.xlu0 %1479
        %v1481 = vsel %vm1299, %v1362, -inf
        %1482 = vmax.xlane.f32.xlu0 %v1481
        %v1483 = vpop.xlane.xlu0 %1482
        %v1484 = vsel %vm1299, %v1367, -inf
        %1485 = vmax.xlane.f32.xlu0 %v1484
        %v1486 = vpop.xlane.xlu0 %1485
        %v1487 = vsel %vm1299, %v1370, -inf
        %1488 = vmax.xlane.f32.xlu0 %v1487
        %v1489 = vpop.xlane.xlu0 %1488
        %v1490 = vsel %vm1299, %v1375, -inf
        %1491 = vmax.xlane.f32.xlu0 %v1490
        %v1492 = vpop.xlane.xlu0 %1491
        %v1493 = vsel %vm1299, %v1378, -inf
        %1494 = vmax.xlane.f32.xlu0 %v1493
        %v1495 = vpop.xlane.xlu0 %1494
        %v1496 = vsel %vm1299, %v1383, -inf
        %1497 = vmax.xlane.f32.xlu0 %v1496
        %v1498 = vpop.xlane.xlu0 %1497
        %v1499 = vsel %vm1299, %v1386, -inf
        %1500 = vmax.xlane.f32.xlu0 %v1499
        %v1501 = vpop.xlane.xlu0 %1500
        %v1502 = vsel %vm1299, %v1448, -inf
        %1503 = vmax.xlane.f32.xlu0 %v1502
        %v1504 = vpop.xlane.xlu0 %1503
        %v1505 = vsel %vm1299, %v1451, -inf
        %1506 = vmax.xlane.f32.xlu0 %v1505
        %v1507 = vpop.xlane.xlu0 %1506
        %v1508 = vsel %vm1299, %v1456, -inf
        %1509 = vmax.xlane.f32.xlu0 %v1508
        %v1510 = vpop.xlane.xlu0 %1509
        %v1511 = vsel %vm1299, %v1459, -inf
        %1512 = vmax.xlane.f32.xlu0 %v1511
        %v1513 = vpop.xlane.xlu0 %1512
        %v1514 = vsel %vm1299, %v1464, -inf
        %1515 = vmax.xlane.f32.xlu0 %v1514
        %v1516 = vpop.xlane.xlu0 %1515
        %v1517 = vsel %vm1299, %v1467, -inf
        %1518 = vmax.xlane.f32.xlu0 %v1517
        %v1519 = vpop.xlane.xlu0 %1518
        %v1520 = vsel %vm1299, %v1472, -inf
        %1521 = vmax.xlane.f32.xlu0 %v1520
        %v1522 = vpop.xlane.xlu0 %1521
        %v1523 = vsel %vm1299, %v1475, -inf
        %1524 = vmax.xlane.f32.xlu0 %v1523
        %v1525 = vpop.xlane.xlu0 %1524
        %v1526 = vsub.f32 %v1359, %v1480
        %v1527 = vsub.f32 %v1362, %v1483
        %v1528 = vsub.f32 %v1367, %v1486
        %v1529 = vsub.f32 %v1370, %v1489
        %v1530 = vsub.f32 %v1375, %v1492
        %v1531 = vsub.f32 %v1378, %v1495
        %v1532 = vsub.f32 %v1383, %v1498
        %v1533 = vsub.f32 %v1386, %v1501
        %v1534 = vsub.f32 %v1448, %v1504
        %v1535 = vsub.f32 %v1451, %v1507
        %v1536 = vsub.f32 %v1456, %v1510
        %v1537 = vsub.f32 %v1459, %v1513
        %v1538 = vsub.f32 %v1464, %v1516
        %v1539 = vsub.f32 %v1467, %v1519
        %v1540 = vsub.f32 %v1472, %v1522
        %v1541 = vsub.f32 %v1475, %v1525
        %v1542 = vmul.f32 %v1526, 1.442695
        %v1543 = vpow.pop %v1542
        %v1544 = vmul.f32 %v1527, 1.442695
        %v1545 = vpow.pop %v1544
        %v1546 = vmul.f32 %v1528, 1.442695
        %v1547 = vpow.pop %v1546
        %v1548 = vmul.f32 %v1529, 1.442695
        %v1549 = vpow.pop %v1548
        %v1550 = vmul.f32 %v1530, 1.442695
        %v1551 = vpow.pop %v1550
        %v1552 = vmul.f32 %v1531, 1.442695
        %v1553 = vpow.pop %v1552
        %v1554 = vmul.f32 %v1532, 1.442695
        %v1555 = vpow.pop %v1554
        %v1556 = vmul.f32 %v1533, 1.442695
        %v1557 = vpow.pop %v1556
        %v1558 = vmul.f32 %v1534, 1.442695
        %v1559 = vpow.pop %v1558
        %v1560 = vmul.f32 %v1535, 1.442695
        %v1561 = vpow.pop %v1560
        %v1562 = vmul.f32 %v1536, 1.442695
        %v1563 = vpow.pop %v1562
        %v1564 = vmul.f32 %v1537, 1.442695
        %v1565 = vpow.pop %v1564
        %v1566 = vmul.f32 %v1538, 1.442695
        %v1567 = vpow.pop %v1566
        %v1568 = vmul.f32 %v1539, 1.442695
        %v1569 = vpow.pop %v1568
        %v1570 = vmul.f32 %v1540, 1.442695
        %v1571 = vpow.pop %v1570
        %v1572 = vmul.f32 %v1541, 1.442695
        %v1573 = vpow.pop %v1572
        %v1574 = vsel %vm1299, %v1543, 0.0
        %1575 = vadd.xlane.f32.xlu0 %v1574
        %v1576 = vpop.xlane.xlu0 %1575
        %v1577 = vsel %vm1299, %v1545, 0.0
        %1578 = vadd.xlane.f32.xlu0 %v1577
        %v1579 = vpop.xlane.xlu0 %1578
        %v1580 = vsel %vm1299, %v1547, 0.0
        %1581 = vadd.xlane.f32.xlu0 %v1580
        %v1582 = vpop.xlane.xlu0 %1581
        %v1583 = vsel %vm1299, %v1549, 0.0
        %1584 = vadd.xlane.f32.xlu0 %v1583
        %v1585 = vpop.xlane.xlu0 %1584
        %v1586 = vsel %vm1299, %v1551, 0.0
        %1587 = vadd.xlane.f32.xlu0 %v1586
        %v1588 = vpop.xlane.xlu0 %1587
        %v1589 = vsel %vm1299, %v1553, 0.0
        %1590 = vadd.xlane.f32.xlu0 %v1589
        %v1591 = vpop.xlane.xlu0 %1590
        %v1592 = vsel %vm1299, %v1555, 0.0
        %1593 = vadd.xlane.f32.xlu0 %v1592
        %v1594 = vpop.xlane.xlu0 %1593
        %v1595 = vsel %vm1299, %v1557, 0.0
        %1596 = vadd.xlane.f32.xlu0 %v1595
        %v1597 = vpop.xlane.xlu0 %1596
        %v1598 = vsel %vm1299, %v1559, 0.0
        %1599 = vadd.xlane.f32.xlu0 %v1598
        %v1600 = vpop.xlane.xlu0 %1599
        %v1601 = vsel %vm1299, %v1561, 0.0
        %1602 = vadd.xlane.f32.xlu0 %v1601
        %v1603 = vpop.xlane.xlu0 %1602
        %v1604 = vsel %vm1299, %v1563, 0.0
        %1605 = vadd.xlane.f32.xlu0 %v1604
        %v1606 = vpop.xlane.xlu0 %1605
        %v1607 = vsel %vm1299, %v1565, 0.0
        %1608 = vadd.xlane.f32.xlu0 %v1607
        %v1609 = vpop.xlane.xlu0 %1608
        %v1610 = vsel %vm1299, %v1567, 0.0
        %1611 = vadd.xlane.f32.xlu0 %v1610
        %v1612 = vpop.xlane.xlu0 %1611
        %v1613 = vsel %vm1299, %v1569, 0.0
        %1614 = vadd.xlane.f32.xlu0 %v1613
        %v1615 = vpop.xlane.xlu0 %1614
        %v1616 = vsel %vm1299, %v1571, 0.0
        %1617 = vadd.xlane.f32.xlu0 %v1616
        %v1618 = vpop.xlane.xlu0 %1617
        %v1619 = vsel %vm1299, %v1573, 0.0
        %1620 = vadd.xlane.f32.xlu0 %v1619
        %v1621 = vpop.xlane.xlu0 %1620
        %v1622 = vrcp.pop %v1576
        %v1623 = vrcp.pop %v1579
        %v1624 = vrcp.pop %v1582
        %v1625 = vrcp.pop %v1585
        %v1626 = vrcp.pop %v1588
        %v1627 = vrcp.pop %v1591
        %v1628 = vrcp.pop %v1594
        %v1629 = vrcp.pop %v1597
        %v1630 = vrcp.pop %v1600
        %v1631 = vrcp.pop %v1603
        %v1632 = vrcp.pop %v1606
        %v1633 = vrcp.pop %v1609
        %v1634 = vrcp.pop %v1612
        %v1635 = vrcp.pop %v1615
        %v1636 = vrcp.pop %v1618
        %v1637 = vrcp.pop %v1621
        %v1638 = vmul.f32 %v1543, %v1622
        %v1639 = vmul.f32 %v1545, %v1623
        %v1640 = vmul.f32 %v1547, %v1624
        %v1641 = vmul.f32 %v1549, %v1625
        %v1642 = vmul.f32 %v1551, %v1626
        %v1643 = vmul.f32 %v1553, %v1627
        %v1644 = vmul.f32 %v1555, %v1628
        %v1645 = vmul.f32 %v1557, %v1629
        %v1646 = vmul.f32 %v1559, %v1630
        %v1647 = vmul.f32 %v1561, %v1631
        %v1648 = vmul.f32 %v1563, %v1632
        %v1649 = vmul.f32 %v1565, %v1633
        %v1650 = vmul.f32 %v1567, %v1634
        %v1651 = vmul.f32 %v1569, %v1635
        %v1652 = vmul.f32 %v1571, %v1636
        %v1653 = vmul.f32 %v1573, %v1637
        %v1654 = vpack.c.bf16 %v1639, %v1638
        %v1655 = vpack.c.bf16 %v1641, %v1640
        %v1656 = vpack.c.bf16 %v1643, %v1642
        %v1657 = vpack.c.bf16 %v1645, %v1644
        %v1658 = vpack.c.bf16 %v1647, %v1646
        %v1659 = vpack.c.bf16 %v1649, %v1648
        %v1660 = vpack.c.bf16 %v1651, %v1650
        %v1661 = vpack.c.bf16 %v1653, %v1652
        %v1662 = vpack.c.bf16 %v1208, %v1205
        %v1663 = vpack.c.bf16 %v1216, %v1213
        %v1664 = vpack.c.bf16 %v1224, %v1221
        %v1665 = vpack.c.bf16 %v1232, %v1229
        %v1666 = vpack.c.bf16 %v1240, %v1237
        %v1667 = vpack.c.bf16 %v1248, %v1245
        %v1668 = vpack.c.bf16 %v1256, %v1253
        %v1669 = vpack.c.bf16 %v1264, %v1261
        %v1671 = vsel %vm1299, %v1654, 0
        %v1674 = vsel %vm1299, %v1655, 0
        %v1677 = vsel %vm1299, %v1656, 0
        %v1680 = vsel %vm1299, %v1657, 0
        %1682 = vmatprep.subr.bf16.mxu0 0
        %1683 = vmatpush1.bf16.msra.mxu0 0
        %1684 = vmatprep.subr.bf16.mxu0 0
        %1685 = vmatpush1.bf16.msra.mxu0 0
        %1686 = vmatprep.subr.bf16.mxu0 0
        %1687 = vmatpush1.bf16.msra.mxu0 0
        %1688 = vmatprep.subr.bf16.mxu0 0
        %1689 = vmatpush1.bf16.msra.mxu0 0
        %1690 = vmatprep.subr.bf16.mxu0 0
        %1691 = vmatpush1.bf16.msra.mxu0 %v1665
        %1692 = vmatprep.subr.bf16.mxu0 0
        %1693 = vmatpush1.bf16.msra.mxu0 %v1664
        %1694 = vmatprep.subr.bf16.mxu0 0
        %1695 = vmatpush1.bf16.msra.mxu0 %v1663
        %1696 = vmatprep.subr.bf16.mxu0 0
        %1697 = vmatpush1.bf16.msra.mxu0 %v1662
        %1698 = vmatprep.subr.bf16.mxu0 0
        %1699 = vmatpush2.bf16.msra.mxu0 0
        %1700 = vmatprep.subr.bf16.mxu0 0
        %1701 = vmatpush2.bf16.msra.mxu0 0
        %1702 = vmatprep.subr.bf16.mxu0 0
        %1703 = vmatpush2.bf16.msra.mxu0 0
        %1704 = vmatprep.subr.bf16.mxu0 0
        %1705 = vmatpush2.bf16.msra.mxu0 0
        %1706 = vmatprep.subr.bf16.mxu0 0
        %1707 = vmatpush2.bf16.msra.mxu0 0
        %1708 = vmatprep.subr.bf16.mxu0 0
        %1709 = vmatpush2.bf16.msra.mxu0 0
        %1710 = vmatprep.subr.bf16.mxu0 0
        %1711 = vmatpush2.bf16.msra.mxu0 0
        %1712 = vmatprep.subr.bf16.mxu0 0
        %1713 = vmatpush2.bf16.msra.mxu0 0
        %1714 = vmatprep.mubr.bf16.mxu0 0
        %1715 = vmatmul.mubr.bf16.gmra.mxu0 %v1671
        %v1716 = vpop.f32.mrf.mxu0
        %v1717 = vadd.f32 0.0, %v1716
        %v1718 = vpop.f32.mrf.mxu0
        %v1719 = vpop.f32.mrf.mxu0
        %v1720 = vadd.f32 0.0, %v1719
        %v1721 = vpop.f32.mrf.mxu0
        %1722 = vmatprep.mubr.bf16.mxu0 0
        %1723 = vmatmul.mubr.bf16.gmra.mxu0 %v1674
        %v1724 = vpop.f32.mrf.mxu0
        %v1725 = vadd.f32 0.0, %v1724
        %v1726 = vpop.f32.mrf.mxu0
        %v1727 = vpop.f32.mrf.mxu0
        %v1728 = vadd.f32 0.0, %v1727
        %v1729 = vpop.f32.mrf.mxu0
        %1730 = vmatprep.mubr.bf16.mxu0 0
        %1731 = vmatmul.mubr.bf16.gmra.mxu0 %v1677
        %v1732 = vpop.f32.mrf.mxu0
        %v1733 = vadd.f32 0.0, %v1732
        %v1734 = vpop.f32.mrf.mxu0
        %v1735 = vpop.f32.mrf.mxu0
        %v1736 = vadd.f32 0.0, %v1735
        %v1737 = vpop.f32.mrf.mxu0
        %1738 = vmatprep.mubr.bf16.mxu0 0
        %1739 = vmatmul.mubr.bf16.gmra.mxu0 %v1680
        %v1740 = vpop.f32.mrf.mxu0
        %v1741 = vadd.f32 0.0, %v1740
        %v1742 = vpop.f32.mrf.mxu0
        %v1743 = vpop.f32.mrf.mxu0
        %v1744 = vadd.f32 0.0, %v1743
        %v1745 = vpop.f32.mrf.mxu0
        %1746 = vdwg.mxu0
        %v1748 = vsel %vm1299, %v1658, 0
        %v1751 = vsel %vm1299, %v1659, 0
        %v1754 = vsel %vm1299, %v1660, 0
        %v1757 = vsel %vm1299, %v1661, 0
        %1759 = vmatprep.subr.bf16.mxu0 0
        %1760 = vmatpush1.bf16.msra.mxu0 0
        %1761 = vmatprep.subr.bf16.mxu0 0
        %1762 = vmatpush1.bf16.msra.mxu0 0
        %1763 = vmatprep.subr.bf16.mxu0 0
        %1764 = vmatpush1.bf16.msra.mxu0 0
        %1765 = vmatprep.subr.bf16.mxu0 0
        %1766 = vmatpush1.bf16.msra.mxu0 0
        %1767 = vmatprep.subr.bf16.mxu0 0
        %1768 = vmatpush1.bf16.msra.mxu0 %v1669
        %1769 = vmatprep.subr.bf16.mxu0 0
        %1770 = vmatpush1.bf16.msra.mxu0 %v1668
        %1771 = vmatprep.subr.bf16.mxu0 0
        %1772 = vmatpush1.bf16.msra.mxu0 %v1667
        %1773 = vmatprep.subr.bf16.mxu0 0
        %1774 = vmatpush1.bf16.msra.mxu0 %v1666
        %1775 = vmatprep.subr.bf16.mxu0 0
        %1776 = vmatpush2.bf16.msra.mxu0 0
        %1777 = vmatprep.subr.bf16.mxu0 0
        %1778 = vmatpush2.bf16.msra.mxu0 0
        %1779 = vmatprep.subr.bf16.mxu0 0
        %1780 = vmatpush2.bf16.msra.mxu0 0
        %1781 = vmatprep.subr.bf16.mxu0 0
        %1782 = vmatpush2.bf16.msra.mxu0 0
        %1783 = vmatprep.subr.bf16.mxu0 0
        %1784 = vmatpush2.bf16.msra.mxu0 0
        %1785 = vmatprep.subr.bf16.mxu0 0
        %1786 = vmatpush2.bf16.msra.mxu0 0
        %1787 = vmatprep.subr.bf16.mxu0 0
        %1788 = vmatpush2.bf16.msra.mxu0 0
        %1789 = vmatprep.subr.bf16.mxu0 0
        %1790 = vmatpush2.bf16.msra.mxu0 0
        %1791 = vmatprep.mubr.bf16.mxu0 0
        %1792 = vmatmul.mubr.bf16.gmra.mxu0 %v1748
        %v1793 = vpop.f32.mrf.mxu0
        %v1794 = vadd.f32 0.0, %v1793
        %v1795 = vpop.f32.mrf.mxu0
        %v1796 = vpop.f32.mrf.mxu0
        %v1797 = vadd.f32 0.0, %v1796
        %v1798 = vpop.f32.mrf.mxu0
        %1799 = vmatprep.mubr.bf16.mxu0 0
        %1800 = vmatmul.mubr.bf16.gmra.mxu0 %v1751
        %v1801 = vpop.f32.mrf.mxu0
        %v1802 = vadd.f32 0.0, %v1801
        %v1803 = vpop.f32.mrf.mxu0
        %v1804 = vpop.f32.mrf.mxu0
        %v1805 = vadd.f32 0.0, %v1804
        %v1806 = vpop.f32.mrf.mxu0
        %1807 = vmatprep.mubr.bf16.mxu0 0
        %1808 = vmatmul.mubr.bf16.gmra.mxu0 %v1754
        %v1809 = vpop.f32.mrf.mxu0
        %v1810 = vadd.f32 0.0, %v1809
        %v1811 = vpop.f32.mrf.mxu0
        %v1812 = vpop.f32.mrf.mxu0
        %v1813 = vadd.f32 0.0, %v1812
        %v1814 = vpop.f32.mrf.mxu0
        %1815 = vmatprep.mubr.bf16.mxu0 0
        %1816 = vmatmul.mubr.bf16.gmra.mxu0 %v1757
        %v1817 = vpop.f32.mrf.mxu0
        %v1818 = vadd.f32 0.0, %v1817
        %v1819 = vpop.f32.mrf.mxu0
        %v1820 = vpop.f32.mrf.mxu0
        %v1821 = vadd.f32 0.0, %v1820
        %v1822 = vpop.f32.mrf.mxu0
        %1823 = vdwg.mxu0
        %v1824 = vpack.c.bf16 %v1720, %v1717
        %v1825 = vpack.c.bf16 %v1728, %v1725
        %v1826 = vpack.c.bf16 %v1736, %v1733
        %v1827 = vpack.c.bf16 %v1744, %v1741
        %v1828 = vpack.c.bf16 %v1797, %v1794
        %v1829 = vpack.c.bf16 %v1805, %v1802
        %v1830 = vpack.c.bf16 %v1813, %v1810
        %v1831 = vpack.c.bf16 %v1821, %v1818
        %1836 = vrot.lane.b32.xlu0 %v1283, 64
        %v1837 = vpop.permute.xlu0 %1836
        %1838 = vrot.lane.b32.xlu0 %v1284, 64
        %v1839 = vpop.permute.xlu0 %1838
        %1840 = vrot.lane.b32.xlu0 %v1285, 64
        %v1841 = vpop.permute.xlu0 %1840
        %1842 = vrot.lane.b32.xlu0 %v1286, 64
        %v1843 = vpop.permute.xlu0 %1842
        %1848 = vrot.lane.b32.xlu0 %v1291, 64
        %v1849 = vpop.permute.xlu0 %1848
        %1850 = vrot.lane.b32.xlu0 %v1292, 64
        %v1851 = vpop.permute.xlu0 %1850
        %1852 = vrot.lane.b32.xlu0 %v1293, 64
        %v1853 = vpop.permute.xlu0 %1852
        %1854 = vrot.lane.b32.xlu0 %v1294, 64
        %v1855 = vpop.permute.xlu0 %1854
        %v1857 = vsel %vm1299, %v1837, 0
        %v1860 = vsel %vm1299, %v1839, 0
        %v1863 = vsel %vm1299, %v1841, 0
        %v1866 = vsel %vm1299, %v1843, 0
        %v1869 = vsel %vm1299, %v1849, 0
        %v1872 = vsel %vm1299, %v1851, 0
        %v1875 = vsel %vm1299, %v1853, 0
        %v1878 = vsel %vm1299, %v1855, 0
        %1880 = vmatprep.subr.bf16.mxu0 0
        %1881 = vmatpush1.bf16.xpose.msra.mxu0 0
        %1882 = vmatprep.subr.bf16.mxu0 0
        %1883 = vmatpush1.bf16.xpose.msra.mxu0 0
        %1884 = vmatprep.subr.bf16.mxu0 0
        %1885 = vmatpush1.bf16.xpose.msra.mxu0 0
        %1886 = vmatprep.subr.bf16.mxu0 0
        %1887 = vmatpush1.bf16.xpose.msra.mxu0 0
        %1888 = vmatprep.subr.bf16.mxu0 0
        %1889 = vmatpush1.bf16.xpose.msra.mxu0 %v1878
        %1890 = vmatprep.subr.bf16.mxu0 0
        %1891 = vmatpush1.bf16.xpose.msra.mxu0 %v1875
        %1892 = vmatprep.subr.bf16.mxu0 0
        %1893 = vmatpush1.bf16.xpose.msra.mxu0 %v1872
        %1894 = vmatprep.subr.bf16.mxu0 0
        %1895 = vmatpush1.bf16.xpose.msra.mxu0 %v1869
        %1896 = vmatprep.subr.bf16.mxu0 0
        %1897 = vmatpush2.bf16.xpose.msra.mxu0 0
        %1898 = vmatprep.subr.bf16.mxu0 0
        %1899 = vmatpush2.bf16.xpose.msra.mxu0 0
        %1900 = vmatprep.subr.bf16.mxu0 0
        %1901 = vmatpush2.bf16.xpose.msra.mxu0 0
        %1902 = vmatprep.subr.bf16.mxu0 0
        %1903 = vmatpush2.bf16.xpose.msra.mxu0 0
        %1904 = vmatprep.subr.bf16.mxu0 0
        %1905 = vmatpush2.bf16.xpose.msra.mxu0 0
        %1906 = vmatprep.subr.bf16.mxu0 0
        %1907 = vmatpush2.bf16.xpose.msra.mxu0 0
        %1908 = vmatprep.subr.bf16.mxu0 0
        %1909 = vmatpush2.bf16.xpose.msra.mxu0 0
        %1910 = vmatprep.subr.bf16.mxu0 0
        %1911 = vmatpush2.bf16.xpose.msra.mxu0 0
        %1912 = vmatprep.mubr.bf16.mxu0 0
        %1913 = vmatmul.mubr.bf16.gmra.mxu0 %v1857
        %v1914 = vpop.f32.mrf.mxu0
        %v1915 = vadd.f32 0.0, %v1914
        %v1916 = vpop.f32.mrf.mxu0
        %v1917 = vpop.f32.mrf.mxu0
        %v1918 = vadd.f32 0.0, %v1917
        %v1919 = vpop.f32.mrf.mxu0
        %1920 = vmatprep.mubr.bf16.mxu0 0
        %1921 = vmatmul.mubr.bf16.gmra.mxu0 %v1860
        %v1922 = vpop.f32.mrf.mxu0
        %v1923 = vadd.f32 0.0, %v1922
        %v1924 = vpop.f32.mrf.mxu0
        %v1925 = vpop.f32.mrf.mxu0
        %v1926 = vadd.f32 0.0, %v1925
        %v1927 = vpop.f32.mrf.mxu0
        %1928 = vmatprep.mubr.bf16.mxu0 0
        %1929 = vmatmul.mubr.bf16.gmra.mxu0 %v1863
        %v1930 = vpop.f32.mrf.mxu0
        %v1931 = vadd.f32 0.0, %v1930
        %v1932 = vpop.f32.mrf.mxu0
        %v1933 = vpop.f32.mrf.mxu0
        %v1934 = vadd.f32 0.0, %v1933
        %v1935 = vpop.f32.mrf.mxu0
        %1936 = vmatprep.mubr.bf16.mxu0 0
        %1937 = vmatmul.mubr.bf16.gmra.mxu0 %v1866
        %v1938 = vpop.f32.mrf.mxu0
        %v1939 = vadd.f32 0.0, %v1938
        %v1940 = vpop.f32.mrf.mxu0
        %v1941 = vpop.f32.mrf.mxu0
        %v1942 = vadd.f32 0.0, %v1941
        %v1943 = vpop.f32.mrf.mxu0
        %1944 = vdwg.mxu0
        %1949 = vrot.lane.b32.xlu0 %v1287, 64
        %v1950 = vpop.permute.xlu0 %1949
        %1951 = vrot.lane.b32.xlu0 %v1288, 64
        %v1952 = vpop.permute.xlu0 %1951
        %1953 = vrot.lane.b32.xlu0 %v1289, 64
        %v1954 = vpop.permute.xlu0 %1953
        %1955 = vrot.lane.b32.xlu0 %v1290, 64
        %v1956 = vpop.permute.xlu0 %1955
        %1961 = vrot.lane.b32.xlu0 %v1295, 64
        %v1962 = vpop.permute.xlu0 %1961
        %1963 = vrot.lane.b32.xlu0 %v1296, 64
        %v1964 = vpop.permute.xlu0 %1963
        %1965 = vrot.lane.b32.xlu0 %v1297, 64
        %v1966 = vpop.permute.xlu0 %1965
        %1967 = vrot.lane.b32.xlu0 %v1298, 64
        %v1968 = vpop.permute.xlu0 %1967
        %v1970 = vsel %vm1299, %v1950, 0
        %v1973 = vsel %vm1299, %v1952, 0
        %v1976 = vsel %vm1299, %v1954, 0
        %v1979 = vsel %vm1299, %v1956, 0
        %v1982 = vsel %vm1299, %v1962, 0
        %v1985 = vsel %vm1299, %v1964, 0
        %v1988 = vsel %vm1299, %v1966, 0
        %v1991 = vsel %vm1299, %v1968, 0
        %1993 = vmatprep.subr.bf16.mxu0 0
        %1994 = vmatpush1.bf16.xpose.msra.mxu0 0
        %1995 = vmatprep.subr.bf16.mxu0 0
        %1996 = vmatpush1.bf16.xpose.msra.mxu0 0
        %1997 = vmatprep.subr.bf16.mxu0 0
        %1998 = vmatpush1.bf16.xpose.msra.mxu0 0
        %1999 = vmatprep.subr.bf16.mxu0 0
        %2000 = vmatpush1.bf16.xpose.msra.mxu0 0
        %2001 = vmatprep.subr.bf16.mxu0 0
        %2002 = vmatpush1.bf16.xpose.msra.mxu0 %v1991
        %2003 = vmatprep.subr.bf16.mxu0 0
        %2004 = vmatpush1.bf16.xpose.msra.mxu0 %v1988
        %2005 = vmatprep.subr.bf16.mxu0 0
        %2006 = vmatpush1.bf16.xpose.msra.mxu0 %v1985
        %2007 = vmatprep.subr.bf16.mxu0 0
        %2008 = vmatpush1.bf16.xpose.msra.mxu0 %v1982
        %2009 = vmatprep.subr.bf16.mxu0 0
        %2010 = vmatpush2.bf16.xpose.msra.mxu0 0
        %2011 = vmatprep.subr.bf16.mxu0 0
        %2012 = vmatpush2.bf16.xpose.msra.mxu0 0
        %2013 = vmatprep.subr.bf16.mxu0 0
        %2014 = vmatpush2.bf16.xpose.msra.mxu0 0
        %2015 = vmatprep.subr.bf16.mxu0 0
        %2016 = vmatpush2.bf16.xpose.msra.mxu0 0
        %2017 = vmatprep.subr.bf16.mxu0 0
        %2018 = vmatpush2.bf16.xpose.msra.mxu0 0
        %2019 = vmatprep.subr.bf16.mxu0 0
        %2020 = vmatpush2.bf16.xpose.msra.mxu0 0
        %2021 = vmatprep.subr.bf16.mxu0 0
        %2022 = vmatpush2.bf16.xpose.msra.mxu0 0
        %2023 = vmatprep.subr.bf16.mxu0 0
        %2024 = vmatpush2.bf16.xpose.msra.mxu0 0
        %2025 = vmatprep.mubr.bf16.mxu0 0
        %2026 = vmatmul.mubr.bf16.gmra.mxu0 %v1970
        %v2027 = vpop.f32.mrf.mxu0
        %v2028 = vadd.f32 0.0, %v2027
        %v2029 = vpop.f32.mrf.mxu0
        %v2030 = vpop.f32.mrf.mxu0
        %v2031 = vadd.f32 0.0, %v2030
        %v2032 = vpop.f32.mrf.mxu0
        %2033 = vmatprep.mubr.bf16.mxu0 0
        %2034 = vmatmul.mubr.bf16.gmra.mxu0 %v1973
        %v2035 = vpop.f32.mrf.mxu0
        %v2036 = vadd.f32 0.0, %v2035
        %v2037 = vpop.f32.mrf.mxu0
        %v2038 = vpop.f32.mrf.mxu0
        %v2039 = vadd.f32 0.0, %v2038
        %v2040 = vpop.f32.mrf.mxu0
        %2041 = vmatprep.mubr.bf16.mxu0 0
        %2042 = vmatmul.mubr.bf16.gmra.mxu0 %v1976
        %v2043 = vpop.f32.mrf.mxu0
        %v2044 = vadd.f32 0.0, %v2043
        %v2045 = vpop.f32.mrf.mxu0
        %v2046 = vpop.f32.mrf.mxu0
        %v2047 = vadd.f32 0.0, %v2046
        %v2048 = vpop.f32.mrf.mxu0
        %2049 = vmatprep.mubr.bf16.mxu0 0
        %2050 = vmatmul.mubr.bf16.gmra.mxu0 %v1979
        %v2051 = vpop.f32.mrf.mxu0
        %v2052 = vadd.f32 0.0, %v2051
        %v2053 = vpop.f32.mrf.mxu0
        %v2054 = vpop.f32.mrf.mxu0
        %v2055 = vadd.f32 0.0, %v2054
        %v2056 = vpop.f32.mrf.mxu0
        %2057 = vdwg.mxu0
        %v2058 = vsel %vm1299, %v1915, -inf
        %2059 = vmax.xlane.f32.xlu0 %v2058
        %v2060 = vpop.xlane.xlu0 %2059
        %v2061 = vsel %vm1299, %v1918, -inf
        %2062 = vmax.xlane.f32.xlu0 %v2061
        %v2063 = vpop.xlane.xlu0 %2062
        %v2064 = vsel %vm1299, %v1923, -inf
        %2065 = vmax.xlane.f32.xlu0 %v2064
        %v2066 = vpop.xlane.xlu0 %2065
        %v2067 = vsel %vm1299, %v1926, -inf
        %2068 = vmax.xlane.f32.xlu0 %v2067
        %v2069 = vpop.xlane.xlu0 %2068
        %v2070 = vsel %vm1299, %v1931, -inf
        %2071 = vmax.xlane.f32.xlu0 %v2070
        %v2072 = vpop.xlane.xlu0 %2071
        %v2073 = vsel %vm1299, %v1934, -inf
        %2074 = vmax.xlane.f32.xlu0 %v2073
        %v2075 = vpop.xlane.xlu0 %2074
        %v2076 = vsel %vm1299, %v1939, -inf
        %2077 = vmax.xlane.f32.xlu0 %v2076
        %v2078 = vpop.xlane.xlu0 %2077
        %v2079 = vsel %vm1299, %v1942, -inf
        %2080 = vmax.xlane.f32.xlu0 %v2079
        %v2081 = vpop.xlane.xlu0 %2080
        %v2082 = vsel %vm1299, %v2028, -inf
        %2083 = vmax.xlane.f32.xlu0 %v2082
        %v2084 = vpop.xlane.xlu0 %2083
        %v2085 = vsel %vm1299, %v2031, -inf
        %2086 = vmax.xlane.f32.xlu0 %v2085
        %v2087 = vpop.xlane.xlu0 %2086
        %v2088 = vsel %vm1299, %v2036, -inf
        %2089 = vmax.xlane.f32.xlu0 %v2088
        %v2090 = vpop.xlane.xlu0 %2089
        %v2091 = vsel %vm1299, %v2039, -inf
        %2092 = vmax.xlane.f32.xlu0 %v2091
        %v2093 = vpop.xlane.xlu0 %2092
        %v2094 = vsel %vm1299, %v2044, -inf
        %2095 = vmax.xlane.f32.xlu0 %v2094
        %v2096 = vpop.xlane.xlu0 %2095
        %v2097 = vsel %vm1299, %v2047, -inf
        %2098 = vmax.xlane.f32.xlu0 %v2097
        %v2099 = vpop.xlane.xlu0 %2098
        %v2100 = vsel %vm1299, %v2052, -inf
        %2101 = vmax.xlane.f32.xlu0 %v2100
        %v2102 = vpop.xlane.xlu0 %2101
        %v2103 = vsel %vm1299, %v2055, -inf
        %2104 = vmax.xlane.f32.xlu0 %v2103
        %v2105 = vpop.xlane.xlu0 %2104
        %v2106 = vsub.f32 %v1915, %v2060
        %v2107 = vsub.f32 %v1918, %v2063
        %v2108 = vsub.f32 %v1923, %v2066
        %v2109 = vsub.f32 %v1926, %v2069
        %v2110 = vsub.f32 %v1931, %v2072
        %v2111 = vsub.f32 %v1934, %v2075
        %v2112 = vsub.f32 %v1939, %v2078
        %v2113 = vsub.f32 %v1942, %v2081
        %v2114 = vsub.f32 %v2028, %v2084
        %v2115 = vsub.f32 %v2031, %v2087
        %v2116 = vsub.f32 %v2036, %v2090
        %v2117 = vsub.f32 %v2039, %v2093
        %v2118 = vsub.f32 %v2044, %v2096
        %v2119 = vsub.f32 %v2047, %v2099
        %v2120 = vsub.f32 %v2052, %v2102
        %v2121 = vsub.f32 %v2055, %v2105
        %v2122 = vmul.f32 %v2106, 1.442695
        %v2123 = vpow.pop %v2122
        %v2124 = vmul.f32 %v2107, 1.442695
        %v2125 = vpow.pop %v2124
        %v2126 = vmul.f32 %v2108, 1.442695
        %v2127 = vpow.pop %v2126
        %v2128 = vmul.f32 %v2109, 1.442695
        %v2129 = vpow.pop %v2128
        %v2130 = vmul.f32 %v2110, 1.442695
        %v2131 = vpow.pop %v2130
        %v2132 = vmul.f32 %v2111, 1.442695
        %v2133 = vpow.pop %v2132
        %v2134 = vmul.f32 %v2112, 1.442695
        %v2135 = vpow.pop %v2134
        %v2136 = vmul.f32 %v2113, 1.442695
        %v2137 = vpow.pop %v2136
        %v2138 = vmul.f32 %v2114, 1.442695
        %v2139 = vpow.pop %v2138
        %v2140 = vmul.f32 %v2115, 1.442695
        %v2141 = vpow.pop %v2140
        %v2142 = vmul.f32 %v2116, 1.442695
        %v2143 = vpow.pop %v2142
        %v2144 = vmul.f32 %v2117, 1.442695
        %v2145 = vpow.pop %v2144
        %v2146 = vmul.f32 %v2118, 1.442695
        %v2147 = vpow.pop %v2146
        %v2148 = vmul.f32 %v2119, 1.442695
        %v2149 = vpow.pop %v2148
        %v2150 = vmul.f32 %v2120, 1.442695
        %v2151 = vpow.pop %v2150
        %v2152 = vmul.f32 %v2121, 1.442695
        %v2153 = vpow.pop %v2152
        %v2154 = vsel %vm1299, %v2123, 0.0
        %2155 = vadd.xlane.f32.xlu0 %v2154
        %v2156 = vpop.xlane.xlu0 %2155
        %v2157 = vsel %vm1299, %v2125, 0.0
        %2158 = vadd.xlane.f32.xlu0 %v2157
        %v2159 = vpop.xlane.xlu0 %2158
        %v2160 = vsel %vm1299, %v2127, 0.0
        %2161 = vadd.xlane.f32.xlu0 %v2160
        %v2162 = vpop.xlane.xlu0 %2161
        %v2163 = vsel %vm1299, %v2129, 0.0
        %2164 = vadd.xlane.f32.xlu0 %v2163
        %v2165 = vpop.xlane.xlu0 %2164
        %v2166 = vsel %vm1299, %v2131, 0.0
        %2167 = vadd.xlane.f32.xlu0 %v2166
        %v2168 = vpop.xlane.xlu0 %2167
        %v2169 = vsel %vm1299, %v2133, 0.0
        %2170 = vadd.xlane.f32.xlu0 %v2169
        %v2171 = vpop.xlane.xlu0 %2170
        %v2172 = vsel %vm1299, %v2135, 0.0
        %2173 = vadd.xlane.f32.xlu0 %v2172
        %v2174 = vpop.xlane.xlu0 %2173
        %v2175 = vsel %vm1299, %v2137, 0.0
        %2176 = vadd.xlane.f32.xlu0 %v2175
        %v2177 = vpop.xlane.xlu0 %2176
        %v2178 = vsel %vm1299, %v2139, 0.0
        %2179 = vadd.xlane.f32.xlu0 %v2178
        %v2180 = vpop.xlane.xlu0 %2179
        %v2181 = vsel %vm1299, %v2141, 0.0
        %2182 = vadd.xlane.f32.xlu0 %v2181
        %v2183 = vpop.xlane.xlu0 %2182
        %v2184 = vsel %vm1299, %v2143, 0.0
        %2185 = vadd.xlane.f32.xlu0 %v2184
        %v2186 = vpop.xlane.xlu0 %2185
        %v2187 = vsel %vm1299, %v2145, 0.0
        %2188 = vadd.xlane.f32.xlu0 %v2187
        %v2189 = vpop.xlane.xlu0 %2188
        %v2190 = vsel %vm1299, %v2147, 0.0
        %2191 = vadd.xlane.f32.xlu0 %v2190
        %v2192 = vpop.xlane.xlu0 %2191
        %v2193 = vsel %vm1299, %v2149, 0.0
        %2194 = vadd.xlane.f32.xlu0 %v2193
        %v2195 = vpop.xlane.xlu0 %2194
        %v2196 = vsel %vm1299, %v2151, 0.0
        %2197 = vadd.xlane.f32.xlu0 %v2196
        %v2198 = vpop.xlane.xlu0 %2197
        %v2199 = vsel %vm1299, %v2153, 0.0
        %2200 = vadd.xlane.f32.xlu0 %v2199
        %v2201 = vpop.xlane.xlu0 %2200
        %v2202 = vrcp.pop %v2156
        %v2203 = vrcp.pop %v2159
        %v2204 = vrcp.pop %v2162
        %v2205 = vrcp.pop %v2165
        %v2206 = vrcp.pop %v2168
        %v2207 = vrcp.pop %v2171
        %v2208 = vrcp.pop %v2174
        %v2209 = vrcp.pop %v2177
        %v2210 = vrcp.pop %v2180
        %v2211 = vrcp.pop %v2183
        %v2212 = vrcp.pop %v2186
        %v2213 = vrcp.pop %v2189
        %v2214 = vrcp.pop %v2192
        %v2215 = vrcp.pop %v2195
        %v2216 = vrcp.pop %v2198
        %v2217 = vrcp.pop %v2201
        %v2218 = vmul.f32 %v2123, %v2202
        %v2219 = vmul.f32 %v2125, %v2203
        %v2220 = vmul.f32 %v2127, %v2204
        %v2221 = vmul.f32 %v2129, %v2205
        %v2222 = vmul.f32 %v2131, %v2206
        %v2223 = vmul.f32 %v2133, %v2207
        %v2224 = vmul.f32 %v2135, %v2208
        %v2225 = vmul.f32 %v2137, %v2209
        %v2226 = vmul.f32 %v2139, %v2210
        %v2227 = vmul.f32 %v2141, %v2211
        %v2228 = vmul.f32 %v2143, %v2212
        %v2229 = vmul.f32 %v2145, %v2213
        %v2230 = vmul.f32 %v2147, %v2214
        %v2231 = vmul.f32 %v2149, %v2215
        %v2232 = vmul.f32 %v2151, %v2216
        %v2233 = vmul.f32 %v2153, %v2217
        %v2234 = vpack.c.bf16 %v2219, %v2218
        %v2235 = vpack.c.bf16 %v2221, %v2220
        %v2236 = vpack.c.bf16 %v2223, %v2222
        %v2237 = vpack.c.bf16 %v2225, %v2224
        %v2238 = vpack.c.bf16 %v2227, %v2226
        %v2239 = vpack.c.bf16 %v2229, %v2228
        %v2240 = vpack.c.bf16 %v2231, %v2230
        %v2241 = vpack.c.bf16 %v2233, %v2232
        %2246 = vrot.lane.b32.xlu0 %v1662, 64
        %v2247 = vpop.permute.xlu0 %2246
        %2248 = vrot.lane.b32.xlu0 %v1663, 64
        %v2249 = vpop.permute.xlu0 %2248
        %2250 = vrot.lane.b32.xlu0 %v1664, 64
        %v2251 = vpop.permute.xlu0 %2250
        %2252 = vrot.lane.b32.xlu0 %v1665, 64
        %v2253 = vpop.permute.xlu0 %2252
        %v2259 = vsel %vm1299, %v2234, 0
        %v2262 = vsel %vm1299, %v2235, 0
        %v2265 = vsel %vm1299, %v2236, 0
        %v2268 = vsel %vm1299, %v2237, 0
        %2270 = vmatprep.subr.bf16.mxu0 0
        %2271 = vmatpush1.bf16.msra.mxu0 0
        %2272 = vmatprep.subr.bf16.mxu0 0
        %2273 = vmatpush1.bf16.msra.mxu0 0
        %2274 = vmatprep.subr.bf16.mxu0 0
        %2275 = vmatpush1.bf16.msra.mxu0 0
        %2276 = vmatprep.subr.bf16.mxu0 0
        %2277 = vmatpush1.bf16.msra.mxu0 0
        %2278 = vmatprep.subr.bf16.mxu0 0
        %2279 = vmatpush1.bf16.msra.mxu0 %v2253
        %2280 = vmatprep.subr.bf16.mxu0 0
        %2281 = vmatpush1.bf16.msra.mxu0 %v2251
        %2282 = vmatprep.subr.bf16.mxu0 0
        %2283 = vmatpush1.bf16.msra.mxu0 %v2249
        %2284 = vmatprep.subr.bf16.mxu0 0
        %2285 = vmatpush1.bf16.msra.mxu0 %v2247
        %2286 = vmatprep.subr.bf16.mxu0 0
        %2287 = vmatpush2.bf16.msra.mxu0 0
        %2288 = vmatprep.subr.bf16.mxu0 0
        %2289 = vmatpush2.bf16.msra.mxu0 0
        %2290 = vmatprep.subr.bf16.mxu0 0
        %2291 = vmatpush2.bf16.msra.mxu0 0
        %2292 = vmatprep.subr.bf16.mxu0 0
        %2293 = vmatpush2.bf16.msra.mxu0 0
        %2294 = vmatprep.subr.bf16.mxu0 0
        %2295 = vmatpush2.bf16.msra.mxu0 0
        %2296 = vmatprep.subr.bf16.mxu0 0
        %2297 = vmatpush2.bf16.msra.mxu0 0
        %2298 = vmatprep.subr.bf16.mxu0 0
        %2299 = vmatpush2.bf16.msra.mxu0 0
        %2300 = vmatprep.subr.bf16.mxu0 0
        %2301 = vmatpush2.bf16.msra.mxu0 0
        %2302 = vmatprep.mubr.bf16.mxu0 0
        %2303 = vmatmul.mubr.bf16.gmra.mxu0 %v2259
        %v2304 = vpop.f32.mrf.mxu0
        %v2305 = vadd.f32 0.0, %v2304
        %v2306 = vpop.f32.mrf.mxu0
        %v2307 = vpop.f32.mrf.mxu0
        %v2308 = vadd.f32 0.0, %v2307
        %v2309 = vpop.f32.mrf.mxu0
        %2310 = vmatprep.mubr.bf16.mxu0 0
        %2311 = vmatmul.mubr.bf16.gmra.mxu0 %v2262
        %v2312 = vpop.f32.mrf.mxu0
        %v2313 = vadd.f32 0.0, %v2312
        %v2314 = vpop.f32.mrf.mxu0
        %v2315 = vpop.f32.mrf.mxu0
        %v2316 = vadd.f32 0.0, %v2315
        %v2317 = vpop.f32.mrf.mxu0
        %2318 = vmatprep.mubr.bf16.mxu0 0
        %2319 = vmatmul.mubr.bf16.gmra.mxu0 %v2265
        %v2320 = vpop.f32.mrf.mxu0
        %v2321 = vadd.f32 0.0, %v2320
        %v2322 = vpop.f32.mrf.mxu0
        %v2323 = vpop.f32.mrf.mxu0
        %v2324 = vadd.f32 0.0, %v2323
        %v2325 = vpop.f32.mrf.mxu0
        %2326 = vmatprep.mubr.bf16.mxu0 0
        %2327 = vmatmul.mubr.bf16.gmra.mxu0 %v2268
        %v2328 = vpop.f32.mrf.mxu0
        %v2329 = vadd.f32 0.0, %v2328
        %v2330 = vpop.f32.mrf.mxu0
        %v2331 = vpop.f32.mrf.mxu0
        %v2332 = vadd.f32 0.0, %v2331
        %v2333 = vpop.f32.mrf.mxu0
        %2334 = vdwg.mxu0
        %2339 = vrot.lane.b32.xlu0 %v1666, 64
        %v2340 = vpop.permute.xlu0 %2339
        %2341 = vrot.lane.b32.xlu0 %v1667, 64
        %v2342 = vpop.permute.xlu0 %2341
        %2343 = vrot.lane.b32.xlu0 %v1668, 64
        %v2344 = vpop.permute.xlu0 %2343
        %2345 = vrot.lane.b32.xlu0 %v1669, 64
        %v2346 = vpop.permute.xlu0 %2345
        %v2352 = vsel %vm1299, %v2238, 0
        %v2355 = vsel %vm1299, %v2239, 0
        %v2358 = vsel %vm1299, %v2240, 0
        %v2361 = vsel %vm1299, %v2241, 0
        %2363 = vmatprep.subr.bf16.mxu0 0
        %2364 = vmatpush1.bf16.msra.mxu0 0
        %2365 = vmatprep.subr.bf16.mxu0 0
        %2366 = vmatpush1.bf16.msra.mxu0 0
        %2367 = vmatprep.subr.bf16.mxu0 0
        %2368 = vmatpush1.bf16.msra.mxu0 0
        %2369 = vmatprep.subr.bf16.mxu0 0
        %2370 = vmatpush1.bf16.msra.mxu0 0
        %2371 = vmatprep.subr.bf16.mxu0 0
        %2372 = vmatpush1.bf16.msra.mxu0 %v2346
        %2373 = vmatprep.subr.bf16.mxu0 0
        %2374 = vmatpush1.bf16.msra.mxu0 %v2344
        %2375 = vmatprep.subr.bf16.mxu0 0
        %2376 = vmatpush1.bf16.msra.mxu0 %v2342
        %2377 = vmatprep.subr.bf16.mxu0 0
        %2378 = vmatpush1.bf16.msra.mxu0 %v2340
        %2379 = vmatprep.subr.bf16.mxu0 0
        %2380 = vmatpush2.bf16.msra.mxu0 0
        %2381 = vmatprep.subr.bf16.mxu0 0
        %2382 = vmatpush2.bf16.msra.mxu0 0
        %2383 = vmatprep.subr.bf16.mxu0 0
        %2384 = vmatpush2.bf16.msra.mxu0 0
        %2385 = vmatprep.subr.bf16.mxu0 0
        %2386 = vmatpush2.bf16.msra.mxu0 0
        %2387 = vmatprep.subr.bf16.mxu0 0
        %2388 = vmatpush2.bf16.msra.mxu0 0
        %2389 = vmatprep.subr.bf16.mxu0 0
        %2390 = vmatpush2.bf16.msra.mxu0 0
        %2391 = vmatprep.subr.bf16.mxu0 0
        %2392 = vmatpush2.bf16.msra.mxu0 0
        %2393 = vmatprep.subr.bf16.mxu0 0
        %2394 = vmatpush2.bf16.msra.mxu0 0
        %2395 = vmatprep.mubr.bf16.mxu0 0
        %2396 = vmatmul.mubr.bf16.gmra.mxu0 %v2352
        %v2397 = vpop.f32.mrf.mxu0
        %v2398 = vadd.f32 0.0, %v2397
        %v2399 = vpop.f32.mrf.mxu0
        %v2400 = vpop.f32.mrf.mxu0
        %v2401 = vadd.f32 0.0, %v2400
        %v2402 = vpop.f32.mrf.mxu0
        %2403 = vmatprep.mubr.bf16.mxu0 0
        %2404 = vmatmul.mubr.bf16.gmra.mxu0 %v2355
        %v2405 = vpop.f32.mrf.mxu0
        %v2406 = vadd.f32 0.0, %v2405
        %v2407 = vpop.f32.mrf.mxu0
        %v2408 = vpop.f32.mrf.mxu0
        %v2409 = vadd.f32 0.0, %v2408
        %v2410 = vpop.f32.mrf.mxu0
        %2411 = vmatprep.mubr.bf16.mxu0 0
        %2412 = vmatmul.mubr.bf16.gmra.mxu0 %v2358
        %v2413 = vpop.f32.mrf.mxu0
        %v2414 = vadd.f32 0.0, %v2413
        %v2415 = vpop.f32.mrf.mxu0
        %v2416 = vpop.f32.mrf.mxu0
        %v2417 = vadd.f32 0.0, %v2416
        %v2418 = vpop.f32.mrf.mxu0
        %2419 = vmatprep.mubr.bf16.mxu0 0
        %2420 = vmatmul.mubr.bf16.gmra.mxu0 %v2361
        %v2421 = vpop.f32.mrf.mxu0
        %v2422 = vadd.f32 0.0, %v2421
        %v2423 = vpop.f32.mrf.mxu0
        %v2424 = vpop.f32.mrf.mxu0
        %v2425 = vadd.f32 0.0, %v2424
        %v2426 = vpop.f32.mrf.mxu0
        %2427 = vdwg.mxu0
        %v2428 = vpack.c.bf16 %v2308, %v2305
        %v2429 = vpack.c.bf16 %v2316, %v2313
        %v2430 = vpack.c.bf16 %v2324, %v2321
        %v2431 = vpack.c.bf16 %v2332, %v2329
        %v2432 = vpack.c.bf16 %v2401, %v2398
        %v2433 = vpack.c.bf16 %v2409, %v2406
        %v2434 = vpack.c.bf16 %v2417, %v2414
        %v2435 = vpack.c.bf16 %v2425, %v2422
        %v2444 = vunpack.c.l.b16 %v1275
        %v2445 = vunpack.c.l.b16 %v1276
        %v2446 = vunpack.c.l.b16 %v1277
        %v2447 = vunpack.c.l.b16 %v1278
        %v2448 = vunpack.c.l.b16 %v1279
        %v2449 = vunpack.c.l.b16 %v1280
        %v2450 = vunpack.c.l.b16 %v1281
        %v2451 = vunpack.c.l.b16 %v1282
        %v2452 = vpack.c.b16 %v2445, %v2444
        %v2453 = vpack.c.b16 %v2447, %v2446
        %v2454 = vpack.c.b16 %v2449, %v2448
        %v2455 = vpack.c.b16 %v2451, %v2450
        %v2461 = vsel %vm1299, %v2428, 0
        %v2464 = vsel %vm1299, %v2429, 0
        %v2467 = vsel %vm1299, %v2430, 0
        %v2470 = vsel %vm1299, %v2431, 0
        %v2473 = vsel %vm1299, %v2432, 0
        %v2476 = vsel %vm1299, %v2433, 0
        %v2479 = vsel %vm1299, %v2434, 0
        %v2482 = vsel %vm1299, %v2435, 0
        %2484 = vmatprep.subr.bf16.mxu0 0
        %2485 = vmatpush1.bf16.msra.mxu0 0
        %2486 = vmatprep.subr.bf16.mxu0 0
        %2487 = vmatpush1.bf16.msra.mxu0 0
        %2488 = vmatprep.subr.bf16.mxu0 0
        %2489 = vmatpush1.bf16.msra.mxu0 0
        %2490 = vmatprep.subr.bf16.mxu0 0
        %2491 = vmatpush1.bf16.msra.mxu0 0
        %2492 = vmatprep.subr.bf16.mxu0 0
        %2493 = vmatpush1.bf16.msra.mxu0 %v2455
        %2494 = vmatprep.subr.bf16.mxu0 0
        %2495 = vmatpush1.bf16.msra.mxu0 %v2454
        %2496 = vmatprep.subr.bf16.mxu0 0
        %2497 = vmatpush1.bf16.msra.mxu0 %v2453
        %2498 = vmatprep.subr.bf16.mxu0 0
        %2499 = vmatpush1.bf16.msra.mxu0 %v2452
        %2500 = vmatprep.subr.bf16.mxu0 0
        %2501 = vmatpush2.bf16.msra.mxu0 0
        %2502 = vmatprep.subr.bf16.mxu0 0
        %2503 = vmatpush2.bf16.msra.mxu0 0
        %2504 = vmatprep.subr.bf16.mxu0 0
        %2505 = vmatpush2.bf16.msra.mxu0 0
        %2506 = vmatprep.subr.bf16.mxu0 0
        %2507 = vmatpush2.bf16.msra.mxu0 0
        %2508 = vmatprep.subr.bf16.mxu0 0
        %2509 = vmatpush2.bf16.msra.mxu0 0
        %2510 = vmatprep.subr.bf16.mxu0 0
        %2511 = vmatpush2.bf16.msra.mxu0 0
        %2512 = vmatprep.subr.bf16.mxu0 0
        %2513 = vmatpush2.bf16.msra.mxu0 0
        %2514 = vmatprep.subr.bf16.mxu0 0
        %2515 = vmatpush2.bf16.msra.mxu0 0
        %2516 = vmatprep.mubr.bf16.mxu0 0
        %2517 = vmatmul.mubr.bf16.gmra.mxu0 %v2461
        %v2518 = vpop.f32.mrf.mxu0
        %v2519 = vadd.f32 0.0, %v2518
        %v2520 = vpop.f32.mrf.mxu0
        %v2521 = vpop.f32.mrf.mxu0
        %v2522 = vadd.f32 0.0, %v2521
        %v2523 = vpop.f32.mrf.mxu0
        %2524 = vmatprep.mubr.bf16.mxu0 0
        %2525 = vmatmul.mubr.bf16.gmra.mxu0 %v2464
        %v2526 = vpop.f32.mrf.mxu0
        %v2527 = vadd.f32 0.0, %v2526
        %v2528 = vpop.f32.mrf.mxu0
        %v2529 = vpop.f32.mrf.mxu0
        %v2530 = vadd.f32 0.0, %v2529
        %v2531 = vpop.f32.mrf.mxu0
        %2532 = vmatprep.mubr.bf16.mxu0 0
        %2533 = vmatmul.mubr.bf16.gmra.mxu0 %v2467
        %v2534 = vpop.f32.mrf.mxu0
        %v2535 = vadd.f32 0.0, %v2534
        %v2536 = vpop.f32.mrf.mxu0
        %v2537 = vpop.f32.mrf.mxu0
        %v2538 = vadd.f32 0.0, %v2537
        %v2539 = vpop.f32.mrf.mxu0
        %2540 = vmatprep.mubr.bf16.mxu0 0
        %2541 = vmatmul.mubr.bf16.gmra.mxu0 %v2470
        %v2542 = vpop.f32.mrf.mxu0
        %v2543 = vadd.f32 0.0, %v2542
        %v2544 = vpop.f32.mrf.mxu0
        %v2545 = vpop.f32.mrf.mxu0
        %v2546 = vadd.f32 0.0, %v2545
        %v2547 = vpop.f32.mrf.mxu0
        %2548 = vmatprep.mubr.bf16.mxu0 0
        %2549 = vmatmul.mubr.bf16.gmra.mxu0 %v2473
        %v2550 = vpop.f32.mrf.mxu0
        %v2551 = vadd.f32 0.0, %v2550
        %v2552 = vpop.f32.mrf.mxu0
        %v2553 = vpop.f32.mrf.mxu0
        %v2554 = vadd.f32 0.0, %v2553
        %v2555 = vpop.f32.mrf.mxu0
        %2556 = vmatprep.mubr.bf16.mxu0 0
        %2557 = vmatmul.mubr.bf16.gmra.mxu0 %v2476
        %v2558 = vpop.f32.mrf.mxu0
        %v2559 = vadd.f32 0.0, %v2558
        %v2560 = vpop.f32.mrf.mxu0
        %v2561 = vpop.f32.mrf.mxu0
        %v2562 = vadd.f32 0.0, %v2561
        %v2563 = vpop.f32.mrf.mxu0
        %2564 = vmatprep.mubr.bf16.mxu0 0
        %2565 = vmatmul.mubr.bf16.gmra.mxu0 %v2479
        %v2566 = vpop.f32.mrf.mxu0
        %v2567 = vadd.f32 0.0, %v2566
        %v2568 = vpop.f32.mrf.mxu0
        %v2569 = vpop.f32.mrf.mxu0
        %v2570 = vadd.f32 0.0, %v2569
        %v2571 = vpop.f32.mrf.mxu0
        %2572 = vmatprep.mubr.bf16.mxu0 0
        %2573 = vmatmul.mubr.bf16.gmra.mxu0 %v2482
        %v2574 = vpop.f32.mrf.mxu0
        %v2575 = vadd.f32 0.0, %v2574
        %v2576 = vpop.f32.mrf.mxu0
        %v2577 = vpop.f32.mrf.mxu0
        %v2578 = vadd.f32 0.0, %v2577
        %v2579 = vpop.f32.mrf.mxu0
        %2580 = vdwg.mxu0
        %v2589 = vunpack.c.l.b16 %v1267
        %v2590 = vunpack.c.l.b16 %v1268
        %v2591 = vunpack.c.l.b16 %v1269
        %v2592 = vunpack.c.l.b16 %v1270
        %v2593 = vunpack.c.l.b16 %v1271
        %v2594 = vunpack.c.l.b16 %v1272
        %v2595 = vunpack.c.l.b16 %v1273
        %v2596 = vunpack.c.l.b16 %v1274
        %v2597 = vpack.c.b16 %v2590, %v2589
        %v2598 = vpack.c.b16 %v2592, %v2591
        %v2599 = vpack.c.b16 %v2594, %v2593
        %v2600 = vpack.c.b16 %v2596, %v2595
        %v2606 = vsel %vm1299, %v1824, 0
        %v2609 = vsel %vm1299, %v1825, 0
        %v2612 = vsel %vm1299, %v1826, 0
        %v2615 = vsel %vm1299, %v1827, 0
        %v2618 = vsel %vm1299, %v1828, 0
        %v2621 = vsel %vm1299, %v1829, 0
        %v2624 = vsel %vm1299, %v1830, 0
        %v2627 = vsel %vm1299, %v1831, 0
        %2629 = vmatprep.subr.bf16.mxu0 0
        %2630 = vmatpush1.bf16.msra.mxu0 0
        %2631 = vmatprep.subr.bf16.mxu0 0
        %2632 = vmatpush1.bf16.msra.mxu0 0
        %2633 = vmatprep.subr.bf16.mxu0 0
        %2634 = vmatpush1.bf16.msra.mxu0 0
        %2635 = vmatprep.subr.bf16.mxu0 0
        %2636 = vmatpush1.bf16.msra.mxu0 0
        %2637 = vmatprep.subr.bf16.mxu0 0
        %2638 = vmatpush1.bf16.msra.mxu0 %v2600
        %2639 = vmatprep.subr.bf16.mxu0 0
        %2640 = vmatpush1.bf16.msra.mxu0 %v2599
        %2641 = vmatprep.subr.bf16.mxu0 0
        %2642 = vmatpush1.bf16.msra.mxu0 %v2598
        %2643 = vmatprep.subr.bf16.mxu0 0
        %2644 = vmatpush1.bf16.msra.mxu0 %v2597
        %2645 = vmatprep.subr.bf16.mxu0 0
        %2646 = vmatpush2.bf16.msra.mxu0 0
        %2647 = vmatprep.subr.bf16.mxu0 0
        %2648 = vmatpush2.bf16.msra.mxu0 0
        %2649 = vmatprep.subr.bf16.mxu0 0
        %2650 = vmatpush2.bf16.msra.mxu0 0
        %2651 = vmatprep.subr.bf16.mxu0 0
        %2652 = vmatpush2.bf16.msra.mxu0 0
        %2653 = vmatprep.subr.bf16.mxu0 0
        %2654 = vmatpush2.bf16.msra.mxu0 0
        %2655 = vmatprep.subr.bf16.mxu0 0
        %2656 = vmatpush2.bf16.msra.mxu0 0
        %2657 = vmatprep.subr.bf16.mxu0 0
        %2658 = vmatpush2.bf16.msra.mxu0 0
        %2659 = vmatprep.subr.bf16.mxu0 0
        %2660 = vmatpush2.bf16.msra.mxu0 0
        %2661 = vmatprep.mubr.bf16.mxu0 0
        %2662 = vmatmul.mubr.bf16.gmra.mxu0 %v2606
        %v2663 = vpop.f32.mrf.mxu0
        %v2664 = vadd.f32 %v2519, %v2663
        %v2665 = vpop.f32.mrf.mxu0
        %v2666 = vpop.f32.mrf.mxu0
        %v2667 = vadd.f32 %v2522, %v2666
        %v2668 = vpop.f32.mrf.mxu0
        %2669 = vmatprep.mubr.bf16.mxu0 0
        %2670 = vmatmul.mubr.bf16.gmra.mxu0 %v2609
        %v2671 = vpop.f32.mrf.mxu0
        %v2672 = vadd.f32 %v2527, %v2671
        %v2673 = vpop.f32.mrf.mxu0
        %v2674 = vpop.f32.mrf.mxu0
        %v2675 = vadd.f32 %v2530, %v2674
        %v2676 = vpop.f32.mrf.mxu0
        %2677 = vmatprep.mubr.bf16.mxu0 0
        %2678 = vmatmul.mubr.bf16.gmra.mxu0 %v2612
        %v2679 = vpop.f32.mrf.mxu0
        %v2680 = vadd.f32 %v2535, %v2679
        %v2681 = vpop.f32.mrf.mxu0
        %v2682 = vpop.f32.mrf.mxu0
        %v2683 = vadd.f32 %v2538, %v2682
        %v2684 = vpop.f32.mrf.mxu0
        %2685 = vmatprep.mubr.bf16.mxu0 0
        %2686 = vmatmul.mubr.bf16.gmra.mxu0 %v2615
        %v2687 = vpop.f32.mrf.mxu0
        %v2688 = vadd.f32 %v2543, %v2687
        %v2689 = vpop.f32.mrf.mxu0
        %v2690 = vpop.f32.mrf.mxu0
        %v2691 = vadd.f32 %v2546, %v2690
        %v2692 = vpop.f32.mrf.mxu0
        %2693 = vmatprep.mubr.bf16.mxu0 0
        %2694 = vmatmul.mubr.bf16.gmra.mxu0 %v2618
        %v2695 = vpop.f32.mrf.mxu0
        %v2696 = vadd.f32 %v2551, %v2695
        %v2697 = vpop.f32.mrf.mxu0
        %v2698 = vpop.f32.mrf.mxu0
        %v2699 = vadd.f32 %v2554, %v2698
        %v2700 = vpop.f32.mrf.mxu0
        %2701 = vmatprep.mubr.bf16.mxu0 0
        %2702 = vmatmul.mubr.bf16.gmra.mxu0 %v2621
        %v2703 = vpop.f32.mrf.mxu0
        %v2704 = vadd.f32 %v2559, %v2703
        %v2705 = vpop.f32.mrf.mxu0
        %v2706 = vpop.f32.mrf.mxu0
        %v2707 = vadd.f32 %v2562, %v2706
        %v2708 = vpop.f32.mrf.mxu0
        %2709 = vmatprep.mubr.bf16.mxu0 0
        %2710 = vmatmul.mubr.bf16.gmra.mxu0 %v2624
        %v2711 = vpop.f32.mrf.mxu0
        %v2712 = vadd.f32 %v2567, %v2711
        %v2713 = vpop.f32.mrf.mxu0
        %v2714 = vpop.f32.mrf.mxu0
        %v2715 = vadd.f32 %v2570, %v2714
        %v2716 = vpop.f32.mrf.mxu0
        %2717 = vmatprep.mubr.bf16.mxu0 0
        %2718 = vmatmul.mubr.bf16.gmra.mxu0 %v2627
        %v2719 = vpop.f32.mrf.mxu0
        %v2720 = vadd.f32 %v2575, %v2719
        %v2721 = vpop.f32.mrf.mxu0
        %v2722 = vpop.f32.mrf.mxu0
        %v2723 = vadd.f32 %v2578, %v2722
        %v2724 = vpop.f32.mrf.mxu0
        %2725 = vdwg.mxu0
        %v2726 = vadd.f32 %v633, %v2664
        %v2727 = vadd.f32 %v634, %v2667
        %v2728 = vadd.f32 %v635, %v2672
        %v2729 = vadd.f32 %v636, %v2675
        %v2730 = vadd.f32 %v637, %v2680
        %v2731 = vadd.f32 %v638, %v2683
        %v2732 = vadd.f32 %v639, %v2688
        %v2733 = vadd.f32 %v640, %v2691
        %v2734 = vadd.f32 %v641, %v2696
        %v2735 = vadd.f32 %v642, %v2699
        %v2736 = vadd.f32 %v643, %v2704
        %v2737 = vadd.f32 %v644, %v2707
        %v2738 = vadd.f32 %v645, %v2712
        %v2739 = vadd.f32 %v646, %v2715
        %v2740 = vadd.f32 %v647, %v2720
        %v2741 = vadd.f32 %v648, %v2723
        %v2742 = vld [vmem:[%s6] sm:$0x1]
        %v2744 = vlaneseq
        %v2745 = vshrl.u32 %v2744, 7
        %v2746 = vsub.s32 0, %v2745
        %v2747 = vrot.slane %v2742, %v2746
        %v2749 = vadd.f32 %v2726, %v2747
        %v2750 = vadd.f32 %v2727, %v2747
        %v2751 = vadd.f32 %v2728, %v2747
        %v2752 = vadd.f32 %v2729, %v2747
        %v2753 = vadd.f32 %v2730, %v2747
        %v2754 = vadd.f32 %v2731, %v2747
        %v2755 = vadd.f32 %v2732, %v2747
        %v2756 = vadd.f32 %v2733, %v2747
        %v2757 = vadd.f32 %v2734, %v2747
        %v2758 = vadd.f32 %v2735, %v2747
        %v2759 = vadd.f32 %v2736, %v2747
        %v2760 = vadd.f32 %v2737, %v2747
        %v2761 = vadd.f32 %v2738, %v2747
        %v2762 = vadd.f32 %v2739, %v2747
        %v2763 = vadd.f32 %v2740, %v2747
        %v2764 = vadd.f32 %v2741, %v2747
        %v2765 = vld [vmem:[#allocation11] sm:$0x1]
        %v2766 = vld [vmem:[#allocation13] sm:$0x1]
        %2767 = vadd.xlane.f32.xlu0 %v2749
        %v2768 = vpop.xlane.xlu0 %2767
        %2769 = vadd.xlane.f32.xlu0 %v2750
        %v2770 = vpop.xlane.xlu0 %2769
        %2771 = vadd.xlane.f32.xlu0 %v2751
        %v2772 = vpop.xlane.xlu0 %2771
        %2773 = vadd.xlane.f32.xlu0 %v2752
        %v2774 = vpop.xlane.xlu0 %2773
        %2775 = vadd.xlane.f32.xlu0 %v2753
        %v2776 = vpop.xlane.xlu0 %2775
        %2777 = vadd.xlane.f32.xlu0 %v2754
        %v2778 = vpop.xlane.xlu0 %2777
        %2779 = vadd.xlane.f32.xlu0 %v2755
        %v2780 = vpop.xlane.xlu0 %2779
        %2781 = vadd.xlane.f32.xlu0 %v2756
        %v2782 = vpop.xlane.xlu0 %2781
        %2783 = vadd.xlane.f32.xlu0 %v2757
        %v2784 = vpop.xlane.xlu0 %2783
        %2785 = vadd.xlane.f32.xlu0 %v2758
        %v2786 = vpop.xlane.xlu0 %2785
        %2787 = vadd.xlane.f32.xlu0 %v2759
        %v2788 = vpop.xlane.xlu0 %2787
        %2789 = vadd.xlane.f32.xlu0 %v2760
        %v2790 = vpop.xlane.xlu0 %2789
        %2791 = vadd.xlane.f32.xlu0 %v2761
        %v2792 = vpop.xlane.xlu0 %2791
        %2793 = vadd.xlane.f32.xlu0 %v2762
        %v2794 = vpop.xlane.xlu0 %2793
        %2795 = vadd.xlane.f32.xlu0 %v2763
        %v2796 = vpop.xlane.xlu0 %2795
        %2797 = vadd.xlane.f32.xlu0 %v2764
        %v2798 = vpop.xlane.xlu0 %2797
        %v2799 = vmul.f32 %v2768, %v683
        %v2800 = vmul.f32 %v2770, %v683
        %v2801 = vmul.f32 %v2772, %v683
        %v2802 = vmul.f32 %v2774, %v683
        %v2803 = vmul.f32 %v2776, %v683
        %v2804 = vmul.f32 %v2778, %v683
        %v2805 = vmul.f32 %v2780, %v683
        %v2806 = vmul.f32 %v2782, %v683
        %v2807 = vmul.f32 %v2784, %v683
        %v2808 = vmul.f32 %v2786, %v683
        %v2809 = vmul.f32 %v2788, %v683
        %v2810 = vmul.f32 %v2790, %v683
        %v2811 = vmul.f32 %v2792, %v683
        %v2812 = vmul.f32 %v2794, %v683
        %v2813 = vmul.f32 %v2796, %v683
        %v2814 = vmul.f32 %v2798, %v683
        %v2815 = vsub.f32 %v2749, %v2799
        %v2816 = vsub.f32 %v2750, %v2800
        %v2817 = vsub.f32 %v2751, %v2801
        %v2818 = vsub.f32 %v2752, %v2802
        %v2819 = vsub.f32 %v2753, %v2803
        %v2820 = vsub.f32 %v2754, %v2804
        %v2821 = vsub.f32 %v2755, %v2805
        %v2822 = vsub.f32 %v2756, %v2806
        %v2823 = vsub.f32 %v2757, %v2807
        %v2824 = vsub.f32 %v2758, %v2808
        %v2825 = vsub.f32 %v2759, %v2809
        %v2826 = vsub.f32 %v2760, %v2810
        %v2827 = vsub.f32 %v2761, %v2811
        %v2828 = vsub.f32 %v2762, %v2812
        %v2829 = vsub.f32 %v2763, %v2813
        %v2830 = vsub.f32 %v2764, %v2814
        %v2831 = vmul.f32 %v2815, %v2815
        %v2832 = vmul.f32 %v2816, %v2816
        %v2833 = vmul.f32 %v2817, %v2817
        %v2834 = vmul.f32 %v2818, %v2818
        %v2835 = vmul.f32 %v2819, %v2819
        %v2836 = vmul.f32 %v2820, %v2820
        %v2837 = vmul.f32 %v2821, %v2821
        %v2838 = vmul.f32 %v2822, %v2822
        %v2839 = vmul.f32 %v2823, %v2823
        %v2840 = vmul.f32 %v2824, %v2824
        %v2841 = vmul.f32 %v2825, %v2825
        %v2842 = vmul.f32 %v2826, %v2826
        %v2843 = vmul.f32 %v2827, %v2827
        %v2844 = vmul.f32 %v2828, %v2828
        %v2845 = vmul.f32 %v2829, %v2829
        %v2846 = vmul.f32 %v2830, %v2830
        %2847 = vadd.xlane.f32.xlu0 %v2831
        %v2848 = vpop.xlane.xlu0 %2847
        %2849 = vadd.xlane.f32.xlu0 %v2832
        %v2850 = vpop.xlane.xlu0 %2849
        %2851 = vadd.xlane.f32.xlu0 %v2833
        %v2852 = vpop.xlane.xlu0 %2851
        %2853 = vadd.xlane.f32.xlu0 %v2834
        %v2854 = vpop.xlane.xlu0 %2853
        %2855 = vadd.xlane.f32.xlu0 %v2835
        %v2856 = vpop.xlane.xlu0 %2855
        %2857 = vadd.xlane.f32.xlu0 %v2836
        %v2858 = vpop.xlane.xlu0 %2857
        %2859 = vadd.xlane.f32.xlu0 %v2837
        %v2860 = vpop.xlane.xlu0 %2859
        %2861 = vadd.xlane.f32.xlu0 %v2838
        %v2862 = vpop.xlane.xlu0 %2861
        %2863 = vadd.xlane.f32.xlu0 %v2839
        %v2864 = vpop.xlane.xlu0 %2863
        %2865 = vadd.xlane.f32.xlu0 %v2840
        %v2866 = vpop.xlane.xlu0 %2865
        %2867 = vadd.xlane.f32.xlu0 %v2841
        %v2868 = vpop.xlane.xlu0 %2867
        %2869 = vadd.xlane.f32.xlu0 %v2842
        %v2870 = vpop.xlane.xlu0 %2869
        %2871 = vadd.xlane.f32.xlu0 %v2843
        %v2872 = vpop.xlane.xlu0 %2871
        %2873 = vadd.xlane.f32.xlu0 %v2844
        %v2874 = vpop.xlane.xlu0 %2873
        %2875 = vadd.xlane.f32.xlu0 %v2845
        %v2876 = vpop.xlane.xlu0 %2875
        %2877 = vadd.xlane.f32.xlu0 %v2846
        %v2878 = vpop.xlane.xlu0 %2877
        %v2879 = vmul.f32 %v2848, %v683
        %v2880 = vmul.f32 %v2850, %v683
        %v2881 = vmul.f32 %v2852, %v683
        %v2882 = vmul.f32 %v2854, %v683
        %v2883 = vmul.f32 %v2856, %v683
        %v2884 = vmul.f32 %v2858, %v683
        %v2885 = vmul.f32 %v2860, %v683
        %v2886 = vmul.f32 %v2862, %v683
        %v2887 = vmul.f32 %v2864, %v683
        %v2888 = vmul.f32 %v2866, %v683
        %v2889 = vmul.f32 %v2868, %v683
        %v2890 = vmul.f32 %v2870, %v683
        %v2891 = vmul.f32 %v2872, %v683
        %v2892 = vmul.f32 %v2874, %v683
        %v2893 = vmul.f32 %v2876, %v683
        %v2894 = vmul.f32 %v2878, %v683
        %v2895 = vadd.f32 %v2879, 1e-05
        %v2896 = vadd.f32 %v2880, 1e-05
        %v2897 = vadd.f32 %v2881, 1e-05
        %v2898 = vadd.f32 %v2882, 1e-05
        %v2899 = vadd.f32 %v2883, 1e-05
        %v2900 = vadd.f32 %v2884, 1e-05
        %v2901 = vadd.f32 %v2885, 1e-05
        %v2902 = vadd.f32 %v2886, 1e-05
        %v2903 = vadd.f32 %v2887, 1e-05
        %v2904 = vadd.f32 %v2888, 1e-05
        %v2905 = vadd.f32 %v2889, 1e-05
        %v2906 = vadd.f32 %v2890, 1e-05
        %v2907 = vadd.f32 %v2891, 1e-05
        %v2908 = vadd.f32 %v2892, 1e-05
        %v2909 = vadd.f32 %v2893, 1e-05
        %v2910 = vadd.f32 %v2894, 1e-05
        %v2911 = vrsqrt.pop %v2895
        %v2912 = vrsqrt.pop %v2896
        %v2913 = vrsqrt.pop %v2897
        %v2914 = vrsqrt.pop %v2898
        %v2915 = vrsqrt.pop %v2899
        %v2916 = vrsqrt.pop %v2900
        %v2917 = vrsqrt.pop %v2901
        %v2918 = vrsqrt.pop %v2902
        %v2919 = vrsqrt.pop %v2903
        %v2920 = vrsqrt.pop %v2904
        %v2921 = vrsqrt.pop %v2905
        %v2922 = vrsqrt.pop %v2906
        %v2923 = vrsqrt.pop %v2907
        %v2924 = vrsqrt.pop %v2908
        %v2925 = vrsqrt.pop %v2909
        %v2926 = vrsqrt.pop %v2910
        %v2927 = vmul.f32 %v2815, %v2911
        %v2928 = vmul.f32 %v2816, %v2912
        %v2929 = vmul.f32 %v2817, %v2913
        %v2930 = vmul.f32 %v2818, %v2914
        %v2931 = vmul.f32 %v2819, %v2915
        %v2932 = vmul.f32 %v2820, %v2916
        %v2933 = vmul.f32 %v2821, %v2917
        %v2934 = vmul.f32 %v2822, %v2918
        %v2935 = vmul.f32 %v2823, %v2919
        %v2936 = vmul.f32 %v2824, %v2920
        %v2937 = vmul.f32 %v2825, %v2921
        %v2938 = vmul.f32 %v2826, %v2922
        %v2939 = vmul.f32 %v2827, %v2923
        %v2940 = vmul.f32 %v2828, %v2924
        %v2941 = vmul.f32 %v2829, %v2925
        %v2942 = vmul.f32 %v2830, %v2926
        %v2944 = vlaneseq
        %v2945 = vshrl.u32 %v2944, 7
        %v2946 = vsub.s32 0, %v2945
        %v2947 = vrot.slane %v2765, %v2946
        %v2949 = vmul.f32 %v2927, %v2947
        %v2950 = vmul.f32 %v2928, %v2947
        %v2951 = vmul.f32 %v2929, %v2947
        %v2952 = vmul.f32 %v2930, %v2947
        %v2953 = vmul.f32 %v2931, %v2947
        %v2954 = vmul.f32 %v2932, %v2947
        %v2955 = vmul.f32 %v2933, %v2947
        %v2956 = vmul.f32 %v2934, %v2947
        %v2957 = vmul.f32 %v2935, %v2947
        %v2958 = vmul.f32 %v2936, %v2947
        %v2959 = vmul.f32 %v2937, %v2947
        %v2960 = vmul.f32 %v2938, %v2947
        %v2961 = vmul.f32 %v2939, %v2947
        %v2962 = vmul.f32 %v2940, %v2947
        %v2963 = vmul.f32 %v2941, %v2947
        %v2964 = vmul.f32 %v2942, %v2947
        %v2966 = vlaneseq
        %v2967 = vshrl.u32 %v2966, 7
        %v2968 = vsub.s32 0, %v2967
        %v2969 = vrot.slane %v2766, %v2968
        %v2971 = vadd.f32 %v2949, %v2969
        %v2972 = vadd.f32 %v2950, %v2969
        %v2973 = vadd.f32 %v2951, %v2969
        %v2974 = vadd.f32 %v2952, %v2969
        %v2975 = vadd.f32 %v2953, %v2969
        %v2976 = vadd.f32 %v2954, %v2969
        %v2977 = vadd.f32 %v2955, %v2969
        %v2978 = vadd.f32 %v2956, %v2969
        %v2979 = vadd.f32 %v2957, %v2969
        %v2980 = vadd.f32 %v2958, %v2969
        %v2981 = vadd.f32 %v2959, %v2969
        %v2982 = vadd.f32 %v2960, %v2969
        %v2983 = vadd.f32 %v2961, %v2969
        %v2984 = vadd.f32 %v2962, %v2969
        %v2985 = vadd.f32 %v2963, %v2969
        %v2986 = vadd.f32 %v2964, %v2969
        %v2987 = vpack.c.bf16 %v2972, %v2971
        %v2988 = vpack.c.bf16 %v2974, %v2973
        %v2989 = vpack.c.bf16 %v2976, %v2975
        %v2990 = vpack.c.bf16 %v2978, %v2977
        %v2991 = vpack.c.bf16 %v2980, %v2979
        %v2992 = vpack.c.bf16 %v2982, %v2981
        %v2993 = vpack.c.bf16 %v2984, %v2983
        %v2994 = vpack.c.bf16 %v2986, %v2985
        %v2995 = vld [vmem:[#allocation14] sm:$0xff]
        %v2996 = vld [vmem:[#allocation14 + $0x8] sm:$0xff]
        %v2997 = vld [vmem:[#allocation14 + $0x10] sm:$0xff]
        %v2998 = vld [vmem:[#allocation14 + $0x18] sm:$0xff]
        %v2999 = vld [vmem:[#allocation14 + $0x20] sm:$0xff]
        %v3000 = vld [vmem:[#allocation14 + $0x28] sm:$0xff]
        %v3001 = vld [vmem:[#allocation14 + $0x30] sm:$0xff]
        %v3002 = vld [vmem:[#allocation14 + $0x38] sm:$0xff]
        %v3003 = vld [vmem:[#allocation14 + $0x40] sm:$0xff]
        %v3004 = vld [vmem:[#allocation14 + $0x48] sm:$0xff]
        %v3005 = vld [vmem:[#allocation14 + $0x50] sm:$0xff]
        %v3006 = vld [vmem:[#allocation14 + $0x58] sm:$0xff]
        %v3007 = vld [vmem:[#allocation14 + $0x60] sm:$0xff]
        %v3008 = vld [vmem:[#allocation14 + $0x68] sm:$0xff]
        %v3009 = vld [vmem:[#allocation14 + $0x70] sm:$0xff]
        %v3010 = vld [vmem:[#allocation14 + $0x78] sm:$0xff]
        %v3011 = vld [vmem:[#allocation14 + $0x80] sm:$0xff]
        %v3012 = vld [vmem:[#allocation14 + $0x88] sm:$0xff]
        %v3013 = vld [vmem:[#allocation14 + $0x90] sm:$0xff]
        %v3014 = vld [vmem:[#allocation14 + $0x98] sm:$0xff]
        %v3015 = vld [vmem:[#allocation14 + $0xa0] sm:$0xff]
        %v3016 = vld [vmem:[#allocation14 + $0xa8] sm:$0xff]
        %v3017 = vld [vmem:[#allocation14 + $0xb0] sm:$0xff]
        %v3018 = vld [vmem:[#allocation14 + $0xb8] sm:$0xff]
        %v3019 = vld [vmem:[#allocation14 + $0xc0] sm:$0xff]
        %v3020 = vld [vmem:[#allocation14 + $0xc8] sm:$0xff]
        %v3021 = vld [vmem:[#allocation14 + $0xd0] sm:$0xff]
        %v3022 = vld [vmem:[#allocation14 + $0xd8] sm:$0xff]
        %v3023 = vld [vmem:[#allocation14 + $0xe0] sm:$0xff]
        %v3024 = vld [vmem:[#allocation14 + $0xe8] sm:$0xff]
        %v3025 = vld [vmem:[#allocation14 + $0xf0] sm:$0xff]
        %v3026 = vld [vmem:[#allocation14 + $0xf8] sm:$0xff]
        %v3027 = vld [vmem:[%s10] sm:$0xf]
        %v3029 = vlaneseq
        %v3030 = vshrl.u32 %v3029, 7
        %v3031 = vsub.s32 0, %v3030
        %v3032 = vrot.slane %v3027, %v3031
        %v3033 = vlaneseq
        %v3034 = vshrl.u32 %v3033, 7
        %v3035 = vsub.s32 1, %v3034
        %v3036 = vrot.slane %v3027, %v3035
        %v3037 = vlaneseq
        %v3038 = vshrl.u32 %v3037, 7
        %v3039 = vsub.s32 2, %v3038
        %v3040 = vrot.slane %v3027, %v3039
        %v3041 = vlaneseq
        %v3042 = vshrl.u32 %v3041, 7
        %v3043 = vsub.s32 3, %v3042
        %v3044 = vrot.slane %v3027, %v3043
        %v3081 = vunpack.c.l.b16 %v2995
        %v3082 = vunpack.c.h.b16 %v2995
        %v3083 = vunpack.c.l.b16 %v2996
        %v3084 = vunpack.c.h.b16 %v2996
        %v3085 = vunpack.c.l.b16 %v2997
        %v3086 = vunpack.c.h.b16 %v2997
        %v3087 = vunpack.c.l.b16 %v2998
        %v3088 = vunpack.c.h.b16 %v2998
        %v3089 = vunpack.c.l.b16 %v2999
        %v3090 = vunpack.c.h.b16 %v2999
        %v3091 = vunpack.c.l.b16 %v3000
        %v3092 = vunpack.c.h.b16 %v3000
        %v3093 = vunpack.c.l.b16 %v3001
        %v3094 = vunpack.c.h.b16 %v3001
        %v3095 = vunpack.c.l.b16 %v3002
        %v3096 = vunpack.c.h.b16 %v3002
        %v3097 = vunpack.c.l.b16 %v3003
        %v3098 = vunpack.c.h.b16 %v3003
        %v3099 = vunpack.c.l.b16 %v3004
        %v3100 = vunpack.c.h.b16 %v3004
        %v3101 = vunpack.c.l.b16 %v3005
        %v3102 = vunpack.c.h.b16 %v3005
        %v3103 = vunpack.c.l.b16 %v3006
        %v3104 = vunpack.c.h.b16 %v3006
        %v3105 = vunpack.c.l.b16 %v3007
        %v3106 = vunpack.c.h.b16 %v3007
        %v3107 = vunpack.c.l.b16 %v3008
        %v3108 = vunpack.c.h.b16 %v3008
        %v3109 = vunpack.c.l.b16 %v3009
        %v3110 = vunpack.c.h.b16 %v3009
        %v3111 = vunpack.c.l.b16 %v3010
        %v3112 = vunpack.c.h.b16 %v3010
        %v3113 = vunpack.c.l.b16 %v3011
        %v3114 = vunpack.c.h.b16 %v3011
        %v3115 = vunpack.c.l.b16 %v3012
        %v3116 = vunpack.c.h.b16 %v3012
        %v3117 = vunpack.c.l.b16 %v3013
        %v3118 = vunpack.c.h.b16 %v3013
        %v3119 = vunpack.c.l.b16 %v3014
        %v3120 = vunpack.c.h.b16 %v3014
        %v3121 = vunpack.c.l.b16 %v3015
        %v3122 = vunpack.c.h.b16 %v3015
        %v3123 = vunpack.c.l.b16 %v3016
        %v3124 = vunpack.c.h.b16 %v3016
        %v3125 = vunpack.c.l.b16 %v3017
        %v3126 = vunpack.c.h.b16 %v3017
        %v3127 = vunpack.c.l.b16 %v3018
        %v3128 = vunpack.c.h.b16 %v3018
        %v3129 = vunpack.c.l.b16 %v3019
        %v3130 = vunpack.c.h.b16 %v3019
        %v3131 = vunpack.c.l.b16 %v3020
        %v3132 = vunpack.c.h.b16 %v3020
        %v3133 = vunpack.c.l.b16 %v3021
        %v3134 = vunpack.c.h.b16 %v3021
        %v3135 = vunpack.c.l.b16 %v3022
        %v3136 = vunpack.c.h.b16 %v3022
        %v3137 = vunpack.c.l.b16 %v3023
        %v3138 = vunpack.c.h.b16 %v3023
        %v3139 = vunpack.c.l.b16 %v3024
        %v3140 = vunpack.c.h.b16 %v3024
        %v3141 = vunpack.c.l.b16 %v3025
        %v3142 = vunpack.c.h.b16 %v3025
        %v3143 = vunpack.c.l.b16 %v3026
        %v3144 = vunpack.c.h.b16 %v3026
        %v3145 = vpack.c.b16 %v3085, %v3081
        %v3146 = vpack.c.b16 %v3086, %v3082
        %v3147 = vpack.c.b16 %v3087, %v3083
        %v3148 = vpack.c.b16 %v3088, %v3084
        %v3149 = vpack.c.b16 %v3093, %v3089
        %v3150 = vpack.c.b16 %v3094, %v3090
        %v3151 = vpack.c.b16 %v3095, %v3091
        %v3152 = vpack.c.b16 %v3096, %v3092
        %v3153 = vpack.c.b16 %v3101, %v3097
        %v3154 = vpack.c.b16 %v3102, %v3098
        %v3155 = vpack.c.b16 %v3103, %v3099
        %v3156 = vpack.c.b16 %v3104, %v3100
        %v3157 = vpack.c.b16 %v3109, %v3105
        %v3158 = vpack.c.b16 %v3110, %v3106
        %v3159 = vpack.c.b16 %v3111, %v3107
        %v3160 = vpack.c.b16 %v3112, %v3108
        %v3161 = vpack.c.b16 %v3117, %v3113
        %v3162 = vpack.c.b16 %v3118, %v3114
        %v3163 = vpack.c.b16 %v3119, %v3115
        %v3164 = vpack.c.b16 %v3120, %v3116
        %v3165 = vpack.c.b16 %v3125, %v3121
        %v3166 = vpack.c.b16 %v3126, %v3122
        %v3167 = vpack.c.b16 %v3127, %v3123
        %v3168 = vpack.c.b16 %v3128, %v3124
        %v3169 = vpack.c.b16 %v3133, %v3129
        %v3170 = vpack.c.b16 %v3134, %v3130
        %v3171 = vpack.c.b16 %v3135, %v3131
        %v3172 = vpack.c.b16 %v3136, %v3132
        %v3173 = vpack.c.b16 %v3141, %v3137
        %v3174 = vpack.c.b16 %v3142, %v3138
        %v3175 = vpack.c.b16 %v3143, %v3139
        %v3176 = vpack.c.b16 %v3144, %v3140
        %3209 = vmatprep.subr.bf16.mxu0 %v3174
        %3210 = vmatpush1.bf16.msra.mxu0 %v3173
        %3211 = vmatprep.subr.bf16.mxu0 %v3170
        %3212 = vmatpush1.bf16.msra.mxu0 %v3169
        %3213 = vmatprep.subr.bf16.mxu0 %v3166
        %3214 = vmatpush1.bf16.msra.mxu0 %v3165
        %3215 = vmatprep.subr.bf16.mxu0 %v3162
        %3216 = vmatpush1.bf16.msra.mxu0 %v3161
        %3217 = vmatprep.subr.bf16.mxu0 %v3158
        %3218 = vmatpush1.bf16.msra.mxu0 %v3157
        %3219 = vmatprep.subr.bf16.mxu0 %v3154
        %3220 = vmatpush1.bf16.msra.mxu0 %v3153
        %3221 = vmatprep.subr.bf16.mxu0 %v3150
        %3222 = vmatpush1.bf16.msra.mxu0 %v3149
        %3223 = vmatprep.subr.bf16.mxu0 %v3146
        %3224 = vmatpush1.bf16.msra.mxu0 %v3145
        %3225 = vmatprep.subr.bf16.mxu0 0
        %3226 = vmatpush2.bf16.msra.mxu0 0
        %3227 = vmatprep.subr.bf16.mxu0 0
        %3228 = vmatpush2.bf16.msra.mxu0 0
        %3229 = vmatprep.subr.bf16.mxu0 0
        %3230 = vmatpush2.bf16.msra.mxu0 0
        %3231 = vmatprep.subr.bf16.mxu0 0
        %3232 = vmatpush2.bf16.msra.mxu0 0
        %3233 = vmatprep.subr.bf16.mxu0 0
        %3234 = vmatpush2.bf16.msra.mxu0 0
        %3235 = vmatprep.subr.bf16.mxu0 0
        %3236 = vmatpush2.bf16.msra.mxu0 0
        %3237 = vmatprep.subr.bf16.mxu0 0
        %3238 = vmatpush2.bf16.msra.mxu0 0
        %3239 = vmatprep.subr.bf16.mxu0 0
        %3240 = vmatpush2.bf16.msra.mxu0 0
        %3241 = vmatprep.mubr.bf16.mxu0 0
        %3242 = vmatmul.mubr.bf16.gmra.mxu0 %v2987
        %v3243 = vpop.f32.mrf.mxu0
        %v3244 = vadd.f32 %v3032, %v3243
        %v3245 = vpop.f32.mrf.mxu0
        %v3246 = vadd.f32 %v3036, %v3245
        %v3247 = vpop.f32.mrf.mxu0
        %v3248 = vadd.f32 %v3032, %v3247
        %v3249 = vpop.f32.mrf.mxu0
        %v3250 = vadd.f32 %v3036, %v3249
        %3251 = vmatprep.mubr.bf16.mxu0 0
        %3252 = vmatmul.mubr.bf16.gmra.mxu0 %v2988
        %v3253 = vpop.f32.mrf.mxu0
        %v3254 = vadd.f32 %v3032, %v3253
        %v3255 = vpop.f32.mrf.mxu0
        %v3256 = vadd.f32 %v3036, %v3255
        %v3257 = vpop.f32.mrf.mxu0
        %v3258 = vadd.f32 %v3032, %v3257
        %v3259 = vpop.f32.mrf.mxu0
        %v3260 = vadd.f32 %v3036, %v3259
        %3261 = vmatprep.mubr.bf16.mxu0 0
        %3262 = vmatmul.mubr.bf16.gmra.mxu0 %v2989
        %v3263 = vpop.f32.mrf.mxu0
        %v3264 = vadd.f32 %v3032, %v3263
        %v3265 = vpop.f32.mrf.mxu0
        %v3266 = vadd.f32 %v3036, %v3265
        %v3267 = vpop.f32.mrf.mxu0
        %v3268 = vadd.f32 %v3032, %v3267
        %v3269 = vpop.f32.mrf.mxu0
        %v3270 = vadd.f32 %v3036, %v3269
        %3271 = vmatprep.mubr.bf16.mxu0 0
        %3272 = vmatmul.mubr.bf16.gmra.mxu0 %v2990
        %v3273 = vpop.f32.mrf.mxu0
        %v3274 = vadd.f32 %v3032, %v3273
        %v3275 = vpop.f32.mrf.mxu0
        %v3276 = vadd.f32 %v3036, %v3275
        %v3277 = vpop.f32.mrf.mxu0
        %v3278 = vadd.f32 %v3032, %v3277
        %v3279 = vpop.f32.mrf.mxu0
        %v3280 = vadd.f32 %v3036, %v3279
        %3281 = vmatprep.mubr.bf16.mxu0 0
        %3282 = vmatmul.mubr.bf16.gmra.mxu0 %v2991
        %v3283 = vpop.f32.mrf.mxu0
        %v3284 = vadd.f32 %v3032, %v3283
        %v3285 = vpop.f32.mrf.mxu0
        %v3286 = vadd.f32 %v3036, %v3285
        %v3287 = vpop.f32.mrf.mxu0
        %v3288 = vadd.f32 %v3032, %v3287
        %v3289 = vpop.f32.mrf.mxu0
        %v3290 = vadd.f32 %v3036, %v3289
        %3291 = vmatprep.mubr.bf16.mxu0 0
        %3292 = vmatmul.mubr.bf16.gmra.mxu0 %v2992
        %v3293 = vpop.f32.mrf.mxu0
        %v3294 = vadd.f32 %v3032, %v3293
        %v3295 = vpop.f32.mrf.mxu0
        %v3296 = vadd.f32 %v3036, %v3295
        %v3297 = vpop.f32.mrf.mxu0
        %v3298 = vadd.f32 %v3032, %v3297
        %v3299 = vpop.f32.mrf.mxu0
        %v3300 = vadd.f32 %v3036, %v3299
        %3301 = vmatprep.mubr.bf16.mxu0 0
        %3302 = vmatmul.mubr.bf16.gmra.mxu0 %v2993
        %v3303 = vpop.f32.mrf.mxu0
        %v3304 = vadd.f32 %v3032, %v3303
        %v3305 = vpop.f32.mrf.mxu0
        %v3306 = vadd.f32 %v3036, %v3305
        %v3307 = vpop.f32.mrf.mxu0
        %v3308 = vadd.f32 %v3032, %v3307
        %v3309 = vpop.f32.mrf.mxu0
        %v3310 = vadd.f32 %v3036, %v3309
        %3311 = vmatprep.mubr.bf16.mxu0 0
        %3312 = vmatmul.mubr.bf16.gmra.mxu0 %v2994
        %v3313 = vpop.f32.mrf.mxu0
        %v3314 = vadd.f32 %v3032, %v3313
        %v3315 = vpop.f32.mrf.mxu0
        %v3316 = vadd.f32 %v3036, %v3315
        %v3317 = vpop.f32.mrf.mxu0
        %v3318 = vadd.f32 %v3032, %v3317
        %v3319 = vpop.f32.mrf.mxu0
        %v3320 = vadd.f32 %v3036, %v3319
        %3321 = vdwg.mxu0
        %3322 = vmatprep.subr.bf16.mxu0 %v3176
        %3323 = vmatpush1.bf16.msra.mxu0 %v3175
        %3324 = vmatprep.subr.bf16.mxu0 %v3172
        %3325 = vmatpush1.bf16.msra.mxu0 %v3171
        %3326 = vmatprep.subr.bf16.mxu0 %v3168
        %3327 = vmatpush1.bf16.msra.mxu0 %v3167
        %3328 = vmatprep.subr.bf16.mxu0 %v3164
        %3329 = vmatpush1.bf16.msra.mxu0 %v3163
        %3330 = vmatprep.subr.bf16.mxu0 %v3160
        %3331 = vmatpush1.bf16.msra.mxu0 %v3159
        %3332 = vmatprep.subr.bf16.mxu0 %v3156
        %3333 = vmatpush1.bf16.msra.mxu0 %v3155
        %3334 = vmatprep.subr.bf16.mxu0 %v3152
        %3335 = vmatpush1.bf16.msra.mxu0 %v3151
        %3336 = vmatprep.subr.bf16.mxu0 %v3148
        %3337 = vmatpush1.bf16.msra.mxu0 %v3147
        %3338 = vmatprep.subr.bf16.mxu0 0
        %3339 = vmatpush2.bf16.msra.mxu0 0
        %3340 = vmatprep.subr.bf16.mxu0 0
        %3341 = vmatpush2.bf16.msra.mxu0 0
        %3342 = vmatprep.subr.bf16.mxu0 0
        %3343 = vmatpush2.bf16.msra.mxu0 0
        %3344 = vmatprep.subr.bf16.mxu0 0
        %3345 = vmatpush2.bf16.msra.mxu0 0
        %3346 = vmatprep.subr.bf16.mxu0 0
        %3347 = vmatpush2.bf16.msra.mxu0 0
        %3348 = vmatprep.subr.bf16.mxu0 0
        %3349 = vmatpush2.bf16.msra.mxu0 0
        %3350 = vmatprep.subr.bf16.mxu0 0
        %3351 = vmatpush2.bf16.msra.mxu0 0
        %3352 = vmatprep.subr.bf16.mxu0 0
        %3353 = vmatpush2.bf16.msra.mxu0 0
        %3354 = vmatprep.mubr.bf16.mxu0 0
        %3355 = vmatmul.mubr.bf16.gmra.mxu0 %v2987
        %v3356 = vpop.f32.mrf.mxu0
        %v3357 = vadd.f32 %v3040, %v3356
        %v3358 = vpop.f32.mrf.mxu0
        %v3359 = vadd.f32 %v3044, %v3358
        %v3360 = vpop.f32.mrf.mxu0
        %v3361 = vadd.f32 %v3040, %v3360
        %v3362 = vpop.f32.mrf.mxu0
        %v3363 = vadd.f32 %v3044, %v3362
        %3364 = vmatprep.mubr.bf16.mxu0 0
        %3365 = vmatmul.mubr.bf16.gmra.mxu0 %v2988
        %v3366 = vpop.f32.mrf.mxu0
        %v3367 = vadd.f32 %v3040, %v3366
        %v3368 = vpop.f32.mrf.mxu0
        %v3369 = vadd.f32 %v3044, %v3368
        %v3370 = vpop.f32.mrf.mxu0
        %v3371 = vadd.f32 %v3040, %v3370
        %v3372 = vpop.f32.mrf.mxu0
        %v3373 = vadd.f32 %v3044, %v3372
        %3374 = vmatprep.mubr.bf16.mxu0 0
        %3375 = vmatmul.mubr.bf16.gmra.mxu0 %v2989
        %v3376 = vpop.f32.mrf.mxu0
        %v3377 = vadd.f32 %v3040, %v3376
        %v3378 = vpop.f32.mrf.mxu0
        %v3379 = vadd.f32 %v3044, %v3378
        %v3380 = vpop.f32.mrf.mxu0
        %v3381 = vadd.f32 %v3040, %v3380
        %v3382 = vpop.f32.mrf.mxu0
        %v3383 = vadd.f32 %v3044, %v3382
        %3384 = vmatprep.mubr.bf16.mxu0 0
        %3385 = vmatmul.mubr.bf16.gmra.mxu0 %v2990
        %v3386 = vpop.f32.mrf.mxu0
        %v3387 = vadd.f32 %v3040, %v3386
        %v3388 = vpop.f32.mrf.mxu0
        %v3389 = vadd.f32 %v3044, %v3388
        %v3390 = vpop.f32.mrf.mxu0
        %v3391 = vadd.f32 %v3040, %v3390
        %v3392 = vpop.f32.mrf.mxu0
        %v3393 = vadd.f32 %v3044, %v3392
        %3394 = vmatprep.mubr.bf16.mxu0 0
        %3395 = vmatmul.mubr.bf16.gmra.mxu0 %v2991
        %v3396 = vpop.f32.mrf.mxu0
        %v3397 = vadd.f32 %v3040, %v3396
        %v3398 = vpop.f32.mrf.mxu0
        %v3399 = vadd.f32 %v3044, %v3398
        %v3400 = vpop.f32.mrf.mxu0
        %v3401 = vadd.f32 %v3040, %v3400
        %v3402 = vpop.f32.mrf.mxu0
        %v3403 = vadd.f32 %v3044, %v3402
        %3404 = vmatprep.mubr.bf16.mxu0 0
        %3405 = vmatmul.mubr.bf16.gmra.mxu0 %v2992
        %v3406 = vpop.f32.mrf.mxu0
        %v3407 = vadd.f32 %v3040, %v3406
        %v3408 = vpop.f32.mrf.mxu0
        %v3409 = vadd.f32 %v3044, %v3408
        %v3410 = vpop.f32.mrf.mxu0
        %v3411 = vadd.f32 %v3040, %v3410
        %v3412 = vpop.f32.mrf.mxu0
        %v3413 = vadd.f32 %v3044, %v3412
        %3414 = vmatprep.mubr.bf16.mxu0 0
        %3415 = vmatmul.mubr.bf16.gmra.mxu0 %v2993
        %v3416 = vpop.f32.mrf.mxu0
        %v3417 = vadd.f32 %v3040, %v3416
        %v3418 = vpop.f32.mrf.mxu0
        %v3419 = vadd.f32 %v3044, %v3418
        %v3420 = vpop.f32.mrf.mxu0
        %v3421 = vadd.f32 %v3040, %v3420
        %v3422 = vpop.f32.mrf.mxu0
        %v3423 = vadd.f32 %v3044, %v3422
        %3424 = vmatprep.mubr.bf16.mxu0 0
        %3425 = vmatmul.mubr.bf16.gmra.mxu0 %v2994
        %v3426 = vpop.f32.mrf.mxu0
        %v3427 = vadd.f32 %v3040, %v3426
        %v3428 = vpop.f32.mrf.mxu0
        %v3429 = vadd.f32 %v3044, %v3428
        %v3430 = vpop.f32.mrf.mxu0
        %v3431 = vadd.f32 %v3040, %v3430
        %v3432 = vpop.f32.mrf.mxu0
        %v3433 = vadd.f32 %v3044, %v3432
        %3434 = vdwg.mxu0
        %v3435 = vmul.f32 %v3244, 0.5
        %v3436 = vmul.f32 %v3246, 0.5
        %v3437 = vmul.f32 %v3357, 0.5
        %v3438 = vmul.f32 %v3359, 0.5
        %v3439 = vmul.f32 %v3248, 0.5
        %v3440 = vmul.f32 %v3250, 0.5
        %v3441 = vmul.f32 %v3361, 0.5
        %v3442 = vmul.f32 %v3363, 0.5
        %v3443 = vmul.f32 %v3254, 0.5
        %v3444 = vmul.f32 %v3256, 0.5
        %v3445 = vmul.f32 %v3367, 0.5
        %v3446 = vmul.f32 %v3369, 0.5
        %v3447 = vmul.f32 %v3258, 0.5
        %v3448 = vmul.f32 %v3260, 0.5
        %v3449 = vmul.f32 %v3371, 0.5
        %v3450 = vmul.f32 %v3373, 0.5
        %v3451 = vmul.f32 %v3264, 0.5
        %v3452 = vmul.f32 %v3266, 0.5
        %v3453 = vmul.f32 %v3377, 0.5
        %v3454 = vmul.f32 %v3379, 0.5
        %v3455 = vmul.f32 %v3268, 0.5
        %v3456 = vmul.f32 %v3270, 0.5
        %v3457 = vmul.f32 %v3381, 0.5
        %v3458 = vmul.f32 %v3383, 0.5
        %v3459 = vmul.f32 %v3274, 0.5
        %v3460 = vmul.f32 %v3276, 0.5
        %v3461 = vmul.f32 %v3387, 0.5
        %v3462 = vmul.f32 %v3389, 0.5
        %v3463 = vmul.f32 %v3278, 0.5
        %v3464 = vmul.f32 %v3280, 0.5
        %v3465 = vmul.f32 %v3391, 0.5
        %v3466 = vmul.f32 %v3393, 0.5
        %v3467 = vmul.f32 %v3284, 0.5
        %v3468 = vmul.f32 %v3286, 0.5
        %v3469 = vmul.f32 %v3397, 0.5
        %v3470 = vmul.f32 %v3399, 0.5
        %v3471 = vmul.f32 %v3288, 0.5
        %v3472 = vmul.f32 %v3290, 0.5
        %v3473 = vmul.f32 %v3401, 0.5
        %v3474 = vmul.f32 %v3403, 0.5
        %v3475 = vmul.f32 %v3294, 0.5
        %v3476 = vmul.f32 %v3296, 0.5
        %v3477 = vmul.f32 %v3407, 0.5
        %v3478 = vmul.f32 %v3409, 0.5
        %v3479 = vmul.f32 %v3298, 0.5
        %v3480 = vmul.f32 %v3300, 0.5
        %v3481 = vmul.f32 %v3411, 0.5
        %v3482 = vmul.f32 %v3413, 0.5
        %v3483 = vmul.f32 %v3304, 0.5
        %v3484 = vmul.f32 %v3306, 0.5
        %v3485 = vmul.f32 %v3417, 0.5
        %v3486 = vmul.f32 %v3419, 0.5
        %v3487 = vmul.f32 %v3308, 0.5
        %v3488 = vmul.f32 %v3310, 0.5
        %v3489 = vmul.f32 %v3421, 0.5
        %v3490 = vmul.f32 %v3423, 0.5
        %v3491 = vmul.f32 %v3314, 0.5
        %v3492 = vmul.f32 %v3316, 0.5
        %v3493 = vmul.f32 %v3427, 0.5
        %v3494 = vmul.f32 %v3429, 0.5
        %v3495 = vmul.f32 %v3318, 0.5
        %v3496 = vmul.f32 %v3320, 0.5
        %v3497 = vmul.f32 %v3431, 0.5
        %v3498 = vmul.f32 %v3433, 0.5
        %v3499 = vmul.f32 %v3244, 0.044715
        %v3500 = vmul.f32 %v3246, 0.044715
        %v3501 = vmul.f32 %v3357, 0.044715
        %v3502 = vmul.f32 %v3359, 0.044715
        %v3503 = vmul.f32 %v3248, 0.044715
        %v3504 = vmul.f32 %v3250, 0.044715
        %v3505 = vmul.f32 %v3361, 0.044715
        %v3506 = vmul.f32 %v3363, 0.044715
        %v3507 = vmul.f32 %v3254, 0.044715
        %v3508 = vmul.f32 %v3256, 0.044715
        %v3509 = vmul.f32 %v3367, 0.044715
        %v3510 = vmul.f32 %v3369, 0.044715
        %v3511 = vmul.f32 %v3258, 0.044715
        %v3512 = vmul.f32 %v3260, 0.044715
        %v3513 = vmul.f32 %v3371, 0.044715
        %v3514 = vmul.f32 %v3373, 0.044715
        %v3515 = vmul.f32 %v3264, 0.044715
        %v3516 = vmul.f32 %v3266, 0.044715
        %v3517 = vmul.f32 %v3377, 0.044715
        %v3518 = vmul.f32 %v3379, 0.044715
        %v3519 = vmul.f32 %v3268, 0.044715
        %v3520 = vmul.f32 %v3270, 0.044715
        %v3521 = vmul.f32 %v3381, 0.044715
        %v3522 = vmul.f32 %v3383, 0.044715
        %v3523 = vmul.f32 %v3274, 0.044715
        %v3524 = vmul.f32 %v3276, 0.044715
        %v3525 = vmul.f32 %v3387, 0.044715
        %v3526 = vmul.f32 %v3389, 0.044715
        %v3527 = vmul.f32 %v3278, 0.044715
        %v3528 = vmul.f32 %v3280, 0.044715
        %v3529 = vmul.f32 %v3391, 0.044715
        %v3530 = vmul.f32 %v3393, 0.044715
        %v3531 = vmul.f32 %v3284, 0.044715
        %v3532 = vmul.f32 %v3286, 0.044715
        %v3533 = vmul.f32 %v3397, 0.044715
        %v3534 = vmul.f32 %v3399, 0.044715
        %v3535 = vmul.f32 %v3288, 0.044715
        %v3536 = vmul.f32 %v3290, 0.044715
        %v3537 = vmul.f32 %v3401, 0.044715
        %v3538 = vmul.f32 %v3403, 0.044715
        %v3539 = vmul.f32 %v3294, 0.044715
        %v3540 = vmul.f32 %v3296, 0.044715
        %v3541 = vmul.f32 %v3407, 0.044715
        %v3542 = vmul.f32 %v3409, 0.044715
        %v3543 = vmul.f32 %v3298, 0.044715
        %v3544 = vmul.f32 %v3300, 0.044715
        %v3545 = vmul.f32 %v3411, 0.044715
        %v3546 = vmul.f32 %v3413, 0.044715
        %v3547 = vmul.f32 %v3304, 0.044715
        %v3548 = vmul.f32 %v3306, 0.044715
        %v3549 = vmul.f32 %v3417, 0.044715
        %v3550 = vmul.f32 %v3419, 0.044715
        %v3551 = vmul.f32 %v3308, 0.044715
        %v3552 = vmul.f32 %v3310, 0.044715
        %v3553 = vmul.f32 %v3421, 0.044715
        %v3554 = vmul.f32 %v3423, 0.044715
        %v3555 = vmul.f32 %v3314, 0.044715
        %v3556 = vmul.f32 %v3316, 0.044715
        %v3557 = vmul.f32 %v3427, 0.044715
        %v3558 = vmul.f32 %v3429, 0.044715
        %v3559 = vmul.f32 %v3318, 0.044715
        %v3560 = vmul.f32 %v3320, 0.044715
        %v3561 = vmul.f32 %v3431, 0.044715
        %v3562 = vmul.f32 %v3433, 0.044715
        %v3563 = vmul.f32 %v3499, %v3244
        %v3564 = vmul.f32 %v3500, %v3246
        %v3565 = vmul.f32 %v3501, %v3357
        %v3566 = vmul.f32 %v3502, %v3359
        %v3567 = vmul.f32 %v3503, %v3248
        %v3568 = vmul.f32 %v3504, %v3250
        %v3569 = vmul.f32 %v3505, %v3361
        %v3570 = vmul.f32 %v3506, %v3363
        %v3571 = vmul.f32 %v3507, %v3254
        %v3572 = vmul.f32 %v3508, %v3256
        %v3573 = vmul.f32 %v3509, %v3367
        %v3574 = vmul.f32 %v3510, %v3369
        %v3575 = vmul.f32 %v3511, %v3258
        %v3576 = vmul.f32 %v3512, %v3260
        %v3577 = vmul.f32 %v3513, %v3371
        %v3578 = vmul.f32 %v3514, %v3373
        %v3579 = vmul.f32 %v3515, %v3264
        %v3580 = vmul.f32 %v3516, %v3266
        %v3581 = vmul.f32 %v3517, %v3377
        %v3582 = vmul.f32 %v3518, %v3379
        %v3583 = vmul.f32 %v3519, %v3268
        %v3584 = vmul.f32 %v3520, %v3270
        %v3585 = vmul.f32 %v3521, %v3381
        %v3586 = vmul.f32 %v3522, %v3383
        %v3587 = vmul.f32 %v3523, %v3274
        %v3588 = vmul.f32 %v3524, %v3276
        %v3589 = vmul.f32 %v3525, %v3387
        %v3590 = vmul.f32 %v3526, %v3389
        %v3591 = vmul.f32 %v3527, %v3278
        %v3592 = vmul.f32 %v3528, %v3280
        %v3593 = vmul.f32 %v3529, %v3391
        %v3594 = vmul.f32 %v3530, %v3393
        %v3595 = vmul.f32 %v3531, %v3284
        %v3596 = vmul.f32 %v3532, %v3286
        %v3597 = vmul.f32 %v3533, %v3397
        %v3598 = vmul.f32 %v3534, %v3399
        %v3599 = vmul.f32 %v3535, %v3288
        %v3600 = vmul.f32 %v3536, %v3290
        %v3601 = vmul.f32 %v3537, %v3401
        %v3602 = vmul.f32 %v3538, %v3403
        %v3603 = vmul.f32 %v3539, %v3294
        %v3604 = vmul.f32 %v3540, %v3296
        %v3605 = vmul.f32 %v3541, %v3407
        %v3606 = vmul.f32 %v3542, %v3409
        %v3607 = vmul.f32 %v3543, %v3298
        %v3608 = vmul.f32 %v3544, %v3300
        %v3609 = vmul.f32 %v3545, %v3411
        %v3610 = vmul.f32 %v3546, %v3413
        %v3611 = vmul.f32 %v3547, %v3304
        %v3612 = vmul.f32 %v3548, %v3306
        %v3613 = vmul.f32 %v3549, %v3417
        %v3614 = vmul.f32 %v3550, %v3419
        %v3615 = vmul.f32 %v3551, %v3308
        %v3616 = vmul.f32 %v3552, %v3310
        %v3617 = vmul.f32 %v3553, %v3421
        %v3618 = vmul.f32 %v3554, %v3423
        %v3619 = vmul.f32 %v3555, %v3314
        %v3620 = vmul.f32 %v3556, %v3316
        %v3621 = vmul.f32 %v3557, %v3427
        %v3622 = vmul.f32 %v3558, %v3429
        %v3623 = vmul.f32 %v3559, %v3318
        %v3624 = vmul.f32 %v3560, %v3320
        %v3625 = vmul.f32 %v3561, %v3431
        %v3626 = vmul.f32 %v3562, %v3433
        %v3627 = vmul.f32 %v3563, %v3244
        %v3628 = vmul.f32 %v3564, %v3246
        %v3629 = vmul.f32 %v3565, %v3357
        %v3630 = vmul.f32 %v3566, %v3359
        %v3631 = vmul.f32 %v3567, %v3248
        %v3632 = vmul.f32 %v3568, %v3250
        %v3633 = vmul.f32 %v3569, %v3361
        %v3634 = vmul.f32 %v3570, %v3363
        %v3635 = vmul.f32 %v3571, %v3254
        %v3636 = vmul.f32 %v3572, %v3256
        %v3637 = vmul.f32 %v3573, %v3367
        %v3638 = vmul.f32 %v3574, %v3369
        %v3639 = vmul.f32 %v3575, %v3258
        %v3640 = vmul.f32 %v3576, %v3260
        %v3641 = vmul.f32 %v3577, %v3371
        %v3642 = vmul.f32 %v3578, %v3373
        %v3643 = vmul.f32 %v3579, %v3264
        %v3644 = vmul.f32 %v3580, %v3266
        %v3645 = vmul.f32 %v3581, %v3377
        %v3646 = vmul.f32 %v3582, %v3379
        %v3647 = vmul.f32 %v3583, %v3268
        %v3648 = vmul.f32 %v3584, %v3270
        %v3649 = vmul.f32 %v3585, %v3381
        %v3650 = vmul.f32 %v3586, %v3383
        %v3651 = vmul.f32 %v3587, %v3274
        %v3652 = vmul.f32 %v3588, %v3276
        %v3653 = vmul.f32 %v3589, %v3387
        %v3654 = vmul.f32 %v3590, %v3389
        %v3655 = vmul.f32 %v3591, %v3278
        %v3656 = vmul.f32 %v3592, %v3280
        %v3657 = vmul.f32 %v3593, %v3391
        %v3658 = vmul.f32 %v3594, %v3393
        %v3659 = vmul.f32 %v3595, %v3284
        %v3660 = vmul.f32 %v3596, %v3286
        %v3661 = vmul.f32 %v3597, %v3397
        %v3662 = vmul.f32 %v3598, %v3399
        %v3663 = vmul.f32 %v3599, %v3288
        %v3664 = vmul.f32 %v3600, %v3290
        %v3665 = vmul.f32 %v3601, %v3401
        %v3666 = vmul.f32 %v3602, %v3403
        %v3667 = vmul.f32 %v3603, %v3294
        %v3668 = vmul.f32 %v3604, %v3296
        %v3669 = vmul.f32 %v3605, %v3407
        %v3670 = vmul.f32 %v3606, %v3409
        %v3671 = vmul.f32 %v3607, %v3298
        %v3672 = vmul.f32 %v3608, %v3300
        %v3673 = vmul.f32 %v3609, %v3411
        %v3674 = vmul.f32 %v3610, %v3413
        %v3675 = vmul.f32 %v3611, %v3304
        %v3676 = vmul.f32 %v3612, %v3306
        %v3677 = vmul.f32 %v3613, %v3417
        %v3678 = vmul.f32 %v3614, %v3419
        %v3679 = vmul.f32 %v3615, %v3308
        %v3680 = vmul.f32 %v3616, %v3310
        %v3681 = vmul.f32 %v3617, %v3421
        %v3682 = vmul.f32 %v3618, %v3423
        %v3683 = vmul.f32 %v3619, %v3314
        %v3684 = vmul.f32 %v3620, %v3316
        %v3685 = vmul.f32 %v3621, %v3427
        %v3686 = vmul.f32 %v3622, %v3429
        %v3687 = vmul.f32 %v3623, %v3318
        %v3688 = vmul.f32 %v3624, %v3320
        %v3689 = vmul.f32 %v3625, %v3431
        %v3690 = vmul.f32 %v3626, %v3433
        %v3691 = vadd.f32 %v3244, %v3627
        %v3692 = vadd.f32 %v3246, %v3628
        %v3693 = vadd.f32 %v3357, %v3629
        %v3694 = vadd.f32 %v3359, %v3630
        %v3695 = vadd.f32 %v3248, %v3631
        %v3696 = vadd.f32 %v3250, %v3632
        %v3697 = vadd.f32 %v3361, %v3633
        %v3698 = vadd.f32 %v3363, %v3634
        %v3699 = vadd.f32 %v3254, %v3635
        %v3700 = vadd.f32 %v3256, %v3636
        %v3701 = vadd.f32 %v3367, %v3637
        %v3702 = vadd.f32 %v3369, %v3638
        %v3703 = vadd.f32 %v3258, %v3639
        %v3704 = vadd.f32 %v3260, %v3640
        %v3705 = vadd.f32 %v3371, %v3641
        %v3706 = vadd.f32 %v3373, %v3642
        %v3707 = vadd.f32 %v3264, %v3643
        %v3708 = vadd.f32 %v3266, %v3644
        %v3709 = vadd.f32 %v3377, %v3645
        %v3710 = vadd.f32 %v3379, %v3646
        %v3711 = vadd.f32 %v3268, %v3647
        %v3712 = vadd.f32 %v3270, %v3648
        %v3713 = vadd.f32 %v3381, %v3649
        %v3714 = vadd.f32 %v3383, %v3650
        %v3715 = vadd.f32 %v3274, %v3651
        %v3716 = vadd.f32 %v3276, %v3652
        %v3717 = vadd.f32 %v3387, %v3653
        %v3718 = vadd.f32 %v3389, %v3654
        %v3719 = vadd.f32 %v3278, %v3655
        %v3720 = vadd.f32 %v3280, %v3656
        %v3721 = vadd.f32 %v3391, %v3657
        %v3722 = vadd.f32 %v3393, %v3658
        %v3723 = vadd.f32 %v3284, %v3659
        %v3724 = vadd.f32 %v3286, %v3660
        %v3725 = vadd.f32 %v3397, %v3661
        %v3726 = vadd.f32 %v3399, %v3662
        %v3727 = vadd.f32 %v3288, %v3663
        %v3728 = vadd.f32 %v3290, %v3664
        %v3729 = vadd.f32 %v3401, %v3665
        %v3730 = vadd.f32 %v3403, %v3666
        %v3731 = vadd.f32 %v3294, %v3667
        %v3732 = vadd.f32 %v3296, %v3668
        %v3733 = vadd.f32 %v3407, %v3669
        %v3734 = vadd.f32 %v3409, %v3670
        %v3735 = vadd.f32 %v3298, %v3671
        %v3736 = vadd.f32 %v3300, %v3672
        %v3737 = vadd.f32 %v3411, %v3673
        %v3738 = vadd.f32 %v3413, %v3674
        %v3739 = vadd.f32 %v3304, %v3675
        %v3740 = vadd.f32 %v3306, %v3676
        %v3741 = vadd.f32 %v3417, %v3677
        %v3742 = vadd.f32 %v3419, %v3678
        %v3743 = vadd.f32 %v3308, %v3679
        %v3744 = vadd.f32 %v3310, %v3680
        %v3745 = vadd.f32 %v3421, %v3681
        %v3746 = vadd.f32 %v3423, %v3682
        %v3747 = vadd.f32 %v3314, %v3683
        %v3748 = vadd.f32 %v3316, %v3684
        %v3749 = vadd.f32 %v3427, %v3685
        %v3750 = vadd.f32 %v3429, %v3686
        %v3751 = vadd.f32 %v3318, %v3687
        %v3752 = vadd.f32 %v3320, %v3688
        %v3753 = vadd.f32 %v3431, %v3689
        %v3754 = vadd.f32 %v3433, %v3690
        %v3755 = vmul.f32 %v3691, 0.7978846
        %v3756 = vmul.f32 %v3692, 0.7978846
        %v3757 = vmul.f32 %v3693, 0.7978846
        %v3758 = vmul.f32 %v3694, 0.7978846
        %v3759 = vmul.f32 %v3695, 0.7978846
        %v3760 = vmul.f32 %v3696, 0.7978846
        %v3761 = vmul.f32 %v3697, 0.7978846
        %v3762 = vmul.f32 %v3698, 0.7978846
        %v3763 = vmul.f32 %v3699, 0.7978846
        %v3764 = vmul.f32 %v3700, 0.7978846
        %v3765 = vmul.f32 %v3701, 0.7978846
        %v3766 = vmul.f32 %v3702, 0.7978846
        %v3767 = vmul.f32 %v3703, 0.7978846
        %v3768 = vmul.f32 %v3704, 0.7978846
        %v3769 = vmul.f32 %v3705, 0.7978846
        %v3770 = vmul.f32 %v3706, 0.7978846
        %v3771 = vmul.f32 %v3707, 0.7978846
        %v3772 = vmul.f32 %v3708, 0.7978846
        %v3773 = vmul.f32 %v3709, 0.7978846
        %v3774 = vmul.f32 %v3710, 0.7978846
        %v3775 = vmul.f32 %v3711, 0.7978846
        %v3776 = vmul.f32 %v3712, 0.7978846
        %v3777 = vmul.f32 %v3713, 0.7978846
        %v3778 = vmul.f32 %v3714, 0.7978846
        %v3779 = vmul.f32 %v3715, 0.7978846
        %v3780 = vmul.f32 %v3716, 0.7978846
        %v3781 = vmul.f32 %v3717, 0.7978846
        %v3782 = vmul.f32 %v3718, 0.7978846
        %v3783 = vmul.f32 %v3719, 0.7978846
        %v3784 = vmul.f32 %v3720, 0.7978846
        %v3785 = vmul.f32 %v3721, 0.7978846
        %v3786 = vmul.f32 %v3722, 0.7978846
        %v3787 = vmul.f32 %v3723, 0.7978846
        %v3788 = vmul.f32 %v3724, 0.7978846
        %v3789 = vmul.f32 %v3725, 0.7978846
        %v3790 = vmul.f32 %v3726, 0.7978846
        %v3791 = vmul.f32 %v3727, 0.7978846
        %v3792 = vmul.f32 %v3728, 0.7978846
        %v3793 = vmul.f32 %v3729, 0.7978846
        %v3794 = vmul.f32 %v3730, 0.7978846
        %v3795 = vmul.f32 %v3731, 0.7978846
        %v3796 = vmul.f32 %v3732, 0.7978846
        %v3797 = vmul.f32 %v3733, 0.7978846
        %v3798 = vmul.f32 %v3734, 0.7978846
        %v3799 = vmul.f32 %v3735, 0.7978846
        %v3800 = vmul.f32 %v3736, 0.7978846
        %v3801 = vmul.f32 %v3737, 0.7978846
        %v3802 = vmul.f32 %v3738, 0.7978846
        %v3803 = vmul.f32 %v3739, 0.7978846
        %v3804 = vmul.f32 %v3740, 0.7978846
        %v3805 = vmul.f32 %v3741, 0.7978846
        %v3806 = vmul.f32 %v3742, 0.7978846
        %v3807 = vmul.f32 %v3743, 0.7978846
        %v3808 = vmul.f32 %v3744, 0.7978846
        %v3809 = vmul.f32 %v3745, 0.7978846
        %v3810 = vmul.f32 %v3746, 0.7978846
        %v3811 = vmul.f32 %v3747, 0.7978846
        %v3812 = vmul.f32 %v3748, 0.7978846
        %v3813 = vmul.f32 %v3749, 0.7978846
        %v3814 = vmul.f32 %v3750, 0.7978846
        %v3815 = vmul.f32 %v3751, 0.7978846
        %v3816 = vmul.f32 %v3752, 0.7978846
        %v3817 = vmul.f32 %v3753, 0.7978846
        %v3818 = vmul.f32 %v3754, 0.7978846
        %v3819 = vtanh.pop %v3755
        %v3820 = vtanh.pop %v3756
        %v3821 = vtanh.pop %v3757
        %v3822 = vtanh.pop %v3758
        %v3823 = vtanh.pop %v3759
        %v3824 = vtanh.pop %v3760
        %v3825 = vtanh.pop %v3761
        %v3826 = vtanh.pop %v3762
        %v3827 = vtanh.pop %v3763
        %v3828 = vtanh.pop %v3764
        %v3829 = vtanh.pop %v3765
        %v3830 = vtanh.pop %v3766
        %v3831 = vtanh.pop %v3767
        %v3832 = vtanh.pop %v3768
        %v3833 = vtanh.pop %v3769
        %v3834 = vtanh.pop %v3770
        %v3835 = vtanh.pop %v3771
        %v3836 = vtanh.pop %v3772
        %v3837 = vtanh.pop %v3773
        %v3838 = vtanh.pop %v3774
        %v3839 = vtanh.pop %v3775
        %v3840 = vtanh.pop %v3776
        %v3841 = vtanh.pop %v3777
        %v3842 = vtanh.pop %v3778
        %v3843 = vtanh.pop %v3779
        %v3844 = vtanh.pop %v3780
        %v3845 = vtanh.pop %v3781
        %v3846 = vtanh.pop %v3782
        %v3847 = vtanh.pop %v3783
        %v3848 = vtanh.pop %v3784
        %v3849 = vtanh.pop %v3785
        %v3850 = vtanh.pop %v3786
        %v3851 = vtanh.pop %v3787
        %v3852 = vtanh.pop %v3788
        %v3853 = vtanh.pop %v3789
        %v3854 = vtanh.pop %v3790
        %v3855 = vtanh.pop %v3791
        %v3856 = vtanh.pop %v3792
        %v3857 = vtanh.pop %v3793
        %v3858 = vtanh.pop %v3794
        %v3859 = vtanh.pop %v3795
        %v3860 = vtanh.pop %v3796
        %v3861 = vtanh.pop %v3797
        %v3862 = vtanh.pop %v3798
        %v3863 = vtanh.pop %v3799
        %v3864 = vtanh.pop %v3800
        %v3865 = vtanh.pop %v3801
        %v3866 = vtanh.pop %v3802
        %v3867 = vtanh.pop %v3803
        %v3868 = vtanh.pop %v3804
        %v3869 = vtanh.pop %v3805
        %v3870 = vtanh.pop %v3806
        %v3871 = vtanh.pop %v3807
        %v3872 = vtanh.pop %v3808
        %v3873 = vtanh.pop %v3809
        %v3874 = vtanh.pop %v3810
        %v3875 = vtanh.pop %v3811
        %v3876 = vtanh.pop %v3812
        %v3877 = vtanh.pop %v3813
        %v3878 = vtanh.pop %v3814
        %v3879 = vtanh.pop %v3815
        %v3880 = vtanh.pop %v3816
        %v3881 = vtanh.pop %v3817
        %v3882 = vtanh.pop %v3818
        %v3883 = vadd.f32 %v3819, 1.0
        %v3884 = vadd.f32 %v3820, 1.0
        %v3885 = vadd.f32 %v3821, 1.0
        %v3886 = vadd.f32 %v3822, 1.0
        %v3887 = vadd.f32 %v3823, 1.0
        %v3888 = vadd.f32 %v3824, 1.0
        %v3889 = vadd.f32 %v3825, 1.0
        %v3890 = vadd.f32 %v3826, 1.0
        %v3891 = vadd.f32 %v3827, 1.0
        %v3892 = vadd.f32 %v3828, 1.0
        %v3893 = vadd.f32 %v3829, 1.0
        %v3894 = vadd.f32 %v3830, 1.0
        %v3895 = vadd.f32 %v3831, 1.0
        %v3896 = vadd.f32 %v3832, 1.0
        %v3897 = vadd.f32 %v3833, 1.0
        %v3898 = vadd.f32 %v3834, 1.0
        %v3899 = vadd.f32 %v3835, 1.0
        %v3900 = vadd.f32 %v3836, 1.0
        %v3901 = vadd.f32 %v3837, 1.0
        %v3902 = vadd.f32 %v3838, 1.0
        %v3903 = vadd.f32 %v3839, 1.0
        %v3904 = vadd.f32 %v3840, 1.0
        %v3905 = vadd.f32 %v3841, 1.0
        %v3906 = vadd.f32 %v3842, 1.0
        %v3907 = vadd.f32 %v3843, 1.0
        %v3908 = vadd.f32 %v3844, 1.0
        %v3909 = vadd.f32 %v3845, 1.0
        %v3910 = vadd.f32 %v3846, 1.0
        %v3911 = vadd.f32 %v3847, 1.0
        %v3912 = vadd.f32 %v3848, 1.0
        %v3913 = vadd.f32 %v3849, 1.0
        %v3914 = vadd.f32 %v3850, 1.0
        %v3915 = vadd.f32 %v3851, 1.0
        %v3916 = vadd.f32 %v3852, 1.0
        %v3917 = vadd.f32 %v3853, 1.0
        %v3918 = vadd.f32 %v3854, 1.0
        %v3919 = vadd.f32 %v3855, 1.0
        %v3920 = vadd.f32 %v3856, 1.0
        %v3921 = vadd.f32 %v3857, 1.0
        %v3922 = vadd.f32 %v3858, 1.0
        %v3923 = vadd.f32 %v3859, 1.0
        %v3924 = vadd.f32 %v3860, 1.0
        %v3925 = vadd.f32 %v3861, 1.0
        %v3926 = vadd.f32 %v3862, 1.0
        %v3927 = vadd.f32 %v3863, 1.0
        %v3928 = vadd.f32 %v3864, 1.0
        %v3929 = vadd.f32 %v3865, 1.0
        %v3930 = vadd.f32 %v3866, 1.0
        %v3931 = vadd.f32 %v3867, 1.0
        %v3932 = vadd.f32 %v3868, 1.0
        %v3933 = vadd.f32 %v3869, 1.0
        %v3934 = vadd.f32 %v3870, 1.0
        %v3935 = vadd.f32 %v3871, 1.0
        %v3936 = vadd.f32 %v3872, 1.0
        %v3937 = vadd.f32 %v3873, 1.0
        %v3938 = vadd.f32 %v3874, 1.0
        %v3939 = vadd.f32 %v3875, 1.0
        %v3940 = vadd.f32 %v3876, 1.0
        %v3941 = vadd.f32 %v3877, 1.0
        %v3942 = vadd.f32 %v3878, 1.0
        %v3943 = vadd.f32 %v3879, 1.0
        %v3944 = vadd.f32 %v3880, 1.0
        %v3945 = vadd.f32 %v3881, 1.0
        %v3946 = vadd.f32 %v3882, 1.0
        %v3947 = vmul.f32 %v3435, %v3883
        %v3948 = vmul.f32 %v3436, %v3884
        %v3949 = vmul.f32 %v3437, %v3885
        %v3950 = vmul.f32 %v3438, %v3886
        %v3951 = vmul.f32 %v3439, %v3887
        %v3952 = vmul.f32 %v3440, %v3888
        %v3953 = vmul.f32 %v3441, %v3889
        %v3954 = vmul.f32 %v3442, %v3890
        %v3955 = vmul.f32 %v3443, %v3891
        %v3956 = vmul.f32 %v3444, %v3892
        %v3957 = vmul.f32 %v3445, %v3893
        %v3958 = vmul.f32 %v3446, %v3894
        %v3959 = vmul.f32 %v3447, %v3895
        %v3960 = vmul.f32 %v3448, %v3896
        %v3961 = vmul.f32 %v3449, %v3897
        %v3962 = vmul.f32 %v3450, %v3898
        %v3963 = vmul.f32 %v3451, %v3899
        %v3964 = vmul.f32 %v3452, %v3900
        %v3965 = vmul.f32 %v3453, %v3901
        %v3966 = vmul.f32 %v3454, %v3902
        %v3967 = vmul.f32 %v3455, %v3903
        %v3968 = vmul.f32 %v3456, %v3904
        %v3969 = vmul.f32 %v3457, %v3905
        %v3970 = vmul.f32 %v3458, %v3906
        %v3971 = vmul.f32 %v3459, %v3907
        %v3972 = vmul.f32 %v3460, %v3908
        %v3973 = vmul.f32 %v3461, %v3909
        %v3974 = vmul.f32 %v3462, %v3910
        %v3975 = vmul.f32 %v3463, %v3911
        %v3976 = vmul.f32 %v3464, %v3912
        %v3977 = vmul.f32 %v3465, %v3913
        %v3978 = vmul.f32 %v3466, %v3914
        %v3979 = vmul.f32 %v3467, %v3915
        %v3980 = vmul.f32 %v3468, %v3916
        %v3981 = vmul.f32 %v3469, %v3917
        %v3982 = vmul.f32 %v3470, %v3918
        %v3983 = vmul.f32 %v3471, %v3919
        %v3984 = vmul.f32 %v3472, %v3920
        %v3985 = vmul.f32 %v3473, %v3921
        %v3986 = vmul.f32 %v3474, %v3922
        %v3987 = vmul.f32 %v3475, %v3923
        %v3988 = vmul.f32 %v3476, %v3924
        %v3989 = vmul.f32 %v3477, %v3925
        %v3990 = vmul.f32 %v3478, %v3926
        %v3991 = vmul.f32 %v3479, %v3927
        %v3992 = vmul.f32 %v3480, %v3928
        %v3993 = vmul.f32 %v3481, %v3929
        %v3994 = vmul.f32 %v3482, %v3930
        %v3995 = vmul.f32 %v3483, %v3931
        %v3996 = vmul.f32 %v3484, %v3932
        %v3997 = vmul.f32 %v3485, %v3933
        %v3998 = vmul.f32 %v3486, %v3934
        %v3999 = vmul.f32 %v3487, %v3935
        %v4000 = vmul.f32 %v3488, %v3936
        %v4001 = vmul.f32 %v3489, %v3937
        %v4002 = vmul.f32 %v3490, %v3938
        %v4003 = vmul.f32 %v3491, %v3939
        %v4004 = vmul.f32 %v3492, %v3940
        %v4005 = vmul.f32 %v3493, %v3941
        %v4006 = vmul.f32 %v3494, %v3942
        %v4007 = vmul.f32 %v3495, %v3943
        %v4008 = vmul.f32 %v3496, %v3944
        %v4009 = vmul.f32 %v3497, %v3945
        %v4010 = vmul.f32 %v3498, %v3946
        %v4011 = vpack.c.bf16 %v3951, %v3947
        %v4012 = vpack.c.bf16 %v3952, %v3948
        %v4013 = vpack.c.bf16 %v3953, %v3949
        %v4014 = vpack.c.bf16 %v3954, %v3950
        %v4015 = vpack.c.bf16 %v3959, %v3955
        %v4016 = vpack.c.bf16 %v3960, %v3956
        %v4017 = vpack.c.bf16 %v3961, %v3957
        %v4018 = vpack.c.bf16 %v3962, %v3958
        %v4019 = vpack.c.bf16 %v3967, %v3963
        %v4020 = vpack.c.bf16 %v3968, %v3964
        %v4021 = vpack.c.bf16 %v3969, %v3965
        %v4022 = vpack.c.bf16 %v3970, %v3966
        %v4023 = vpack.c.bf16 %v3975, %v3971
        %v4024 = vpack.c.bf16 %v3976, %v3972
        %v4025 = vpack.c.bf16 %v3977, %v3973
        %v4026 = vpack.c.bf16 %v3978, %v3974
        %v4027 = vpack.c.bf16 %v3983, %v3979
        %v4028 = vpack.c.bf16 %v3984, %v3980
        %v4029 = vpack.c.bf16 %v3985, %v3981
        %v4030 = vpack.c.bf16 %v3986, %v3982
        %v4031 = vpack.c.bf16 %v3991, %v3987
        %v4032 = vpack.c.bf16 %v3992, %v3988
        %v4033 = vpack.c.bf16 %v3993, %v3989
        %v4034 = vpack.c.bf16 %v3994, %v3990
        %v4035 = vpack.c.bf16 %v3999, %v3995
        %v4036 = vpack.c.bf16 %v4000, %v3996
        %v4037 = vpack.c.bf16 %v4001, %v3997
        %v4038 = vpack.c.bf16 %v4002, %v3998
        %v4039 = vpack.c.bf16 %v4007, %v4003
        %v4040 = vpack.c.bf16 %v4008, %v4004
        %v4041 = vpack.c.bf16 %v4009, %v4005
        %v4042 = vpack.c.bf16 %v4010, %v4006
        %v4043 = vld [vmem:[#allocation16] sm:$0xf]
        %v4044 = vld [vmem:[#allocation16 + $0x4] sm:$0xf]
        %v4045 = vld [vmem:[#allocation16 + $0x8] sm:$0xf]
        %v4046 = vld [vmem:[#allocation16 + $0xc] sm:$0xf]
        %v4047 = vld [vmem:[#allocation16 + $0x10] sm:$0xf]
        %v4048 = vld [vmem:[#allocation16 + $0x14] sm:$0xf]
        %v4049 = vld [vmem:[#allocation16 + $0x18] sm:$0xf]
        %v4050 = vld [vmem:[#allocation16 + $0x1c] sm:$0xf]
        %v4051 = vld [vmem:[#allocation16 + $0x20] sm:$0xf]
        %v4052 = vld [vmem:[#allocation16 + $0x24] sm:$0xf]
        %v4053 = vld [vmem:[#allocation16 + $0x28] sm:$0xf]
        %v4054 = vld [vmem:[#allocation16 + $0x2c] sm:$0xf]
        %v4055 = vld [vmem:[#allocation16 + $0x30] sm:$0xf]
        %v4056 = vld [vmem:[#allocation16 + $0x34] sm:$0xf]
        %v4057 = vld [vmem:[#allocation16 + $0x38] sm:$0xf]
        %v4058 = vld [vmem:[#allocation16 + $0x3c] sm:$0xf]
        %v4059 = vld [vmem:[#allocation16 + $0x40] sm:$0xf]
        %v4060 = vld [vmem:[#allocation16 + $0x44] sm:$0xf]
        %v4061 = vld [vmem:[#allocation16 + $0x48] sm:$0xf]
        %v4062 = vld [vmem:[#allocation16 + $0x4c] sm:$0xf]
        %v4063 = vld [vmem:[#allocation16 + $0x50] sm:$0xf]
        %v4064 = vld [vmem:[#allocation16 + $0x54] sm:$0xf]
        %v4065 = vld [vmem:[#allocation16 + $0x58] sm:$0xf]
        %v4066 = vld [vmem:[#allocation16 + $0x5c] sm:$0xf]
        %v4067 = vld [vmem:[#allocation16 + $0x60] sm:$0xf]
        %v4068 = vld [vmem:[#allocation16 + $0x64] sm:$0xf]
        %v4069 = vld [vmem:[#allocation16 + $0x68] sm:$0xf]
        %v4070 = vld [vmem:[#allocation16 + $0x6c] sm:$0xf]
        %v4071 = vld [vmem:[#allocation16 + $0x70] sm:$0xf]
        %v4072 = vld [vmem:[#allocation16 + $0x74] sm:$0xf]
        %v4073 = vld [vmem:[#allocation16 + $0x78] sm:$0xf]
        %v4074 = vld [vmem:[#allocation16 + $0x7c] sm:$0xf]
        %v4075 = vld [vmem:[#allocation16 + $0x80] sm:$0xf]
        %v4076 = vld [vmem:[#allocation16 + $0x84] sm:$0xf]
        %v4077 = vld [vmem:[#allocation16 + $0x88] sm:$0xf]
        %v4078 = vld [vmem:[#allocation16 + $0x8c] sm:$0xf]
        %v4079 = vld [vmem:[#allocation16 + $0x90] sm:$0xf]
        %v4080 = vld [vmem:[#allocation16 + $0x94] sm:$0xf]
        %v4081 = vld [vmem:[#allocation16 + $0x98] sm:$0xf]
        %v4082 = vld [vmem:[#allocation16 + $0x9c] sm:$0xf]
        %v4083 = vld [vmem:[#allocation16 + $0xa0] sm:$0xf]
        %v4084 = vld [vmem:[#allocation16 + $0xa4] sm:$0xf]
        %v4085 = vld [vmem:[#allocation16 + $0xa8] sm:$0xf]
        %v4086 = vld [vmem:[#allocation16 + $0xac] sm:$0xf]
        %v4087 = vld [vmem:[#allocation16 + $0xb0] sm:$0xf]
        %v4088 = vld [vmem:[#allocation16 + $0xb4] sm:$0xf]
        %v4089 = vld [vmem:[#allocation16 + $0xb8] sm:$0xf]
        %v4090 = vld [vmem:[#allocation16 + $0xbc] sm:$0xf]
        %v4091 = vld [vmem:[#allocation16 + $0xc0] sm:$0xf]
        %v4092 = vld [vmem:[#allocation16 + $0xc4] sm:$0xf]
        %v4093 = vld [vmem:[#allocation16 + $0xc8] sm:$0xf]
        %v4094 = vld [vmem:[#allocation16 + $0xcc] sm:$0xf]
        %v4095 = vld [vmem:[#allocation16 + $0xd0] sm:$0xf]
        %v4096 = vld [vmem:[#allocation16 + $0xd4] sm:$0xf]
        %v4097 = vld [vmem:[#allocation16 + $0xd8] sm:$0xf]
        %v4098 = vld [vmem:[#allocation16 + $0xdc] sm:$0xf]
        %v4099 = vld [vmem:[#allocation16 + $0xe0] sm:$0xf]
        %v4100 = vld [vmem:[#allocation16 + $0xe4] sm:$0xf]
        %v4101 = vld [vmem:[#allocation16 + $0xe8] sm:$0xf]
        %v4102 = vld [vmem:[#allocation16 + $0xec] sm:$0xf]
        %v4103 = vld [vmem:[#allocation16 + $0xf0] sm:$0xf]
        %v4104 = vld [vmem:[#allocation16 + $0xf4] sm:$0xf]
        %v4105 = vld [vmem:[#allocation16 + $0xf8] sm:$0xf]
        %v4106 = vld [vmem:[#allocation16 + $0xfc] sm:$0xf]
        %v4107 = vld [vmem:[%s12] sm:$0x1]
        %v4109 = vlaneseq
        %v4110 = vshrl.u32 %v4109, 7
        %v4111 = vsub.s32 0, %v4110
        %v4112 = vrot.slane %v4107, %v4111
        %v4178 = vunpack.c.l.b16 %v4043
        %v4179 = vunpack.c.l.b16 %v4044
        %v4180 = vunpack.c.l.b16 %v4045
        %v4181 = vunpack.c.l.b16 %v4046
        %v4182 = vunpack.c.l.b16 %v4047
        %v4183 = vunpack.c.l.b16 %v4048
        %v4184 = vunpack.c.l.b16 %v4049
        %v4185 = vunpack.c.l.b16 %v4050
        %v4186 = vunpack.c.l.b16 %v4051
        %v4187 = vunpack.c.l.b16 %v4052
        %v4188 = vunpack.c.l.b16 %v4053
        %v4189 = vunpack.c.l.b16 %v4054
        %v4190 = vunpack.c.l.b16 %v4055
        %v4191 = vunpack.c.l.b16 %v4056
        %v4192 = vunpack.c.l.b16 %v4057
        %v4193 = vunpack.c.l.b16 %v4058
        %v4194 = vunpack.c.l.b16 %v4059
        %v4195 = vunpack.c.l.b16 %v4060
        %v4196 = vunpack.c.l.b16 %v4061
        %v4197 = vunpack.c.l.b16 %v4062
        %v4198 = vunpack.c.l.b16 %v4063
        %v4199 = vunpack.c.l.b16 %v4064
        %v4200 = vunpack.c.l.b16 %v4065
        %v4201 = vunpack.c.l.b16 %v4066
        %v4202 = vunpack.c.l.b16 %v4067
        %v4203 = vunpack.c.l.b16 %v4068
        %v4204 = vunpack.c.l.b16 %v4069
        %v4205 = vunpack.c.l.b16 %v4070
        %v4206 = vunpack.c.l.b16 %v4071
        %v4207 = vunpack.c.l.b16 %v4072
        %v4208 = vunpack.c.l.b16 %v4073
        %v4209 = vunpack.c.l.b16 %v4074
        %v4210 = vunpack.c.l.b16 %v4075
        %v4211 = vunpack.c.l.b16 %v4076
        %v4212 = vunpack.c.l.b16 %v4077
        %v4213 = vunpack.c.l.b16 %v4078
        %v4214 = vunpack.c.l.b16 %v4079
        %v4215 = vunpack.c.l.b16 %v4080
        %v4216 = vunpack.c.l.b16 %v4081
        %v4217 = vunpack.c.l.b16 %v4082
        %v4218 = vunpack.c.l.b16 %v4083
        %v4219 = vunpack.c.l.b16 %v4084
        %v4220 = vunpack.c.l.b16 %v4085
        %v4221 = vunpack.c.l.b16 %v4086
        %v4222 = vunpack.c.l.b16 %v4087
        %v4223 = vunpack.c.l.b16 %v4088
        %v4224 = vunpack.c.l.b16 %v4089
        %v4225 = vunpack.c.l.b16 %v4090
        %v4226 = vunpack.c.l.b16 %v4091
        %v4227 = vunpack.c.l.b16 %v4092
        %v4228 = vunpack.c.l.b16 %v4093
        %v4229 = vunpack.c.l.b16 %v4094
        %v4230 = vunpack.c.l.b16 %v4095
        %v4231 = vunpack.c.l.b16 %v4096
        %v4232 = vunpack.c.l.b16 %v4097
        %v4233 = vunpack.c.l.b16 %v4098
        %v4234 = vunpack.c.l.b16 %v4099
        %v4235 = vunpack.c.l.b16 %v4100
        %v4236 = vunpack.c.l.b16 %v4101
        %v4237 = vunpack.c.l.b16 %v4102
        %v4238 = vunpack.c.l.b16 %v4103
        %v4239 = vunpack.c.l.b16 %v4104
        %v4240 = vunpack.c.l.b16 %v4105
        %v4241 = vunpack.c.l.b16 %v4106
        %v4242 = vpack.c.b16 %v4179, %v4178
        %v4243 = vpack.c.b16 %v4181, %v4180
        %v4244 = vpack.c.b16 %v4183, %v4182
        %v4245 = vpack.c.b16 %v4185, %v4184
        %v4246 = vpack.c.b16 %v4187, %v4186
        %v4247 = vpack.c.b16 %v4189, %v4188
        %v4248 = vpack.c.b16 %v4191, %v4190
        %v4249 = vpack.c.b16 %v4193, %v4192
        %v4250 = vpack.c.b16 %v4195, %v4194
        %v4251 = vpack.c.b16 %v4197, %v4196
        %v4252 = vpack.c.b16 %v4199, %v4198
        %v4253 = vpack.c.b16 %v4201, %v4200
        %v4254 = vpack.c.b16 %v4203, %v4202
        %v4255 = vpack.c.b16 %v4205, %v4204
        %v4256 = vpack.c.b16 %v4207, %v4206
        %v4257 = vpack.c.b16 %v4209, %v4208
        %v4258 = vpack.c.b16 %v4211, %v4210
        %v4259 = vpack.c.b16 %v4213, %v4212
        %v4260 = vpack.c.b16 %v4215, %v4214
        %v4261 = vpack.c.b16 %v4217, %v4216
        %v4262 = vpack.c.b16 %v4219, %v4218
        %v4263 = vpack.c.b16 %v4221, %v4220
        %v4264 = vpack.c.b16 %v4223, %v4222
        %v4265 = vpack.c.b16 %v4225, %v4224
        %v4266 = vpack.c.b16 %v4227, %v4226
        %v4267 = vpack.c.b16 %v4229, %v4228
        %v4268 = vpack.c.b16 %v4231, %v4230
        %v4269 = vpack.c.b16 %v4233, %v4232
        %v4270 = vpack.c.b16 %v4235, %v4234
        %v4271 = vpack.c.b16 %v4237, %v4236
        %v4272 = vpack.c.b16 %v4239, %v4238
        %v4273 = vpack.c.b16 %v4241, %v4240
        %4306 = vmatprep.subr.bf16.mxu0 0
        %4307 = vmatpush1.bf16.msra.mxu0 %v4249
        %4308 = vmatprep.subr.bf16.mxu0 0
        %4309 = vmatpush1.bf16.msra.mxu0 %v4248
        %4310 = vmatprep.subr.bf16.mxu0 0
        %4311 = vmatpush1.bf16.msra.mxu0 %v4247
        %4312 = vmatprep.subr.bf16.mxu0 0
        %4313 = vmatpush1.bf16.msra.mxu0 %v4246
        %4314 = vmatprep.subr.bf16.mxu0 0
        %4315 = vmatpush1.bf16.msra.mxu0 %v4245
        %4316 = vmatprep.subr.bf16.mxu0 0
        %4317 = vmatpush1.bf16.msra.mxu0 %v4244
        %4318 = vmatprep.subr.bf16.mxu0 0
        %4319 = vmatpush1.bf16.msra.mxu0 %v4243
        %4320 = vmatprep.subr.bf16.mxu0 0
        %4321 = vmatpush1.bf16.msra.mxu0 %v4242
        %4322 = vmatprep.subr.bf16.mxu0 0
        %4323 = vmatpush2.bf16.msra.mxu0 %v4257
        %4324 = vmatprep.subr.bf16.mxu0 0
        %4325 = vmatpush2.bf16.msra.mxu0 %v4256
        %4326 = vmatprep.subr.bf16.mxu0 0
        %4327 = vmatpush2.bf16.msra.mxu0 %v4255
        %4328 = vmatprep.subr.bf16.mxu0 0
        %4329 = vmatpush2.bf16.msra.mxu0 %v4254
        %4330 = vmatprep.subr.bf16.mxu0 0
        %4331 = vmatpush2.bf16.msra.mxu0 %v4253
        %4332 = vmatprep.subr.bf16.mxu0 0
        %4333 = vmatpush2.bf16.msra.mxu0 %v4252
        %4334 = vmatprep.subr.bf16.mxu0 0
        %4335 = vmatpush2.bf16.msra.mxu0 %v4251
        %4336 = vmatprep.subr.bf16.mxu0 0
        %4337 = vmatpush2.bf16.msra.mxu0 %v4250
        %4338 = vmatprep.mubr.bf16.mxu0 %v4012
        %4339 = vmatmul.mubr.bf16.gmra.mxu0 %v4011
        %v4340 = vpop.f32.mrf.mxu0
        %v4341 = vadd.f32 %v4112, %v4340
        %v4342 = vpop.f32.mrf.mxu0
        %v4343 = vpop.f32.mrf.mxu0
        %v4344 = vadd.f32 %v4112, %v4343
        %v4345 = vpop.f32.mrf.mxu0
        %4346 = vmatprep.mubr.bf16.mxu0 %v4016
        %4347 = vmatmul.mubr.bf16.gmra.mxu0 %v4015
        %v4348 = vpop.f32.mrf.mxu0
        %v4349 = vadd.f32 %v4112, %v4348
        %v4350 = vpop.f32.mrf.mxu0
        %v4351 = vpop.f32.mrf.mxu0
        %v4352 = vadd.f32 %v4112, %v4351
        %v4353 = vpop.f32.mrf.mxu0
        %4354 = vmatprep.mubr.bf16.mxu0 %v4020
        %4355 = vmatmul.mubr.bf16.gmra.mxu0 %v4019
        %v4356 = vpop.f32.mrf.mxu0
        %v4357 = vadd.f32 %v4112, %v4356
        %v4358 = vpop.f32.mrf.mxu0
        %v4359 = vpop.f32.mrf.mxu0
        %v4360 = vadd.f32 %v4112, %v4359
        %v4361 = vpop.f32.mrf.mxu0
        %4362 = vmatprep.mubr.bf16.mxu0 %v4024
        %4363 = vmatmul.mubr.bf16.gmra.mxu0 %v4023
        %v4364 = vpop.f32.mrf.mxu0
        %v4365 = vadd.f32 %v4112, %v4364
        %v4366 = vpop.f32.mrf.mxu0
        %v4367 = vpop.f32.mrf.mxu0
        %v4368 = vadd.f32 %v4112, %v4367
        %v4369 = vpop.f32.mrf.mxu0
        %4370 = vmatprep.mubr.bf16.mxu0 %v4028
        %4371 = vmatmul.mubr.bf16.gmra.mxu0 %v4027
        %v4372 = vpop.f32.mrf.mxu0
        %v4373 = vadd.f32 %v4112, %v4372
        %v4374 = vpop.f32.mrf.mxu0
        %v4375 = vpop.f32.mrf.mxu0
        %v4376 = vadd.f32 %v4112, %v4375
        %v4377 = vpop.f32.mrf.mxu0
        %4378 = vmatprep.mubr.bf16.mxu0 %v4032
        %4379 = vmatmul.mubr.bf16.gmra.mxu0 %v4031
        %v4380 = vpop.f32.mrf.mxu0
        %v4381 = vadd.f32 %v4112, %v4380
        %v4382 = vpop.f32.mrf.mxu0
        %v4383 = vpop.f32.mrf.mxu0
        %v4384 = vadd.f32 %v4112, %v4383
        %v4385 = vpop.f32.mrf.mxu0
        %4386 = vmatprep.mubr.bf16.mxu0 %v4036
        %4387 = vmatmul.mubr.bf16.gmra.mxu0 %v4035
        %v4388 = vpop.f32.mrf.mxu0
        %v4389 = vadd.f32 %v4112, %v4388
        %v4390 = vpop.f32.mrf.mxu0
        %v4391 = vpop.f32.mrf.mxu0
        %v4392 = vadd.f32 %v4112, %v4391
        %v4393 = vpop.f32.mrf.mxu0
        %4394 = vmatprep.mubr.bf16.mxu0 %v4040
        %4395 = vmatmul.mubr.bf16.gmra.mxu0 %v4039
        %v4396 = vpop.f32.mrf.mxu0
        %v4397 = vadd.f32 %v4112, %v4396
        %v4398 = vpop.f32.mrf.mxu0
        %v4399 = vpop.f32.mrf.mxu0
        %v4400 = vadd.f32 %v4112, %v4399
        %v4401 = vpop.f32.mrf.mxu0
        %4402 = vdwg.mxu0
        %4403 = vmatprep.subr.bf16.mxu0 0
        %4404 = vmatpush1.bf16.msra.mxu0 %v4265
        %4405 = vmatprep.subr.bf16.mxu0 0
        %4406 = vmatpush1.bf16.msra.mxu0 %v4264
        %4407 = vmatprep.subr.bf16.mxu0 0
        %4408 = vmatpush1.bf16.msra.mxu0 %v4263
        %4409 = vmatprep.subr.bf16.mxu0 0
        %4410 = vmatpush1.bf16.msra.mxu0 %v4262
        %4411 = vmatprep.subr.bf16.mxu0 0
        %4412 = vmatpush1.bf16.msra.mxu0 %v4261
        %4413 = vmatprep.subr.bf16.mxu0 0
        %4414 = vmatpush1.bf16.msra.mxu0 %v4260
        %4415 = vmatprep.subr.bf16.mxu0 0
        %4416 = vmatpush1.bf16.msra.mxu0 %v4259
        %4417 = vmatprep.subr.bf16.mxu0 0
        %4418 = vmatpush1.bf16.msra.mxu0 %v4258
        %4419 = vmatprep.subr.bf16.mxu0 0
        %4420 = vmatpush2.bf16.msra.mxu0 %v4273
        %4421 = vmatprep.subr.bf16.mxu0 0
        %4422 = vmatpush2.bf16.msra.mxu0 %v4272
        %4423 = vmatprep.subr.bf16.mxu0 0
        %4424 = vmatpush2.bf16.msra.mxu0 %v4271
        %4425 = vmatprep.subr.bf16.mxu0 0
        %4426 = vmatpush2.bf16.msra.mxu0 %v4270
        %4427 = vmatprep.subr.bf16.mxu0 0
        %4428 = vmatpush2.bf16.msra.mxu0 %v4269
        %4429 = vmatprep.subr.bf16.mxu0 0
        %4430 = vmatpush2.bf16.msra.mxu0 %v4268
        %4431 = vmatprep.subr.bf16.mxu0 0
        %4432 = vmatpush2.bf16.msra.mxu0 %v4267
        %4433 = vmatprep.subr.bf16.mxu0 0
        %4434 = vmatpush2.bf16.msra.mxu0 %v4266
        %4435 = vmatprep.mubr.bf16.mxu0 %v4014
        %4436 = vmatmul.mubr.bf16.gmra.mxu0 %v4013
        %v4437 = vpop.f32.mrf.mxu0
        %v4438 = vadd.f32 %v4341, %v4437
        %v4439 = vpop.f32.mrf.mxu0
        %v4440 = vpop.f32.mrf.mxu0
        %v4441 = vadd.f32 %v4344, %v4440
        %v4442 = vpop.f32.mrf.mxu0
        %4443 = vmatprep.mubr.bf16.mxu0 %v4018
        %4444 = vmatmul.mubr.bf16.gmra.mxu0 %v4017
        %v4445 = vpop.f32.mrf.mxu0
        %v4446 = vadd.f32 %v4349, %v4445
        %v4447 = vpop.f32.mrf.mxu0
        %v4448 = vpop.f32.mrf.mxu0
        %v4449 = vadd.f32 %v4352, %v4448
        %v4450 = vpop.f32.mrf.mxu0
        %4451 = vmatprep.mubr.bf16.mxu0 %v4022
        %4452 = vmatmul.mubr.bf16.gmra.mxu0 %v4021
        %v4453 = vpop.f32.mrf.mxu0
        %v4454 = vadd.f32 %v4357, %v4453
        %v4455 = vpop.f32.mrf.mxu0
        %v4456 = vpop.f32.mrf.mxu0
        %v4457 = vadd.f32 %v4360, %v4456
        %v4458 = vpop.f32.mrf.mxu0
        %4459 = vmatprep.mubr.bf16.mxu0 %v4026
        %4460 = vmatmul.mubr.bf16.gmra.mxu0 %v4025
        %v4461 = vpop.f32.mrf.mxu0
        %v4462 = vadd.f32 %v4365, %v4461
        %v4463 = vpop.f32.mrf.mxu0
        %v4464 = vpop.f32.mrf.mxu0
        %v4465 = vadd.f32 %v4368, %v4464
        %v4466 = vpop.f32.mrf.mxu0
        %4467 = vmatprep.mubr.bf16.mxu0 %v4030
        %4468 = vmatmul.mubr.bf16.gmra.mxu0 %v4029
        %v4469 = vpop.f32.mrf.mxu0
        %v4470 = vadd.f32 %v4373, %v4469
        %v4471 = vpop.f32.mrf.mxu0
        %v4472 = vpop.f32.mrf.mxu0
        %v4473 = vadd.f32 %v4376, %v4472
        %v4474 = vpop.f32.mrf.mxu0
        %4475 = vmatprep.mubr.bf16.mxu0 %v4034
        %4476 = vmatmul.mubr.bf16.gmra.mxu0 %v4033
        %v4477 = vpop.f32.mrf.mxu0
        %v4478 = vadd.f32 %v4381, %v4477
        %v4479 = vpop.f32.mrf.mxu0
        %v4480 = vpop.f32.mrf.mxu0
        %v4481 = vadd.f32 %v4384, %v4480
        %v4482 = vpop.f32.mrf.mxu0
        %4483 = vmatprep.mubr.bf16.mxu0 %v4038
        %4484 = vmatmul.mubr.bf16.gmra.mxu0 %v4037
        %v4485 = vpop.f32.mrf.mxu0
        %v4486 = vadd.f32 %v4389, %v4485
        %v4487 = vpop.f32.mrf.mxu0
        %v4488 = vpop.f32.mrf.mxu0
        %v4489 = vadd.f32 %v4392, %v4488
        %v4490 = vpop.f32.mrf.mxu0
        %4491 = vmatprep.mubr.bf16.mxu0 %v4042
        %4492 = vmatmul.mubr.bf16.gmra.mxu0 %v4041
        %v4493 = vpop.f32.mrf.mxu0
        %v4494 = vadd.f32 %v4397, %v4493
        %v4495 = vpop.f32.mrf.mxu0
        %v4496 = vpop.f32.mrf.mxu0
        %v4497 = vadd.f32 %v4400, %v4496
        %v4498 = vpop.f32.mrf.mxu0
        %4499 = vdwg.mxu0
        %v4500 = vadd.f32 %v2749, %v4438
        %v4501 = vadd.f32 %v2750, %v4441
        %v4502 = vadd.f32 %v2751, %v4446
        %v4503 = vadd.f32 %v2752, %v4449
        %v4504 = vadd.f32 %v2753, %v4454
        %v4505 = vadd.f32 %v2754, %v4457
        %v4506 = vadd.f32 %v2755, %v4462
        %v4507 = vadd.f32 %v2756, %v4465
        %v4508 = vadd.f32 %v2757, %v4470
        %v4509 = vadd.f32 %v2758, %v4473
        %v4510 = vadd.f32 %v2759, %v4478
        %v4511 = vadd.f32 %v2760, %v4481
        %v4512 = vadd.f32 %v2761, %v4486
        %v4513 = vadd.f32 %v2762, %v4489
        %v4514 = vadd.f32 %v2763, %v4494
        %v4515 = vadd.f32 %v2764, %v4497
        %s4516 = scalar_lea.vmem [#allocation5], 1
        %v4517 = vld [vmem:[%s4516] sm:$0x1]
        %s4518 = scalar_lea.vmem [#allocation7], 1
        %v4519 = vld [vmem:[%s4518] sm:$0x1]
        %4520 = vadd.xlane.f32.xlu0 %v4500
        %v4521 = vpop.xlane.xlu0 %4520
        %4522 = vadd.xlane.f32.xlu0 %v4501
        %v4523 = vpop.xlane.xlu0 %4522
        %4524 = vadd.xlane.f32.xlu0 %v4502
        %v4525 = vpop.xlane.xlu0 %4524
        %4526 = vadd.xlane.f32.xlu0 %v4503
        %v4527 = vpop.xlane.xlu0 %4526
        %4528 = vadd.xlane.f32.xlu0 %v4504
        %v4529 = vpop.xlane.xlu0 %4528
        %4530 = vadd.xlane.f32.xlu0 %v4505
        %v4531 = vpop.xlane.xlu0 %4530
        %4532 = vadd.xlane.f32.xlu0 %v4506
        %v4533 = vpop.xlane.xlu0 %4532
        %4534 = vadd.xlane.f32.xlu0 %v4507
        %v4535 = vpop.xlane.xlu0 %4534
        %4536 = vadd.xlane.f32.xlu0 %v4508
        %v4537 = vpop.xlane.xlu0 %4536
        %4538 = vadd.xlane.f32.xlu0 %v4509
        %v4539 = vpop.xlane.xlu0 %4538
        %4540 = vadd.xlane.f32.xlu0 %v4510
        %v4541 = vpop.xlane.xlu0 %4540
        %4542 = vadd.xlane.f32.xlu0 %v4511
        %v4543 = vpop.xlane.xlu0 %4542
        %4544 = vadd.xlane.f32.xlu0 %v4512
        %v4545 = vpop.xlane.xlu0 %4544
        %4546 = vadd.xlane.f32.xlu0 %v4513
        %v4547 = vpop.xlane.xlu0 %4546
        %4548 = vadd.xlane.f32.xlu0 %v4514
        %v4549 = vpop.xlane.xlu0 %4548
        %4550 = vadd.xlane.f32.xlu0 %v4515
        %v4551 = vpop.xlane.xlu0 %4550
        %v4552 = vmul.f32 %v4521, %v683
        %v4553 = vmul.f32 %v4523, %v683
        %v4554 = vmul.f32 %v4525, %v683
        %v4555 = vmul.f32 %v4527, %v683
        %v4556 = vmul.f32 %v4529, %v683
        %v4557 = vmul.f32 %v4531, %v683
        %v4558 = vmul.f32 %v4533, %v683
        %v4559 = vmul.f32 %v4535, %v683
        %v4560 = vmul.f32 %v4537, %v683
        %v4561 = vmul.f32 %v4539, %v683
        %v4562 = vmul.f32 %v4541, %v683
        %v4563 = vmul.f32 %v4543, %v683
        %v4564 = vmul.f32 %v4545, %v683
        %v4565 = vmul.f32 %v4547, %v683
        %v4566 = vmul.f32 %v4549, %v683
        %v4567 = vmul.f32 %v4551, %v683
        %v4568 = vsub.f32 %v4500, %v4552
        %v4569 = vsub.f32 %v4501, %v4553
        %v4570 = vsub.f32 %v4502, %v4554
        %v4571 = vsub.f32 %v4503, %v4555
        %v4572 = vsub.f32 %v4504, %v4556
        %v4573 = vsub.f32 %v4505, %v4557
        %v4574 = vsub.f32 %v4506, %v4558
        %v4575 = vsub.f32 %v4507, %v4559
        %v4576 = vsub.f32 %v4508, %v4560
        %v4577 = vsub.f32 %v4509, %v4561
        %v4578 = vsub.f32 %v4510, %v4562
        %v4579 = vsub.f32 %v4511, %v4563
        %v4580 = vsub.f32 %v4512, %v4564
        %v4581 = vsub.f32 %v4513, %v4565
        %v4582 = vsub.f32 %v4514, %v4566
        %v4583 = vsub.f32 %v4515, %v4567
        %v4584 = vmul.f32 %v4568, %v4568
        %v4585 = vmul.f32 %v4569, %v4569
        %v4586 = vmul.f32 %v4570, %v4570
        %v4587 = vmul.f32 %v4571, %v4571
        %v4588 = vmul.f32 %v4572, %v4572
        %v4589 = vmul.f32 %v4573, %v4573
        %v4590 = vmul.f32 %v4574, %v4574
        %v4591 = vmul.f32 %v4575, %v4575
        %v4592 = vmul.f32 %v4576, %v4576
        %v4593 = vmul.f32 %v4577, %v4577
        %v4594 = vmul.f32 %v4578, %v4578
        %v4595 = vmul.f32 %v4579, %v4579
        %v4596 = vmul.f32 %v4580, %v4580
        %v4597 = vmul.f32 %v4581, %v4581
        %v4598 = vmul.f32 %v4582, %v4582
        %v4599 = vmul.f32 %v4583, %v4583
        %4600 = vadd.xlane.f32.xlu0 %v4584
        %v4601 = vpop.xlane.xlu0 %4600
        %4602 = vadd.xlane.f32.xlu0 %v4585
        %v4603 = vpop.xlane.xlu0 %4602
        %4604 = vadd.xlane.f32.xlu0 %v4586
        %v4605 = vpop.xlane.xlu0 %4604
        %4606 = vadd.xlane.f32.xlu0 %v4587
        %v4607 = vpop.xlane.xlu0 %4606
        %4608 = vadd.xlane.f32.xlu0 %v4588
        %v4609 = vpop.xlane.xlu0 %4608
        %4610 = vadd.xlane.f32.xlu0 %v4589
        %v4611 = vpop.xlane.xlu0 %4610
        %4612 = vadd.xlane.f32.xlu0 %v4590
        %v4613 = vpop.xlane.xlu0 %4612
        %4614 = vadd.xlane.f32.xlu0 %v4591
        %v4615 = vpop.xlane.xlu0 %4614
        %4616 = vadd.xlane.f32.xlu0 %v4592
        %v4617 = vpop.xlane.xlu0 %4616
        %4618 = vadd.xlane.f32.xlu0 %v4593
        %v4619 = vpop.xlane.xlu0 %4618
        %4620 = vadd.xlane.f32.xlu0 %v4594
        %v4621 = vpop.xlane.xlu0 %4620
        %4622 = vadd.xlane.f32.xlu0 %v4595
        %v4623 = vpop.xlane.xlu0 %4622
        %4624 = vadd.xlane.f32.xlu0 %v4596
        %v4625 = vpop.xlane.xlu0 %4624
        %4626 = vadd.xlane.f32.xlu0 %v4597
        %v4627 = vpop.xlane.xlu0 %4626
        %4628 = vadd.xlane.f32.xlu0 %v4598
        %v4629 = vpop.xlane.xlu0 %4628
        %4630 = vadd.xlane.f32.xlu0 %v4599
        %v4631 = vpop.xlane.xlu0 %4630
        %v4632 = vmul.f32 %v4601, %v683
        %v4633 = vmul.f32 %v4603, %v683
        %v4634 = vmul.f32 %v4605, %v683
        %v4635 = vmul.f32 %v4607, %v683
        %v4636 = vmul.f32 %v4609, %v683
        %v4637 = vmul.f32 %v4611, %v683
        %v4638 = vmul.f32 %v4613, %v683
        %v4639 = vmul.f32 %v4615, %v683
        %v4640 = vmul.f32 %v4617, %v683
        %v4641 = vmul.f32 %v4619, %v683
        %v4642 = vmul.f32 %v4621, %v683
        %v4643 = vmul.f32 %v4623, %v683
        %v4644 = vmul.f32 %v4625, %v683
        %v4645 = vmul.f32 %v4627, %v683
        %v4646 = vmul.f32 %v4629, %v683
        %v4647 = vmul.f32 %v4631, %v683
        %v4648 = vadd.f32 %v4632, 1e-05
        %v4649 = vadd.f32 %v4633, 1e-05
        %v4650 = vadd.f32 %v4634, 1e-05
        %v4651 = vadd.f32 %v4635, 1e-05
        %v4652 = vadd.f32 %v4636, 1e-05
        %v4653 = vadd.f32 %v4637, 1e-05
        %v4654 = vadd.f32 %v4638, 1e-05
        %v4655 = vadd.f32 %v4639, 1e-05
        %v4656 = vadd.f32 %v4640, 1e-05
        %v4657 = vadd.f32 %v4641, 1e-05
        %v4658 = vadd.f32 %v4642, 1e-05
        %v4659 = vadd.f32 %v4643, 1e-05
        %v4660 = vadd.f32 %v4644, 1e-05
        %v4661 = vadd.f32 %v4645, 1e-05
        %v4662 = vadd.f32 %v4646, 1e-05
        %v4663 = vadd.f32 %v4647, 1e-05
        %v4664 = vrsqrt.pop %v4648
        %v4665 = vrsqrt.pop %v4649
        %v4666 = vrsqrt.pop %v4650
        %v4667 = vrsqrt.pop %v4651
        %v4668 = vrsqrt.pop %v4652
        %v4669 = vrsqrt.pop %v4653
        %v4670 = vrsqrt.pop %v4654
        %v4671 = vrsqrt.pop %v4655
        %v4672 = vrsqrt.pop %v4656
        %v4673 = vrsqrt.pop %v4657
        %v4674 = vrsqrt.pop %v4658
        %v4675 = vrsqrt.pop %v4659
        %v4676 = vrsqrt.pop %v4660
        %v4677 = vrsqrt.pop %v4661
        %v4678 = vrsqrt.pop %v4662
        %v4679 = vrsqrt.pop %v4663
        %v4680 = vmul.f32 %v4568, %v4664
        %v4681 = vmul.f32 %v4569, %v4665
        %v4682 = vmul.f32 %v4570, %v4666
        %v4683 = vmul.f32 %v4571, %v4667
        %v4684 = vmul.f32 %v4572, %v4668
        %v4685 = vmul.f32 %v4573, %v4669
        %v4686 = vmul.f32 %v4574, %v4670
        %v4687 = vmul.f32 %v4575, %v4671
        %v4688 = vmul.f32 %v4576, %v4672
        %v4689 = vmul.f32 %v4577, %v4673
        %v4690 = vmul.f32 %v4578, %v4674
        %v4691 = vmul.f32 %v4579, %v4675
        %v4692 = vmul.f32 %v4580, %v4676
        %v4693 = vmul.f32 %v4581, %v4677
        %v4694 = vmul.f32 %v4582, %v4678
        %v4695 = vmul.f32 %v4583, %v4679
        %v4697 = vlaneseq
        %v4698 = vshrl.u32 %v4697, 7
        %v4699 = vsub.s32 0, %v4698
        %v4700 = vrot.slane %v4517, %v4699
        %v4702 = vmul.f32 %v4680, %v4700
        %v4703 = vmul.f32 %v4681, %v4700
        %v4704 = vmul.f32 %v4682, %v4700
        %v4705 = vmul.f32 %v4683, %v4700
        %v4706 = vmul.f32 %v4684, %v4700
        %v4707 = vmul.f32 %v4685, %v4700
        %v4708 = vmul.f32 %v4686, %v4700
        %v4709 = vmul.f32 %v4687, %v4700
        %v4710 = vmul.f32 %v4688, %v4700
        %v4711 = vmul.f32 %v4689, %v4700
        %v4712 = vmul.f32 %v4690, %v4700
        %v4713 = vmul.f32 %v4691, %v4700
        %v4714 = vmul.f32 %v4692, %v4700
        %v4715 = vmul.f32 %v4693, %v4700
        %v4716 = vmul.f32 %v4694, %v4700
        %v4717 = vmul.f32 %v4695, %v4700
        %v4719 = vlaneseq
        %v4720 = vshrl.u32 %v4719, 7
        %v4721 = vsub.s32 0, %v4720
        %v4722 = vrot.slane %v4519, %v4721
        %v4724 = vadd.f32 %v4702, %v4722
        %v4725 = vadd.f32 %v4703, %v4722
        %v4726 = vadd.f32 %v4704, %v4722
        %v4727 = vadd.f32 %v4705, %v4722
        %v4728 = vadd.f32 %v4706, %v4722
        %v4729 = vadd.f32 %v4707, %v4722
        %v4730 = vadd.f32 %v4708, %v4722
        %v4731 = vadd.f32 %v4709, %v4722
        %v4732 = vadd.f32 %v4710, %v4722
        %v4733 = vadd.f32 %v4711, %v4722
        %v4734 = vadd.f32 %v4712, %v4722
        %v4735 = vadd.f32 %v4713, %v4722
        %v4736 = vadd.f32 %v4714, %v4722
        %v4737 = vadd.f32 %v4715, %v4722
        %v4738 = vadd.f32 %v4716, %v4722
        %v4739 = vadd.f32 %v4717, %v4722
        %v4740 = vpack.c.bf16 %v4725, %v4724
        %v4741 = vpack.c.bf16 %v4727, %v4726
        %v4742 = vpack.c.bf16 %v4729, %v4728
        %v4743 = vpack.c.bf16 %v4731, %v4730
        %v4744 = vpack.c.bf16 %v4733, %v4732
        %v4745 = vpack.c.bf16 %v4735, %v4734
        %v4746 = vpack.c.bf16 %v4737, %v4736
        %v4747 = vpack.c.bf16 %v4739, %v4738
        %s4748 = scalar_lea.vmem [#allocation8], 192
        %v4749 = vld [vmem:[%s4748] sm:$0xff]
        %v4750 = vld [vmem:[%s4748 + $0x8] sm:$0xf]
        %v4751 = vld [vmem:[%s4748 + $0xc] sm:$0xff]
        %v4752 = vld [vmem:[%s4748 + $0x14] sm:$0xf]
        %v4753 = vld [vmem:[%s4748 + $0x18] sm:$0xff]
        %v4754 = vld [vmem:[%s4748 + $0x20] sm:$0xf]
        %v4755 = vld [vmem:[%s4748 + $0x24] sm:$0xff]
        %v4756 = vld [vmem:[%s4748 + $0x2c] sm:$0xf]
        %v4757 = vld [vmem:[%s4748 + $0x30] sm:$0xff]
        %v4758 = vld [vmem:[%s4748 + $0x38] sm:$0xf]
        %v4759 = vld [vmem:[%s4748 + $0x3c] sm:$0xff]
        %v4760 = vld [vmem:[%s4748 + $0x44] sm:$0xf]
        %v4761 = vld [vmem:[%s4748 + $0x48] sm:$0xff]
        %v4762 = vld [vmem:[%s4748 + $0x50] sm:$0xf]
        %v4763 = vld [vmem:[%s4748 + $0x54] sm:$0xff]
        %v4764 = vld [vmem:[%s4748 + $0x5c] sm:$0xf]
        %v4765 = vld [vmem:[%s4748 + $0x60] sm:$0xff]
        %v4766 = vld [vmem:[%s4748 + $0x68] sm:$0xf]
        %v4767 = vld [vmem:[%s4748 + $0x6c] sm:$0xff]
        %v4768 = vld [vmem:[%s4748 + $0x74] sm:$0xf]
        %v4769 = vld [vmem:[%s4748 + $0x78] sm:$0xff]
        %v4770 = vld [vmem:[%s4748 + $0x80] sm:$0xf]
        %v4771 = vld [vmem:[%s4748 + $0x84] sm:$0xff]
        %v4772 = vld [vmem:[%s4748 + $0x8c] sm:$0xf]
        %v4773 = vld [vmem:[%s4748 + $0x90] sm:$0xff]
        %v4774 = vld [vmem:[%s4748 + $0x98] sm:$0xf]
        %v4775 = vld [vmem:[%s4748 + $0x9c] sm:$0xff]
        %v4776 = vld [vmem:[%s4748 + $0xa4] sm:$0xf]
        %v4777 = vld [vmem:[%s4748 + $0xa8] sm:$0xff]
        %v4778 = vld [vmem:[%s4748 + $0xb0] sm:$0xf]
        %v4779 = vld [vmem:[%s4748 + $0xb4] sm:$0xff]
        %v4780 = vld [vmem:[%s4748 + $0xbc] sm:$0xf]
        %s4781 = scalar_lea.vmem %s4, 3
        %v4782 = vld [vmem:[%s4781] sm:$0x7]
        %v4784 = vlaneseq
        %v4785 = vshrl.u32 %v4784, 7
        %v4786 = vsub.s32 0, %v4785
        %v4787 = vrot.slane %v4782, %v4786
        %v4788 = vlaneseq
        %v4789 = vshrl.u32 %v4788, 7
        %v4790 = vsub.s32 1, %v4789
        %v4791 = vrot.slane %v4782, %v4790
        %v4792 = vlaneseq
        %v4793 = vshrl.u32 %v4792, 7
        %v4794 = vsub.s32 2, %v4793
        %v4795 = vrot.slane %v4782, %v4794
        %v4831 = vunpack.c.l.b16 %v4749
        %v4832 = vunpack.c.h.b16 %v4749
        %v4833 = vunpack.c.l.b16 %v4750
        %v4834 = vunpack.c.l.b16 %v4751
        %v4835 = vunpack.c.h.b16 %v4751
        %v4836 = vunpack.c.l.b16 %v4752
        %v4837 = vunpack.c.l.b16 %v4753
        %v4838 = vunpack.c.h.b16 %v4753
        %v4839 = vunpack.c.l.b16 %v4754
        %v4840 = vunpack.c.l.b16 %v4755
        %v4841 = vunpack.c.h.b16 %v4755
        %v4842 = vunpack.c.l.b16 %v4756
        %v4843 = vunpack.c.l.b16 %v4757
        %v4844 = vunpack.c.h.b16 %v4757
        %v4845 = vunpack.c.l.b16 %v4758
        %v4846 = vunpack.c.l.b16 %v4759
        %v4847 = vunpack.c.h.b16 %v4759
        %v4848 = vunpack.c.l.b16 %v4760
        %v4849 = vunpack.c.l.b16 %v4761
        %v4850 = vunpack.c.h.b16 %v4761
        %v4851 = vunpack.c.l.b16 %v4762
        %v4852 = vunpack.c.l.b16 %v4763
        %v4853 = vunpack.c.h.b16 %v4763
        %v4854 = vunpack.c.l.b16 %v4764
        %v4855 = vunpack.c.l.b16 %v4765
        %v4856 = vunpack.c.h.b16 %v4765
        %v4857 = vunpack.c.l.b16 %v4766
        %v4858 = vunpack.c.l.b16 %v4767
        %v4859 = vunpack.c.h.b16 %v4767
        %v4860 = vunpack.c.l.b16 %v4768
        %v4861 = vunpack.c.l.b16 %v4769
        %v4862 = vunpack.c.h.b16 %v4769
        %v4863 = vunpack.c.l.b16 %v4770
        %v4864 = vunpack.c.l.b16 %v4771
        %v4865 = vunpack.c.h.b16 %v4771
        %v4866 = vunpack.c.l.b16 %v4772
        %v4867 = vunpack.c.l.b16 %v4773
        %v4868 = vunpack.c.h.b16 %v4773
        %v4869 = vunpack.c.l.b16 %v4774
        %v4870 = vunpack.c.l.b16 %v4775
        %v4871 = vunpack.c.h.b16 %v4775
        %v4872 = vunpack.c.l.b16 %v4776
        %v4873 = vunpack.c.l.b16 %v4777
        %v4874 = vunpack.c.h.b16 %v4777
        %v4875 = vunpack.c.l.b16 %v4778
        %v4876 = vunpack.c.l.b16 %v4779
        %v4877 = vunpack.c.h.b16 %v4779
        %v4878 = vunpack.c.l.b16 %v4780
        %v4879 = vpack.c.b16 %v4834, %v4831
        %v4880 = vpack.c.b16 %v4835, %v4832
        %v4881 = vpack.c.b16 %v4836, %v4833
        %v4882 = vpack.c.b16 %v4840, %v4837
        %v4883 = vpack.c.b16 %v4841, %v4838
        %v4884 = vpack.c.b16 %v4842, %v4839
        %v4885 = vpack.c.b16 %v4846, %v4843
        %v4886 = vpack.c.b16 %v4847, %v4844
        %v4887 = vpack.c.b16 %v4848, %v4845
        %v4888 = vpack.c.b16 %v4852, %v4849
        %v4889 = vpack.c.b16 %v4853, %v4850
        %v4890 = vpack.c.b16 %v4854, %v4851
        %v4891 = vpack.c.b16 %v4858, %v4855
        %v4892 = vpack.c.b16 %v4859, %v4856
        %v4893 = vpack.c.b16 %v4860, %v4857
        %v4894 = vpack.c.b16 %v4864, %v4861
        %v4895 = vpack.c.b16 %v4865, %v4862
        %v4896 = vpack.c.b16 %v4866, %v4863
        %v4897 = vpack.c.b16 %v4870, %v4867
        %v4898 = vpack.c.b16 %v4871, %v4868
        %v4899 = vpack.c.b16 %v4872, %v4869
        %v4900 = vpack.c.b16 %v4876, %v4873
        %v4901 = vpack.c.b16 %v4877, %v4874
        %v4902 = vpack.c.b16 %v4878, %v4875
        %4927 = vmatprep.subr.bf16.mxu0 %v4901
        %4928 = vmatpush1.bf16.msra.mxu0 %v4900
        %4929 = vmatprep.subr.bf16.mxu0 %v4898
        %4930 = vmatpush1.bf16.msra.mxu0 %v4897
        %4931 = vmatprep.subr.bf16.mxu0 %v4895
        %4932 = vmatpush1.bf16.msra.mxu0 %v4894
        %4933 = vmatprep.subr.bf16.mxu0 %v4892
        %4934 = vmatpush1.bf16.msra.mxu0 %v4891
        %4935 = vmatprep.subr.bf16.mxu0 %v4889
        %4936 = vmatpush1.bf16.msra.mxu0 %v4888
        %4937 = vmatprep.subr.bf16.mxu0 %v4886
        %4938 = vmatpush1.bf16.msra.mxu0 %v4885
        %4939 = vmatprep.subr.bf16.mxu0 %v4883
        %4940 = vmatpush1.bf16.msra.mxu0 %v4882
        %4941 = vmatprep.subr.bf16.mxu0 %v4880
        %4942 = vmatpush1.bf16.msra.mxu0 %v4879
        %4943 = vmatprep.subr.bf16.mxu0 0
        %4944 = vmatpush2.bf16.msra.mxu0 0
        %4945 = vmatprep.subr.bf16.mxu0 0
        %4946 = vmatpush2.bf16.msra.mxu0 0
        %4947 = vmatprep.subr.bf16.mxu0 0
        %4948 = vmatpush2.bf16.msra.mxu0 0
        %4949 = vmatprep.subr.bf16.mxu0 0
        %4950 = vmatpush2.bf16.msra.mxu0 0
        %4951 = vmatprep.subr.bf16.mxu0 0
        %4952 = vmatpush2.bf16.msra.mxu0 0
        %4953 = vmatprep.subr.bf16.mxu0 0
        %4954 = vmatpush2.bf16.msra.mxu0 0
        %4955 = vmatprep.subr.bf16.mxu0 0
        %4956 = vmatpush2.bf16.msra.mxu0 0
        %4957 = vmatprep.subr.bf16.mxu0 0
        %4958 = vmatpush2.bf16.msra.mxu0 0
        %4959 = vmatprep.mubr.bf16.mxu0 0
        %4960 = vmatmul.mubr.bf16.gmra.mxu0 %v4740
        %v4961 = vpop.f32.mrf.mxu0
        %v4962 = vadd.f32 %v4787, %v4961
        %v4963 = vpop.f32.mrf.mxu0
        %v4964 = vadd.f32 %v4791, %v4963
        %v4965 = vpop.f32.mrf.mxu0
        %v4966 = vadd.f32 %v4787, %v4965
        %v4967 = vpop.f32.mrf.mxu0
        %v4968 = vadd.f32 %v4791, %v4967
        %4969 = vmatprep.mubr.bf16.mxu0 0
        %4970 = vmatmul.mubr.bf16.gmra.mxu0 %v4741
        %v4971 = vpop.f32.mrf.mxu0
        %v4972 = vadd.f32 %v4787, %v4971
        %v4973 = vpop.f32.mrf.mxu0
        %v4974 = vadd.f32 %v4791, %v4973
        %v4975 = vpop.f32.mrf.mxu0
        %v4976 = vadd.f32 %v4787, %v4975
        %v4977 = vpop.f32.mrf.mxu0
        %v4978 = vadd.f32 %v4791, %v4977
        %4979 = vmatprep.mubr.bf16.mxu0 0
        %4980 = vmatmul.mubr.bf16.gmra.mxu0 %v4742
        %v4981 = vpop.f32.mrf.mxu0
        %v4982 = vadd.f32 %v4787, %v4981
        %v4983 = vpop.f32.mrf.mxu0
        %v4984 = vadd.f32 %v4791, %v4983
        %v4985 = vpop.f32.mrf.mxu0
        %v4986 = vadd.f32 %v4787, %v4985
        %v4987 = vpop.f32.mrf.mxu0
        %v4988 = vadd.f32 %v4791, %v4987
        %4989 = vmatprep.mubr.bf16.mxu0 0
        %4990 = vmatmul.mubr.bf16.gmra.mxu0 %v4743
        %v4991 = vpop.f32.mrf.mxu0
        %v4992 = vadd.f32 %v4787, %v4991
        %v4993 = vpop.f32.mrf.mxu0
        %v4994 = vadd.f32 %v4791, %v4993
        %v4995 = vpop.f32.mrf.mxu0
        %v4996 = vadd.f32 %v4787, %v4995
        %v4997 = vpop.f32.mrf.mxu0
        %v4998 = vadd.f32 %v4791, %v4997
        %4999 = vmatprep.mubr.bf16.mxu0 0
        %5000 = vmatmul.mubr.bf16.gmra.mxu0 %v4744
        %v5001 = vpop.f32.mrf.mxu0
        %v5002 = vadd.f32 %v4787, %v5001
        %v5003 = vpop.f32.mrf.mxu0
        %v5004 = vadd.f32 %v4791, %v5003
        %v5005 = vpop.f32.mrf.mxu0
        %v5006 = vadd.f32 %v4787, %v5005
        %v5007 = vpop.f32.mrf.mxu0
        %v5008 = vadd.f32 %v4791, %v5007
        %5009 = vmatprep.mubr.bf16.mxu0 0
        %5010 = vmatmul.mubr.bf16.gmra.mxu0 %v4745
        %v5011 = vpop.f32.mrf.mxu0
        %v5012 = vadd.f32 %v4787, %v5011
        %v5013 = vpop.f32.mrf.mxu0
        %v5014 = vadd.f32 %v4791, %v5013
        %v5015 = vpop.f32.mrf.mxu0
        %v5016 = vadd.f32 %v4787, %v5015
        %v5017 = vpop.f32.mrf.mxu0
        %v5018 = vadd.f32 %v4791, %v5017
        %5019 = vmatprep.mubr.bf16.mxu0 0
        %5020 = vmatmul.mubr.bf16.gmra.mxu0 %v4746
        %v5021 = vpop.f32.mrf.mxu0
        %v5022 = vadd.f32 %v4787, %v5021
        %v5023 = vpop.f32.mrf.mxu0
        %v5024 = vadd.f32 %v4791, %v5023
        %v5025 = vpop.f32.mrf.mxu0
        %v5026 = vadd.f32 %v4787, %v5025
        %v5027 = vpop.f32.mrf.mxu0
        %v5028 = vadd.f32 %v4791, %v5027
        %5029 = vmatprep.mubr.bf16.mxu0 0
        %5030 = vmatmul.mubr.bf16.gmra.mxu0 %v4747
        %v5031 = vpop.f32.mrf.mxu0
        %v5032 = vadd.f32 %v4787, %v5031
        %v5033 = vpop.f32.mrf.mxu0
        %v5034 = vadd.f32 %v4791, %v5033
        %v5035 = vpop.f32.mrf.mxu0
        %v5036 = vadd.f32 %v4787, %v5035
        %v5037 = vpop.f32.mrf.mxu0
        %v5038 = vadd.f32 %v4791, %v5037
        %5039 = vdwg.mxu0
        %5040 = vmatprep.subr.bf16.mxu0 0
        %5041 = vmatpush1.bf16.msra.mxu0 %v4902
        %5042 = vmatprep.subr.bf16.mxu0 0
        %5043 = vmatpush1.bf16.msra.mxu0 %v4899
        %5044 = vmatprep.subr.bf16.mxu0 0
        %5045 = vmatpush1.bf16.msra.mxu0 %v4896
        %5046 = vmatprep.subr.bf16.mxu0 0
        %5047 = vmatpush1.bf16.msra.mxu0 %v4893
        %5048 = vmatprep.subr.bf16.mxu0 0
        %5049 = vmatpush1.bf16.msra.mxu0 %v4890
        %5050 = vmatprep.subr.bf16.mxu0 0
        %5051 = vmatpush1.bf16.msra.mxu0 %v4887
        %5052 = vmatprep.subr.bf16.mxu0 0
        %5053 = vmatpush1.bf16.msra.mxu0 %v4884
        %5054 = vmatprep.subr.bf16.mxu0 0
        %5055 = vmatpush1.bf16.msra.mxu0 %v4881
        %5056 = vmatprep.subr.bf16.mxu0 0
        %5057 = vmatpush2.bf16.msra.mxu0 0
        %5058 = vmatprep.subr.bf16.mxu0 0
        %5059 = vmatpush2.bf16.msra.mxu0 0
        %5060 = vmatprep.subr.bf16.mxu0 0
        %5061 = vmatpush2.bf16.msra.mxu0 0
        %5062 = vmatprep.subr.bf16.mxu0 0
        %5063 = vmatpush2.bf16.msra.mxu0 0
        %5064 = vmatprep.subr.bf16.mxu0 0
        %5065 = vmatpush2.bf16.msra.mxu0 0
        %5066 = vmatprep.subr.bf16.mxu0 0
        %5067 = vmatpush2.bf16.msra.mxu0 0
        %5068 = vmatprep.subr.bf16.mxu0 0
        %5069 = vmatpush2.bf16.msra.mxu0 0
        %5070 = vmatprep.subr.bf16.mxu0 0
        %5071 = vmatpush2.bf16.msra.mxu0 0
        %5072 = vmatprep.mubr.bf16.mxu0 0
        %5073 = vmatmul.mubr.bf16.gmra.mxu0 %v4740
        %v5074 = vpop.f32.mrf.mxu0
        %v5075 = vadd.f32 %v4795, %v5074
        %v5076 = vpop.f32.mrf.mxu0
        %v5077 = vpop.f32.mrf.mxu0
        %v5078 = vadd.f32 %v4795, %v5077
        %v5079 = vpop.f32.mrf.mxu0
        %5080 = vmatprep.mubr.bf16.mxu0 0
        %5081 = vmatmul.mubr.bf16.gmra.mxu0 %v4741
        %v5082 = vpop.f32.mrf.mxu0
        %v5083 = vadd.f32 %v4795, %v5082
        %v5084 = vpop.f32.mrf.mxu0
        %v5085 = vpop.f32.mrf.mxu0
        %v5086 = vadd.f32 %v4795, %v5085
        %v5087 = vpop.f32.mrf.mxu0
        %5088 = vmatprep.mubr.bf16.mxu0 0
        %5089 = vmatmul.mubr.bf16.gmra.mxu0 %v4742
        %v5090 = vpop.f32.mrf.mxu0
        %v5091 = vadd.f32 %v4795, %v5090
        %v5092 = vpop.f32.mrf.mxu0
        %v5093 = vpop.f32.mrf.mxu0
        %v5094 = vadd.f32 %v4795, %v5093
        %v5095 = vpop.f32.mrf.mxu0
        %5096 = vmatprep.mubr.bf16.mxu0 0
        %5097 = vmatmul.mubr.bf16.gmra.mxu0 %v4743
        %v5098 = vpop.f32.mrf.mxu0
        %v5099 = vadd.f32 %v4795, %v5098
        %v5100 = vpop.f32.mrf.mxu0
        %v5101 = vpop.f32.mrf.mxu0
        %v5102 = vadd.f32 %v4795, %v5101
        %v5103 = vpop.f32.mrf.mxu0
        %5104 = vmatprep.mubr.bf16.mxu0 0
        %5105 = vmatmul.mubr.bf16.gmra.mxu0 %v4744
        %v5106 = vpop.f32.mrf.mxu0
        %v5107 = vadd.f32 %v4795, %v5106
        %v5108 = vpop.f32.mrf.mxu0
        %v5109 = vpop.f32.mrf.mxu0
        %v5110 = vadd.f32 %v4795, %v5109
        %v5111 = vpop.f32.mrf.mxu0
        %5112 = vmatprep.mubr.bf16.mxu0 0
        %5113 = vmatmul.mubr.bf16.gmra.mxu0 %v4745
        %v5114 = vpop.f32.mrf.mxu0
        %v5115 = vadd.f32 %v4795, %v5114
        %v5116 = vpop.f32.mrf.mxu0
        %v5117 = vpop.f32.mrf.mxu0
        %v5118 = vadd.f32 %v4795, %v5117
        %v5119 = vpop.f32.mrf.mxu0
        %5120 = vmatprep.mubr.bf16.mxu0 0
        %5121 = vmatmul.mubr.bf16.gmra.mxu0 %v4746
        %v5122 = vpop.f32.mrf.mxu0
        %v5123 = vadd.f32 %v4795, %v5122
        %v5124 = vpop.f32.mrf.mxu0
        %v5125 = vpop.f32.mrf.mxu0
        %v5126 = vadd.f32 %v4795, %v5125
        %v5127 = vpop.f32.mrf.mxu0
        %5128 = vmatprep.mubr.bf16.mxu0 0
        %5129 = vmatmul.mubr.bf16.gmra.mxu0 %v4747
        %v5130 = vpop.f32.mrf.mxu0
        %v5131 = vadd.f32 %v4795, %v5130
        %v5132 = vpop.f32.mrf.mxu0
        %v5133 = vpop.f32.mrf.mxu0
        %v5134 = vadd.f32 %v4795, %v5133
        %v5135 = vpop.f32.mrf.mxu0
        %5136 = vdwg.mxu0
        %s5137 = scalar_lea.vmem [#allocation10], 64
        %v5138 = vld [vmem:[%s5137] sm:$0xf]
        %v5139 = vld [vmem:[%s5137 + $0x4] sm:$0xf]
        %v5140 = vld [vmem:[%s5137 + $0x8] sm:$0xf]
        %v5141 = vld [vmem:[%s5137 + $0xc] sm:$0xf]
        %v5142 = vld [vmem:[%s5137 + $0x10] sm:$0xf]
        %v5143 = vld [vmem:[%s5137 + $0x14] sm:$0xf]
        %v5144 = vld [vmem:[%s5137 + $0x18] sm:$0xf]
        %v5145 = vld [vmem:[%s5137 + $0x1c] sm:$0xf]
        %v5146 = vld [vmem:[%s5137 + $0x20] sm:$0xf]
        %v5147 = vld [vmem:[%s5137 + $0x24] sm:$0xf]
        %v5148 = vld [vmem:[%s5137 + $0x28] sm:$0xf]
        %v5149 = vld [vmem:[%s5137 + $0x2c] sm:$0xf]
        %v5150 = vld [vmem:[%s5137 + $0x30] sm:$0xf]
        %v5151 = vld [vmem:[%s5137 + $0x34] sm:$0xf]
        %v5152 = vld [vmem:[%s5137 + $0x38] sm:$0xf]
        %v5153 = vld [vmem:[%s5137 + $0x3c] sm:$0xf]
        %v5154 = vpack.c.bf16 %v4966, %v4962
        %v5155 = vpack.c.bf16 %v4976, %v4972
        %v5156 = vpack.c.bf16 %v4986, %v4982
        %v5157 = vpack.c.bf16 %v4996, %v4992
        %v5158 = vpack.c.bf16 %v5006, %v5002
        %v5159 = vpack.c.bf16 %v5016, %v5012
        %v5160 = vpack.c.bf16 %v5026, %v5022
        %v5161 = vpack.c.bf16 %v5036, %v5032
        %v5162 = vpack.c.bf16 %v4968, %v4964
        %v5163 = vpack.c.bf16 %v4978, %v4974
        %v5164 = vpack.c.bf16 %v4988, %v4984
        %v5165 = vpack.c.bf16 %v4998, %v4994
        %v5166 = vpack.c.bf16 %v5008, %v5004
        %v5167 = vpack.c.bf16 %v5018, %v5014
        %v5168 = vpack.c.bf16 %v5028, %v5024
        %v5169 = vpack.c.bf16 %v5038, %v5034
        %v5171 = vsel %vm1299, %v5154, 0
        %v5174 = vsel %vm1299, %v5155, 0
        %v5177 = vsel %vm1299, %v5156, 0
        %v5180 = vsel %vm1299, %v5157, 0
        %v5183 = vsel %vm1299, %v5162, 0
        %v5186 = vsel %vm1299, %v5163, 0
        %v5189 = vsel %vm1299, %v5164, 0
        %v5192 = vsel %vm1299, %v5165, 0
        %5194 = vmatprep.subr.bf16.mxu0 0
        %5195 = vmatpush1.bf16.xpose.msra.mxu0 0
        %5196 = vmatprep.subr.bf16.mxu0 0
        %5197 = vmatpush1.bf16.xpose.msra.mxu0 0
        %5198 = vmatprep.subr.bf16.mxu0 0
        %5199 = vmatpush1.bf16.xpose.msra.mxu0 0
        %5200 = vmatprep.subr.bf16.mxu0 0
        %5201 = vmatpush1.bf16.xpose.msra.mxu0 0
        %5202 = vmatprep.subr.bf16.mxu0 0
        %5203 = vmatpush1.bf16.xpose.msra.mxu0 %v5192
        %5204 = vmatprep.subr.bf16.mxu0 0
        %5205 = vmatpush1.bf16.xpose.msra.mxu0 %v5189
        %5206 = vmatprep.subr.bf16.mxu0 0
        %5207 = vmatpush1.bf16.xpose.msra.mxu0 %v5186
        %5208 = vmatprep.subr.bf16.mxu0 0
        %5209 = vmatpush1.bf16.xpose.msra.mxu0 %v5183
        %5210 = vmatprep.subr.bf16.mxu0 0
        %5211 = vmatpush2.bf16.xpose.msra.mxu0 0
        %5212 = vmatprep.subr.bf16.mxu0 0
        %5213 = vmatpush2.bf16.xpose.msra.mxu0 0
        %5214 = vmatprep.subr.bf16.mxu0 0
        %5215 = vmatpush2.bf16.xpose.msra.mxu0 0
        %5216 = vmatprep.subr.bf16.mxu0 0
        %5217 = vmatpush2.bf16.xpose.msra.mxu0 0
        %5218 = vmatprep.subr.bf16.mxu0 0
        %5219 = vmatpush2.bf16.xpose.msra.mxu0 0
        %5220 = vmatprep.subr.bf16.mxu0 0
        %5221 = vmatpush2.bf16.xpose.msra.mxu0 0
        %5222 = vmatprep.subr.bf16.mxu0 0
        %5223 = vmatpush2.bf16.xpose.msra.mxu0 0
        %5224 = vmatprep.subr.bf16.mxu0 0
        %5225 = vmatpush2.bf16.xpose.msra.mxu0 0
        %5226 = vmatprep.mubr.bf16.mxu0 0
        %5227 = vmatmul.mubr.bf16.gmra.mxu0 %v5171
        %v5228 = vpop.f32.mrf.mxu0
        %v5229 = vadd.f32 0.0, %v5228
        %v5230 = vpop.f32.mrf.mxu0
        %v5231 = vpop.f32.mrf.mxu0
        %v5232 = vadd.f32 0.0, %v5231
        %v5233 = vpop.f32.mrf.mxu0
        %5234 = vmatprep.mubr.bf16.mxu0 0
        %5235 = vmatmul.mubr.bf16.gmra.mxu0 %v5174
        %v5236 = vpop.f32.mrf.mxu0
        %v5237 = vadd.f32 0.0, %v5236
        %v5238 = vpop.f32.mrf.mxu0
        %v5239 = vpop.f32.mrf.mxu0
        %v5240 = vadd.f32 0.0, %v5239
        %v5241 = vpop.f32.mrf.mxu0
        %5242 = vmatprep.mubr.bf16.mxu0 0
        %5243 = vmatmul.mubr.bf16.gmra.mxu0 %v5177
        %v5244 = vpop.f32.mrf.mxu0
        %v5245 = vadd.f32 0.0, %v5244
        %v5246 = vpop.f32.mrf.mxu0
        %v5247 = vpop.f32.mrf.mxu0
        %v5248 = vadd.f32 0.0, %v5247
        %v5249 = vpop.f32.mrf.mxu0
        %5250 = vmatprep.mubr.bf16.mxu0 0
        %5251 = vmatmul.mubr.bf16.gmra.mxu0 %v5180
        %v5252 = vpop.f32.mrf.mxu0
        %v5253 = vadd.f32 0.0, %v5252
        %v5254 = vpop.f32.mrf.mxu0
        %v5255 = vpop.f32.mrf.mxu0
        %v5256 = vadd.f32 0.0, %v5255
        %v5257 = vpop.f32.mrf.mxu0
        %5258 = vdwg.mxu0
        %v5260 = vsel %vm1299, %v5158, 0
        %v5263 = vsel %vm1299, %v5159, 0
        %v5266 = vsel %vm1299, %v5160, 0
        %v5269 = vsel %vm1299, %v5161, 0
        %v5272 = vsel %vm1299, %v5166, 0
        %v5275 = vsel %vm1299, %v5167, 0
        %v5278 = vsel %vm1299, %v5168, 0
        %v5281 = vsel %vm1299, %v5169, 0
        %5283 = vmatprep.subr.bf16.mxu0 0
        %5284 = vmatpush1.bf16.xpose.msra.mxu0 0
        %5285 = vmatprep.subr.bf16.mxu0 0
        %5286 = vmatpush1.bf16.xpose.msra.mxu0 0
        %5287 = vmatprep.subr.bf16.mxu0 0
        %5288 = vmatpush1.bf16.xpose.msra.mxu0 0
        %5289 = vmatprep.subr.bf16.mxu0 0
        %5290 = vmatpush1.bf16.xpose.msra.mxu0 0
        %5291 = vmatprep.subr.bf16.mxu0 0
        %5292 = vmatpush1.bf16.xpose.msra.mxu0 %v5281
        %5293 = vmatprep.subr.bf16.mxu0 0
        %5294 = vmatpush1.bf16.xpose.msra.mxu0 %v5278
        %5295 = vmatprep.subr.bf16.mxu0 0
        %5296 = vmatpush1.bf16.xpose.msra.mxu0 %v5275
        %5297 = vmatprep.subr.bf16.mxu0 0
        %5298 = vmatpush1.bf16.xpose.msra.mxu0 %v5272
        %5299 = vmatprep.subr.bf16.mxu0 0
        %5300 = vmatpush2.bf16.xpose.msra.mxu0 0
        %5301 = vmatprep.subr.bf16.mxu0 0
        %5302 = vmatpush2.bf16.xpose.msra.mxu0 0
        %5303 = vmatprep.subr.bf16.mxu0 0
        %5304 = vmatpush2.bf16.xpose.msra.mxu0 0
        %5305 = vmatprep.subr.bf16.mxu0 0
        %5306 = vmatpush2.bf16.xpose.msra.mxu0 0
        %5307 = vmatprep.subr.bf16.mxu0 0
        %5308 = vmatpush2.bf16.xpose.msra.mxu0 0
        %5309 = vmatprep.subr.bf16.mxu0 0
        %5310 = vmatpush2.bf16.xpose.msra.mxu0 0
        %5311 = vmatprep.subr.bf16.mxu0 0
        %5312 = vmatpush2.bf16.xpose.msra.mxu0 0
        %5313 = vmatprep.subr.bf16.mxu0 0
        %5314 = vmatpush2.bf16.xpose.msra.mxu0 0
        %5315 = vmatprep.mubr.bf16.mxu0 0
        %5316 = vmatmul.mubr.bf16.gmra.mxu0 %v5260
        %v5317 = vpop.f32.mrf.mxu0
        %v5318 = vadd.f32 0.0, %v5317
        %v5319 = vpop.f32.mrf.mxu0
        %v5320 = vpop.f32.mrf.mxu0
        %v5321 = vadd.f32 0.0, %v5320
        %v5322 = vpop.f32.mrf.mxu0
        %5323 = vmatprep.mubr.bf16.mxu0 0
        %5324 = vmatmul.mubr.bf16.gmra.mxu0 %v5263
        %v5325 = vpop.f32.mrf.mxu0
        %v5326 = vadd.f32 0.0, %v5325
        %v5327 = vpop.f32.mrf.mxu0
        %v5328 = vpop.f32.mrf.mxu0
        %v5329 = vadd.f32 0.0, %v5328
        %v5330 = vpop.f32.mrf.mxu0
        %5331 = vmatprep.mubr.bf16.mxu0 0
        %5332 = vmatmul.mubr.bf16.gmra.mxu0 %v5266
        %v5333 = vpop.f32.mrf.mxu0
        %v5334 = vadd.f32 0.0, %v5333
        %v5335 = vpop.f32.mrf.mxu0
        %v5336 = vpop.f32.mrf.mxu0
        %v5337 = vadd.f32 0.0, %v5336
        %v5338 = vpop.f32.mrf.mxu0
        %5339 = vmatprep.mubr.bf16.mxu0 0
        %5340 = vmatmul.mubr.bf16.gmra.mxu0 %v5269
        %v5341 = vpop.f32.mrf.mxu0
        %v5342 = vadd.f32 0.0, %v5341
        %v5343 = vpop.f32.mrf.mxu0
        %v5344 = vpop.f32.mrf.mxu0
        %v5345 = vadd.f32 0.0, %v5344
        %v5346 = vpop.f32.mrf.mxu0
        %5347 = vdwg.mxu0
        %v5348 = vsel %vm1299, %v5229, -inf
        %5349 = vmax.xlane.f32.xlu0 %v5348
        %v5350 = vpop.xlane.xlu0 %5349
        %v5351 = vsel %vm1299, %v5232, -inf
        %5352 = vmax.xlane.f32.xlu0 %v5351
        %v5353 = vpop.xlane.xlu0 %5352
        %v5354 = vsel %vm1299, %v5237, -inf
        %5355 = vmax.xlane.f32.xlu0 %v5354
        %v5356 = vpop.xlane.xlu0 %5355
        %v5357 = vsel %vm1299, %v5240, -inf
        %5358 = vmax.xlane.f32.xlu0 %v5357
        %v5359 = vpop.xlane.xlu0 %5358
        %v5360 = vsel %vm1299, %v5245, -inf
        %5361 = vmax.xlane.f32.xlu0 %v5360
        %v5362 = vpop.xlane.xlu0 %5361
        %v5363 = vsel %vm1299, %v5248, -inf
        %5364 = vmax.xlane.f32.xlu0 %v5363
        %v5365 = vpop.xlane.xlu0 %5364
        %v5366 = vsel %vm1299, %v5253, -inf
        %5367 = vmax.xlane.f32.xlu0 %v5366
        %v5368 = vpop.xlane.xlu0 %5367
        %v5369 = vsel %vm1299, %v5256, -inf
        %5370 = vmax.xlane.f32.xlu0 %v5369
        %v5371 = vpop.xlane.xlu0 %5370
        %v5372 = vsel %vm1299, %v5318, -inf
        %5373 = vmax.xlane.f32.xlu0 %v5372
        %v5374 = vpop.xlane.xlu0 %5373
        %v5375 = vsel %vm1299, %v5321, -inf
        %5376 = vmax.xlane.f32.xlu0 %v5375
        %v5377 = vpop.xlane.xlu0 %5376
        %v5378 = vsel %vm1299, %v5326, -inf
        %5379 = vmax.xlane.f32.xlu0 %v5378
        %v5380 = vpop.xlane.xlu0 %5379
        %v5381 = vsel %vm1299, %v5329, -inf
        %5382 = vmax.xlane.f32.xlu0 %v5381
        %v5383 = vpop.xlane.xlu0 %5382
        %v5384 = vsel %vm1299, %v5334, -inf
        %5385 = vmax.xlane.f32.xlu0 %v5384
        %v5386 = vpop.xlane.xlu0 %5385
        %v5387 = vsel %vm1299, %v5337, -inf
        %5388 = vmax.xlane.f32.xlu0 %v5387
        %v5389 = vpop.xlane.xlu0 %5388
        %v5390 = vsel %vm1299, %v5342, -inf
        %5391 = vmax.xlane.f32.xlu0 %v5390
        %v5392 = vpop.xlane.xlu0 %5391
        %v5393 = vsel %vm1299, %v5345, -inf
        %5394 = vmax.xlane.f32.xlu0 %v5393
        %v5395 = vpop.xlane.xlu0 %5394
        %v5396 = vsub.f32 %v5229, %v5350
        %v5397 = vsub.f32 %v5232, %v5353
        %v5398 = vsub.f32 %v5237, %v5356
        %v5399 = vsub.f32 %v5240, %v5359
        %v5400 = vsub.f32 %v5245, %v5362
        %v5401 = vsub.f32 %v5248, %v5365
        %v5402 = vsub.f32 %v5253, %v5368
        %v5403 = vsub.f32 %v5256, %v5371
        %v5404 = vsub.f32 %v5318, %v5374
        %v5405 = vsub.f32 %v5321, %v5377
        %v5406 = vsub.f32 %v5326, %v5380
        %v5407 = vsub.f32 %v5329, %v5383
        %v5408 = vsub.f32 %v5334, %v5386
        %v5409 = vsub.f32 %v5337, %v5389
        %v5410 = vsub.f32 %v5342, %v5392
        %v5411 = vsub.f32 %v5345, %v5395
        %v5412 = vmul.f32 %v5396, 1.442695
        %v5413 = vpow.pop %v5412
        %v5414 = vmul.f32 %v5397, 1.442695
        %v5415 = vpow.pop %v5414
        %v5416 = vmul.f32 %v5398, 1.442695
        %v5417 = vpow.pop %v5416
        %v5418 = vmul.f32 %v5399, 1.442695
        %v5419 = vpow.pop %v5418
        %v5420 = vmul.f32 %v5400, 1.442695
        %v5421 = vpow.pop %v5420
        %v5422 = vmul.f32 %v5401, 1.442695
        %v5423 = vpow.pop %v5422
        %v5424 = vmul.f32 %v5402, 1.442695
        %v5425 = vpow.pop %v5424
        %v5426 = vmul.f32 %v5403, 1.442695
        %v5427 = vpow.pop %v5426
        %v5428 = vmul.f32 %v5404, 1.442695
        %v5429 = vpow.pop %v5428
        %v5430 = vmul.f32 %v5405, 1.442695
        %v5431 = vpow.pop %v5430
        %v5432 = vmul.f32 %v5406, 1.442695
        %v5433 = vpow.pop %v5432
        %v5434 = vmul.f32 %v5407, 1.442695
        %v5435 = vpow.pop %v5434
        %v5436 = vmul.f32 %v5408, 1.442695
        %v5437 = vpow.pop %v5436
        %v5438 = vmul.f32 %v5409, 1.442695
        %v5439 = vpow.pop %v5438
        %v5440 = vmul.f32 %v5410, 1.442695
        %v5441 = vpow.pop %v5440
        %v5442 = vmul.f32 %v5411, 1.442695
        %v5443 = vpow.pop %v5442
        %v5444 = vsel %vm1299, %v5413, 0.0
        %5445 = vadd.xlane.f32.xlu0 %v5444
        %v5446 = vpop.xlane.xlu0 %5445
        %v5447 = vsel %vm1299, %v5415, 0.0
        %5448 = vadd.xlane.f32.xlu0 %v5447
        %v5449 = vpop.xlane.xlu0 %5448
        %v5450 = vsel %vm1299, %v5417, 0.0
        %5451 = vadd.xlane.f32.xlu0 %v5450
        %v5452 = vpop.xlane.xlu0 %5451
        %v5453 = vsel %vm1299, %v5419, 0.0
        %5454 = vadd.xlane.f32.xlu0 %v5453
        %v5455 = vpop.xlane.xlu0 %5454
        %v5456 = vsel %vm1299, %v5421, 0.0
        %5457 = vadd.xlane.f32.xlu0 %v5456
        %v5458 = vpop.xlane.xlu0 %5457
        %v5459 = vsel %vm1299, %v5423, 0.0
        %5460 = vadd.xlane.f32.xlu0 %v5459
        %v5461 = vpop.xlane.xlu0 %5460
        %v5462 = vsel %vm1299, %v5425, 0.0
        %5463 = vadd.xlane.f32.xlu0 %v5462
        %v5464 = vpop.xlane.xlu0 %5463
        %v5465 = vsel %vm1299, %v5427, 0.0
        %5466 = vadd.xlane.f32.xlu0 %v5465
        %v5467 = vpop.xlane.xlu0 %5466
        %v5468 = vsel %vm1299, %v5429, 0.0
        %5469 = vadd.xlane.f32.xlu0 %v5468
        %v5470 = vpop.xlane.xlu0 %5469
        %v5471 = vsel %vm1299, %v5431, 0.0
        %5472 = vadd.xlane.f32.xlu0 %v5471
        %v5473 = vpop.xlane.xlu0 %5472
        %v5474 = vsel %vm1299, %v5433, 0.0
        %5475 = vadd.xlane.f32.xlu0 %v5474
        %v5476 = vpop.xlane.xlu0 %5475
        %v5477 = vsel %vm1299, %v5435, 0.0
        %5478 = vadd.xlane.f32.xlu0 %v5477
        %v5479 = vpop.xlane.xlu0 %5478
        %v5480 = vsel %vm1299, %v5437, 0.0
        %5481 = vadd.xlane.f32.xlu0 %v5480
        %v5482 = vpop.xlane.xlu0 %5481
        %v5483 = vsel %vm1299, %v5439, 0.0
        %5484 = vadd.xlane.f32.xlu0 %v5483
        %v5485 = vpop.xlane.xlu0 %5484
        %v5486 = vsel %vm1299, %v5441, 0.0
        %5487 = vadd.xlane.f32.xlu0 %v5486
        %v5488 = vpop.xlane.xlu0 %5487
        %v5489 = vsel %vm1299, %v5443, 0.0
        %5490 = vadd.xlane.f32.xlu0 %v5489
        %v5491 = vpop.xlane.xlu0 %5490
        %v5492 = vrcp.pop %v5446
        %v5493 = vrcp.pop %v5449
        %v5494 = vrcp.pop %v5452
        %v5495 = vrcp.pop %v5455
        %v5496 = vrcp.pop %v5458
        %v5497 = vrcp.pop %v5461
        %v5498 = vrcp.pop %v5464
        %v5499 = vrcp.pop %v5467
        %v5500 = vrcp.pop %v5470
        %v5501 = vrcp.pop %v5473
        %v5502 = vrcp.pop %v5476
        %v5503 = vrcp.pop %v5479
        %v5504 = vrcp.pop %v5482
        %v5505 = vrcp.pop %v5485
        %v5506 = vrcp.pop %v5488
        %v5507 = vrcp.pop %v5491
        %v5508 = vmul.f32 %v5413, %v5492
        %v5509 = vmul.f32 %v5415, %v5493
        %v5510 = vmul.f32 %v5417, %v5494
        %v5511 = vmul.f32 %v5419, %v5495
        %v5512 = vmul.f32 %v5421, %v5496
        %v5513 = vmul.f32 %v5423, %v5497
        %v5514 = vmul.f32 %v5425, %v5498
        %v5515 = vmul.f32 %v5427, %v5499
        %v5516 = vmul.f32 %v5429, %v5500
        %v5517 = vmul.f32 %v5431, %v5501
        %v5518 = vmul.f32 %v5433, %v5502
        %v5519 = vmul.f32 %v5435, %v5503
        %v5520 = vmul.f32 %v5437, %v5504
        %v5521 = vmul.f32 %v5439, %v5505
        %v5522 = vmul.f32 %v5441, %v5506
        %v5523 = vmul.f32 %v5443, %v5507
        %v5524 = vpack.c.bf16 %v5509, %v5508
        %v5525 = vpack.c.bf16 %v5511, %v5510
        %v5526 = vpack.c.bf16 %v5513, %v5512
        %v5527 = vpack.c.bf16 %v5515, %v5514
        %v5528 = vpack.c.bf16 %v5517, %v5516
        %v5529 = vpack.c.bf16 %v5519, %v5518
        %v5530 = vpack.c.bf16 %v5521, %v5520
        %v5531 = vpack.c.bf16 %v5523, %v5522
        %v5532 = vpack.c.bf16 %v5078, %v5075
        %v5533 = vpack.c.bf16 %v5086, %v5083
        %v5534 = vpack.c.bf16 %v5094, %v5091
        %v5535 = vpack.c.bf16 %v5102, %v5099
        %v5536 = vpack.c.bf16 %v5110, %v5107
        %v5537 = vpack.c.bf16 %v5118, %v5115
        %v5538 = vpack.c.bf16 %v5126, %v5123
        %v5539 = vpack.c.bf16 %v5134, %v5131
        %v5541 = vsel %vm1299, %v5524, 0
        %v5544 = vsel %vm1299, %v5525, 0
        %v5547 = vsel %vm1299, %v5526, 0
        %v5550 = vsel %vm1299, %v5527, 0
        %5552 = vmatprep.subr.bf16.mxu0 0
        %5553 = vmatpush1.bf16.msra.mxu0 0
        %5554 = vmatprep.subr.bf16.mxu0 0
        %5555 = vmatpush1.bf16.msra.mxu0 0
        %5556 = vmatprep.subr.bf16.mxu0 0
        %5557 = vmatpush1.bf16.msra.mxu0 0
        %5558 = vmatprep.subr.bf16.mxu0 0
        %5559 = vmatpush1.bf16.msra.mxu0 0
        %5560 = vmatprep.subr.bf16.mxu0 0
        %5561 = vmatpush1.bf16.msra.mxu0 %v5535
        %5562 = vmatprep.subr.bf16.mxu0 0
        %5563 = vmatpush1.bf16.msra.mxu0 %v5534
        %5564 = vmatprep.subr.bf16.mxu0 0
        %5565 = vmatpush1.bf16.msra.mxu0 %v5533
        %5566 = vmatprep.subr.bf16.mxu0 0
        %5567 = vmatpush1.bf16.msra.mxu0 %v5532
        %5568 = vmatprep.subr.bf16.mxu0 0
        %5569 = vmatpush2.bf16.msra.mxu0 0
        %5570 = vmatprep.subr.bf16.mxu0 0
        %5571 = vmatpush2.bf16.msra.mxu0 0
        %5572 = vmatprep.subr.bf16.mxu0 0
        %5573 = vmatpush2.bf16.msra.mxu0 0
        %5574 = vmatprep.subr.bf16.mxu0 0
        %5575 = vmatpush2.bf16.msra.mxu0 0
        %5576 = vmatprep.subr.bf16.mxu0 0
        %5577 = vmatpush2.bf16.msra.mxu0 0
        %5578 = vmatprep.subr.bf16.mxu0 0
        %5579 = vmatpush2.bf16.msra.mxu0 0
        %5580 = vmatprep.subr.bf16.mxu0 0
        %5581 = vmatpush2.bf16.msra.mxu0 0
        %5582 = vmatprep.subr.bf16.mxu0 0
        %5583 = vmatpush2.bf16.msra.mxu0 0
        %5584 = vmatprep.mubr.bf16.mxu0 0
        %5585 = vmatmul.mubr.bf16.gmra.mxu0 %v5541
        %v5586 = vpop.f32.mrf.mxu0
        %v5587 = vadd.f32 0.0, %v5586
        %v5588 = vpop.f32.mrf.mxu0
        %v5589 = vpop.f32.mrf.mxu0
        %v5590 = vadd.f32 0.0, %v5589
        %v5591 = vpop.f32.mrf.mxu0
        %5592 = vmatprep.mubr.bf16.mxu0 0
        %5593 = vmatmul.mubr.bf16.gmra.mxu0 %v5544
        %v5594 = vpop.f32.mrf.mxu0
        %v5595 = vadd.f32 0.0, %v5594
        %v5596 = vpop.f32.mrf.mxu0
        %v5597 = vpop.f32.mrf.mxu0
        %v5598 = vadd.f32 0.0, %v5597
        %v5599 = vpop.f32.mrf.mxu0
        %5600 = vmatprep.mubr.bf16.mxu0 0
        %5601 = vmatmul.mubr.bf16.gmra.mxu0 %v5547
        %v5602 = vpop.f32.mrf.mxu0
        %v5603 = vadd.f32 0.0, %v5602
        %v5604 = vpop.f32.mrf.mxu0
        %v5605 = vpop.f32.mrf.mxu0
        %v5606 = vadd.f32 0.0, %v5605
        %v5607 = vpop.f32.mrf.mxu0
        %5608 = vmatprep.mubr.bf16.mxu0 0
        %5609 = vmatmul.mubr.bf16.gmra.mxu0 %v5550
        %v5610 = vpop.f32.mrf.mxu0
        %v5611 = vadd.f32 0.0, %v5610
        %v5612 = vpop.f32.mrf.mxu0
        %v5613 = vpop.f32.mrf.mxu0
        %v5614 = vadd.f32 0.0, %v5613
        %v5615 = vpop.f32.mrf.mxu0
        %5616 = vdwg.mxu0
        %v5618 = vsel %vm1299, %v5528, 0
        %v5621 = vsel %vm1299, %v5529, 0
        %v5624 = vsel %vm1299, %v5530, 0
        %v5627 = vsel %vm1299, %v5531, 0
        %5629 = vmatprep.subr.bf16.mxu0 0
        %5630 = vmatpush1.bf16.msra.mxu0 0
        %5631 = vmatprep.subr.bf16.mxu0 0
        %5632 = vmatpush1.bf16.msra.mxu0 0
        %5633 = vmatprep.subr.bf16.mxu0 0
        %5634 = vmatpush1.bf16.msra.mxu0 0
        %5635 = vmatprep.subr.bf16.mxu0 0
        %5636 = vmatpush1.bf16.msra.mxu0 0
        %5637 = vmatprep.subr.bf16.mxu0 0
        %5638 = vmatpush1.bf16.msra.mxu0 %v5539
        %5639 = vmatprep.subr.bf16.mxu0 0
        %5640 = vmatpush1.bf16.msra.mxu0 %v5538
        %5641 = vmatprep.subr.bf16.mxu0 0
        %5642 = vmatpush1.bf16.msra.mxu0 %v5537
        %5643 = vmatprep.subr.bf16.mxu0 0
        %5644 = vmatpush1.bf16.msra.mxu0 %v5536
        %5645 = vmatprep.subr.bf16.mxu0 0
        %5646 = vmatpush2.bf16.msra.mxu0 0
        %5647 = vmatprep.subr.bf16.mxu0 0
        %5648 = vmatpush2.bf16.msra.mxu0 0
        %5649 = vmatprep.subr.bf16.mxu0 0
        %5650 = vmatpush2.bf16.msra.mxu0 0
        %5651 = vmatprep.subr.bf16.mxu0 0
        %5652 = vmatpush2.bf16.msra.mxu0 0
        %5653 = vmatprep.subr.bf16.mxu0 0
        %5654 = vmatpush2.bf16.msra.mxu0 0
        %5655 = vmatprep.subr.bf16.mxu0 0
        %5656 = vmatpush2.bf16.msra.mxu0 0
        %5657 = vmatprep.subr.bf16.mxu0 0
        %5658 = vmatpush2.bf16.msra.mxu0 0
        %5659 = vmatprep.subr.bf16.mxu0 0
        %5660 = vmatpush2.bf16.msra.mxu0 0
        %5661 = vmatprep.mubr.bf16.mxu0 0
        %5662 = vmatmul.mubr.bf16.gmra.mxu0 %v5618
        %v5663 = vpop.f32.mrf.mxu0
        %v5664 = vadd.f32 0.0, %v5663
        %v5665 = vpop.f32.mrf.mxu0
        %v5666 = vpop.f32.mrf.mxu0
        %v5667 = vadd.f32 0.0, %v5666
        %v5668 = vpop.f32.mrf.mxu0
        %5669 = vmatprep.mubr.bf16.mxu0 0
        %5670 = vmatmul.mubr.bf16.gmra.mxu0 %v5621
        %v5671 = vpop.f32.mrf.mxu0
        %v5672 = vadd.f32 0.0, %v5671
        %v5673 = vpop.f32.mrf.mxu0
        %v5674 = vpop.f32.mrf.mxu0
        %v5675 = vadd.f32 0.0, %v5674
        %v5676 = vpop.f32.mrf.mxu0
        %5677 = vmatprep.mubr.bf16.mxu0 0
        %5678 = vmatmul.mubr.bf16.gmra.mxu0 %v5624
        %v5679 = vpop.f32.mrf.mxu0
        %v5680 = vadd.f32 0.0, %v5679
        %v5681 = vpop.f32.mrf.mxu0
        %v5682 = vpop.f32.mrf.mxu0
        %v5683 = vadd.f32 0.0, %v5682
        %v5684 = vpop.f32.mrf.mxu0
        %5685 = vmatprep.mubr.bf16.mxu0 0
        %5686 = vmatmul.mubr.bf16.gmra.mxu0 %v5627
        %v5687 = vpop.f32.mrf.mxu0
        %v5688 = vadd.f32 0.0, %v5687
        %v5689 = vpop.f32.mrf.mxu0
        %v5690 = vpop.f32.mrf.mxu0
        %v5691 = vadd.f32 0.0, %v5690
        %v5692 = vpop.f32.mrf.mxu0
        %5693 = vdwg.mxu0
        %v5694 = vpack.c.bf16 %v5590, %v5587
        %v5695 = vpack.c.bf16 %v5598, %v5595
        %v5696 = vpack.c.bf16 %v5606, %v5603
        %v5697 = vpack.c.bf16 %v5614, %v5611
        %v5698 = vpack.c.bf16 %v5667, %v5664
        %v5699 = vpack.c.bf16 %v5675, %v5672
        %v5700 = vpack.c.bf16 %v5683, %v5680
        %v5701 = vpack.c.bf16 %v5691, %v5688
        %5706 = vrot.lane.b32.xlu0 %v5154, 64
        %v5707 = vpop.permute.xlu0 %5706
        %5708 = vrot.lane.b32.xlu0 %v5155, 64
        %v5709 = vpop.permute.xlu0 %5708
        %5710 = vrot.lane.b32.xlu0 %v5156, 64
        %v5711 = vpop.permute.xlu0 %5710
        %5712 = vrot.lane.b32.xlu0 %v5157, 64
        %v5713 = vpop.permute.xlu0 %5712
        %5718 = vrot.lane.b32.xlu0 %v5162, 64
        %v5719 = vpop.permute.xlu0 %5718
        %5720 = vrot.lane.b32.xlu0 %v5163, 64
        %v5721 = vpop.permute.xlu0 %5720
        %5722 = vrot.lane.b32.xlu0 %v5164, 64
        %v5723 = vpop.permute.xlu0 %5722
        %5724 = vrot.lane.b32.xlu0 %v5165, 64
        %v5725 = vpop.permute.xlu0 %5724
        %v5727 = vsel %vm1299, %v5707, 0
        %v5730 = vsel %vm1299, %v5709, 0
        %v5733 = vsel %vm1299, %v5711, 0
        %v5736 = vsel %vm1299, %v5713, 0
        %v5739 = vsel %vm1299, %v5719, 0
        %v5742 = vsel %vm1299, %v5721, 0
        %v5745 = vsel %vm1299, %v5723, 0
        %v5748 = vsel %vm1299, %v5725, 0
        %5750 = vmatprep.subr.bf16.mxu0 0
        %5751 = vmatpush1.bf16.xpose.msra.mxu0 0
        %5752 = vmatprep.subr.bf16.mxu0 0
        %5753 = vmatpush1.bf16.xpose.msra.mxu0 0
        %5754 = vmatprep.subr.bf16.mxu0 0
        %5755 = vmatpush1.bf16.xpose.msra.mxu0 0
        %5756 = vmatprep.subr.bf16.mxu0 0
        %5757 = vmatpush1.bf16.xpose.msra.mxu0 0
        %5758 = vmatprep.subr.bf16.mxu0 0
        %5759 = vmatpush1.bf16.xpose.msra.mxu0 %v5748
        %5760 = vmatprep.subr.bf16.mxu0 0
        %5761 = vmatpush1.bf16.xpose.msra.mxu0 %v5745
        %5762 = vmatprep.subr.bf16.mxu0 0
        %5763 = vmatpush1.bf16.xpose.msra.mxu0 %v5742
        %5764 = vmatprep.subr.bf16.mxu0 0
        %5765 = vmatpush1.bf16.xpose.msra.mxu0 %v5739
        %5766 = vmatprep.subr.bf16.mxu0 0
        %5767 = vmatpush2.bf16.xpose.msra.mxu0 0
        %5768 = vmatprep.subr.bf16.mxu0 0
        %5769 = vmatpush2.bf16.xpose.msra.mxu0 0
        %5770 = vmatprep.subr.bf16.mxu0 0
        %5771 = vmatpush2.bf16.xpose.msra.mxu0 0
        %5772 = vmatprep.subr.bf16.mxu0 0
        %5773 = vmatpush2.bf16.xpose.msra.mxu0 0
        %5774 = vmatprep.subr.bf16.mxu0 0
        %5775 = vmatpush2.bf16.xpose.msra.mxu0 0
        %5776 = vmatprep.subr.bf16.mxu0 0
        %5777 = vmatpush2.bf16.xpose.msra.mxu0 0
        %5778 = vmatprep.subr.bf16.mxu0 0
        %5779 = vmatpush2.bf16.xpose.msra.mxu0 0
        %5780 = vmatprep.subr.bf16.mxu0 0
        %5781 = vmatpush2.bf16.xpose.msra.mxu0 0
        %5782 = vmatprep.mubr.bf16.mxu0 0
        %5783 = vmatmul.mubr.bf16.gmra.mxu0 %v5727
        %v5784 = vpop.f32.mrf.mxu0
        %v5785 = vadd.f32 0.0, %v5784
        %v5786 = vpop.f32.mrf.mxu0
        %v5787 = vpop.f32.mrf.mxu0
        %v5788 = vadd.f32 0.0, %v5787
        %v5789 = vpop.f32.mrf.mxu0
        %5790 = vmatprep.mubr.bf16.mxu0 0
        %5791 = vmatmul.mubr.bf16.gmra.mxu0 %v5730
        %v5792 = vpop.f32.mrf.mxu0
        %v5793 = vadd.f32 0.0, %v5792
        %v5794 = vpop.f32.mrf.mxu0
        %v5795 = vpop.f32.mrf.mxu0
        %v5796 = vadd.f32 0.0, %v5795
        %v5797 = vpop.f32.mrf.mxu0
        %5798 = vmatprep.mubr.bf16.mxu0 0
        %5799 = vmatmul.mubr.bf16.gmra.mxu0 %v5733
        %v5800 = vpop.f32.mrf.mxu0
        %v5801 = vadd.f32 0.0, %v5800
        %v5802 = vpop.f32.mrf.mxu0
        %v5803 = vpop.f32.mrf.mxu0
        %v5804 = vadd.f32 0.0, %v5803
        %v5805 = vpop.f32.mrf.mxu0
        %5806 = vmatprep.mubr.bf16.mxu0 0
        %5807 = vmatmul.mubr.bf16.gmra.mxu0 %v5736
        %v5808 = vpop.f32.mrf.mxu0
        %v5809 = vadd.f32 0.0, %v5808
        %v5810 = vpop.f32.mrf.mxu0
        %v5811 = vpop.f32.mrf.mxu0
        %v5812 = vadd.f32 0.0, %v5811
        %v5813 = vpop.f32.mrf.mxu0
        %5814 = vdwg.mxu0
        %5819 = vrot.lane.b32.xlu0 %v5158, 64
        %v5820 = vpop.permute.xlu0 %5819
        %5821 = vrot.lane.b32.xlu0 %v5159, 64
        %v5822 = vpop.permute.xlu0 %5821
        %5823 = vrot.lane.b32.xlu0 %v5160, 64
        %v5824 = vpop.permute.xlu0 %5823
        %5825 = vrot.lane.b32.xlu0 %v5161, 64
        %v5826 = vpop.permute.xlu0 %5825
        %5831 = vrot.lane.b32.xlu0 %v5166, 64
        %v5832 = vpop.permute.xlu0 %5831
        %5833 = vrot.lane.b32.xlu0 %v5167, 64
        %v5834 = vpop.permute.xlu0 %5833
        %5835 = vrot.lane.b32.xlu0 %v5168, 64
        %v5836 = vpop.permute.xlu0 %5835
        %5837 = vrot.lane.b32.xlu0 %v5169, 64
        %v5838 = vpop.permute.xlu0 %5837
        %v5840 = vsel %vm1299, %v5820, 0
        %v5843 = vsel %vm1299, %v5822, 0
        %v5846 = vsel %vm1299, %v5824, 0
        %v5849 = vsel %vm1299, %v5826, 0
        %v5852 = vsel %vm1299, %v5832, 0
        %v5855 = vsel %vm1299, %v5834, 0
        %v5858 = vsel %vm1299, %v5836, 0
        %v5861 = vsel %vm1299, %v5838, 0
        %5863 = vmatprep.subr.bf16.mxu0 0
        %5864 = vmatpush1.bf16.xpose.msra.mxu0 0
        %5865 = vmatprep.subr.bf16.mxu0 0
        %5866 = vmatpush1.bf16.xpose.msra.mxu0 0
        %5867 = vmatprep.subr.bf16.mxu0 0
        %5868 = vmatpush1.bf16.xpose.msra.mxu0 0
        %5869 = vmatprep.subr.bf16.mxu0 0
        %5870 = vmatpush1.bf16.xpose.msra.mxu0 0
        %5871 = vmatprep.subr.bf16.mxu0 0
        %5872 = vmatpush1.bf16.xpose.msra.mxu0 %v5861
        %5873 = vmatprep.subr.bf16.mxu0 0
        %5874 = vmatpush1.bf16.xpose.msra.mxu0 %v5858
        %5875 = vmatprep.subr.bf16.mxu0 0
        %5876 = vmatpush1.bf16.xpose.msra.mxu0 %v5855
        %5877 = vmatprep.subr.bf16.mxu0 0
        %5878 = vmatpush1.bf16.xpose.msra.mxu0 %v5852
        %5879 = vmatprep.subr.bf16.mxu0 0
        %5880 = vmatpush2.bf16.xpose.msra.mxu0 0
        %5881 = vmatprep.subr.bf16.mxu0 0
        %5882 = vmatpush2.bf16.xpose.msra.mxu0 0
        %5883 = vmatprep.subr.bf16.mxu0 0
        %5884 = vmatpush2.bf16.xpose.msra.mxu0 0
        %5885 = vmatprep.subr.bf16.mxu0 0
        %5886 = vmatpush2.bf16.xpose.msra.mxu0 0
        %5887 = vmatprep.subr.bf16.mxu0 0
        %5888 = vmatpush2.bf16.xpose.msra.mxu0 0
        %5889 = vmatprep.subr.bf16.mxu0 0
        %5890 = vmatpush2.bf16.xpose.msra.mxu0 0
        %5891 = vmatprep.subr.bf16.mxu0 0
        %5892 = vmatpush2.bf16.xpose.msra.mxu0 0
        %5893 = vmatprep.subr.bf16.mxu0 0
        %5894 = vmatpush2.bf16.xpose.msra.mxu0 0
        %5895 = vmatprep.mubr.bf16.mxu0 0
        %5896 = vmatmul.mubr.bf16.gmra.mxu0 %v5840
        %v5897 = vpop.f32.mrf.mxu0
        %v5898 = vadd.f32 0.0, %v5897
        %v5899 = vpop.f32.mrf.mxu0
        %v5900 = vpop.f32.mrf.mxu0
        %v5901 = vadd.f32 0.0, %v5900
        %v5902 = vpop.f32.mrf.mxu0
        %5903 = vmatprep.mubr.bf16.mxu0 0
        %5904 = vmatmul.mubr.bf16.gmra.mxu0 %v5843
        %v5905 = vpop.f32.mrf.mxu0
        %v5906 = vadd.f32 0.0, %v5905
        %v5907 = vpop.f32.mrf.mxu0
        %v5908 = vpop.f32.mrf.mxu0
        %v5909 = vadd.f32 0.0, %v5908
        %v5910 = vpop.f32.mrf.mxu0
        %5911 = vmatprep.mubr.bf16.mxu0 0
        %5912 = vmatmul.mubr.bf16.gmra.mxu0 %v5846
        %v5913 = vpop.f32.mrf.mxu0
        %v5914 = vadd.f32 0.0, %v5913
        %v5915 = vpop.f32.mrf.mxu0
        %v5916 = vpop.f32.mrf.mxu0
        %v5917 = vadd.f32 0.0, %v5916
        %v5918 = vpop.f32.mrf.mxu0
        %5919 = vmatprep.mubr.bf16.mxu0 0
        %5920 = vmatmul.mubr.bf16.gmra.mxu0 %v5849
        %v5921 = vpop.f32.mrf.mxu0
        %v5922 = vadd.f32 0.0, %v5921
        %v5923 = vpop.f32.mrf.mxu0
        %v5924 = vpop.f32.mrf.mxu0
        %v5925 = vadd.f32 0.0, %v5924
        %v5926 = vpop.f32.mrf.mxu0
        %5927 = vdwg.mxu0
        %v5928 = vsel %vm1299, %v5785, -inf
        %5929 = vmax.xlane.f32.xlu0 %v5928
        %v5930 = vpop.xlane.xlu0 %5929
        %v5931 = vsel %vm1299, %v5788, -inf
        %5932 = vmax.xlane.f32.xlu0 %v5931
        %v5933 = vpop.xlane.xlu0 %5932
        %v5934 = vsel %vm1299, %v5793, -inf
        %5935 = vmax.xlane.f32.xlu0 %v5934
        %v5936 = vpop.xlane.xlu0 %5935
        %v5937 = vsel %vm1299, %v5796, -inf
        %5938 = vmax.xlane.f32.xlu0 %v5937
        %v5939 = vpop.xlane.xlu0 %5938
        %v5940 = vsel %vm1299, %v5801, -inf
        %5941 = vmax.xlane.f32.xlu0 %v5940
        %v5942 = vpop.xlane.xlu0 %5941
        %v5943 = vsel %vm1299, %v5804, -inf
        %5944 = vmax.xlane.f32.xlu0 %v5943
        %v5945 = vpop.xlane.xlu0 %5944
        %v5946 = vsel %vm1299, %v5809, -inf
        %5947 = vmax.xlane.f32.xlu0 %v5946
        %v5948 = vpop.xlane.xlu0 %5947
        %v5949 = vsel %vm1299, %v5812, -inf
        %5950 = vmax.xlane.f32.xlu0 %v5949
        %v5951 = vpop.xlane.xlu0 %5950
        %v5952 = vsel %vm1299, %v5898, -inf
        %5953 = vmax.xlane.f32.xlu0 %v5952
        %v5954 = vpop.xlane.xlu0 %5953
        %v5955 = vsel %vm1299, %v5901, -inf
        %5956 = vmax.xlane.f32.xlu0 %v5955
        %v5957 = vpop.xlane.xlu0 %5956
        %v5958 = vsel %vm1299, %v5906, -inf
        %5959 = vmax.xlane.f32.xlu0 %v5958
        %v5960 = vpop.xlane.xlu0 %5959
        %v5961 = vsel %vm1299, %v5909, -inf
        %5962 = vmax.xlane.f32.xlu0 %v5961
        %v5963 = vpop.xlane.xlu0 %5962
        %v5964 = vsel %vm1299, %v5914, -inf
        %5965 = vmax.xlane.f32.xlu0 %v5964
        %v5966 = vpop.xlane.xlu0 %5965
        %v5967 = vsel %vm1299, %v5917, -inf
        %5968 = vmax.xlane.f32.xlu0 %v5967
        %v5969 = vpop.xlane.xlu0 %5968
        %v5970 = vsel %vm1299, %v5922, -inf
        %5971 = vmax.xlane.f32.xlu0 %v5970
        %v5972 = vpop.xlane.xlu0 %5971
        %v5973 = vsel %vm1299, %v5925, -inf
        %5974 = vmax.xlane.f32.xlu0 %v5973
        %v5975 = vpop.xlane.xlu0 %5974
        %v5976 = vsub.f32 %v5785, %v5930
        %v5977 = vsub.f32 %v5788, %v5933
        %v5978 = vsub.f32 %v5793, %v5936
        %v5979 = vsub.f32 %v5796, %v5939
        %v5980 = vsub.f32 %v5801, %v5942
        %v5981 = vsub.f32 %v5804, %v5945
        %v5982 = vsub.f32 %v5809, %v5948
        %v5983 = vsub.f32 %v5812, %v5951
        %v5984 = vsub.f32 %v5898, %v5954
        %v5985 = vsub.f32 %v5901, %v5957
        %v5986 = vsub.f32 %v5906, %v5960
        %v5987 = vsub.f32 %v5909, %v5963
        %v5988 = vsub.f32 %v5914, %v5966
        %v5989 = vsub.f32 %v5917, %v5969
        %v5990 = vsub.f32 %v5922, %v5972
        %v5991 = vsub.f32 %v5925, %v5975
        %v5992 = vmul.f32 %v5976, 1.442695
        %v5993 = vpow.pop %v5992
        %v5994 = vmul.f32 %v5977, 1.442695
        %v5995 = vpow.pop %v5994
        %v5996 = vmul.f32 %v5978, 1.442695
        %v5997 = vpow.pop %v5996
        %v5998 = vmul.f32 %v5979, 1.442695
        %v5999 = vpow.pop %v5998
        %v6000 = vmul.f32 %v5980, 1.442695
        %v6001 = vpow.pop %v6000
        %v6002 = vmul.f32 %v5981, 1.442695
        %v6003 = vpow.pop %v6002
        %v6004 = vmul.f32 %v5982, 1.442695
        %v6005 = vpow.pop %v6004
        %v6006 = vmul.f32 %v5983, 1.442695
        %v6007 = vpow.pop %v6006
        %v6008 = vmul.f32 %v5984, 1.442695
        %v6009 = vpow.pop %v6008
        %v6010 = vmul.f32 %v5985, 1.442695
        %v6011 = vpow.pop %v6010
        %v6012 = vmul.f32 %v5986, 1.442695
        %v6013 = vpow.pop %v6012
        %v6014 = vmul.f32 %v5987, 1.442695
        %v6015 = vpow.pop %v6014
        %v6016 = vmul.f32 %v5988, 1.442695
        %v6017 = vpow.pop %v6016
        %v6018 = vmul.f32 %v5989, 1.442695
        %v6019 = vpow.pop %v6018
        %v6020 = vmul.f32 %v5990, 1.442695
        %v6021 = vpow.pop %v6020
        %v6022 = vmul.f32 %v5991, 1.442695
        %v6023 = vpow.pop %v6022
        %v6024 = vsel %vm1299, %v5993, 0.0
        %6025 = vadd.xlane.f32.xlu0 %v6024
        %v6026 = vpop.xlane.xlu0 %6025
        %v6027 = vsel %vm1299, %v5995, 0.0
        %6028 = vadd.xlane.f32.xlu0 %v6027
        %v6029 = vpop.xlane.xlu0 %6028
        %v6030 = vsel %vm1299, %v5997, 0.0
        %6031 = vadd.xlane.f32.xlu0 %v6030
        %v6032 = vpop.xlane.xlu0 %6031
        %v6033 = vsel %vm1299, %v5999, 0.0
        %6034 = vadd.xlane.f32.xlu0 %v6033
        %v6035 = vpop.xlane.xlu0 %6034
        %v6036 = vsel %vm1299, %v6001, 0.0
        %6037 = vadd.xlane.f32.xlu0 %v6036
        %v6038 = vpop.xlane.xlu0 %6037
        %v6039 = vsel %vm1299, %v6003, 0.0
        %6040 = vadd.xlane.f32.xlu0 %v6039
        %v6041 = vpop.xlane.xlu0 %6040
        %v6042 = vsel %vm1299, %v6005, 0.0
        %6043 = vadd.xlane.f32.xlu0 %v6042
        %v6044 = vpop.xlane.xlu0 %6043
        %v6045 = vsel %vm1299, %v6007, 0.0
        %6046 = vadd.xlane.f32.xlu0 %v6045
        %v6047 = vpop.xlane.xlu0 %6046
        %v6048 = vsel %vm1299, %v6009, 0.0
        %6049 = vadd.xlane.f32.xlu0 %v6048
        %v6050 = vpop.xlane.xlu0 %6049
        %v6051 = vsel %vm1299, %v6011, 0.0
        %6052 = vadd.xlane.f32.xlu0 %v6051
        %v6053 = vpop.xlane.xlu0 %6052
        %v6054 = vsel %vm1299, %v6013, 0.0
        %6055 = vadd.xlane.f32.xlu0 %v6054
        %v6056 = vpop.xlane.xlu0 %6055
        %v6057 = vsel %vm1299, %v6015, 0.0
        %6058 = vadd.xlane.f32.xlu0 %v6057
        %v6059 = vpop.xlane.xlu0 %6058
        %v6060 = vsel %vm1299, %v6017, 0.0
        %6061 = vadd.xlane.f32.xlu0 %v6060
        %v6062 = vpop.xlane.xlu0 %6061
        %v6063 = vsel %vm1299, %v6019, 0.0
        %6064 = vadd.xlane.f32.xlu0 %v6063
        %v6065 = vpop.xlane.xlu0 %6064
        %v6066 = vsel %vm1299, %v6021, 0.0
        %6067 = vadd.xlane.f32.xlu0 %v6066
        %v6068 = vpop.xlane.xlu0 %6067
        %v6069 = vsel %vm1299, %v6023, 0.0
        %6070 = vadd.xlane.f32.xlu0 %v6069
        %v6071 = vpop.xlane.xlu0 %6070
        %v6072 = vrcp.pop %v6026
        %v6073 = vrcp.pop %v6029
        %v6074 = vrcp.pop %v6032
        %v6075 = vrcp.pop %v6035
        %v6076 = vrcp.pop %v6038
        %v6077 = vrcp.pop %v6041
        %v6078 = vrcp.pop %v6044
        %v6079 = vrcp.pop %v6047
        %v6080 = vrcp.pop %v6050
        %v6081 = vrcp.pop %v6053
        %v6082 = vrcp.pop %v6056
        %v6083 = vrcp.pop %v6059
        %v6084 = vrcp.pop %v6062
        %v6085 = vrcp.pop %v6065
        %v6086 = vrcp.pop %v6068
        %v6087 = vrcp.pop %v6071
        %v6088 = vmul.f32 %v5993, %v6072
        %v6089 = vmul.f32 %v5995, %v6073
        %v6090 = vmul.f32 %v5997, %v6074
        %v6091 = vmul.f32 %v5999, %v6075
        %v6092 = vmul.f32 %v6001, %v6076
        %v6093 = vmul.f32 %v6003, %v6077
        %v6094 = vmul.f32 %v6005, %v6078
        %v6095 = vmul.f32 %v6007, %v6079
        %v6096 = vmul.f32 %v6009, %v6080
        %v6097 = vmul.f32 %v6011, %v6081
        %v6098 = vmul.f32 %v6013, %v6082
        %v6099 = vmul.f32 %v6015, %v6083
        %v6100 = vmul.f32 %v6017, %v6084
        %v6101 = vmul.f32 %v6019, %v6085
        %v6102 = vmul.f32 %v6021, %v6086
        %v6103 = vmul.f32 %v6023, %v6087
        %v6104 = vpack.c.bf16 %v6089, %v6088
        %v6105 = vpack.c.bf16 %v6091, %v6090
        %v6106 = vpack.c.bf16 %v6093, %v6092
        %v6107 = vpack.c.bf16 %v6095, %v6094
        %v6108 = vpack.c.bf16 %v6097, %v6096
        %v6109 = vpack.c.bf16 %v6099, %v6098
        %v6110 = vpack.c.bf16 %v6101, %v6100
        %v6111 = vpack.c.bf16 %v6103, %v6102
        %6116 = vrot.lane.b32.xlu0 %v5532, 64
        %v6117 = vpop.permute.xlu0 %6116
        %6118 = vrot.lane.b32.xlu0 %v5533, 64
        %v6119 = vpop.permute.xlu0 %6118
        %6120 = vrot.lane.b32.xlu0 %v5534, 64
        %v6121 = vpop.permute.xlu0 %6120
        %6122 = vrot.lane.b32.xlu0 %v5535, 64
        %v6123 = vpop.permute.xlu0 %6122
        %v6129 = vsel %vm1299, %v6104, 0
        %v6132 = vsel %vm1299, %v6105, 0
        %v6135 = vsel %vm1299, %v6106, 0
        %v6138 = vsel %vm1299, %v6107, 0
        %6140 = vmatprep.subr.bf16.mxu0 0
        %6141 = vmatpush1.bf16.msra.mxu0 0
        %6142 = vmatprep.subr.bf16.mxu0 0
        %6143 = vmatpush1.bf16.msra.mxu0 0
        %6144 = vmatprep.subr.bf16.mxu0 0
        %6145 = vmatpush1.bf16.msra.mxu0 0
        %6146 = vmatprep.subr.bf16.mxu0 0
        %6147 = vmatpush1.bf16.msra.mxu0 0
        %6148 = vmatprep.subr.bf16.mxu0 0
        %6149 = vmatpush1.bf16.msra.mxu0 %v6123
        %6150 = vmatprep.subr.bf16.mxu0 0
        %6151 = vmatpush1.bf16.msra.mxu0 %v6121
        %6152 = vmatprep.subr.bf16.mxu0 0
        %6153 = vmatpush1.bf16.msra.mxu0 %v6119
        %6154 = vmatprep.subr.bf16.mxu0 0
        %6155 = vmatpush1.bf16.msra.mxu0 %v6117
        %6156 = vmatprep.subr.bf16.mxu0 0
        %6157 = vmatpush2.bf16.msra.mxu0 0
        %6158 = vmatprep.subr.bf16.mxu0 0
        %6159 = vmatpush2.bf16.msra.mxu0 0
        %6160 = vmatprep.subr.bf16.mxu0 0
        %6161 = vmatpush2.bf16.msra.mxu0 0
        %6162 = vmatprep.subr.bf16.mxu0 0
        %6163 = vmatpush2.bf16.msra.mxu0 0
        %6164 = vmatprep.subr.bf16.mxu0 0
        %6165 = vmatpush2.bf16.msra.mxu0 0
        %6166 = vmatprep.subr.bf16.mxu0 0
        %6167 = vmatpush2.bf16.msra.mxu0 0
        %6168 = vmatprep.subr.bf16.mxu0 0
        %6169 = vmatpush2.bf16.msra.mxu0 0
        %6170 = vmatprep.subr.bf16.mxu0 0
        %6171 = vmatpush2.bf16.msra.mxu0 0
        %6172 = vmatprep.mubr.bf16.mxu0 0
        %6173 = vmatmul.mubr.bf16.gmra.mxu0 %v6129
        %v6174 = vpop.f32.mrf.mxu0
        %v6175 = vadd.f32 0.0, %v6174
        %v6176 = vpop.f32.mrf.mxu0
        %v6177 = vpop.f32.mrf.mxu0
        %v6178 = vadd.f32 0.0, %v6177
        %v6179 = vpop.f32.mrf.mxu0
        %6180 = vmatprep.mubr.bf16.mxu0 0
        %6181 = vmatmul.mubr.bf16.gmra.mxu0 %v6132
        %v6182 = vpop.f32.mrf.mxu0
        %v6183 = vadd.f32 0.0, %v6182
        %v6184 = vpop.f32.mrf.mxu0
        %v6185 = vpop.f32.mrf.mxu0
        %v6186 = vadd.f32 0.0, %v6185
        %v6187 = vpop.f32.mrf.mxu0
        %6188 = vmatprep.mubr.bf16.mxu0 0
        %6189 = vmatmul.mubr.bf16.gmra.mxu0 %v6135
        %v6190 = vpop.f32.mrf.mxu0
        %v6191 = vadd.f32 0.0, %v6190
        %v6192 = vpop.f32.mrf.mxu0
        %v6193 = vpop.f32.mrf.mxu0
        %v6194 = vadd.f32 0.0, %v6193
        %v6195 = vpop.f32.mrf.mxu0
        %6196 = vmatprep.mubr.bf16.mxu0 0
        %6197 = vmatmul.mubr.bf16.gmra.mxu0 %v6138
        %v6198 = vpop.f32.mrf.mxu0
        %v6199 = vadd.f32 0.0, %v6198
        %v6200 = vpop.f32.mrf.mxu0
        %v6201 = vpop.f32.mrf.mxu0
        %v6202 = vadd.f32 0.0, %v6201
        %v6203 = vpop.f32.mrf.mxu0
        %6204 = vdwg.mxu0
        %6209 = vrot.lane.b32.xlu0 %v5536, 64
        %v6210 = vpop.permute.xlu0 %6209
        %6211 = vrot.lane.b32.xlu0 %v5537, 64
        %v6212 = vpop.permute.xlu0 %6211
        %6213 = vrot.lane.b32.xlu0 %v5538, 64
        %v6214 = vpop.permute.xlu0 %6213
        %6215 = vrot.lane.b32.xlu0 %v5539, 64
        %v6216 = vpop.permute.xlu0 %6215
        %v6222 = vsel %vm1299, %v6108, 0
        %v6225 = vsel %vm1299, %v6109, 0
        %v6228 = vsel %vm1299, %v6110, 0
        %v6231 = vsel %vm1299, %v6111, 0
        %6233 = vmatprep.subr.bf16.mxu0 0
        %6234 = vmatpush1.bf16.msra.mxu0 0
        %6235 = vmatprep.subr.bf16.mxu0 0
        %6236 = vmatpush1.bf16.msra.mxu0 0
        %6237 = vmatprep.subr.bf16.mxu0 0
        %6238 = vmatpush1.bf16.msra.mxu0 0
        %6239 = vmatprep.subr.bf16.mxu0 0
        %6240 = vmatpush1.bf16.msra.mxu0 0
        %6241 = vmatprep.subr.bf16.mxu0 0
        %6242 = vmatpush1.bf16.msra.mxu0 %v6216
        %6243 = vmatprep.subr.bf16.mxu0 0
        %6244 = vmatpush1.bf16.msra.mxu0 %v6214
        %6245 = vmatprep.subr.bf16.mxu0 0
        %6246 = vmatpush1.bf16.msra.mxu0 %v6212
        %6247 = vmatprep.subr.bf16.mxu0 0
        %6248 = vmatpush1.bf16.msra.mxu0 %v6210
        %6249 = vmatprep.subr.bf16.mxu0 0
        %6250 = vmatpush2.bf16.msra.mxu0 0
        %6251 = vmatprep.subr.bf16.mxu0 0
        %6252 = vmatpush2.bf16.msra.mxu0 0
        %6253 = vmatprep.subr.bf16.mxu0 0
        %6254 = vmatpush2.bf16.msra.mxu0 0
        %6255 = vmatprep.subr.bf16.mxu0 0
        %6256 = vmatpush2.bf16.msra.mxu0 0
        %6257 = vmatprep.subr.bf16.mxu0 0
        %6258 = vmatpush2.bf16.msra.mxu0 0
        %6259 = vmatprep.subr.bf16.mxu0 0
        %6260 = vmatpush2.bf16.msra.mxu0 0
        %6261 = vmatprep.subr.bf16.mxu0 0
        %6262 = vmatpush2.bf16.msra.mxu0 0
        %6263 = vmatprep.subr.bf16.mxu0 0
        %6264 = vmatpush2.bf16.msra.mxu0 0
        %6265 = vmatprep.mubr.bf16.mxu0 0
        %6266 = vmatmul.mubr.bf16.gmra.mxu0 %v6222
        %v6267 = vpop.f32.mrf.mxu0
        %v6268 = vadd.f32 0.0, %v6267
        %v6269 = vpop.f32.mrf.mxu0
        %v6270 = vpop.f32.mrf.mxu0
        %v6271 = vadd.f32 0.0, %v6270
        %v6272 = vpop.f32.mrf.mxu0
        %6273 = vmatprep.mubr.bf16.mxu0 0
        %6274 = vmatmul.mubr.bf16.gmra.mxu0 %v6225
        %v6275 = vpop.f32.mrf.mxu0
        %v6276 = vadd.f32 0.0, %v6275
        %v6277 = vpop.f32.mrf.mxu0
        %v6278 = vpop.f32.mrf.mxu0
        %v6279 = vadd.f32 0.0, %v6278
        %v6280 = vpop.f32.mrf.mxu0
        %6281 = vmatprep.mubr.bf16.mxu0 0
        %6282 = vmatmul.mubr.bf16.gmra.mxu0 %v6228
        %v6283 = vpop.f32.mrf.mxu0
        %v6284 = vadd.f32 0.0, %v6283
        %v6285 = vpop.f32.mrf.mxu0
        %v6286 = vpop.f32.mrf.mxu0
        %v6287 = vadd.f32 0.0, %v6286
        %v6288 = vpop.f32.mrf.mxu0
        %6289 = vmatprep.mubr.bf16.mxu0 0
        %6290 = vmatmul.mubr.bf16.gmra.mxu0 %v6231
        %v6291 = vpop.f32.mrf.mxu0
        %v6292 = vadd.f32 0.0, %v6291
        %v6293 = vpop.f32.mrf.mxu0
        %v6294 = vpop.f32.mrf.mxu0
        %v6295 = vadd.f32 0.0, %v6294
        %v6296 = vpop.f32.mrf.mxu0
        %6297 = vdwg.mxu0
        %v6298 = vpack.c.bf16 %v6178, %v6175
        %v6299 = vpack.c.bf16 %v6186, %v6183
        %v6300 = vpack.c.bf16 %v6194, %v6191
        %v6301 = vpack.c.bf16 %v6202, %v6199
        %v6302 = vpack.c.bf16 %v6271, %v6268
        %v6303 = vpack.c.bf16 %v6279, %v6276
        %v6304 = vpack.c.bf16 %v6287, %v6284
        %v6305 = vpack.c.bf16 %v6295, %v6292
        %v6314 = vunpack.c.l.b16 %v5146
        %v6315 = vunpack.c.l.b16 %v5147
        %v6316 = vunpack.c.l.b16 %v5148
        %v6317 = vunpack.c.l.b16 %v5149
        %v6318 = vunpack.c.l.b16 %v5150
        %v6319 = vunpack.c.l.b16 %v5151
        %v6320 = vunpack.c.l.b16 %v5152
        %v6321 = vunpack.c.l.b16 %v5153
        %v6322 = vpack.c.b16 %v6315, %v6314
        %v6323 = vpack.c.b16 %v6317, %v6316
        %v6324 = vpack.c.b16 %v6319, %v6318
        %v6325 = vpack.c.b16 %v6321, %v6320
        %v6331 = vsel %vm1299, %v6298, 0
        %v6334 = vsel %vm1299, %v6299, 0
        %v6337 = vsel %vm1299, %v6300, 0
        %v6340 = vsel %vm1299, %v6301, 0
        %v6343 = vsel %vm1299, %v6302, 0
        %v6346 = vsel %vm1299, %v6303, 0
        %v6349 = vsel %vm1299, %v6304, 0
        %v6352 = vsel %vm1299, %v6305, 0
        %6354 = vmatprep.subr.bf16.mxu0 0
        %6355 = vmatpush1.bf16.msra.mxu0 0
        %6356 = vmatprep.subr.bf16.mxu0 0
        %6357 = vmatpush1.bf16.msra.mxu0 0
        %6358 = vmatprep.subr.bf16.mxu0 0
        %6359 = vmatpush1.bf16.msra.mxu0 0
        %6360 = vmatprep.subr.bf16.mxu0 0
        %6361 = vmatpush1.bf16.msra.mxu0 0
        %6362 = vmatprep.subr.bf16.mxu0 0
        %6363 = vmatpush1.bf16.msra.mxu0 %v6325
        %6364 = vmatprep.subr.bf16.mxu0 0
        %6365 = vmatpush1.bf16.msra.mxu0 %v6324
        %6366 = vmatprep.subr.bf16.mxu0 0
        %6367 = vmatpush1.bf16.msra.mxu0 %v6323
        %6368 = vmatprep.subr.bf16.mxu0 0
        %6369 = vmatpush1.bf16.msra.mxu0 %v6322
        %6370 = vmatprep.subr.bf16.mxu0 0
        %6371 = vmatpush2.bf16.msra.mxu0 0
        %6372 = vmatprep.subr.bf16.mxu0 0
        %6373 = vmatpush2.bf16.msra.mxu0 0
        %6374 = vmatprep.subr.bf16.mxu0 0
        %6375 = vmatpush2.bf16.msra.mxu0 0
        %6376 = vmatprep.subr.bf16.mxu0 0
        %6377 = vmatpush2.bf16.msra.mxu0 0
        %6378 = vmatprep.subr.bf16.mxu0 0
        %6379 = vmatpush2.bf16.msra.mxu0 0
        %6380 = vmatprep.subr.bf16.mxu0 0
        %6381 = vmatpush2.bf16.msra.mxu0 0
        %6382 = vmatprep.subr.bf16.mxu0 0
        %6383 = vmatpush2.bf16.msra.mxu0 0
        %6384 = vmatprep.subr.bf16.mxu0 0
        %6385 = vmatpush2.bf16.msra.mxu0 0
        %6386 = vmatprep.mubr.bf16.mxu0 0
        %6387 = vmatmul.mubr.bf16.gmra.mxu0 %v6331
        %v6388 = vpop.f32.mrf.mxu0
        %v6389 = vadd.f32 0.0, %v6388
        %v6390 = vpop.f32.mrf.mxu0
        %v6391 = vpop.f32.mrf.mxu0
        %v6392 = vadd.f32 0.0, %v6391
        %v6393 = vpop.f32.mrf.mxu0
        %6394 = vmatprep.mubr.bf16.mxu0 0
        %6395 = vmatmul.mubr.bf16.gmra.mxu0 %v6334
        %v6396 = vpop.f32.mrf.mxu0
        %v6397 = vadd.f32 0.0, %v6396
        %v6398 = vpop.f32.mrf.mxu0
        %v6399 = vpop.f32.mrf.mxu0
        %v6400 = vadd.f32 0.0, %v6399
        %v6401 = vpop.f32.mrf.mxu0
        %6402 = vmatprep.mubr.bf16.mxu0 0
        %6403 = vmatmul.mubr.bf16.gmra.mxu0 %v6337
        %v6404 = vpop.f32.mrf.mxu0
        %v6405 = vadd.f32 0.0, %v6404
        %v6406 = vpop.f32.mrf.mxu0
        %v6407 = vpop.f32.mrf.mxu0
        %v6408 = vadd.f32 0.0, %v6407
        %v6409 = vpop.f32.mrf.mxu0
        %6410 = vmatprep.mubr.bf16.mxu0 0
        %6411 = vmatmul.mubr.bf16.gmra.mxu0 %v6340
        %v6412 = vpop.f32.mrf.mxu0
        %v6413 = vadd.f32 0.0, %v6412
        %v6414 = vpop.f32.mrf.mxu0
        %v6415 = vpop.f32.mrf.mxu0
        %v6416 = vadd.f32 0.0, %v6415
        %v6417 = vpop.f32.mrf.mxu0
        %6418 = vmatprep.mubr.bf16.mxu0 0
        %6419 = vmatmul.mubr.bf16.gmra.mxu0 %v6343
        %v6420 = vpop.f32.mrf.mxu0
        %v6421 = vadd.f32 0.0, %v6420
        %v6422 = vpop.f32.mrf.mxu0
        %v6423 = vpop.f32.mrf.mxu0
        %v6424 = vadd.f32 0.0, %v6423
        %v6425 = vpop.f32.mrf.mxu0
        %6426 = vmatprep.mubr.bf16.mxu0 0
        %6427 = vmatmul.mubr.bf16.gmra.mxu0 %v6346
        %v6428 = vpop.f32.mrf.mxu0
        %v6429 = vadd.f32 0.0, %v6428
        %v6430 = vpop.f32.mrf.mxu0
        %v6431 = vpop.f32.mrf.mxu0
        %v6432 = vadd.f32 0.0, %v6431
        %v6433 = vpop.f32.mrf.mxu0
        %6434 = vmatprep.mubr.bf16.mxu0 0
        %6435 = vmatmul.mubr.bf16.gmra.mxu0 %v6349
        %v6436 = vpop.f32.mrf.mxu0
        %v6437 = vadd.f32 0.0, %v6436
        %v6438 = vpop.f32.mrf.mxu0
        %v6439 = vpop.f32.mrf.mxu0
        %v6440 = vadd.f32 0.0, %v6439
        %v6441 = vpop.f32.mrf.mxu0
        %6442 = vmatprep.mubr.bf16.mxu0 0
        %6443 = vmatmul.mubr.bf16.gmra.mxu0 %v6352
        %v6444 = vpop.f32.mrf.mxu0
        %v6445 = vadd.f32 0.0, %v6444
        %v6446 = vpop.f32.mrf.mxu0
        %v6447 = vpop.f32.mrf.mxu0
        %v6448 = vadd.f32 0.0, %v6447
        %v6449 = vpop.f32.mrf.mxu0
        %6450 = vdwg.mxu0
        %v6459 = vunpack.c.l.b16 %v5138
        %v6460 = vunpack.c.l.b16 %v5139
        %v6461 = vunpack.c.l.b16 %v5140
        %v6462 = vunpack.c.l.b16 %v5141
        %v6463 = vunpack.c.l.b16 %v5142
        %v6464 = vunpack.c.l.b16 %v5143
        %v6465 = vunpack.c.l.b16 %v5144
        %v6466 = vunpack.c.l.b16 %v5145
        %v6467 = vpack.c.b16 %v6460, %v6459
        %v6468 = vpack.c.b16 %v6462, %v6461
        %v6469 = vpack.c.b16 %v6464, %v6463
        %v6470 = vpack.c.b16 %v6466, %v6465
        %v6476 = vsel %vm1299, %v5694, 0
        %v6479 = vsel %vm1299, %v5695, 0
        %v6482 = vsel %vm1299, %v5696, 0
        %v6485 = vsel %vm1299, %v5697, 0
        %v6488 = vsel %vm1299, %v5698, 0
        %v6491 = vsel %vm1299, %v5699, 0
        %v6494 = vsel %vm1299, %v5700, 0
        %v6497 = vsel %vm1299, %v5701, 0
        %6499 = vmatprep.subr.bf16.mxu0 0
        %6500 = vmatpush1.bf16.msra.mxu0 0
        %6501 = vmatprep.subr.bf16.mxu0 0
        %6502 = vmatpush1.bf16.msra.mxu0 0
        %6503 = vmatprep.subr.bf16.mxu0 0
        %6504 = vmatpush1.bf16.msra.mxu0 0
        %6505 = vmatprep.subr.bf16.mxu0 0
        %6506 = vmatpush1.bf16.msra.mxu0 0
        %6507 = vmatprep.subr.bf16.mxu0 0
        %6508 = vmatpush1.bf16.msra.mxu0 %v6470
        %6509 = vmatprep.subr.bf16.mxu0 0
        %6510 = vmatpush1.bf16.msra.mxu0 %v6469
        %6511 = vmatprep.subr.bf16.mxu0 0
        %6512 = vmatpush1.bf16.msra.mxu0 %v6468
        %6513 = vmatprep.subr.bf16.mxu0 0
        %6514 = vmatpush1.bf16.msra.mxu0 %v6467
        %6515 = vmatprep.subr.bf16.mxu0 0
        %6516 = vmatpush2.bf16.msra.mxu0 0
        %6517 = vmatprep.subr.bf16.mxu0 0
        %6518 = vmatpush2.bf16.msra.mxu0 0
        %6519 = vmatprep.subr.bf16.mxu0 0
        %6520 = vmatpush2.bf16.msra.mxu0 0
        %6521 = vmatprep.subr.bf16.mxu0 0
        %6522 = vmatpush2.bf16.msra.mxu0 0
        %6523 = vmatprep.subr.bf16.mxu0 0
        %6524 = vmatpush2.bf16.msra.mxu0 0
        %6525 = vmatprep.subr.bf16.mxu0 0
        %6526 = vmatpush2.bf16.msra.mxu0 0
        %6527 = vmatprep.subr.bf16.mxu0 0
        %6528 = vmatpush2.bf16.msra.mxu0 0
        %6529 = vmatprep.subr.bf16.mxu0 0
        %6530 = vmatpush2.bf16.msra.mxu0 0
        %6531 = vmatprep.mubr.bf16.mxu0 0
        %6532 = vmatmul.mubr.bf16.gmra.mxu0 %v6476
        %v6533 = vpop.f32.mrf.mxu0
        %v6534 = vadd.f32 %v6389, %v6533
        %v6535 = vpop.f32.mrf.mxu0
        %v6536 = vpop.f32.mrf.mxu0
        %v6537 = vadd.f32 %v6392, %v6536
        %v6538 = vpop.f32.mrf.mxu0
        %6539 = vmatprep.mubr.bf16.mxu0 0
        %6540 = vmatmul.mubr.bf16.gmra.mxu0 %v6479
        %v6541 = vpop.f32.mrf.mxu0
        %v6542 = vadd.f32 %v6397, %v6541
        %v6543 = vpop.f32.mrf.mxu0
        %v6544 = vpop.f32.mrf.mxu0
        %v6545 = vadd.f32 %v6400, %v6544
        %v6546 = vpop.f32.mrf.mxu0
        %6547 = vmatprep.mubr.bf16.mxu0 0
        %6548 = vmatmul.mubr.bf16.gmra.mxu0 %v6482
        %v6549 = vpop.f32.mrf.mxu0
        %v6550 = vadd.f32 %v6405, %v6549
        %v6551 = vpop.f32.mrf.mxu0
        %v6552 = vpop.f32.mrf.mxu0
        %v6553 = vadd.f32 %v6408, %v6552
        %v6554 = vpop.f32.mrf.mxu0
        %6555 = vmatprep.mubr.bf16.mxu0 0
        %6556 = vmatmul.mubr.bf16.gmra.mxu0 %v6485
        %v6557 = vpop.f32.mrf.mxu0
        %v6558 = vadd.f32 %v6413, %v6557
        %v6559 = vpop.f32.mrf.mxu0
        %v6560 = vpop.f32.mrf.mxu0
        %v6561 = vadd.f32 %v6416, %v6560
        %v6562 = vpop.f32.mrf.mxu0
        %6563 = vmatprep.mubr.bf16.mxu0 0
        %6564 = vmatmul.mubr.bf16.gmra.mxu0 %v6488
        %v6565 = vpop.f32.mrf.mxu0
        %v6566 = vadd.f32 %v6421, %v6565
        %v6567 = vpop.f32.mrf.mxu0
        %v6568 = vpop.f32.mrf.mxu0
        %v6569 = vadd.f32 %v6424, %v6568
        %v6570 = vpop.f32.mrf.mxu0
        %6571 = vmatprep.mubr.bf16.mxu0 0
        %6572 = vmatmul.mubr.bf16.gmra.mxu0 %v6491
        %v6573 = vpop.f32.mrf.mxu0
        %v6574 = vadd.f32 %v6429, %v6573
        %v6575 = vpop.f32.mrf.mxu0
        %v6576 = vpop.f32.mrf.mxu0
        %v6577 = vadd.f32 %v6432, %v6576
        %v6578 = vpop.f32.mrf.mxu0
        %6579 = vmatprep.mubr.bf16.mxu0 0
        %6580 = vmatmul.mubr.bf16.gmra.mxu0 %v6494
        %v6581 = vpop.f32.mrf.mxu0
        %v6582 = vadd.f32 %v6437, %v6581
        %v6583 = vpop.f32.mrf.mxu0
        %v6584 = vpop.f32.mrf.mxu0
        %v6585 = vadd.f32 %v6440, %v6584
        %v6586 = vpop.f32.mrf.mxu0
        %6587 = vmatprep.mubr.bf16.mxu0 0
        %6588 = vmatmul.mubr.bf16.gmra.mxu0 %v6497
        %v6589 = vpop.f32.mrf.mxu0
        %v6590 = vadd.f32 %v6445, %v6589
        %v6591 = vpop.f32.mrf.mxu0
        %v6592 = vpop.f32.mrf.mxu0
        %v6593 = vadd.f32 %v6448, %v6592
        %v6594 = vpop.f32.mrf.mxu0
        %6595 = vdwg.mxu0
        %v6596 = vadd.f32 %v4500, %v6534
        %v6597 = vadd.f32 %v4501, %v6537
        %v6598 = vadd.f32 %v4502, %v6542
        %v6599 = vadd.f32 %v4503, %v6545
        %v6600 = vadd.f32 %v4504, %v6550
        %v6601 = vadd.f32 %v4505, %v6553
        %v6602 = vadd.f32 %v4506, %v6558
        %v6603 = vadd.f32 %v4507, %v6561
        %v6604 = vadd.f32 %v4508, %v6566
        %v6605 = vadd.f32 %v4509, %v6569
        %v6606 = vadd.f32 %v4510, %v6574
        %v6607 = vadd.f32 %v4511, %v6577
        %v6608 = vadd.f32 %v4512, %v6582
        %v6609 = vadd.f32 %v4513, %v6585
        %v6610 = vadd.f32 %v4514, %v6590
        %v6611 = vadd.f32 %v4515, %v6593
        %s6612 = scalar_lea.vmem %s6, 1
        %v6613 = vld [vmem:[%s6612] sm:$0x1]
        %v6615 = vlaneseq
        %v6616 = vshrl.u32 %v6615, 7
        %v6617 = vsub.s32 0, %v6616
        %v6618 = vrot.slane %v6613, %v6617
        %v6620 = vadd.f32 %v6596, %v6618
        %v6621 = vadd.f32 %v6597, %v6618
        %v6622 = vadd.f32 %v6598, %v6618
        %v6623 = vadd.f32 %v6599, %v6618
        %v6624 = vadd.f32 %v6600, %v6618
        %v6625 = vadd.f32 %v6601, %v6618
        %v6626 = vadd.f32 %v6602, %v6618
        %v6627 = vadd.f32 %v6603, %v6618
        %v6628 = vadd.f32 %v6604, %v6618
        %v6629 = vadd.f32 %v6605, %v6618
        %v6630 = vadd.f32 %v6606, %v6618
        %v6631 = vadd.f32 %v6607, %v6618
        %v6632 = vadd.f32 %v6608, %v6618
        %v6633 = vadd.f32 %v6609, %v6618
        %v6634 = vadd.f32 %v6610, %v6618
        %v6635 = vadd.f32 %v6611, %v6618
        %s6636 = scalar_lea.vmem [#allocation11], 1
        %v6637 = vld [vmem:[%s6636] sm:$0x1]
        %s6638 = scalar_lea.vmem [#allocation13], 1
        %v6639 = vld [vmem:[%s6638] sm:$0x1]
        %6640 = vadd.xlane.f32.xlu0 %v6620
        %v6641 = vpop.xlane.xlu0 %6640
        %6642 = vadd.xlane.f32.xlu0 %v6621
        %v6643 = vpop.xlane.xlu0 %6642
        %6644 = vadd.xlane.f32.xlu0 %v6622
        %v6645 = vpop.xlane.xlu0 %6644
        %6646 = vadd.xlane.f32.xlu0 %v6623
        %v6647 = vpop.xlane.xlu0 %6646
        %6648 = vadd.xlane.f32.xlu0 %v6624
        %v6649 = vpop.xlane.xlu0 %6648
        %6650 = vadd.xlane.f32.xlu0 %v6625
        %v6651 = vpop.xlane.xlu0 %6650
        %6652 = vadd.xlane.f32.xlu0 %v6626
        %v6653 = vpop.xlane.xlu0 %6652
        %6654 = vadd.xlane.f32.xlu0 %v6627
        %v6655 = vpop.xlane.xlu0 %6654
        %6656 = vadd.xlane.f32.xlu0 %v6628
        %v6657 = vpop.xlane.xlu0 %6656
        %6658 = vadd.xlane.f32.xlu0 %v6629
        %v6659 = vpop.xlane.xlu0 %6658
        %6660 = vadd.xlane.f32.xlu0 %v6630
        %v6661 = vpop.xlane.xlu0 %6660
        %6662 = vadd.xlane.f32.xlu0 %v6631
        %v6663 = vpop.xlane.xlu0 %6662
        %6664 = vadd.xlane.f32.xlu0 %v6632
        %v6665 = vpop.xlane.xlu0 %6664
        %6666 = vadd.xlane.f32.xlu0 %v6633
        %v6667 = vpop.xlane.xlu0 %6666
        %6668 = vadd.xlane.f32.xlu0 %v6634
        %v6669 = vpop.xlane.xlu0 %6668
        %6670 = vadd.xlane.f32.xlu0 %v6635
        %v6671 = vpop.xlane.xlu0 %6670
        %v6672 = vmul.f32 %v6641, %v683
        %v6673 = vmul.f32 %v6643, %v683
        %v6674 = vmul.f32 %v6645, %v683
        %v6675 = vmul.f32 %v6647, %v683
        %v6676 = vmul.f32 %v6649, %v683
        %v6677 = vmul.f32 %v6651, %v683
        %v6678 = vmul.f32 %v6653, %v683
        %v6679 = vmul.f32 %v6655, %v683
        %v6680 = vmul.f32 %v6657, %v683
        %v6681 = vmul.f32 %v6659, %v683
        %v6682 = vmul.f32 %v6661, %v683
        %v6683 = vmul.f32 %v6663, %v683
        %v6684 = vmul.f32 %v6665, %v683
        %v6685 = vmul.f32 %v6667, %v683
        %v6686 = vmul.f32 %v6669, %v683
        %v6687 = vmul.f32 %v6671, %v683
        %v6688 = vsub.f32 %v6620, %v6672
        %v6689 = vsub.f32 %v6621, %v6673
        %v6690 = vsub.f32 %v6622, %v6674
        %v6691 = vsub.f32 %v6623, %v6675
        %v6692 = vsub.f32 %v6624, %v6676
        %v6693 = vsub.f32 %v6625, %v6677
        %v6694 = vsub.f32 %v6626, %v6678
        %v6695 = vsub.f32 %v6627, %v6679
        %v6696 = vsub.f32 %v6628, %v6680
        %v6697 = vsub.f32 %v6629, %v6681
        %v6698 = vsub.f32 %v6630, %v6682
        %v6699 = vsub.f32 %v6631, %v6683
        %v6700 = vsub.f32 %v6632, %v6684
        %v6701 = vsub.f32 %v6633, %v6685
        %v6702 = vsub.f32 %v6634, %v6686
        %v6703 = vsub.f32 %v6635, %v6687
        %v6704 = vmul.f32 %v6688, %v6688
        %v6705 = vmul.f32 %v6689, %v6689
        %v6706 = vmul.f32 %v6690, %v6690
        %v6707 = vmul.f32 %v6691, %v6691
        %v6708 = vmul.f32 %v6692, %v6692
        %v6709 = vmul.f32 %v6693, %v6693
        %v6710 = vmul.f32 %v6694, %v6694
        %v6711 = vmul.f32 %v6695, %v6695
        %v6712 = vmul.f32 %v6696, %v6696
        %v6713 = vmul.f32 %v6697, %v6697
        %v6714 = vmul.f32 %v6698, %v6698
        %v6715 = vmul.f32 %v6699, %v6699
        %v6716 = vmul.f32 %v6700, %v6700
        %v6717 = vmul.f32 %v6701, %v6701
        %v6718 = vmul.f32 %v6702, %v6702
        %v6719 = vmul.f32 %v6703, %v6703
        %6720 = vadd.xlane.f32.xlu0 %v6704
        %v6721 = vpop.xlane.xlu0 %6720
        %6722 = vadd.xlane.f32.xlu0 %v6705
        %v6723 = vpop.xlane.xlu0 %6722
        %6724 = vadd.xlane.f32.xlu0 %v6706
        %v6725 = vpop.xlane.xlu0 %6724
        %6726 = vadd.xlane.f32.xlu0 %v6707
        %v6727 = vpop.xlane.xlu0 %6726
        %6728 = vadd.xlane.f32.xlu0 %v6708
        %v6729 = vpop.xlane.xlu0 %6728
        %6730 = vadd.xlane.f32.xlu0 %v6709
        %v6731 = vpop.xlane.xlu0 %6730
        %6732 = vadd.xlane.f32.xlu0 %v6710
        %v6733 = vpop.xlane.xlu0 %6732
        %6734 = vadd.xlane.f32.xlu0 %v6711
        %v6735 = vpop.xlane.xlu0 %6734
        %6736 = vadd.xlane.f32.xlu0 %v6712
        %v6737 = vpop.xlane.xlu0 %6736
        %6738 = vadd.xlane.f32.xlu0 %v6713
        %v6739 = vpop.xlane.xlu0 %6738
        %6740 = vadd.xlane.f32.xlu0 %v6714
        %v6741 = vpop.xlane.xlu0 %6740
        %6742 = vadd.xlane.f32.xlu0 %v6715
        %v6743 = vpop.xlane.xlu0 %6742
        %6744 = vadd.xlane.f32.xlu0 %v6716
        %v6745 = vpop.xlane.xlu0 %6744
        %6746 = vadd.xlane.f32.xlu0 %v6717
        %v6747 = vpop.xlane.xlu0 %6746
        %6748 = vadd.xlane.f32.xlu0 %v6718
        %v6749 = vpop.xlane.xlu0 %6748
        %6750 = vadd.xlane.f32.xlu0 %v6719
        %v6751 = vpop.xlane.xlu0 %6750
        %v6752 = vmul.f32 %v6721, %v683
        %v6753 = vmul.f32 %v6723, %v683
        %v6754 = vmul.f32 %v6725, %v683
        %v6755 = vmul.f32 %v6727, %v683
        %v6756 = vmul.f32 %v6729, %v683
        %v6757 = vmul.f32 %v6731, %v683
        %v6758 = vmul.f32 %v6733, %v683
        %v6759 = vmul.f32 %v6735, %v683
        %v6760 = vmul.f32 %v6737, %v683
        %v6761 = vmul.f32 %v6739, %v683
        %v6762 = vmul.f32 %v6741, %v683
        %v6763 = vmul.f32 %v6743, %v683
        %v6764 = vmul.f32 %v6745, %v683
        %v6765 = vmul.f32 %v6747, %v683
        %v6766 = vmul.f32 %v6749, %v683
        %v6767 = vmul.f32 %v6751, %v683
        %v6768 = vadd.f32 %v6752, 1e-05
        %v6769 = vadd.f32 %v6753, 1e-05
        %v6770 = vadd.f32 %v6754, 1e-05
        %v6771 = vadd.f32 %v6755, 1e-05
        %v6772 = vadd.f32 %v6756, 1e-05
        %v6773 = vadd.f32 %v6757, 1e-05
        %v6774 = vadd.f32 %v6758, 1e-05
        %v6775 = vadd.f32 %v6759, 1e-05
        %v6776 = vadd.f32 %v6760, 1e-05
        %v6777 = vadd.f32 %v6761, 1e-05
        %v6778 = vadd.f32 %v6762, 1e-05
        %v6779 = vadd.f32 %v6763, 1e-05
        %v6780 = vadd.f32 %v6764, 1e-05
        %v6781 = vadd.f32 %v6765, 1e-05
        %v6782 = vadd.f32 %v6766, 1e-05
        %v6783 = vadd.f32 %v6767, 1e-05
        %v6784 = vrsqrt.pop %v6768
        %v6785 = vrsqrt.pop %v6769
        %v6786 = vrsqrt.pop %v6770
        %v6787 = vrsqrt.pop %v6771
        %v6788 = vrsqrt.pop %v6772
        %v6789 = vrsqrt.pop %v6773
        %v6790 = vrsqrt.pop %v6774
        %v6791 = vrsqrt.pop %v6775
        %v6792 = vrsqrt.pop %v6776
        %v6793 = vrsqrt.pop %v6777
        %v6794 = vrsqrt.pop %v6778
        %v6795 = vrsqrt.pop %v6779
        %v6796 = vrsqrt.pop %v6780
        %v6797 = vrsqrt.pop %v6781
        %v6798 = vrsqrt.pop %v6782
        %v6799 = vrsqrt.pop %v6783
        %v6800 = vmul.f32 %v6688, %v6784
        %v6801 = vmul.f32 %v6689, %v6785
        %v6802 = vmul.f32 %v6690, %v6786
        %v6803 = vmul.f32 %v6691, %v6787
        %v6804 = vmul.f32 %v6692, %v6788
        %v6805 = vmul.f32 %v6693, %v6789
        %v6806 = vmul.f32 %v6694, %v6790
        %v6807 = vmul.f32 %v6695, %v6791
        %v6808 = vmul.f32 %v6696, %v6792
        %v6809 = vmul.f32 %v6697, %v6793
        %v6810 = vmul.f32 %v6698, %v6794
        %v6811 = vmul.f32 %v6699, %v6795
        %v6812 = vmul.f32 %v6700, %v6796
        %v6813 = vmul.f32 %v6701, %v6797
        %v6814 = vmul.f32 %v6702, %v6798
        %v6815 = vmul.f32 %v6703, %v6799
        %v6817 = vlaneseq
        %v6818 = vshrl.u32 %v6817, 7
        %v6819 = vsub.s32 0, %v6818
        %v6820 = vrot.slane %v6637, %v6819
        %v6822 = vmul.f32 %v6800, %v6820
        %v6823 = vmul.f32 %v6801, %v6820
        %v6824 = vmul.f32 %v6802, %v6820
        %v6825 = vmul.f32 %v6803, %v6820
        %v6826 = vmul.f32 %v6804, %v6820
        %v6827 = vmul.f32 %v6805, %v6820
        %v6828 = vmul.f32 %v6806, %v6820
        %v6829 = vmul.f32 %v6807, %v6820
        %v6830 = vmul.f32 %v6808, %v6820
        %v6831 = vmul.f32 %v6809, %v6820
        %v6832 = vmul.f32 %v6810, %v6820
        %v6833 = vmul.f32 %v6811, %v6820
        %v6834 = vmul.f32 %v6812, %v6820
        %v6835 = vmul.f32 %v6813, %v6820
        %v6836 = vmul.f32 %v6814, %v6820
        %v6837 = vmul.f32 %v6815, %v6820
        %v6839 = vlaneseq
        %v6840 = vshrl.u32 %v6839, 7
        %v6841 = vsub.s32 0, %v6840
        %v6842 = vrot.slane %v6639, %v6841
        %v6844 = vadd.f32 %v6822, %v6842
        %v6845 = vadd.f32 %v6823, %v6842
        %v6846 = vadd.f32 %v6824, %v6842
        %v6847 = vadd.f32 %v6825, %v6842
        %v6848 = vadd.f32 %v6826, %v6842
        %v6849 = vadd.f32 %v6827, %v6842
        %v6850 = vadd.f32 %v6828, %v6842
        %v6851 = vadd.f32 %v6829, %v6842
        %v6852 = vadd.f32 %v6830, %v6842
        %v6853 = vadd.f32 %v6831, %v6842
        %v6854 = vadd.f32 %v6832, %v6842
        %v6855 = vadd.f32 %v6833, %v6842
        %v6856 = vadd.f32 %v6834, %v6842
        %v6857 = vadd.f32 %v6835, %v6842
        %v6858 = vadd.f32 %v6836, %v6842
        %v6859 = vadd.f32 %v6837, %v6842
        %v6860 = vpack.c.bf16 %v6845, %v6844
        %v6861 = vpack.c.bf16 %v6847, %v6846
        %v6862 = vpack.c.bf16 %v6849, %v6848
        %v6863 = vpack.c.bf16 %v6851, %v6850
        %v6864 = vpack.c.bf16 %v6853, %v6852
        %v6865 = vpack.c.bf16 %v6855, %v6854
        %v6866 = vpack.c.bf16 %v6857, %v6856
        %v6867 = vpack.c.bf16 %v6859, %v6858
        %s6868 = scalar_lea.vmem [#allocation14], 256
        %v6869 = vld [vmem:[%s6868] sm:$0xff]
        %v6870 = vld [vmem:[%s6868 + $0x8] sm:$0xff]
        %v6871 = vld [vmem:[%s6868 + $0x10] sm:$0xff]
        %v6872 = vld [vmem:[%s6868 + $0x18] sm:$0xff]
        %v6873 = vld [vmem:[%s6868 + $0x20] sm:$0xff]
        %v6874 = vld [vmem:[%s6868 + $0x28] sm:$0xff]
        %v6875 = vld [vmem:[%s6868 + $0x30] sm:$0xff]
        %v6876 = vld [vmem:[%s6868 + $0x38] sm:$0xff]
        %v6877 = vld [vmem:[%s6868 + $0x40] sm:$0xff]
        %v6878 = vld [vmem:[%s6868 + $0x48] sm:$0xff]
        %v6879 = vld [vmem:[%s6868 + $0x50] sm:$0xff]
        %v6880 = vld [vmem:[%s6868 + $0x58] sm:$0xff]
        %v6881 = vld [vmem:[%s6868 + $0x60] sm:$0xff]
        %v6882 = vld [vmem:[%s6868 + $0x68] sm:$0xff]
        %v6883 = vld [vmem:[%s6868 + $0x70] sm:$0xff]
        %v6884 = vld [vmem:[%s6868 + $0x78] sm:$0xff]
        %v6885 = vld [vmem:[%s6868 + $0x80] sm:$0xff]
        %v6886 = vld [vmem:[%s6868 + $0x88] sm:$0xff]
        %v6887 = vld [vmem:[%s6868 + $0x90] sm:$0xff]
        %v6888 = vld [vmem:[%s6868 + $0x98] sm:$0xff]
        %v6889 = vld [vmem:[%s6868 + $0xa0] sm:$0xff]
        %v6890 = vld [vmem:[%s6868 + $0xa8] sm:$0xff]
        %v6891 = vld [vmem:[%s6868 + $0xb0] sm:$0xff]
        %v6892 = vld [vmem:[%s6868 + $0xb8] sm:$0xff]
        %v6893 = vld [vmem:[%s6868 + $0xc0] sm:$0xff]
        %v6894 = vld [vmem:[%s6868 + $0xc8] sm:$0xff]
        %v6895 = vld [vmem:[%s6868 + $0xd0] sm:$0xff]
        %v6896 = vld [vmem:[%s6868 + $0xd8] sm:$0xff]
        %v6897 = vld [vmem:[%s6868 + $0xe0] sm:$0xff]
        %v6898 = vld [vmem:[%s6868 + $0xe8] sm:$0xff]
        %v6899 = vld [vmem:[%s6868 + $0xf0] sm:$0xff]
        %v6900 = vld [vmem:[%s6868 + $0xf8] sm:$0xff]
        %s6901 = scalar_lea.vmem %s10, 4
        %v6902 = vld [vmem:[%s6901] sm:$0xf]
        %v6904 = vlaneseq
        %v6905 = vshrl.u32 %v6904, 7
        %v6906 = vsub.s32 0, %v6905
        %v6907 = vrot.slane %v6902, %v6906
        %v6908 = vlaneseq
        %v6909 = vshrl.u32 %v6908, 7
        %v6910 = vsub.s32 1, %v6909
        %v6911 = vrot.slane %v6902, %v6910
        %v6912 = vlaneseq
        %v6913 = vshrl.u32 %v6912, 7
        %v6914 = vsub.s32 2, %v6913
        %v6915 = vrot.slane %v6902, %v6914
        %v6916 = vlaneseq
        %v6917 = vshrl.u32 %v6916, 7
        %v6918 = vsub.s32 3, %v6917
        %v6919 = vrot.slane %v6902, %v6918
        %v6956 = vunpack.c.l.b16 %v6869
        %v6957 = vunpack.c.h.b16 %v6869
        %v6958 = vunpack.c.l.b16 %v6870
        %v6959 = vunpack.c.h.b16 %v6870
        %v6960 = vunpack.c.l.b16 %v6871
        %v6961 = vunpack.c.h.b16 %v6871
        %v6962 = vunpack.c.l.b16 %v6872
        %v6963 = vunpack.c.h.b16 %v6872
        %v6964 = vunpack.c.l.b16 %v6873
        %v6965 = vunpack.c.h.b16 %v6873
        %v6966 = vunpack.c.l.b16 %v6874
        %v6967 = vunpack.c.h.b16 %v6874
        %v6968 = vunpack.c.l.b16 %v6875
        %v6969 = vunpack.c.h.b16 %v6875
        %v6970 = vunpack.c.l.b16 %v6876
        %v6971 = vunpack.c.h.b16 %v6876
        %v6972 = vunpack.c.l.b16 %v6877
        %v6973 = vunpack.c.h.b16 %v6877
        %v6974 = vunpack.c.l.b16 %v6878
        %v6975 = vunpack.c.h.b16 %v6878
        %v6976 = vunpack.c.l.b16 %v6879
        %v6977 = vunpack.c.h.b16 %v6879
        %v6978 = vunpack.c.l.b16 %v6880
        %v6979 = vunpack.c.h.b16 %v6880
        %v6980 = vunpack.c.l.b16 %v6881
        %v6981 = vunpack.c.h.b16 %v6881
        %v6982 = vunpack.c.l.b16 %v6882
        %v6983 = vunpack.c.h.b16 %v6882
        %v6984 = vunpack.c.l.b16 %v6883
        %v6985 = vunpack.c.h.b16 %v6883
        %v6986 = vunpack.c.l.b16 %v6884
        %v6987 = vunpack.c.h.b16 %v6884
        %v6988 = vunpack.c.l.b16 %v6885
        %v6989 = vunpack.c.h.b16 %v6885
        %v6990 = vunpack.c.l.b16 %v6886
        %v6991 = vunpack.c.h.b16 %v6886
        %v6992 = vunpack.c.l.b16 %v6887
        %v6993 = vunpack.c.h.b16 %v6887
        %v6994 = vunpack.c.l.b16 %v6888
        %v6995 = vunpack.c.h.b16 %v6888
        %v6996 = vunpack.c.l.b16 %v6889
        %v6997 = vunpack.c.h.b16 %v6889
        %v6998 = vunpack.c.l.b16 %v6890
        %v6999 = vunpack.c.h.b16 %v6890
        %v7000 = vunpack.c.l.b16 %v6891
        %v7001 = vunpack.c.h.b16 %v6891
        %v7002 = vunpack.c.l.b16 %v6892
        %v7003 = vunpack.c.h.b16 %v6892
        %v7004 = vunpack.c.l.b16 %v6893
        %v7005 = vunpack.c.h.b16 %v6893
        %v7006 = vunpack.c.l.b16 %v6894
        %v7007 = vunpack.c.h.b16 %v6894
        %v7008 = vunpack.c.l.b16 %v6895
        %v7009 = vunpack.c.h.b16 %v6895
        %v7010 = vunpack.c.l.b16 %v6896
        %v7011 = vunpack.c.h.b16 %v6896
        %v7012 = vunpack.c.l.b16 %v6897
        %v7013 = vunpack.c.h.b16 %v6897
        %v7014 = vunpack.c.l.b16 %v6898
        %v7015 = vunpack.c.h.b16 %v6898
        %v7016 = vunpack.c.l.b16 %v6899
        %v7017 = vunpack.c.h.b16 %v6899
        %v7018 = vunpack.c.l.b16 %v6900
        %v7019 = vunpack.c.h.b16 %v6900
        %v7020 = vpack.c.b16 %v6960, %v6956
        %v7021 = vpack.c.b16 %v6961, %v6957
        %v7022 = vpack.c.b16 %v6962, %v6958
        %v7023 = vpack.c.b16 %v6963, %v6959
        %v7024 = vpack.c.b16 %v6968, %v6964
        %v7025 = vpack.c.b16 %v6969, %v6965
        %v7026 = vpack.c.b16 %v6970, %v6966
        %v7027 = vpack.c.b16 %v6971, %v6967
        %v7028 = vpack.c.b16 %v6976, %v6972
        %v7029 = vpack.c.b16 %v6977, %v6973
        %v7030 = vpack.c.b16 %v6978, %v6974
        %v7031 = vpack.c.b16 %v6979, %v6975
        %v7032 = vpack.c.b16 %v6984, %v6980
        %v7033 = vpack.c.b16 %v6985, %v6981
        %v7034 = vpack.c.b16 %v6986, %v6982
        %v7035 = vpack.c.b16 %v6987, %v6983
        %v7036 = vpack.c.b16 %v6992, %v6988
        %v7037 = vpack.c.b16 %v6993, %v6989
        %v7038 = vpack.c.b16 %v6994, %v6990
        %v7039 = vpack.c.b16 %v6995, %v6991
        %v7040 = vpack.c.b16 %v7000, %v6996
        %v7041 = vpack.c.b16 %v7001, %v6997
        %v7042 = vpack.c.b16 %v7002, %v6998
        %v7043 = vpack.c.b16 %v7003, %v6999
        %v7044 = vpack.c.b16 %v7008, %v7004
        %v7045 = vpack.c.b16 %v7009, %v7005
        %v7046 = vpack.c.b16 %v7010, %v7006
        %v7047 = vpack.c.b16 %v7011, %v7007
        %v7048 = vpack.c.b16 %v7016, %v7012
        %v7049 = vpack.c.b16 %v7017, %v7013
        %v7050 = vpack.c.b16 %v7018, %v7014
        %v7051 = vpack.c.b16 %v7019, %v7015
        %7084 = vmatprep.subr.bf16.mxu0 %v7049
        %7085 = vmatpush1.bf16.msra.mxu0 %v7048
        %7086 = vmatprep.subr.bf16.mxu0 %v7045
        %7087 = vmatpush1.bf16.msra.mxu0 %v7044
        %7088 = vmatprep.subr.bf16.mxu0 %v7041
        %7089 = vmatpush1.bf16.msra.mxu0 %v7040
        %7090 = vmatprep.subr.bf16.mxu0 %v7037
        %7091 = vmatpush1.bf16.msra.mxu0 %v7036
        %7092 = vmatprep.subr.bf16.mxu0 %v7033
        %7093 = vmatpush1.bf16.msra.mxu0 %v7032
        %7094 = vmatprep.subr.bf16.mxu0 %v7029
        %7095 = vmatpush1.bf16.msra.mxu0 %v7028
        %7096 = vmatprep.subr.bf16.mxu0 %v7025
        %7097 = vmatpush1.bf16.msra.mxu0 %v7024
        %7098 = vmatprep.subr.bf16.mxu0 %v7021
        %7099 = vmatpush1.bf16.msra.mxu0 %v7020
        %7100 = vmatprep.subr.bf16.mxu0 0
        %7101 = vmatpush2.bf16.msra.mxu0 0
        %7102 = vmatprep.subr.bf16.mxu0 0
        %7103 = vmatpush2.bf16.msra.mxu0 0
        %7104 = vmatprep.subr.bf16.mxu0 0
        %7105 = vmatpush2.bf16.msra.mxu0 0
        %7106 = vmatprep.subr.bf16.mxu0 0
        %7107 = vmatpush2.bf16.msra.mxu0 0
        %7108 = vmatprep.subr.bf16.mxu0 0
        %7109 = vmatpush2.bf16.msra.mxu0 0
        %7110 = vmatprep.subr.bf16.mxu0 0
        %7111 = vmatpush2.bf16.msra.mxu0 0
        %7112 = vmatprep.subr.bf16.mxu0 0
        %7113 = vmatpush2.bf16.msra.mxu0 0
        %7114 = vmatprep.subr.bf16.mxu0 0
        %7115 = vmatpush2.bf16.msra.mxu0 0
        %7116 = vmatprep.mubr.bf16.mxu0 0
        %7117 = vmatmul.mubr.bf16.gmra.mxu0 %v6860
        %v7118 = vpop.f32.mrf.mxu0
        %v7119 = vadd.f32 %v6907, %v7118
        %v7120 = vpop.f32.mrf.mxu0
        %v7121 = vadd.f32 %v6911, %v7120
        %v7122 = vpop.f32.mrf.mxu0
        %v7123 = vadd.f32 %v6907, %v7122
        %v7124 = vpop.f32.mrf.mxu0
        %v7125 = vadd.f32 %v6911, %v7124
        %7126 = vmatprep.mubr.bf16.mxu0 0
        %7127 = vmatmul.mubr.bf16.gmra.mxu0 %v6861
        %v7128 = vpop.f32.mrf.mxu0
        %v7129 = vadd.f32 %v6907, %v7128
        %v7130 = vpop.f32.mrf.mxu0
        %v7131 = vadd.f32 %v6911, %v7130
        %v7132 = vpop.f32.mrf.mxu0
        %v7133 = vadd.f32 %v6907, %v7132
        %v7134 = vpop.f32.mrf.mxu0
        %v7135 = vadd.f32 %v6911, %v7134
        %7136 = vmatprep.mubr.bf16.mxu0 0
        %7137 = vmatmul.mubr.bf16.gmra.mxu0 %v6862
        %v7138 = vpop.f32.mrf.mxu0
        %v7139 = vadd.f32 %v6907, %v7138
        %v7140 = vpop.f32.mrf.mxu0
        %v7141 = vadd.f32 %v6911, %v7140
        %v7142 = vpop.f32.mrf.mxu0
        %v7143 = vadd.f32 %v6907, %v7142
        %v7144 = vpop.f32.mrf.mxu0
        %v7145 = vadd.f32 %v6911, %v7144
        %7146 = vmatprep.mubr.bf16.mxu0 0
        %7147 = vmatmul.mubr.bf16.gmra.mxu0 %v6863
        %v7148 = vpop.f32.mrf.mxu0
        %v7149 = vadd.f32 %v6907, %v7148
        %v7150 = vpop.f32.mrf.mxu0
        %v7151 = vadd.f32 %v6911, %v7150
        %v7152 = vpop.f32.mrf.mxu0
        %v7153 = vadd.f32 %v6907, %v7152
        %v7154 = vpop.f32.mrf.mxu0
        %v7155 = vadd.f32 %v6911, %v7154
        %7156 = vmatprep.mubr.bf16.mxu0 0
        %7157 = vmatmul.mubr.bf16.gmra.mxu0 %v6864
        %v7158 = vpop.f32.mrf.mxu0
        %v7159 = vadd.f32 %v6907, %v7158
        %v7160 = vpop.f32.mrf.mxu0
        %v7161 = vadd.f32 %v6911, %v7160
        %v7162 = vpop.f32.mrf.mxu0
        %v7163 = vadd.f32 %v6907, %v7162
        %v7164 = vpop.f32.mrf.mxu0
        %v7165 = vadd.f32 %v6911, %v7164
        %7166 = vmatprep.mubr.bf16.mxu0 0
        %7167 = vmatmul.mubr.bf16.gmra.mxu0 %v6865
        %v7168 = vpop.f32.mrf.mxu0
        %v7169 = vadd.f32 %v6907, %v7168
        %v7170 = vpop.f32.mrf.mxu0
        %v7171 = vadd.f32 %v6911, %v7170
        %v7172 = vpop.f32.mrf.mxu0
        %v7173 = vadd.f32 %v6907, %v7172
        %v7174 = vpop.f32.mrf.mxu0
        %v7175 = vadd.f32 %v6911, %v7174
        %7176 = vmatprep.mubr.bf16.mxu0 0
        %7177 = vmatmul.mubr.bf16.gmra.mxu0 %v6866
        %v7178 = vpop.f32.mrf.mxu0
        %v7179 = vadd.f32 %v6907, %v7178
        %v7180 = vpop.f32.mrf.mxu0
        %v7181 = vadd.f32 %v6911, %v7180
        %v7182 = vpop.f32.mrf.mxu0
        %v7183 = vadd.f32 %v6907, %v7182
        %v7184 = vpop.f32.mrf.mxu0
        %v7185 = vadd.f32 %v6911, %v7184
        %7186 = vmatprep.mubr.bf16.mxu0 0
        %7187 = vmatmul.mubr.bf16.gmra.mxu0 %v6867
        %v7188 = vpop.f32.mrf.mxu0
        %v7189 = vadd.f32 %v6907, %v7188
        %v7190 = vpop.f32.mrf.mxu0
        %v7191 = vadd.f32 %v6911, %v7190
        %v7192 = vpop.f32.mrf.mxu0
        %v7193 = vadd.f32 %v6907, %v7192
        %v7194 = vpop.f32.mrf.mxu0
        %v7195 = vadd.f32 %v6911, %v7194
        %7196 = vdwg.mxu0
        %7197 = vmatprep.subr.bf16.mxu0 %v7051
        %7198 = vmatpush1.bf16.msra.mxu0 %v7050
        %7199 = vmatprep.subr.bf16.mxu0 %v7047
        %7200 = vmatpush1.bf16.msra.mxu0 %v7046
        %7201 = vmatprep.subr.bf16.mxu0 %v7043
        %7202 = vmatpush1.bf16.msra.mxu0 %v7042
        %7203 = vmatprep.subr.bf16.mxu0 %v7039
        %7204 = vmatpush1.bf16.msra.mxu0 %v7038
        %7205 = vmatprep.subr.bf16.mxu0 %v7035
        %7206 = vmatpush1.bf16.msra.mxu0 %v7034
        %7207 = vmatprep.subr.bf16.mxu0 %v7031
        %7208 = vmatpush1.bf16.msra.mxu0 %v7030
        %7209 = vmatprep.subr.bf16.mxu0 %v7027
        %7210 = vmatpush1.bf16.msra.mxu0 %v7026
        %7211 = vmatprep.subr.bf16.mxu0 %v7023
        %7212 = vmatpush1.bf16.msra.mxu0 %v7022
        %7213 = vmatprep.subr.bf16.mxu0 0
        %7214 = vmatpush2.bf16.msra.mxu0 0
        %7215 = vmatprep.subr.bf16.mxu0 0
        %7216 = vmatpush2.bf16.msra.mxu0 0
        %7217 = vmatprep.subr.bf16.mxu0 0
        %7218 = vmatpush2.bf16.msra.mxu0 0
        %7219 = vmatprep.subr.bf16.mxu0 0
        %7220 = vmatpush2.bf16.msra.mxu0 0
        %7221 = vmatprep.subr.bf16.mxu0 0
        %7222 = vmatpush2.bf16.msra.mxu0 0
        %7223 = vmatprep.subr.bf16.mxu0 0
        %7224 = vmatpush2.bf16.msra.mxu0 0
        %7225 = vmatprep.subr.bf16.mxu0 0
        %7226 = vmatpush2.bf16.msra.mxu0 0
        %7227 = vmatprep.subr.bf16.mxu0 0
        %7228 = vmatpush2.bf16.msra.mxu0 0
        %7229 = vmatprep.mubr.bf16.mxu0 0
        %7230 = vmatmul.mubr.bf16.gmra.mxu0 %v6860
        %v7231 = vpop.f32.mrf.mxu0
        %v7232 = vadd.f32 %v6915, %v7231
        %v7233 = vpop.f32.mrf.mxu0
        %v7234 = vadd.f32 %v6919, %v7233
        %v7235 = vpop.f32.mrf.mxu0
        %v7236 = vadd.f32 %v6915, %v7235
        %v7237 = vpop.f32.mrf.mxu0
        %v7238 = vadd.f32 %v6919, %v7237
        %7239 = vmatprep.mubr.bf16.mxu0 0
        %7240 = vmatmul.mubr.bf16.gmra.mxu0 %v6861
        %v7241 = vpop.f32.mrf.mxu0
        %v7242 = vadd.f32 %v6915, %v7241
        %v7243 = vpop.f32.mrf.mxu0
        %v7244 = vadd.f32 %v6919, %v7243
        %v7245 = vpop.f32.mrf.mxu0
        %v7246 = vadd.f32 %v6915, %v7245
        %v7247 = vpop.f32.mrf.mxu0
        %v7248 = vadd.f32 %v6919, %v7247
        %7249 = vmatprep.mubr.bf16.mxu0 0
        %7250 = vmatmul.mubr.bf16.gmra.mxu0 %v6862
        %v7251 = vpop.f32.mrf.mxu0
        %v7252 = vadd.f32 %v6915, %v7251
        %v7253 = vpop.f32.mrf.mxu0
        %v7254 = vadd.f32 %v6919, %v7253
        %v7255 = vpop.f32.mrf.mxu0
        %v7256 = vadd.f32 %v6915, %v7255
        %v7257 = vpop.f32.mrf.mxu0
        %v7258 = vadd.f32 %v6919, %v7257
        %7259 = vmatprep.mubr.bf16.mxu0 0
        %7260 = vmatmul.mubr.bf16.gmra.mxu0 %v6863
        %v7261 = vpop.f32.mrf.mxu0
        %v7262 = vadd.f32 %v6915, %v7261
        %v7263 = vpop.f32.mrf.mxu0
        %v7264 = vadd.f32 %v6919, %v7263
        %v7265 = vpop.f32.mrf.mxu0
        %v7266 = vadd.f32 %v6915, %v7265
        %v7267 = vpop.f32.mrf.mxu0
        %v7268 = vadd.f32 %v6919, %v7267
        %7269 = vmatprep.mubr.bf16.mxu0 0
        %7270 = vmatmul.mubr.bf16.gmra.mxu0 %v6864
        %v7271 = vpop.f32.mrf.mxu0
        %v7272 = vadd.f32 %v6915, %v7271
        %v7273 = vpop.f32.mrf.mxu0
        %v7274 = vadd.f32 %v6919, %v7273
        %v7275 = vpop.f32.mrf.mxu0
        %v7276 = vadd.f32 %v6915, %v7275
        %v7277 = vpop.f32.mrf.mxu0
        %v7278 = vadd.f32 %v6919, %v7277
        %7279 = vmatprep.mubr.bf16.mxu0 0
        %7280 = vmatmul.mubr.bf16.gmra.mxu0 %v6865
        %v7281 = vpop.f32.mrf.mxu0
        %v7282 = vadd.f32 %v6915, %v7281
        %v7283 = vpop.f32.mrf.mxu0
        %v7284 = vadd.f32 %v6919, %v7283
        %v7285 = vpop.f32.mrf.mxu0
        %v7286 = vadd.f32 %v6915, %v7285
        %v7287 = vpop.f32.mrf.mxu0
        %v7288 = vadd.f32 %v6919, %v7287
        %7289 = vmatprep.mubr.bf16.mxu0 0
        %7290 = vmatmul.mubr.bf16.gmra.mxu0 %v6866
        %v7291 = vpop.f32.mrf.mxu0
        %v7292 = vadd.f32 %v6915, %v7291
        %v7293 = vpop.f32.mrf.mxu0
        %v7294 = vadd.f32 %v6919, %v7293
        %v7295 = vpop.f32.mrf.mxu0
        %v7296 = vadd.f32 %v6915, %v7295
        %v7297 = vpop.f32.mrf.mxu0
        %v7298 = vadd.f32 %v6919, %v7297
        %7299 = vmatprep.mubr.bf16.mxu0 0
        %7300 = vmatmul.mubr.bf16.gmra.mxu0 %v6867
        %v7301 = vpop.f32.mrf.mxu0
        %v7302 = vadd.f32 %v6915, %v7301
        %v7303 = vpop.f32.mrf.mxu0
        %v7304 = vadd.f32 %v6919, %v7303
        %v7305 = vpop.f32.mrf.mxu0
        %v7306 = vadd.f32 %v6915, %v7305
        %v7307 = vpop.f32.mrf.mxu0
        %v7308 = vadd.f32 %v6919, %v7307
        %7309 = vdwg.mxu0
        %v7310 = vmul.f32 %v7119, 0.5
        %v7311 = vmul.f32 %v7121, 0.5
        %v7312 = vmul.f32 %v7232, 0.5
        %v7313 = vmul.f32 %v7234, 0.5
        %v7314 = vmul.f32 %v7123, 0.5
        %v7315 = vmul.f32 %v7125, 0.5
        %v7316 = vmul.f32 %v7236, 0.5
        %v7317 = vmul.f32 %v7238, 0.5
        %v7318 = vmul.f32 %v7129, 0.5
        %v7319 = vmul.f32 %v7131, 0.5
        %v7320 = vmul.f32 %v7242, 0.5
        %v7321 = vmul.f32 %v7244, 0.5
        %v7322 = vmul.f32 %v7133, 0.5
        %v7323 = vmul.f32 %v7135, 0.5
        %v7324 = vmul.f32 %v7246, 0.5
        %v7325 = vmul.f32 %v7248, 0.5
        %v7326 = vmul.f32 %v7139, 0.5
        %v7327 = vmul.f32 %v7141, 0.5
        %v7328 = vmul.f32 %v7252, 0.5
        %v7329 = vmul.f32 %v7254, 0.5
        %v7330 = vmul.f32 %v7143, 0.5
        %v7331 = vmul.f32 %v7145, 0.5
        %v7332 = vmul.f32 %v7256, 0.5
        %v7333 = vmul.f32 %v7258, 0.5
        %v7334 = vmul.f32 %v7149, 0.5
        %v7335 = vmul.f32 %v7151, 0.5
        %v7336 = vmul.f32 %v7262, 0.5
        %v7337 = vmul.f32 %v7264, 0.5
        %v7338 = vmul.f32 %v7153, 0.5
        %v7339 = vmul.f32 %v7155, 0.5
        %v7340 = vmul.f32 %v7266, 0.5
        %v7341 = vmul.f32 %v7268, 0.5
        %v7342 = vmul.f32 %v7159, 0.5
        %v7343 = vmul.f32 %v7161, 0.5
        %v7344 = vmul.f32 %v7272, 0.5
        %v7345 = vmul.f32 %v7274, 0.5
        %v7346 = vmul.f32 %v7163, 0.5
        %v7347 = vmul.f32 %v7165, 0.5
        %v7348 = vmul.f32 %v7276, 0.5
        %v7349 = vmul.f32 %v7278, 0.5
        %v7350 = vmul.f32 %v7169, 0.5
        %v7351 = vmul.f32 %v7171, 0.5
        %v7352 = vmul.f32 %v7282, 0.5
        %v7353 = vmul.f32 %v7284, 0.5
        %v7354 = vmul.f32 %v7173, 0.5
        %v7355 = vmul.f32 %v7175, 0.5
        %v7356 = vmul.f32 %v7286, 0.5
        %v7357 = vmul.f32 %v7288, 0.5
        %v7358 = vmul.f32 %v7179, 0.5
        %v7359 = vmul.f32 %v7181, 0.5
        %v7360 = vmul.f32 %v7292, 0.5
        %v7361 = vmul.f32 %v7294, 0.5
        %v7362 = vmul.f32 %v7183, 0.5
        %v7363 = vmul.f32 %v7185, 0.5
        %v7364 = vmul.f32 %v7296, 0.5
        %v7365 = vmul.f32 %v7298, 0.5
        %v7366 = vmul.f32 %v7189, 0.5
        %v7367 = vmul.f32 %v7191, 0.5
        %v7368 = vmul.f32 %v7302, 0.5
        %v7369 = vmul.f32 %v7304, 0.5
        %v7370 = vmul.f32 %v7193, 0.5
        %v7371 = vmul.f32 %v7195, 0.5
        %v7372 = vmul.f32 %v7306, 0.5
        %v7373 = vmul.f32 %v7308, 0.5
        %v7374 = vmul.f32 %v7119, 0.044715
        %v7375 = vmul.f32 %v7121, 0.044715
        %v7376 = vmul.f32 %v7232, 0.044715
        %v7377 = vmul.f32 %v7234, 0.044715
        %v7378 = vmul.f32 %v7123, 0.044715
        %v7379 = vmul.f32 %v7125, 0.044715
        %v7380 = vmul.f32 %v7236, 0.044715
        %v7381 = vmul.f32 %v7238, 0.044715
        %v7382 = vmul.f32 %v7129, 0.044715
        %v7383 = vmul.f32 %v7131, 0.044715
        %v7384 = vmul.f32 %v7242, 0.044715
        %v7385 = vmul.f32 %v7244, 0.044715
        %v7386 = vmul.f32 %v7133, 0.044715
        %v7387 = vmul.f32 %v7135, 0.044715
        %v7388 = vmul.f32 %v7246, 0.044715
        %v7389 = vmul.f32 %v7248, 0.044715
        %v7390 = vmul.f32 %v7139, 0.044715
        %v7391 = vmul.f32 %v7141, 0.044715
        %v7392 = vmul.f32 %v7252, 0.044715
        %v7393 = vmul.f32 %v7254, 0.044715
        %v7394 = vmul.f32 %v7143, 0.044715
        %v7395 = vmul.f32 %v7145, 0.044715
        %v7396 = vmul.f32 %v7256, 0.044715
        %v7397 = vmul.f32 %v7258, 0.044715
        %v7398 = vmul.f32 %v7149, 0.044715
        %v7399 = vmul.f32 %v7151, 0.044715
        %v7400 = vmul.f32 %v7262, 0.044715
        %v7401 = vmul.f32 %v7264, 0.044715
        %v7402 = vmul.f32 %v7153, 0.044715
        %v7403 = vmul.f32 %v7155, 0.044715
        %v7404 = vmul.f32 %v7266, 0.044715
        %v7405 = vmul.f32 %v7268, 0.044715
        %v7406 = vmul.f32 %v7159, 0.044715
        %v7407 = vmul.f32 %v7161, 0.044715
        %v7408 = vmul.f32 %v7272, 0.044715
        %v7409 = vmul.f32 %v7274, 0.044715
        %v7410 = vmul.f32 %v7163, 0.044715
        %v7411 = vmul.f32 %v7165, 0.044715
        %v7412 = vmul.f32 %v7276, 0.044715
        %v7413 = vmul.f32 %v7278, 0.044715
        %v7414 = vmul.f32 %v7169, 0.044715
        %v7415 = vmul.f32 %v7171, 0.044715
        %v7416 = vmul.f32 %v7282, 0.044715
        %v7417 = vmul.f32 %v7284, 0.044715
        %v7418 = vmul.f32 %v7173, 0.044715
        %v7419 = vmul.f32 %v7175, 0.044715
        %v7420 = vmul.f32 %v7286, 0.044715
        %v7421 = vmul.f32 %v7288, 0.044715
        %v7422 = vmul.f32 %v7179, 0.044715
        %v7423 = vmul.f32 %v7181, 0.044715
        %v7424 = vmul.f32 %v7292, 0.044715
        %v7425 = vmul.f32 %v7294, 0.044715
        %v7426 = vmul.f32 %v7183, 0.044715
        %v7427 = vmul.f32 %v7185, 0.044715
        %v7428 = vmul.f32 %v7296, 0.044715
        %v7429 = vmul.f32 %v7298, 0.044715
        %v7430 = vmul.f32 %v7189, 0.044715
        %v7431 = vmul.f32 %v7191, 0.044715
        %v7432 = vmul.f32 %v7302, 0.044715
        %v7433 = vmul.f32 %v7304, 0.044715
        %v7434 = vmul.f32 %v7193, 0.044715
        %v7435 = vmul.f32 %v7195, 0.044715
        %v7436 = vmul.f32 %v7306, 0.044715
        %v7437 = vmul.f32 %v7308, 0.044715
        %v7438 = vmul.f32 %v7374, %v7119
        %v7439 = vmul.f32 %v7375, %v7121
        %v7440 = vmul.f32 %v7376, %v7232
        %v7441 = vmul.f32 %v7377, %v7234
        %v7442 = vmul.f32 %v7378, %v7123
        %v7443 = vmul.f32 %v7379, %v7125
        %v7444 = vmul.f32 %v7380, %v7236
        %v7445 = vmul.f32 %v7381, %v7238
        %v7446 = vmul.f32 %v7382, %v7129
        %v7447 = vmul.f32 %v7383, %v7131
        %v7448 = vmul.f32 %v7384, %v7242
        %v7449 = vmul.f32 %v7385, %v7244
        %v7450 = vmul.f32 %v7386, %v7133
        %v7451 = vmul.f32 %v7387, %v7135
        %v7452 = vmul.f32 %v7388, %v7246
        %v7453 = vmul.f32 %v7389, %v7248
        %v7454 = vmul.f32 %v7390, %v7139
        %v7455 = vmul.f32 %v7391, %v7141
        %v7456 = vmul.f32 %v7392, %v7252
        %v7457 = vmul.f32 %v7393, %v7254
        %v7458 = vmul.f32 %v7394, %v7143
        %v7459 = vmul.f32 %v7395, %v7145
        %v7460 = vmul.f32 %v7396, %v7256
        %v7461 = vmul.f32 %v7397, %v7258
        %v7462 = vmul.f32 %v7398, %v7149
        %v7463 = vmul.f32 %v7399, %v7151
        %v7464 = vmul.f32 %v7400, %v7262
        %v7465 = vmul.f32 %v7401, %v7264
        %v7466 = vmul.f32 %v7402, %v7153
        %v7467 = vmul.f32 %v7403, %v7155
        %v7468 = vmul.f32 %v7404, %v7266
        %v7469 = vmul.f32 %v7405, %v7268
        %v7470 = vmul.f32 %v7406, %v7159
        %v7471 = vmul.f32 %v7407, %v7161
        %v7472 = vmul.f32 %v7408, %v7272
        %v7473 = vmul.f32 %v7409, %v7274
        %v7474 = vmul.f32 %v7410, %v7163
        %v7475 = vmul.f32 %v7411, %v7165
        %v7476 = vmul.f32 %v7412, %v7276
        %v7477 = vmul.f32 %v7413, %v7278
        %v7478 = vmul.f32 %v7414, %v7169
        %v7479 = vmul.f32 %v7415, %v7171
        %v7480 = vmul.f32 %v7416, %v7282
        %v7481 = vmul.f32 %v7417, %v7284
        %v7482 = vmul.f32 %v7418, %v7173
        %v7483 = vmul.f32 %v7419, %v7175
        %v7484 = vmul.f32 %v7420, %v7286
        %v7485 = vmul.f32 %v7421, %v7288
        %v7486 = vmul.f32 %v7422, %v7179
        %v7487 = vmul.f32 %v7423, %v7181
        %v7488 = vmul.f32 %v7424, %v7292
        %v7489 = vmul.f32 %v7425, %v7294
        %v7490 = vmul.f32 %v7426, %v7183
        %v7491 = vmul.f32 %v7427, %v7185
        %v7492 = vmul.f32 %v7428, %v7296
        %v7493 = vmul.f32 %v7429, %v7298
        %v7494 = vmul.f32 %v7430, %v7189
        %v7495 = vmul.f32 %v7431, %v7191
        %v7496 = vmul.f32 %v7432, %v7302
        %v7497 = vmul.f32 %v7433, %v7304
        %v7498 = vmul.f32 %v7434, %v7193
        %v7499 = vmul.f32 %v7435, %v7195
        %v7500 = vmul.f32 %v7436, %v7306
        %v7501 = vmul.f32 %v7437, %v7308
        %v7502 = vmul.f32 %v7438, %v7119
        %v7503 = vmul.f32 %v7439, %v7121
        %v7504 = vmul.f32 %v7440, %v7232
        %v7505 = vmul.f32 %v7441, %v7234
        %v7506 = vmul.f32 %v7442, %v7123
        %v7507 = vmul.f32 %v7443, %v7125
        %v7508 = vmul.f32 %v7444, %v7236
        %v7509 = vmul.f32 %v7445, %v7238
        %v7510 = vmul.f32 %v7446, %v7129
        %v7511 = vmul.f32 %v7447, %v7131
        %v7512 = vmul.f32 %v7448, %v7242
        %v7513 = vmul.f32 %v7449, %v7244
        %v7514 = vmul.f32 %v7450, %v7133
        %v7515 = vmul.f32 %v7451, %v7135
        %v7516 = vmul.f32 %v7452, %v7246
        %v7517 = vmul.f32 %v7453, %v7248
        %v7518 = vmul.f32 %v7454, %v7139
        %v7519 = vmul.f32 %v7455, %v7141
        %v7520 = vmul.f32 %v7456, %v7252
        %v7521 = vmul.f32 %v7457, %v7254
        %v7522 = vmul.f32 %v7458, %v7143
        %v7523 = vmul.f32 %v7459, %v7145
        %v7524 = vmul.f32 %v7460, %v7256
        %v7525 = vmul.f32 %v7461, %v7258
        %v7526 = vmul.f32 %v7462, %v7149
        %v7527 = vmul.f32 %v7463, %v7151
        %v7528 = vmul.f32 %v7464, %v7262
        %v7529 = vmul.f32 %v7465, %v7264
        %v7530 = vmul.f32 %v7466, %v7153
        %v7531 = vmul.f32 %v7467, %v7155
        %v7532 = vmul.f32 %v7468, %v7266
        %v7533 = vmul.f32 %v7469, %v7268
        %v7534 = vmul.f32 %v7470, %v7159
        %v7535 = vmul.f32 %v7471, %v7161
        %v7536 = vmul.f32 %v7472, %v7272
        %v7537 = vmul.f32 %v7473, %v7274
        %v7538 = vmul.f32 %v7474, %v7163
        %v7539 = vmul.f32 %v7475, %v7165
        %v7540 = vmul.f32 %v7476, %v7276
        %v7541 = vmul.f32 %v7477, %v7278
        %v7542 = vmul.f32 %v7478, %v7169
        %v7543 = vmul.f32 %v7479, %v7171
        %v7544 = vmul.f32 %v7480, %v7282
        %v7545 = vmul.f32 %v7481, %v7284
        %v7546 = vmul.f32 %v7482, %v7173
        %v7547 = vmul.f32 %v7483, %v7175
        %v7548 = vmul.f32 %v7484, %v7286
        %v7549 = vmul.f32 %v7485, %v7288
        %v7550 = vmul.f32 %v7486, %v7179
        %v7551 = vmul.f32 %v7487, %v7181
        %v7552 = vmul.f32 %v7488, %v7292
        %v7553 = vmul.f32 %v7489, %v7294
        %v7554 = vmul.f32 %v7490, %v7183
        %v7555 = vmul.f32 %v7491, %v7185
        %v7556 = vmul.f32 %v7492, %v7296
        %v7557 = vmul.f32 %v7493, %v7298
        %v7558 = vmul.f32 %v7494, %v7189
        %v7559 = vmul.f32 %v7495, %v7191
        %v7560 = vmul.f32 %v7496, %v7302
        %v7561 = vmul.f32 %v7497, %v7304
        %v7562 = vmul.f32 %v7498, %v7193
        %v7563 = vmul.f32 %v7499, %v7195
        %v7564 = vmul.f32 %v7500, %v7306
        %v7565 = vmul.f32 %v7501, %v7308
        %v7566 = vadd.f32 %v7119, %v7502
        %v7567 = vadd.f32 %v7121, %v7503
        %v7568 = vadd.f32 %v7232, %v7504
        %v7569 = vadd.f32 %v7234, %v7505
        %v7570 = vadd.f32 %v7123, %v7506
        %v7571 = vadd.f32 %v7125, %v7507
        %v7572 = vadd.f32 %v7236, %v7508
        %v7573 = vadd.f32 %v7238, %v7509
        %v7574 = vadd.f32 %v7129, %v7510
        %v7575 = vadd.f32 %v7131, %v7511
        %v7576 = vadd.f32 %v7242, %v7512
        %v7577 = vadd.f32 %v7244, %v7513
        %v7578 = vadd.f32 %v7133, %v7514
        %v7579 = vadd.f32 %v7135, %v7515
        %v7580 = vadd.f32 %v7246, %v7516
        %v7581 = vadd.f32 %v7248, %v7517
        %v7582 = vadd.f32 %v7139, %v7518
        %v7583 = vadd.f32 %v7141, %v7519
        %v7584 = vadd.f32 %v7252, %v7520
        %v7585 = vadd.f32 %v7254, %v7521
        %v7586 = vadd.f32 %v7143, %v7522
        %v7587 = vadd.f32 %v7145, %v7523
        %v7588 = vadd.f32 %v7256, %v7524
        %v7589 = vadd.f32 %v7258, %v7525
        %v7590 = vadd.f32 %v7149, %v7526
        %v7591 = vadd.f32 %v7151, %v7527
        %v7592 = vadd.f32 %v7262, %v7528
        %v7593 = vadd.f32 %v7264, %v7529
        %v7594 = vadd.f32 %v7153, %v7530
        %v7595 = vadd.f32 %v7155, %v7531
        %v7596 = vadd.f32 %v7266, %v7532
        %v7597 = vadd.f32 %v7268, %v7533
        %v7598 = vadd.f32 %v7159, %v7534
        %v7599 = vadd.f32 %v7161, %v7535
        %v7600 = vadd.f32 %v7272, %v7536
        %v7601 = vadd.f32 %v7274, %v7537
        %v7602 = vadd.f32 %v7163, %v7538
        %v7603 = vadd.f32 %v7165, %v7539
        %v7604 = vadd.f32 %v7276, %v7540
        %v7605 = vadd.f32 %v7278, %v7541
        %v7606 = vadd.f32 %v7169, %v7542
        %v7607 = vadd.f32 %v7171, %v7543
        %v7608 = vadd.f32 %v7282, %v7544
        %v7609 = vadd.f32 %v7284, %v7545
        %v7610 = vadd.f32 %v7173, %v7546
        %v7611 = vadd.f32 %v7175, %v7547
        %v7612 = vadd.f32 %v7286, %v7548
        %v7613 = vadd.f32 %v7288, %v7549
        %v7614 = vadd.f32 %v7179, %v7550
        %v7615 = vadd.f32 %v7181, %v7551
        %v7616 = vadd.f32 %v7292, %v7552
        %v7617 = vadd.f32 %v7294, %v7553
        %v7618 = vadd.f32 %v7183, %v7554
        %v7619 = vadd.f32 %v7185, %v7555
        %v7620 = vadd.f32 %v7296, %v7556
        %v7621 = vadd.f32 %v7298, %v7557
        %v7622 = vadd.f32 %v7189, %v7558
        %v7623 = vadd.f32 %v7191, %v7559
        %v7624 = vadd.f32 %v7302, %v7560
        %v7625 = vadd.f32 %v7304, %v7561
        %v7626 = vadd.f32 %v7193, %v7562
        %v7627 = vadd.f32 %v7195, %v7563
        %v7628 = vadd.f32 %v7306, %v7564
        %v7629 = vadd.f32 %v7308, %v7565
        %v7630 = vmul.f32 %v7566, 0.7978846
        %v7631 = vmul.f32 %v7567, 0.7978846
        %v7632 = vmul.f32 %v7568, 0.7978846
        %v7633 = vmul.f32 %v7569, 0.7978846
        %v7634 = vmul.f32 %v7570, 0.7978846
        %v7635 = vmul.f32 %v7571, 0.7978846
        %v7636 = vmul.f32 %v7572, 0.7978846
        %v7637 = vmul.f32 %v7573, 0.7978846
        %v7638 = vmul.f32 %v7574, 0.7978846
        %v7639 = vmul.f32 %v7575, 0.7978846
        %v7640 = vmul.f32 %v7576, 0.7978846
        %v7641 = vmul.f32 %v7577, 0.7978846
        %v7642 = vmul.f32 %v7578, 0.7978846
        %v7643 = vmul.f32 %v7579, 0.7978846
        %v7644 = vmul.f32 %v7580, 0.7978846
        %v7645 = vmul.f32 %v7581, 0.7978846
        %v7646 = vmul.f32 %v7582, 0.7978846
        %v7647 = vmul.f32 %v7583, 0.7978846
        %v7648 = vmul.f32 %v7584, 0.7978846
        %v7649 = vmul.f32 %v7585, 0.7978846
        %v7650 = vmul.f32 %v7586, 0.7978846
        %v7651 = vmul.f32 %v7587, 0.7978846
        %v7652 = vmul.f32 %v7588, 0.7978846
        %v7653 = vmul.f32 %v7589, 0.7978846
        %v7654 = vmul.f32 %v7590, 0.7978846
        %v7655 = vmul.f32 %v7591, 0.7978846
        %v7656 = vmul.f32 %v7592, 0.7978846
        %v7657 = vmul.f32 %v7593, 0.7978846
        %v7658 = vmul.f32 %v7594, 0.7978846
        %v7659 = vmul.f32 %v7595, 0.7978846
        %v7660 = vmul.f32 %v7596, 0.7978846
        %v7661 = vmul.f32 %v7597, 0.7978846
        %v7662 = vmul.f32 %v7598, 0.7978846
        %v7663 = vmul.f32 %v7599, 0.7978846
        %v7664 = vmul.f32 %v7600, 0.7978846
        %v7665 = vmul.f32 %v7601, 0.7978846
        %v7666 = vmul.f32 %v7602, 0.7978846
        %v7667 = vmul.f32 %v7603, 0.7978846
        %v7668 = vmul.f32 %v7604, 0.7978846
        %v7669 = vmul.f32 %v7605, 0.7978846
        %v7670 = vmul.f32 %v7606, 0.7978846
        %v7671 = vmul.f32 %v7607, 0.7978846
        %v7672 = vmul.f32 %v7608, 0.7978846
        %v7673 = vmul.f32 %v7609, 0.7978846
        %v7674 = vmul.f32 %v7610, 0.7978846
        %v7675 = vmul.f32 %v7611, 0.7978846
        %v7676 = vmul.f32 %v7612, 0.7978846
        %v7677 = vmul.f32 %v7613, 0.7978846
        %v7678 = vmul.f32 %v7614, 0.7978846
        %v7679 = vmul.f32 %v7615, 0.7978846
        %v7680 = vmul.f32 %v7616, 0.7978846
        %v7681 = vmul.f32 %v7617, 0.7978846
        %v7682 = vmul.f32 %v7618, 0.7978846
        %v7683 = vmul.f32 %v7619, 0.7978846
        %v7684 = vmul.f32 %v7620, 0.7978846
        %v7685 = vmul.f32 %v7621, 0.7978846
        %v7686 = vmul.f32 %v7622, 0.7978846
        %v7687 = vmul.f32 %v7623, 0.7978846
        %v7688 = vmul.f32 %v7624, 0.7978846
        %v7689 = vmul.f32 %v7625, 0.7978846
        %v7690 = vmul.f32 %v7626, 0.7978846
        %v7691 = vmul.f32 %v7627, 0.7978846
        %v7692 = vmul.f32 %v7628, 0.7978846
        %v7693 = vmul.f32 %v7629, 0.7978846
        %v7694 = vtanh.pop %v7630
        %v7695 = vtanh.pop %v7631
        %v7696 = vtanh.pop %v7632
        %v7697 = vtanh.pop %v7633
        %v7698 = vtanh.pop %v7634
        %v7699 = vtanh.pop %v7635
        %v7700 = vtanh.pop %v7636
        %v7701 = vtanh.pop %v7637
        %v7702 = vtanh.pop %v7638
        %v7703 = vtanh.pop %v7639
        %v7704 = vtanh.pop %v7640
        %v7705 = vtanh.pop %v7641
        %v7706 = vtanh.pop %v7642
        %v7707 = vtanh.pop %v7643
        %v7708 = vtanh.pop %v7644
        %v7709 = vtanh.pop %v7645
        %v7710 = vtanh.pop %v7646
        %v7711 = vtanh.pop %v7647
        %v7712 = vtanh.pop %v7648
        %v7713 = vtanh.pop %v7649
        %v7714 = vtanh.pop %v7650
        %v7715 = vtanh.pop %v7651
        %v7716 = vtanh.pop %v7652
        %v7717 = vtanh.pop %v7653
        %v7718 = vtanh.pop %v7654
        %v7719 = vtanh.pop %v7655
        %v7720 = vtanh.pop %v7656
        %v7721 = vtanh.pop %v7657
        %v7722 = vtanh.pop %v7658
        %v7723 = vtanh.pop %v7659
        %v7724 = vtanh.pop %v7660
        %v7725 = vtanh.pop %v7661
        %v7726 = vtanh.pop %v7662
        %v7727 = vtanh.pop %v7663
        %v7728 = vtanh.pop %v7664
        %v7729 = vtanh.pop %v7665
        %v7730 = vtanh.pop %v7666
        %v7731 = vtanh.pop %v7667
        %v7732 = vtanh.pop %v7668
        %v7733 = vtanh.pop %v7669
        %v7734 = vtanh.pop %v7670
        %v7735 = vtanh.pop %v7671
        %v7736 = vtanh.pop %v7672
        %v7737 = vtanh.pop %v7673
        %v7738 = vtanh.pop %v7674
        %v7739 = vtanh.pop %v7675
        %v7740 = vtanh.pop %v7676
        %v7741 = vtanh.pop %v7677
        %v7742 = vtanh.pop %v7678
        %v7743 = vtanh.pop %v7679
        %v7744 = vtanh.pop %v7680
        %v7745 = vtanh.pop %v7681
        %v7746 = vtanh.pop %v7682
        %v7747 = vtanh.pop %v7683
        %v7748 = vtanh.pop %v7684
        %v7749 = vtanh.pop %v7685
        %v7750 = vtanh.pop %v7686
        %v7751 = vtanh.pop %v7687
        %v7752 = vtanh.pop %v7688
        %v7753 = vtanh.pop %v7689
        %v7754 = vtanh.pop %v7690
        %v7755 = vtanh.pop %v7691
        %v7756 = vtanh.pop %v7692
        %v7757 = vtanh.pop %v7693
        %v7758 = vadd.f32 %v7694, 1.0
        %v7759 = vadd.f32 %v7695, 1.0
        %v7760 = vadd.f32 %v7696, 1.0
        %v7761 = vadd.f32 %v7697, 1.0
        %v7762 = vadd.f32 %v7698, 1.0
        %v7763 = vadd.f32 %v7699, 1.0
        %v7764 = vadd.f32 %v7700, 1.0
        %v7765 = vadd.f32 %v7701, 1.0
        %v7766 = vadd.f32 %v7702, 1.0
        %v7767 = vadd.f32 %v7703, 1.0
        %v7768 = vadd.f32 %v7704, 1.0
        %v7769 = vadd.f32 %v7705, 1.0
        %v7770 = vadd.f32 %v7706, 1.0
        %v7771 = vadd.f32 %v7707, 1.0
        %v7772 = vadd.f32 %v7708, 1.0
        %v7773 = vadd.f32 %v7709, 1.0
        %v7774 = vadd.f32 %v7710, 1.0
        %v7775 = vadd.f32 %v7711, 1.0
        %v7776 = vadd.f32 %v7712, 1.0
        %v7777 = vadd.f32 %v7713, 1.0
        %v7778 = vadd.f32 %v7714, 1.0
        %v7779 = vadd.f32 %v7715, 1.0
        %v7780 = vadd.f32 %v7716, 1.0
        %v7781 = vadd.f32 %v7717, 1.0
        %v7782 = vadd.f32 %v7718, 1.0
        %v7783 = vadd.f32 %v7719, 1.0
        %v7784 = vadd.f32 %v7720, 1.0
        %v7785 = vadd.f32 %v7721, 1.0
        %v7786 = vadd.f32 %v7722, 1.0
        %v7787 = vadd.f32 %v7723, 1.0
        %v7788 = vadd.f32 %v7724, 1.0
        %v7789 = vadd.f32 %v7725, 1.0
        %v7790 = vadd.f32 %v7726, 1.0
        %v7791 = vadd.f32 %v7727, 1.0
        %v7792 = vadd.f32 %v7728, 1.0
        %v7793 = vadd.f32 %v7729, 1.0
        %v7794 = vadd.f32 %v7730, 1.0
        %v7795 = vadd.f32 %v7731, 1.0
        %v7796 = vadd.f32 %v7732, 1.0
        %v7797 = vadd.f32 %v7733, 1.0
        %v7798 = vadd.f32 %v7734, 1.0
        %v7799 = vadd.f32 %v7735, 1.0
        %v7800 = vadd.f32 %v7736, 1.0
        %v7801 = vadd.f32 %v7737, 1.0
        %v7802 = vadd.f32 %v7738, 1.0
        %v7803 = vadd.f32 %v7739, 1.0
        %v7804 = vadd.f32 %v7740, 1.0
        %v7805 = vadd.f32 %v7741, 1.0
        %v7806 = vadd.f32 %v7742, 1.0
        %v7807 = vadd.f32 %v7743, 1.0
        %v7808 = vadd.f32 %v7744, 1.0
        %v7809 = vadd.f32 %v7745, 1.0
        %v7810 = vadd.f32 %v7746, 1.0
        %v7811 = vadd.f32 %v7747, 1.0
        %v7812 = vadd.f32 %v7748, 1.0
        %v7813 = vadd.f32 %v7749, 1.0
        %v7814 = vadd.f32 %v7750, 1.0
        %v7815 = vadd.f32 %v7751, 1.0
        %v7816 = vadd.f32 %v7752, 1.0
        %v7817 = vadd.f32 %v7753, 1.0
        %v7818 = vadd.f32 %v7754, 1.0
        %v7819 = vadd.f32 %v7755, 1.0
        %v7820 = vadd.f32 %v7756, 1.0
        %v7821 = vadd.f32 %v7757, 1.0
        %v7822 = vmul.f32 %v7310, %v7758
        %v7823 = vmul.f32 %v7311, %v7759
        %v7824 = vmul.f32 %v7312, %v7760
        %v7825 = vmul.f32 %v7313, %v7761
        %v7826 = vmul.f32 %v7314, %v7762
        %v7827 = vmul.f32 %v7315, %v7763
        %v7828 = vmul.f32 %v7316, %v7764
        %v7829 = vmul.f32 %v7317, %v7765
        %v7830 = vmul.f32 %v7318, %v7766
        %v7831 = vmul.f32 %v7319, %v7767
        %v7832 = vmul.f32 %v7320, %v7768
        %v7833 = vmul.f32 %v7321, %v7769
        %v7834 = vmul.f32 %v7322, %v7770
        %v7835 = vmul.f32 %v7323, %v7771
        %v7836 = vmul.f32 %v7324, %v7772
        %v7837 = vmul.f32 %v7325, %v7773
        %v7838 = vmul.f32 %v7326, %v7774
        %v7839 = vmul.f32 %v7327, %v7775
        %v7840 = vmul.f32 %v7328, %v7776
        %v7841 = vmul.f32 %v7329, %v7777
        %v7842 = vmul.f32 %v7330, %v7778
        %v7843 = vmul.f32 %v7331, %v7779
        %v7844 = vmul.f32 %v7332, %v7780
        %v7845 = vmul.f32 %v7333, %v7781
        %v7846 = vmul.f32 %v7334, %v7782
        %v7847 = vmul.f32 %v7335, %v7783
        %v7848 = vmul.f32 %v7336, %v7784
        %v7849 = vmul.f32 %v7337, %v7785
        %v7850 = vmul.f32 %v7338, %v7786
        %v7851 = vmul.f32 %v7339, %v7787
        %v7852 = vmul.f32 %v7340, %v7788
        %v7853 = vmul.f32 %v7341, %v7789
        %v7854 = vmul.f32 %v7342, %v7790
        %v7855 = vmul.f32 %v7343, %v7791
        %v7856 = vmul.f32 %v7344, %v7792
        %v7857 = vmul.f32 %v7345, %v7793
        %v7858 = vmul.f32 %v7346, %v7794
        %v7859 = vmul.f32 %v7347, %v7795
        %v7860 = vmul.f32 %v7348, %v7796
        %v7861 = vmul.f32 %v7349, %v7797
        %v7862 = vmul.f32 %v7350, %v7798
        %v7863 = vmul.f32 %v7351, %v7799
        %v7864 = vmul.f32 %v7352, %v7800
        %v7865 = vmul.f32 %v7353, %v7801
        %v7866 = vmul.f32 %v7354, %v7802
        %v7867 = vmul.f32 %v7355, %v7803
        %v7868 = vmul.f32 %v7356, %v7804
        %v7869 = vmul.f32 %v7357, %v7805
        %v7870 = vmul.f32 %v7358, %v7806
        %v7871 = vmul.f32 %v7359, %v7807
        %v7872 = vmul.f32 %v7360, %v7808
        %v7873 = vmul.f32 %v7361, %v7809
        %v7874 = vmul.f32 %v7362, %v7810
        %v7875 = vmul.f32 %v7363, %v7811
        %v7876 = vmul.f32 %v7364, %v7812
        %v7877 = vmul.f32 %v7365, %v7813
        %v7878 = vmul.f32 %v7366, %v7814
        %v7879 = vmul.f32 %v7367, %v7815
        %v7880 = vmul.f32 %v7368, %v7816
        %v7881 = vmul.f32 %v7369, %v7817
        %v7882 = vmul.f32 %v7370, %v7818
        %v7883 = vmul.f32 %v7371, %v7819
        %v7884 = vmul.f32 %v7372, %v7820
        %v7885 = vmul.f32 %v7373, %v7821
        %v7886 = vpack.c.bf16 %v7826, %v7822
        %v7887 = vpack.c.bf16 %v7827, %v7823
        %v7888 = vpack.c.bf16 %v7828, %v7824
        %v7889 = vpack.c.bf16 %v7829, %v7825
        %v7890 = vpack.c.bf16 %v7834, %v7830
        %v7891 = vpack.c.bf16 %v7835, %v7831
        %v7892 = vpack.c.bf16 %v7836, %v7832
        %v7893 = vpack.c.bf16 %v7837, %v7833
        %v7894 = vpack.c.bf16 %v7842, %v7838
        %v7895 = vpack.c.bf16 %v7843, %v7839
        %v7896 = vpack.c.bf16 %v7844, %v7840
        %v7897 = vpack.c.bf16 %v7845, %v7841
        %v7898 = vpack.c.bf16 %v7850, %v7846
        %v7899 = vpack.c.bf16 %v7851, %v7847
        %v7900 = vpack.c.bf16 %v7852, %v7848
        %v7901 = vpack.c.bf16 %v7853, %v7849
        %v7902 = vpack.c.bf16 %v7858, %v7854
        %v7903 = vpack.c.bf16 %v7859, %v7855
        %v7904 = vpack.c.bf16 %v7860, %v7856
        %v7905 = vpack.c.bf16 %v7861, %v7857
        %v7906 = vpack.c.bf16 %v7866, %v7862
        %v7907 = vpack.c.bf16 %v7867, %v7863
        %v7908 = vpack.c.bf16 %v7868, %v7864
        %v7909 = vpack.c.bf16 %v7869, %v7865
        %v7910 = vpack.c.bf16 %v7874, %v7870
        %v7911 = vpack.c.bf16 %v7875, %v7871
        %v7912 = vpack.c.bf16 %v7876, %v7872
        %v7913 = vpack.c.bf16 %v7877, %v7873
        %v7914 = vpack.c.bf16 %v7882, %v7878
        %v7915 = vpack.c.bf16 %v7883, %v7879
        %v7916 = vpack.c.bf16 %v7884, %v7880
        %v7917 = vpack.c.bf16 %v7885, %v7881
        %s7918 = scalar_lea.vmem [#allocation16], 256
        %v7919 = vld [vmem:[%s7918] sm:$0xf]
        %v7920 = vld [vmem:[%s7918 + $0x4] sm:$0xf]
        %v7921 = vld [vmem:[%s7918 + $0x8] sm:$0xf]
        %v7922 = vld [vmem:[%s7918 + $0xc] sm:$0xf]
        %v7923 = vld [vmem:[%s7918 + $0x10] sm:$0xf]
        %v7924 = vld [vmem:[%s7918 + $0x14] sm:$0xf]
        %v7925 = vld [vmem:[%s7918 + $0x18] sm:$0xf]
        %v7926 = vld [vmem:[%s7918 + $0x1c] sm:$0xf]
        %v7927 = vld [vmem:[%s7918 + $0x20] sm:$0xf]
        %v7928 = vld [vmem:[%s7918 + $0x24] sm:$0xf]
        %v7929 = vld [vmem:[%s7918 + $0x28] sm:$0xf]
        %v7930 = vld [vmem:[%s7918 + $0x2c] sm:$0xf]
        %v7931 = vld [vmem:[%s7918 + $0x30] sm:$0xf]
        %v7932 = vld [vmem:[%s7918 + $0x34] sm:$0xf]
        %v7933 = vld [vmem:[%s7918 + $0x38] sm:$0xf]
        %v7934 = vld [vmem:[%s7918 + $0x3c] sm:$0xf]
        %v7935 = vld [vmem:[%s7918 + $0x40] sm:$0xf]
        %v7936 = vld [vmem:[%s7918 + $0x44] sm:$0xf]
        %v7937 = vld [vmem:[%s7918 + $0x48] sm:$0xf]
        %v7938 = vld [vmem:[%s7918 + $0x4c] sm:$0xf]
        %v7939 = vld [vmem:[%s7918 + $0x50] sm:$0xf]
        %v7940 = vld [vmem:[%s7918 + $0x54] sm:$0xf]
        %v7941 = vld [vmem:[%s7918 + $0x58] sm:$0xf]
        %v7942 = vld [vmem:[%s7918 + $0x5c] sm:$0xf]
        %v7943 = vld [vmem:[%s7918 + $0x60] sm:$0xf]
        %v7944 = vld [vmem:[%s7918 + $0x64] sm:$0xf]
        %v7945 = vld [vmem:[%s7918 + $0x68] sm:$0xf]
        %v7946 = vld [vmem:[%s7918 + $0x6c] sm:$0xf]
        %v7947 = vld [vmem:[%s7918 + $0x70] sm:$0xf]
        %v7948 = vld [vmem:[%s7918 + $0x74] sm:$0xf]
        %v7949 = vld [vmem:[%s7918 + $0x78] sm:$0xf]
        %v7950 = vld [vmem:[%s7918 + $0x7c] sm:$0xf]
        %v7951 = vld [vmem:[%s7918 + $0x80] sm:$0xf]
        %v7952 = vld [vmem:[%s7918 + $0x84] sm:$0xf]
        %v7953 = vld [vmem:[%s7918 + $0x88] sm:$0xf]
        %v7954 = vld [vmem:[%s7918 + $0x8c] sm:$0xf]
        %v7955 = vld [vmem:[%s7918 + $0x90] sm:$0xf]
        %v7956 = vld [vmem:[%s7918 + $0x94] sm:$0xf]
        %v7957 = vld [vmem:[%s7918 + $0x98] sm:$0xf]
        %v7958 = vld [vmem:[%s7918 + $0x9c] sm:$0xf]
        %v7959 = vld [vmem:[%s7918 + $0xa0] sm:$0xf]
        %v7960 = vld [vmem:[%s7918 + $0xa4] sm:$0xf]
        %v7961 = vld [vmem:[%s7918 + $0xa8] sm:$0xf]
        %v7962 = vld [vmem:[%s7918 + $0xac] sm:$0xf]
        %v7963 = vld [vmem:[%s7918 + $0xb0] sm:$0xf]
        %v7964 = vld [vmem:[%s7918 + $0xb4] sm:$0xf]
        %v7965 = vld [vmem:[%s7918 + $0xb8] sm:$0xf]
        %v7966 = vld [vmem:[%s7918 + $0xbc] sm:$0xf]
        %v7967 = vld [vmem:[%s7918 + $0xc0] sm:$0xf]
        %v7968 = vld [vmem:[%s7918 + $0xc4] sm:$0xf]
        %v7969 = vld [vmem:[%s7918 + $0xc8] sm:$0xf]
        %v7970 = vld [vmem:[%s7918 + $0xcc] sm:$0xf]
        %v7971 = vld [vmem:[%s7918 + $0xd0] sm:$0xf]
        %v7972 = vld [vmem:[%s7918 + $0xd4] sm:$0xf]
        %v7973 = vld [vmem:[%s7918 + $0xd8] sm:$0xf]
        %v7974 = vld [vmem:[%s7918 + $0xdc] sm:$0xf]
        %v7975 = vld [vmem:[%s7918 + $0xe0] sm:$0xf]
        %v7976 = vld [vmem:[%s7918 + $0xe4] sm:$0xf]
        %v7977 = vld [vmem:[%s7918 + $0xe8] sm:$0xf]
        %v7978 = vld [vmem:[%s7918 + $0xec] sm:$0xf]
        %v7979 = vld [vmem:[%s7918 + $0xf0] sm:$0xf]
        %v7980 = vld [vmem:[%s7918 + $0xf4] sm:$0xf]
        %v7981 = vld [vmem:[%s7918 + $0xf8] sm:$0xf]
        %v7982 = vld [vmem:[%s7918 + $0xfc] sm:$0xf]
        %s7983 = scalar_lea.vmem %s12, 1
        %v7984 = vld [vmem:[%s7983] sm:$0x1]
        %v7986 = vlaneseq
        %v7987 = vshrl.u32 %v7986, 7
        %v7988 = vsub.s32 0, %v7987
        %v7989 = vrot.slane %v7984, %v7988
        %v8055 = vunpack.c.l.b16 %v7919
        %v8056 = vunpack.c.l.b16 %v7920
        %v8057 = vunpack.c.l.b16 %v7921
        %v8058 = vunpack.c.l.b16 %v7922
        %v8059 = vunpack.c.l.b16 %v7923
        %v8060 = vunpack.c.l.b16 %v7924
        %v8061 = vunpack.c.l.b16 %v7925
        %v8062 = vunpack.c.l.b16 %v7926
        %v8063 = vunpack.c.l.b16 %v7927
        %v8064 = vunpack.c.l.b16 %v7928
        %v8065 = vunpack.c.l.b16 %v7929
        %v8066 = vunpack.c.l.b16 %v7930
        %v8067 = vunpack.c.l.b16 %v7931
        %v8068 = vunpack.c.l.b16 %v7932
        %v8069 = vunpack.c.l.b16 %v7933
        %v8070 = vunpack.c.l.b16 %v7934
        %v8071 = vunpack.c.l.b16 %v7935
        %v8072 = vunpack.c.l.b16 %v7936
        %v8073 = vunpack.c.l.b16 %v7937
        %v8074 = vunpack.c.l.b16 %v7938
        %v8075 = vunpack.c.l.b16 %v7939
        %v8076 = vunpack.c.l.b16 %v7940
        %v8077 = vunpack.c.l.b16 %v7941
        %v8078 = vunpack.c.l.b16 %v7942
        %v8079 = vunpack.c.l.b16 %v7943
        %v8080 = vunpack.c.l.b16 %v7944
        %v8081 = vunpack.c.l.b16 %v7945
        %v8082 = vunpack.c.l.b16 %v7946
        %v8083 = vunpack.c.l.b16 %v7947
        %v8084 = vunpack.c.l.b16 %v7948
        %v8085 = vunpack.c.l.b16 %v7949
        %v8086 = vunpack.c.l.b16 %v7950
        %v8087 = vunpack.c.l.b16 %v7951
        %v8088 = vunpack.c.l.b16 %v7952
        %v8089 = vunpack.c.l.b16 %v7953
        %v8090 = vunpack.c.l.b16 %v7954
        %v8091 = vunpack.c.l.b16 %v7955
        %v8092 = vunpack.c.l.b16 %v7956
        %v8093 = vunpack.c.l.b16 %v7957
        %v8094 = vunpack.c.l.b16 %v7958
        %v8095 = vunpack.c.l.b16 %v7959
        %v8096 = vunpack.c.l.b16 %v7960
        %v8097 = vunpack.c.l.b16 %v7961
        %v8098 = vunpack.c.l.b16 %v7962
        %v8099 = vunpack.c.l.b16 %v7963
        %v8100 = vunpack.c.l.b16 %v7964
        %v8101 = vunpack.c.l.b16 %v7965
        %v8102 = vunpack.c.l.b16 %v7966
        %v8103 = vunpack.c.l.b16 %v7967
        %v8104 = vunpack.c.l.b16 %v7968
        %v8105 = vunpack.c.l.b16 %v7969
        %v8106 = vunpack.c.l.b16 %v7970
        %v8107 = vunpack.c.l.b16 %v7971
        %v8108 = vunpack.c.l.b16 %v7972
        %v8109 = vunpack.c.l.b16 %v7973
        %v8110 = vunpack.c.l.b16 %v7974
        %v8111 = vunpack.c.l.b16 %v7975
        %v8112 = vunpack.c.l.b16 %v7976
        %v8113 = vunpack.c.l.b16 %v7977
        %v8114 = vunpack.c.l.b16 %v7978
        %v8115 = vunpack.c.l.b16 %v7979
        %v8116 = vunpack.c.l.b16 %v7980
        %v8117 = vunpack.c.l.b16 %v7981
        %v8118 = vunpack.c.l.b16 %v7982
        %v8119 = vpack.c.b16 %v8056, %v8055
        %v8120 = vpack.c.b16 %v8058, %v8057
        %v8121 = vpack.c.b16 %v8060, %v8059
        %v8122 = vpack.c.b16 %v8062, %v8061
        %v8123 = vpack.c.b16 %v8064, %v8063
        %v8124 = vpack.c.b16 %v8066, %v8065
        %v8125 = vpack.c.b16 %v8068, %v8067
        %v8126 = vpack.c.b16 %v8070, %v8069
        %v8127 = vpack.c.b16 %v8072, %v8071
        %v8128 = vpack.c.b16 %v8074, %v8073
        %v8129 = vpack.c.b16 %v8076, %v8075
        %v8130 = vpack.c.b16 %v8078, %v8077
        %v8131 = vpack.c.b16 %v8080, %v8079
        %v8132 = vpack.c.b16 %v8082, %v8081
        %v8133 = vpack.c.b16 %v8084, %v8083
        %v8134 = vpack.c.b16 %v8086, %v8085
        %v8135 = vpack.c.b16 %v8088, %v8087
        %v8136 = vpack.c.b16 %v8090, %v8089
        %v8137 = vpack.c.b16 %v8092, %v8091
        %v8138 = vpack.c.b16 %v8094, %v8093
        %v8139 = vpack.c.b16 %v8096, %v8095
        %v8140 = vpack.c.b16 %v8098, %v8097
        %v8141 = vpack.c.b16 %v8100, %v8099
        %v8142 = vpack.c.b16 %v8102, %v8101
        %v8143 = vpack.c.b16 %v8104, %v8103
        %v8144 = vpack.c.b16 %v8106, %v8105
        %v8145 = vpack.c.b16 %v8108, %v8107
        %v8146 = vpack.c.b16 %v8110, %v8109
        %v8147 = vpack.c.b16 %v8112, %v8111
        %v8148 = vpack.c.b16 %v8114, %v8113
        %v8149 = vpack.c.b16 %v8116, %v8115
        %v8150 = vpack.c.b16 %v8118, %v8117
        %8183 = vmatprep.subr.bf16.mxu0 0
        %8184 = vmatpush1.bf16.msra.mxu0 %v8126
        %8185 = vmatprep.subr.bf16.mxu0 0
        %8186 = vmatpush1.bf16.msra.mxu0 %v8125
        %8187 = vmatprep.subr.bf16.mxu0 0
        %8188 = vmatpush1.bf16.msra.mxu0 %v8124
        %8189 = vmatprep.subr.bf16.mxu0 0
        %8190 = vmatpush1.bf16.msra.mxu0 %v8123
        %8191 = vmatprep.subr.bf16.mxu0 0
        %8192 = vmatpush1.bf16.msra.mxu0 %v8122
        %8193 = vmatprep.subr.bf16.mxu0 0
        %8194 = vmatpush1.bf16.msra.mxu0 %v8121
        %8195 = vmatprep.subr.bf16.mxu0 0
        %8196 = vmatpush1.bf16.msra.mxu0 %v8120
        %8197 = vmatprep.subr.bf16.mxu0 0
        %8198 = vmatpush1.bf16.msra.mxu0 %v8119
        %8199 = vmatprep.subr.bf16.mxu0 0
        %8200 = vmatpush2.bf16.msra.mxu0 %v8134
        %8201 = vmatprep.subr.bf16.mxu0 0
        %8202 = vmatpush2.bf16.msra.mxu0 %v8133
        %8203 = vmatprep.subr.bf16.mxu0 0
        %8204 = vmatpush2.bf16.msra.mxu0 %v8132
        %8205 = vmatprep.subr.bf16.mxu0 0
        %8206 = vmatpush2.bf16.msra.mxu0 %v8131
        %8207 = vmatprep.subr.bf16.mxu0 0
        %8208 = vmatpush2.bf16.msra.mxu0 %v8130
        %8209 = vmatprep.subr.bf16.mxu0 0
        %8210 = vmatpush2.bf16.msra.mxu0 %v8129
        %8211 = vmatprep.subr.bf16.mxu0 0
        %8212 = vmatpush2.bf16.msra.mxu0 %v8128
        %8213 = vmatprep.subr.bf16.mxu0 0
        %8214 = vmatpush2.bf16.msra.mxu0 %v8127
        %8215 = vmatprep.mubr.bf16.mxu0 %v7887
        %8216 = vmatmul.mubr.bf16.gmra.mxu0 %v7886
        %v8217 = vpop.f32.mrf.mxu0
        %v8218 = vadd.f32 %v7989, %v8217
        %v8219 = vpop.f32.mrf.mxu0
        %v8220 = vpop.f32.mrf.mxu0
        %v8221 = vadd.f32 %v7989, %v8220
        %v8222 = vpop.f32.mrf.mxu0
        %8223 = vmatprep.mubr.bf16.mxu0 %v7891
        %8224 = vmatmul.mubr.bf16.gmra.mxu0 %v7890
        %v8225 = vpop.f32.mrf.mxu0
        %v8226 = vadd.f32 %v7989, %v8225
        %v8227 = vpop.f32.mrf.mxu0
        %v8228 = vpop.f32.mrf.mxu0
        %v8229 = vadd.f32 %v7989, %v8228
        %v8230 = vpop.f32.mrf.mxu0
        %8231 = vmatprep.mubr.bf16.mxu0 %v7895
        %8232 = vmatmul.mubr.bf16.gmra.mxu0 %v7894
        %v8233 = vpop.f32.mrf.mxu0
        %v8234 = vadd.f32 %v7989, %v8233
        %v8235 = vpop.f32.mrf.mxu0
        %v8236 = vpop.f32.mrf.mxu0
        %v8237 = vadd.f32 %v7989, %v8236
        %v8238 = vpop.f32.mrf.mxu0
        %8239 = vmatprep.mubr.bf16.mxu0 %v7899
        %8240 = vmatmul.mubr.bf16.gmra.mxu0 %v7898
        %v8241 = vpop.f32.mrf.mxu0
        %v8242 = vadd.f32 %v7989, %v8241
        %v8243 = vpop.f32.mrf.mxu0
        %v8244 = vpop.f32.mrf.mxu0
        %v8245 = vadd.f32 %v7989, %v8244
        %v8246 = vpop.f32.mrf.mxu0
        %8247 = vmatprep.mubr.bf16.mxu0 %v7903
        %8248 = vmatmul.mubr.bf16.gmra.mxu0 %v7902
        %v8249 = vpop.f32.mrf.mxu0
        %v8250 = vadd.f32 %v7989, %v8249
        %v8251 = vpop.f32.mrf.mxu0
        %v8252 = vpop.f32.mrf.mxu0
        %v8253 = vadd.f32 %v7989, %v8252
        %v8254 = vpop.f32.mrf.mxu0
        %8255 = vmatprep.mubr.bf16.mxu0 %v7907
        %8256 = vmatmul.mubr.bf16.gmra.mxu0 %v7906
        %v8257 = vpop.f32.mrf.mxu0
        %v8258 = vadd.f32 %v7989, %v8257
        %v8259 = vpop.f32.mrf.mxu0
        %v8260 = vpop.f32.mrf.mxu0
        %v8261 = vadd.f32 %v7989, %v8260
        %v8262 = vpop.f32.mrf.mxu0
        %8263 = vmatprep.mubr.bf16.mxu0 %v7911
        %8264 = vmatmul.mubr.bf16.gmra.mxu0 %v7910
        %v8265 = vpop.f32.mrf.mxu0
        %v8266 = vadd.f32 %v7989, %v8265
        %v8267 = vpop.f32.mrf.mxu0
        %v8268 = vpop.f32.mrf.mxu0
        %v8269 = vadd.f32 %v7989, %v8268
        %v8270 = vpop.f32.mrf.mxu0
        %8271 = vmatprep.mubr.bf16.mxu0 %v7915
        %8272 = vmatmul.mubr.bf16.gmra.mxu0 %v7914
        %v8273 = vpop.f32.mrf.mxu0
        %v8274 = vadd.f32 %v7989, %v8273
        %v8275 = vpop.f32.mrf.mxu0
        %v8276 = vpop.f32.mrf.mxu0
        %v8277 = vadd.f32 %v7989, %v8276
        %v8278 = vpop.f32.mrf.mxu0
        %8279 = vdwg.mxu0
        %8280 = vmatprep.subr.bf16.mxu0 0
        %8281 = vmatpush1.bf16.msra.mxu0 %v8142
        %8282 = vmatprep.subr.bf16.mxu0 0
        %8283 = vmatpush1.bf16.msra.mxu0 %v8141
        %8284 = vmatprep.subr.bf16.mxu0 0
        %8285 = vmatpush1.bf16.msra.mxu0 %v8140
        %8286 = vmatprep.subr.bf16.mxu0 0
        %8287 = vmatpush1.bf16.msra.mxu0 %v8139
        %8288 = vmatprep.subr.bf16.mxu0 0
        %8289 = vmatpush1.bf16.msra.mxu0 %v8138
        %8290 = vmatprep.subr.bf16.mxu0 0
        %8291 = vmatpush1.bf16.msra.mxu0 %v8137
        %8292 = vmatprep.subr.bf16.mxu0 0
        %8293 = vmatpush1.bf16.msra.mxu0 %v8136
        %8294 = vmatprep.subr.bf16.mxu0 0
        %8295 = vmatpush1.bf16.msra.mxu0 %v8135
        %8296 = vmatprep.subr.bf16.mxu0 0
        %8297 = vmatpush2.bf16.msra.mxu0 %v8150
        %8298 = vmatprep.subr.bf16.mxu0 0
        %8299 = vmatpush2.bf16.msra.mxu0 %v8149
        %8300 = vmatprep.subr.bf16.mxu0 0
        %8301 = vmatpush2.bf16.msra.mxu0 %v8148
        %8302 = vmatprep.subr.bf16.mxu0 0
        %8303 = vmatpush2.bf16.msra.mxu0 %v8147
        %8304 = vmatprep.subr.bf16.mxu0 0
        %8305 = vmatpush2.bf16.msra.mxu0 %v8146
        %8306 = vmatprep.subr.bf16.mxu0 0
        %8307 = vmatpush2.bf16.msra.mxu0 %v8145
        %8308 = vmatprep.subr.bf16.mxu0 0
        %8309 = vmatpush2.bf16.msra.mxu0 %v8144
        %8310 = vmatprep.subr.bf16.mxu0 0
        %8311 = vmatpush2.bf16.msra.mxu0 %v8143
        %8312 = vmatprep.mubr.bf16.mxu0 %v7889
        %8313 = vmatmul.mubr.bf16.gmra.mxu0 %v7888
        %v8314 = vpop.f32.mrf.mxu0
        %v8315 = vadd.f32 %v8218, %v8314
        %v8316 = vpop.f32.mrf.mxu0
        %v8317 = vpop.f32.mrf.mxu0
        %v8318 = vadd.f32 %v8221, %v8317
        %v8319 = vpop.f32.mrf.mxu0
        %8320 = vmatprep.mubr.bf16.mxu0 %v7893
        %8321 = vmatmul.mubr.bf16.gmra.mxu0 %v7892
        %v8322 = vpop.f32.mrf.mxu0
        %v8323 = vadd.f32 %v8226, %v8322
        %v8324 = vpop.f32.mrf.mxu0
        %v8325 = vpop.f32.mrf.mxu0
        %v8326 = vadd.f32 %v8229, %v8325
        %v8327 = vpop.f32.mrf.mxu0
        %8328 = vmatprep.mubr.bf16.mxu0 %v7897
        %8329 = vmatmul.mubr.bf16.gmra.mxu0 %v7896
        %v8330 = vpop.f32.mrf.mxu0
        %v8331 = vadd.f32 %v8234, %v8330
        %v8332 = vpop.f32.mrf.mxu0
        %v8333 = vpop.f32.mrf.mxu0
        %v8334 = vadd.f32 %v8237, %v8333
        %v8335 = vpop.f32.mrf.mxu0
        %8336 = vmatprep.mubr.bf16.mxu0 %v7901
        %8337 = vmatmul.mubr.bf16.gmra.mxu0 %v7900
        %v8338 = vpop.f32.mrf.mxu0
        %v8339 = vadd.f32 %v8242, %v8338
        %v8340 = vpop.f32.mrf.mxu0
        %v8341 = vpop.f32.mrf.mxu0
        %v8342 = vadd.f32 %v8245, %v8341
        %v8343 = vpop.f32.mrf.mxu0
        %8344 = vmatprep.mubr.bf16.mxu0 %v7905
        %8345 = vmatmul.mubr.bf16.gmra.mxu0 %v7904
        %v8346 = vpop.f32.mrf.mxu0
        %v8347 = vadd.f32 %v8250, %v8346
        %v8348 = vpop.f32.mrf.mxu0
        %v8349 = vpop.f32.mrf.mxu0
        %v8350 = vadd.f32 %v8253, %v8349
        %v8351 = vpop.f32.mrf.mxu0
        %8352 = vmatprep.mubr.bf16.mxu0 %v7909
        %8353 = vmatmul.mubr.bf16.gmra.mxu0 %v7908
        %v8354 = vpop.f32.mrf.mxu0
        %v8355 = vadd.f32 %v8258, %v8354
        %v8356 = vpop.f32.mrf.mxu0
        %v8357 = vpop.f32.mrf.mxu0
        %v8358 = vadd.f32 %v8261, %v8357
        %v8359 = vpop.f32.mrf.mxu0
        %8360 = vmatprep.mubr.bf16.mxu0 %v7913
        %8361 = vmatmul.mubr.bf16.gmra.mxu0 %v7912
        %v8362 = vpop.f32.mrf.mxu0
        %v8363 = vadd.f32 %v8266, %v8362
        %v8364 = vpop.f32.mrf.mxu0
        %v8365 = vpop.f32.mrf.mxu0
        %v8366 = vadd.f32 %v8269, %v8365
        %v8367 = vpop.f32.mrf.mxu0
        %8368 = vmatprep.mubr.bf16.mxu0 %v7917
        %8369 = vmatmul.mubr.bf16.gmra.mxu0 %v7916
        %v8370 = vpop.f32.mrf.mxu0
        %v8371 = vadd.f32 %v8274, %v8370
        %v8372 = vpop.f32.mrf.mxu0
        %v8373 = vpop.f32.mrf.mxu0
        %v8374 = vadd.f32 %v8277, %v8373
        %v8375 = vpop.f32.mrf.mxu0
        %8376 = vdwg.mxu0
        %v8377 = vadd.f32 %v6620, %v8315
        %v8378 = vadd.f32 %v6621, %v8318
        %v8379 = vadd.f32 %v6622, %v8323
        %v8380 = vadd.f32 %v6623, %v8326
        %v8381 = vadd.f32 %v6624, %v8331
        %v8382 = vadd.f32 %v6625, %v8334
        %v8383 = vadd.f32 %v6626, %v8339
        %v8384 = vadd.f32 %v6627, %v8342
        %v8385 = vadd.f32 %v6628, %v8347
        %v8386 = vadd.f32 %v6629, %v8350
        %v8387 = vadd.f32 %v6630, %v8355
        %v8388 = vadd.f32 %v6631, %v8358
        %v8389 = vadd.f32 %v6632, %v8363
        %v8390 = vadd.f32 %v6633, %v8366
        %v8391 = vadd.f32 %v6634, %v8371
        %v8392 = vadd.f32 %v6635, %v8374
        %v8393 = vld [vmem:[%s13] sm:$0x1]
        %v8394 = vld [vmem:[%s14] sm:$0x1]
        %8395 = vadd.xlane.f32.xlu0 %v8377
        %v8396 = vpop.xlane.xlu0 %8395
        %8397 = vadd.xlane.f32.xlu0 %v8378
        %v8398 = vpop.xlane.xlu0 %8397
        %8399 = vadd.xlane.f32.xlu0 %v8379
        %v8400 = vpop.xlane.xlu0 %8399
        %8401 = vadd.xlane.f32.xlu0 %v8380
        %v8402 = vpop.xlane.xlu0 %8401
        %8403 = vadd.xlane.f32.xlu0 %v8381
        %v8404 = vpop.xlane.xlu0 %8403
        %8405 = vadd.xlane.f32.xlu0 %v8382
        %v8406 = vpop.xlane.xlu0 %8405
        %8407 = vadd.xlane.f32.xlu0 %v8383
        %v8408 = vpop.xlane.xlu0 %8407
        %8409 = vadd.xlane.f32.xlu0 %v8384
        %v8410 = vpop.xlane.xlu0 %8409
        %8411 = vadd.xlane.f32.xlu0 %v8385
        %v8412 = vpop.xlane.xlu0 %8411
        %8413 = vadd.xlane.f32.xlu0 %v8386
        %v8414 = vpop.xlane.xlu0 %8413
        %8415 = vadd.xlane.f32.xlu0 %v8387
        %v8416 = vpop.xlane.xlu0 %8415
        %8417 = vadd.xlane.f32.xlu0 %v8388
        %v8418 = vpop.xlane.xlu0 %8417
        %8419 = vadd.xlane.f32.xlu0 %v8389
        %v8420 = vpop.xlane.xlu0 %8419
        %8421 = vadd.xlane.f32.xlu0 %v8390
        %v8422 = vpop.xlane.xlu0 %8421
        %8423 = vadd.xlane.f32.xlu0 %v8391
        %v8424 = vpop.xlane.xlu0 %8423
        %8425 = vadd.xlane.f32.xlu0 %v8392
        %v8426 = vpop.xlane.xlu0 %8425
        %v8427 = vmul.f32 %v8396, %v683
        %v8428 = vmul.f32 %v8398, %v683
        %v8429 = vmul.f32 %v8400, %v683
        %v8430 = vmul.f32 %v8402, %v683
        %v8431 = vmul.f32 %v8404, %v683
        %v8432 = vmul.f32 %v8406, %v683
        %v8433 = vmul.f32 %v8408, %v683
        %v8434 = vmul.f32 %v8410, %v683
        %v8435 = vmul.f32 %v8412, %v683
        %v8436 = vmul.f32 %v8414, %v683
        %v8437 = vmul.f32 %v8416, %v683
        %v8438 = vmul.f32 %v8418, %v683
        %v8439 = vmul.f32 %v8420, %v683
        %v8440 = vmul.f32 %v8422, %v683
        %v8441 = vmul.f32 %v8424, %v683
        %v8442 = vmul.f32 %v8426, %v683
        %v8443 = vsub.f32 %v8377, %v8427
        %v8444 = vsub.f32 %v8378, %v8428
        %v8445 = vsub.f32 %v8379, %v8429
        %v8446 = vsub.f32 %v8380, %v8430
        %v8447 = vsub.f32 %v8381, %v8431
        %v8448 = vsub.f32 %v8382, %v8432
        %v8449 = vsub.f32 %v8383, %v8433
        %v8450 = vsub.f32 %v8384, %v8434
        %v8451 = vsub.f32 %v8385, %v8435
        %v8452 = vsub.f32 %v8386, %v8436
        %v8453 = vsub.f32 %v8387, %v8437
        %v8454 = vsub.f32 %v8388, %v8438
        %v8455 = vsub.f32 %v8389, %v8439
        %v8456 = vsub.f32 %v8390, %v8440
        %v8457 = vsub.f32 %v8391, %v8441
        %v8458 = vsub.f32 %v8392, %v8442
        %v8459 = vmul.f32 %v8443, %v8443
        %v8460 = vmul.f32 %v8444, %v8444
        %v8461 = vmul.f32 %v8445, %v8445
        %v8462 = vmul.f32 %v8446, %v8446
        %v8463 = vmul.f32 %v8447, %v8447
        %v8464 = vmul.f32 %v8448, %v8448
        %v8465 = vmul.f32 %v8449, %v8449
        %v8466 = vmul.f32 %v8450, %v8450
        %v8467 = vmul.f32 %v8451, %v8451
        %v8468 = vmul.f32 %v8452, %v8452
        %v8469 = vmul.f32 %v8453, %v8453
        %v8470 = vmul.f32 %v8454, %v8454
        %v8471 = vmul.f32 %v8455, %v8455
        %v8472 = vmul.f32 %v8456, %v8456
        %v8473 = vmul.f32 %v8457, %v8457
        %v8474 = vmul.f32 %v8458, %v8458
        %8475 = vadd.xlane.f32.xlu0 %v8459
        %v8476 = vpop.xlane.xlu0 %8475
        %8477 = vadd.xlane.f32.xlu0 %v8460
        %v8478 = vpop.xlane.xlu0 %8477
        %8479 = vadd.xlane.f32.xlu0 %v8461
        %v8480 = vpop.xlane.xlu0 %8479
        %8481 = vadd.xlane.f32.xlu0 %v8462
        %v8482 = vpop.xlane.xlu0 %8481
        %8483 = vadd.xlane.f32.xlu0 %v8463
        %v8484 = vpop.xlane.xlu0 %8483
        %8485 = vadd.xlane.f32.xlu0 %v8464
        %v8486 = vpop.xlane.xlu0 %8485
        %8487 = vadd.xlane.f32.xlu0 %v8465
        %v8488 = vpop.xlane.xlu0 %8487
        %8489 = vadd.xlane.f32.xlu0 %v8466
        %v8490 = vpop.xlane.xlu0 %8489
        %8491 = vadd.xlane.f32.xlu0 %v8467
        %v8492 = vpop.xlane.xlu0 %8491
        %8493 = vadd.xlane.f32.xlu0 %v8468
        %v8494 = vpop.xlane.xlu0 %8493
        %8495 = vadd.xlane.f32.xlu0 %v8469
        %v8496 = vpop.xlane.xlu0 %8495
        %8497 = vadd.xlane.f32.xlu0 %v8470
        %v8498 = vpop.xlane.xlu0 %8497
        %8499 = vadd.xlane.f32.xlu0 %v8471
        %v8500 = vpop.xlane.xlu0 %8499
        %8501 = vadd.xlane.f32.xlu0 %v8472
        %v8502 = vpop.xlane.xlu0 %8501
        %8503 = vadd.xlane.f32.xlu0 %v8473
        %v8504 = vpop.xlane.xlu0 %8503
        %8505 = vadd.xlane.f32.xlu0 %v8474
        %v8506 = vpop.xlane.xlu0 %8505
        %v8507 = vmul.f32 %v8476, %v683
        %v8508 = vmul.f32 %v8478, %v683
        %v8509 = vmul.f32 %v8480, %v683
        %v8510 = vmul.f32 %v8482, %v683
        %v8511 = vmul.f32 %v8484, %v683
        %v8512 = vmul.f32 %v8486, %v683
        %v8513 = vmul.f32 %v8488, %v683
        %v8514 = vmul.f32 %v8490, %v683
        %v8515 = vmul.f32 %v8492, %v683
        %v8516 = vmul.f32 %v8494, %v683
        %v8517 = vmul.f32 %v8496, %v683
        %v8518 = vmul.f32 %v8498, %v683
        %v8519 = vmul.f32 %v8500, %v683
        %v8520 = vmul.f32 %v8502, %v683
        %v8521 = vmul.f32 %v8504, %v683
        %v8522 = vmul.f32 %v8506, %v683
        %v8523 = vadd.f32 %v8507, 1e-05
        %v8524 = vadd.f32 %v8508, 1e-05
        %v8525 = vadd.f32 %v8509, 1e-05
        %v8526 = vadd.f32 %v8510, 1e-05
        %v8527 = vadd.f32 %v8511, 1e-05
        %v8528 = vadd.f32 %v8512, 1e-05
        %v8529 = vadd.f32 %v8513, 1e-05
        %v8530 = vadd.f32 %v8514, 1e-05
        %v8531 = vadd.f32 %v8515, 1e-05
        %v8532 = vadd.f32 %v8516, 1e-05
        %v8533 = vadd.f32 %v8517, 1e-05
        %v8534 = vadd.f32 %v8518, 1e-05
        %v8535 = vadd.f32 %v8519, 1e-05
        %v8536 = vadd.f32 %v8520, 1e-05
        %v8537 = vadd.f32 %v8521, 1e-05
        %v8538 = vadd.f32 %v8522, 1e-05
        %v8539 = vrsqrt.pop %v8523
        %v8540 = vrsqrt.pop %v8524
        %v8541 = vrsqrt.pop %v8525
        %v8542 = vrsqrt.pop %v8526
        %v8543 = vrsqrt.pop %v8527
        %v8544 = vrsqrt.pop %v8528
        %v8545 = vrsqrt.pop %v8529
        %v8546 = vrsqrt.pop %v8530
        %v8547 = vrsqrt.pop %v8531
        %v8548 = vrsqrt.pop %v8532
        %v8549 = vrsqrt.pop %v8533
        %v8550 = vrsqrt.pop %v8534
        %v8551 = vrsqrt.pop %v8535
        %v8552 = vrsqrt.pop %v8536
        %v8553 = vrsqrt.pop %v8537
        %v8554 = vrsqrt.pop %v8538
        %v8555 = vmul.f32 %v8443, %v8539
        %v8556 = vmul.f32 %v8444, %v8540
        %v8557 = vmul.f32 %v8445, %v8541
        %v8558 = vmul.f32 %v8446, %v8542
        %v8559 = vmul.f32 %v8447, %v8543
        %v8560 = vmul.f32 %v8448, %v8544
        %v8561 = vmul.f32 %v8449, %v8545
        %v8562 = vmul.f32 %v8450, %v8546
        %v8563 = vmul.f32 %v8451, %v8547
        %v8564 = vmul.f32 %v8452, %v8548
        %v8565 = vmul.f32 %v8453, %v8549
        %v8566 = vmul.f32 %v8454, %v8550
        %v8567 = vmul.f32 %v8455, %v8551
        %v8568 = vmul.f32 %v8456, %v8552
        %v8569 = vmul.f32 %v8457, %v8553
        %v8570 = vmul.f32 %v8458, %v8554
        %v8572 = vlaneseq
        %v8573 = vshrl.u32 %v8572, 7
        %v8574 = vsub.s32 0, %v8573
        %v8575 = vrot.slane %v8393, %v8574
        %v8577 = vmul.f32 %v8555, %v8575
        %v8578 = vmul.f32 %v8556, %v8575
        %v8579 = vmul.f32 %v8557, %v8575
        %v8580 = vmul.f32 %v8558, %v8575
        %v8581 = vmul.f32 %v8559, %v8575
        %v8582 = vmul.f32 %v8560, %v8575
        %v8583 = vmul.f32 %v8561, %v8575
        %v8584 = vmul.f32 %v8562, %v8575
        %v8585 = vmul.f32 %v8563, %v8575
        %v8586 = vmul.f32 %v8564, %v8575
        %v8587 = vmul.f32 %v8565, %v8575
        %v8588 = vmul.f32 %v8566, %v8575
        %v8589 = vmul.f32 %v8567, %v8575
        %v8590 = vmul.f32 %v8568, %v8575
        %v8591 = vmul.f32 %v8569, %v8575
        %v8592 = vmul.f32 %v8570, %v8575
        %v8594 = vlaneseq
        %v8595 = vshrl.u32 %v8594, 7
        %v8596 = vsub.s32 0, %v8595
        %v8597 = vrot.slane %v8394, %v8596
        %v8599 = vadd.f32 %v8577, %v8597
        %v8600 = vadd.f32 %v8578, %v8597
        %v8601 = vadd.f32 %v8579, %v8597
        %v8602 = vadd.f32 %v8580, %v8597
        %v8603 = vadd.f32 %v8581, %v8597
        %v8604 = vadd.f32 %v8582, %v8597
        %v8605 = vadd.f32 %v8583, %v8597
        %v8606 = vadd.f32 %v8584, %v8597
        %v8607 = vadd.f32 %v8585, %v8597
        %v8608 = vadd.f32 %v8586, %v8597
        %v8609 = vadd.f32 %v8587, %v8597
        %v8610 = vadd.f32 %v8588, %v8597
        %v8611 = vadd.f32 %v8589, %v8597
        %v8612 = vadd.f32 %v8590, %v8597
        %v8613 = vadd.f32 %v8591, %v8597
        %v8614 = vadd.f32 %v8592, %v8597
        %8615 = vst [vmem:[%s629] sm:$0xff] %v8599
        %8616 = vst [vmem:[%s629 + $0x8] sm:$0xff] %v8600
        %8617 = vst [vmem:[%s629 + $0x10] sm:$0xff] %v8601
        %8618 = vst [vmem:[%s629 + $0x18] sm:$0xff] %v8602
        %8619 = vst [vmem:[%s629 + $0x20] sm:$0xff] %v8603
        %8620 = vst [vmem:[%s629 + $0x28] sm:$0xff] %v8604
        %8621 = vst [vmem:[%s629 + $0x30] sm:$0xff] %v8605
        %8622 = vst [vmem:[%s629 + $0x38] sm:$0xff] %v8606
        %8623 = vst [vmem:[%s629 + $0x40] sm:$0xff] %v8607
        %8624 = vst [vmem:[%s629 + $0x48] sm:$0xff] %v8608
        %8625 = vst [vmem:[%s629 + $0x50] sm:$0xff] %v8609
        %8626 = vst [vmem:[%s629 + $0x58] sm:$0xff] %v8610
        %8627 = vst [vmem:[%s629 + $0x60] sm:$0xff] %v8611
        %8628 = vst [vmem:[%s629 + $0x68] sm:$0xff] %v8612
        %8629 = vst [vmem:[%s629 + $0x70] sm:$0xff] %v8613
        %8630 = vst [vmem:[%s629 + $0x78] sm:$0xff] %v8614
        %s8631 = sand.u32 %s364, 1
        %s8632 = scalar_lea.sflag [#allocation4], %s8631
        %s8633 = sand.u32 %s364, 1
        %s8634 = smul.addr %s8633, 128
        %s8635 = scalar_lea.vmem [#allocation17], %s8634
        // Predicated region
        $region117: #{tpu_custom_call.1} parent=79 // pred_check
          %p8636 = pneg %p374
        $region118: #{tpu_custom_call.1} parent=79 // pred_check_branch
          %8638 = sbr.rel (%p8636) target = $region120
        $region119: #{tpu_custom_call.1} parent=79 // pred_region
          %s8639 = smul.u32 2, %s36
          %s8641 = ssub.s32 2048, 2048
          %8642 = vsyncadd %s8632, %s8641
          %s8643 = smul.addr %s8639, 8
          %s8644 = smul.addr %s8643, 128
          %s8645 = scalar_lea.hbm %s15, %s8644
          %s8646 = sshll.u32 %s8635, 4
          %s8647 = int_to_ptr.vmem [resolvable:$true] %s8646
          %8652 = dma.vmem_to_hbm [thread:$0]  %s8647, 2048, %s8645, %s8632, 128, 128, 8
        $region120: #{tpu_custom_call.1} parent=79 // pred_fallthru
          _
      $region80: #{tpu_custom_call.1} parent=5 // pred_fallthru
        _
      %p8653 = scmp.le.s32.totalorder 2, %s31
      // Predicated region
      $region121: #{tpu_custom_call.1} parent=5 // pred_check
        %p8654 = pneg %p8653
      $region122: #{tpu_custom_call.1} parent=5 // pred_check_branch
        %8656 = sbr.rel (%p8654) target = $region124
      $region123: #{tpu_custom_call.1} parent=5 // pred_region
        %s8657 = ssub.s32 %s31, 2
        // Predicated region
        $region125: #{tpu_custom_call.1} parent=123 // pred_check
          %p8658 = pneg %p380
        $region126: #{tpu_custom_call.1} parent=123 // pred_check_branch
          %8660 = sbr.rel (%p8658) target = $region128
        $region127: #{tpu_custom_call.1} parent=123 // pred_region
          %s8661 = sand.u32 %s365, 1
          %s8662 = scalar_lea.sflag [#allocation4], %s8661
          %s8663 = sand.u32 %s365, 1
          %s8664 = smul.addr %s8663, 128
          %s8665 = scalar_lea.vmem [#allocation17], %s8664
          %8666 = dma.done %s8662, 2048
        $region128: #{tpu_custom_call.1} parent=123 // pred_fallthru
          _
      $region124: #{tpu_custom_call.1} parent=5 // pred_fallthru
        _
    $region6: #{tpu_custom_call.1} parent=1 // loop_footer
      %s35 = sadd.s32 1, %s31
    $region7: #{tpu_custom_call.1} parent=1 // loop_footer_branch
      %30 = sbr.rel target = $region3
    $region8: #{tpu_custom_call.1} parent=1 // loop_exit
      _
    %8667 = vsyncpa [#allocation3], 1
    %s8668 = scalar_lea.sflag [#allocation3], 1
    %8669 = vsyncpa %s8668, 1
    %8670 = vsyncpa [#allocation6], 1
    %8671 = vsyncpa [#allocation9], 1
    %8672 = vsyncpa [#allocation12], 1
    %8673 = vsyncpa [#allocation15], 1
    %8674 = vsyncpa [#allocation4], 1
    %s8675 = scalar_lea.sflag [#allocation4], 1
    %8676 = vsyncpa %s8675, 1

</llo_original>
